<compile_context>
chip_gen: v7x
topology: tpu7x:2x2x1
jax: 0.10.0
libtpu: 0.0.40
codegen_flags: <defaults>
</compile_context>

<pallas_src>
import jax
import jax.numpy as jnp
import numpy as np
from jax import lax
from jax.experimental import pallas as pl
from jax.experimental.pallas import tpu as pltpu

N_ACTIONS = 9
N_TILE = 20
STATE_LEN = 4

# --- ConvNet geometry (fixed by the torch module) ----------------------------
C_IN = STATE_LEN            # conv1 input channels
O1, K1 = 8, 8               # conv1: Conv2d(4, 8, kernel_size=8, stride=2)
O2, K2 = 10, 4              # conv2: Conv2d(8, 10, kernel_size=4, stride=2)
H_IN = W_IN = 42            # 42 -> 18 -> 8 spatial, so the flatten is 640
H2 = W2 = 8                 # conv2 output spatial
HID = 512

# --- Kernel layout constants --------------------------------------------------
PH = 4                      # stride-4 phase factor (conv1 stride * conv2 stride)
PG = 11                     # per-phase grid size: ceil(44 / 4)
C_PAD = 8                   # conv1 in-channels zero-padded 4 -> 8
LS = 128                    # per-sample lane period inside a batch tile
TAIL = 128                  # zero tail so shifted slices never run out of bounds
R_ALL = PH * PH * C_PAD     # 128 input rows: (ph*4 + pw)*8 + c
B_TILE_MAX = 8              # samples per grid step for large batches
NQ_PAD = 128                # fc_q output padded to a lane-dense width
CONV_DTYPE = jnp.bfloat16   # MXU operand dtype for conv layers (f32 accumulation)
FC_DTYPE = jnp.bfloat16     # MXU operand dtype for fc_0 / fc_1 (f32 accumulation)


# ------------------------------------------------------------------------------
# Static tap bookkeeping for conv1.
#
# conv1 output position (2i+qh, 2j+qw) (i,j in [0,9)) at tap (kh, kw) reads the
# input phase (ph, pw) = ((2qh+kh)%4, (2qw+kw)%4) at lane (i*11+j) + oh*11+ow
# where (oh, ow) = ((2qh+kh)//4, (2qw+kw)//4).  Only ~100 distinct
# (input-phase, lane-shift) slices exist across all 4 output phases x 64 taps;
# they are materialized once into a stacked (100*8, N) operand and the four
# output phases are produced together by one (32, 800) matmul whose weight has
# zeros wherever an output phase does not use a group.
# ------------------------------------------------------------------------------
def _conv1_groups():
    groups, gidx = [], {}
    for qh in range(2):
        for kh in range(K1):
            rh = 2 * qh + kh
            for qw in range(2):
                for kw in range(K1):
                    rw = 2 * qw + kw
                    key = (rh % PH, rh // PH, rw % PH, rw // PH)
                    if key not in gidx:
                        gidx[key] = len(groups)
                        groups.append((key[0], key[2], key[1] * PG + key[3]))
    return groups, gidx


_CONV1_GROUPS, _CONV1_GIDX = _conv1_groups()
G1 = len(_CONV1_GROUPS)     # 100


def _conv1_weight_index():
    """idx[row, col] = flat index into w_c1 (O1, C_IN, K1, K1), or -1 for zero.

    Row = (qh*2+qw)*O1 + o (conv1 output phase & channel); col = g*C_PAD + c.
    """
    idx = np.full((4 * O1, G1 * C_PAD), -1, np.int32)
    for qh in range(2):
        for qw in range(2):
            row0 = (qh * 2 + qw) * O1
            for kh in range(K1):
                rh = 2 * qh + kh
                for kw in range(K1):
                    rw = 2 * qw + kw
                    g = _CONV1_GIDX[(rh % PH, rh // PH, rw % PH, rw // PH)]
                    for o in range(O1):
                        for c in range(C_IN):
                            idx[row0 + o, g * C_PAD + c] = (
                                ((o * C_IN + c) * K1 + kh) * K1 + kw)
    return idx


# ------------------------------------------------------------------------------
# The fused kernel: one grid step = `bt` samples, lane-concatenated.
# ------------------------------------------------------------------------------
def _make_kernel(bt):
    nw = bt * LS            # matmul N width (all samples of the tile at once)

    def kernel(xp_ref, w1_ref, b1_ref, w2_ref, b2_ref,
               w0_ref, b0_ref, wf1_ref, bf1_ref, wq_ref, bq_ref,
               o_ref, xs1, h1, xs2, f2):
        f32 = jnp.float32

        # ---- conv1: build the stacked shifted-slice operand (each distinct
        # (input-phase, shift) slice copied once, reused by all output phases).
        for g, (ph, pw, sh) in enumerate(_CONV1_GROUPS):
            r0 = (ph * PH + pw) * C_PAD
            xs1[pl.ds(g * C_PAD, C_PAD), :] = (
                xp_ref[0, pl.ds(r0, C_PAD), pl.ds(sh, nw)].astype(f32))

        # One deep-K MXU matmul produces all four conv1 output phases at once.
        a1 = jnp.dot(w1_ref[...], xs1[...].astype(CONV_DTYPE),
                     preferred_element_type=f32)
        h1[:, pl.ds(0, nw)] = jnp.maximum(a1 + b1_ref[...], 0.0)
        # Zero the tail so conv2's shifted slices never read uninitialized VMEM.
        h1[:, pl.ds(nw, TAIL)] = jnp.zeros((4 * O1, TAIL), f32)

        # ---- conv2: stack its 16 taps into a (128, nw) operand, one matmul.
        for kh2 in range(K2):
            ph2, dh2 = kh2 % 2, kh2 // 2
            for kw2 in range(K2):
                pw2, dw2 = kw2 % 2, kw2 // 2
                t = kh2 * K2 + kw2
                p2 = ph2 * 2 + pw2
                sh2 = dh2 * PG + dw2                       # in {0, 1, 11, 12}
                xs2[pl.ds(t * O1, O1), :] = h1[pl.ds(p2 * O1, O1),
                                               pl.ds(sh2, nw)]
        a2 = jnp.dot(w2_ref[...], xs2[...].astype(CONV_DTYPE),
                     preferred_element_type=f32)
        feat = jnp.maximum(a2 + b2_ref[...], 0.0)          # (O2, nw) float32

        # ---- relayout (channel, sample*128+f) -> (sample, channel*128+f) so
        # fc_0 is a single (bt, 1280) @ (1280, 512) matmul (aligned 128-lane
        # window copies; garbage lanes hit exact-zero rows of w0).
        for s in range(bt):
            for c in range(O2):
                f2[pl.ds(s, 1), pl.ds(c * LS, LS)] = (
                    feat[c:c + 1, s * LS:(s + 1) * LS])

        # ---- fused MLP head (weights stay resident in VMEM across steps).
        h = jnp.dot(f2[...].astype(FC_DTYPE), w0_ref[...],
                    preferred_element_type=f32)
        h = jnp.maximum(h + b0_ref[...], 0.0)
        h = jnp.dot(h.astype(FC_DTYPE), wf1_ref[...],
                    preferred_element_type=f32)
        h = jnp.maximum(h + bf1_ref[...], 0.0)
        q = jnp.dot(h, wq_ref[...], preferred_element_type=f32)   # f32 Q head
        o_ref[0] = q + bq_ref[...]

    return kernel


def _convnet_call(xp, pp, bt):
    nt = xp.shape[0]
    nw = bt * LS
    lw = nw + TAIL
    const = lambda t: (0, 0)
    return pl.pallas_call(
        _make_kernel(bt),
        out_shape=jax.ShapeDtypeStruct((nt, bt, NQ_PAD), jnp.float32),
        grid=(nt,),
        in_specs=[
            pl.BlockSpec((1, R_ALL, lw), lambda t: (t, 0, 0)),
            pl.BlockSpec((4 * O1, G1 * C_PAD), const),
            pl.BlockSpec((4 * O1, 1), const),
            pl.BlockSpec((O2, K2 * K2 * O1), const),
            pl.BlockSpec((O2, 1), const),
            pl.BlockSpec((O2 * LS, HID), const),
            pl.BlockSpec((1, HID), const),
            pl.BlockSpec((HID, HID), const),
            pl.BlockSpec((1, HID), const),
            pl.BlockSpec((HID, NQ_PAD), const),
            pl.BlockSpec((1, NQ_PAD), const),
        ],
        out_specs=pl.BlockSpec((1, bt, NQ_PAD), lambda t: (t, 0, 0)),
        scratch_shapes=[
            pltpu.VMEM((G1 * C_PAD, nw), jnp.float32),    # conv1 stacked operand
            pltpu.VMEM((4 * O1, lw), jnp.float32),        # conv1 output (phase slabs)
            pltpu.VMEM((K2 * K2 * O1, nw), jnp.float32),  # conv2 stacked operand
            pltpu.VMEM((bt, O2 * LS), jnp.float32),       # per-sample flat features
        ],
        compiler_params=pltpu.CompilerParams(
            dimension_semantics=("parallel",),            # megacore batch split
            vmem_limit_bytes=32 * 1024 * 1024,
        ),
    )(xp, pp["w1"], pp["b1"], pp["w2"], pp["b2"], pp["w0"], pp["b0"],
      pp["wf1"], pp["bf1"], pp["wq"], pp["bq"])


# ------------------------------------------------------------------------------
# One-time parameter preparation (all transposes / stacking / padding and the
# 1/255 fold happen here, never per forward).
# ------------------------------------------------------------------------------
def prepare_params(p):
    f32 = jnp.float32
    # conv1: fold x/255 into the weights and scatter into the stacked layout;
    # positions without a real tap / padded input channels are exact zeros.
    idx = jnp.asarray(_conv1_weight_index())
    w1flat = (p["w_c1"].astype(f32) / 255.0).reshape(-1)
    w1s = jnp.where(idx >= 0, w1flat[jnp.clip(idx, 0)], 0.0).astype(CONV_DTYPE)
    b1s = jnp.tile(p["b_c1"].astype(f32).reshape(O1, 1), (4, 1))      # (32, 1)

    # conv2: (O2, O1, K2, K2) -> (O2, 16*O1), tap index t = kh2*K2 + kw2.
    w2 = jnp.transpose(p["w_c2"].astype(f32), (2, 3, 0, 1))           # (K2,K2,O2,O1)
    w2s = jnp.transpose(w2.reshape(K2 * K2, O2, O1), (1, 0, 2)).reshape(
        O2, K2 * K2 * O1).astype(CONV_DTYPE)
    b2s = p["b_c2"].astype(f32).reshape(O2, 1)

    # fc_0: torch weight (512, 640), flatten order n = c*64 + R2*8 + C2; the
    # kernel's per-sample feature row index is c*128 + (R2*11 + C2); every
    # other row is exactly zero so garbage feature lanes contribute nothing.
    w0 = p["w_fc0"].astype(f32).T.reshape(O2, H2, W2, HID)            # (10,8,8,512)
    cols = (jnp.arange(H2)[:, None] * PG + jnp.arange(W2)[None, :]).reshape(-1)
    w0p = (jnp.zeros((O2, LS, HID), f32)
           .at[:, cols, :].set(w0.reshape(O2, H2 * W2, HID))
           .reshape(O2 * LS, HID).astype(FC_DTYPE))
    b0p = p["b_fc0"].astype(f32).reshape(1, HID)

    wf1 = p["w_fc1"].astype(f32).T.astype(FC_DTYPE)                   # (512, 512)
    bf1 = p["b_fc1"].astype(f32).reshape(1, HID)

    # Q head stays in float32 (tiny; protects argmax over near-tied actions).
    wqp = jnp.zeros((HID, NQ_PAD), f32).at[:, :N_ACTIONS].set(
        p["w_fcq"].astype(f32).T)
    bqp = jnp.zeros((1, NQ_PAD), f32).at[:, :N_ACTIONS].set(
        p["b_fcq"].astype(f32).reshape(1, N_ACTIONS))

    return {"w1": w1s, "b1": b1s, "w2": w2s, "b2": b2s,
            "w0": w0p, "b0": b0p, "wf1": wf1, "bf1": bf1,
            "wq": wqp, "bq": bqp}


def _phase_split(x, nt, bt):
    """(B, C, 42, 42) NCHW -> (nt, 128, bt*128 + 128) bf16.

    Row (ph*4 + pw)*8 + c, lane s*128 + (u*11 + v) holds
    x[t*bt + s, c, 4u + ph, 4v + pw] (zero padded).  Pure layout plumbing on
    the tiny input (no gathers, no patch expansion); emitted in bf16 to halve
    the kernel's dominant HBM stream.
    """
    b_pad, C, H, W = x.shape
    full = PH * PG                                        # 44
    x = jnp.pad(x, ((0, 0), (0, C_PAD - C), (0, full - H), (0, full - W)))
    x = x.reshape(b_pad, C_PAD, PG, PH, PG, PH)
    x = x.transpose(0, 3, 5, 1, 2, 4)                     # (B, ph, pw, c, u, v)
    x = x.reshape(b_pad, R_ALL, PG * PG)
    x = jnp.pad(x, ((0, 0), (0, 0), (0, LS - PG * PG)))
    x = x.reshape(nt, bt, R_ALL, LS)
    x = x.transpose(0, 2, 1, 3).reshape(nt, R_ALL, bt * LS)
    x = jnp.pad(x, ((0, 0), (0, 0), (0, TAIL)))
    return x.astype(CONV_DTYPE)


def _pick_batch_tile(B):
    """>= 2 grid steps whenever B >= 2 (keeps both v7x TensorCores busy)."""
    if B >= 2 * B_TILE_MAX:
        return B_TILE_MAX
    return max(1, min(B_TILE_MAX, -(-B // 2)))


# ------------------------------------------------------------------------------
# Forward pass (mirrors ConvNet.forward), one Pallas launch total.
# ------------------------------------------------------------------------------
def convnet_forward(prepped, x, state):
    # `state` is reshaped & tiled in the torch forward but never used afterwards
    # (dead value) — nothing to compute.
    del state
    B = x.shape[0]
    bt = _pick_batch_tile(B)
    nt = -(-B // bt)
    b_pad = nt * bt
    x = x.astype(jnp.float32)
    if b_pad != B:
        x = jnp.pad(x, ((0, b_pad - B), (0, 0), (0, 0), (0, 0)))
    xp = _phase_split(x, nt, bt)
    q = _convnet_call(xp, prepped, bt)                    # (nt, bt, NQ_PAD)
    return q.reshape(b_pad, NQ_PAD)[:B, :N_ACTIONS]


# ------------------------------------------------------------------------------
# Deterministic parameter init (matches the torch recipe: xavier_normal for
# conv weights, kaiming_normal for linear weights, zero biases).
# ------------------------------------------------------------------------------
def init_params(key):
    k_c1, k_c2, k_f0, k_f1, k_fq = jax.random.split(key, 5)

    def xavier_normal(k, shape):                 # conv weight (O, C, kh, kw)
        fan_in = shape[1] * shape[2] * shape[3]
        fan_out = shape[0] * shape[2] * shape[3]
        std = (2.0 / (fan_in + fan_out)) ** 0.5
        return std * jax.random.normal(k, shape, jnp.float32)

    def kaiming_normal(k, shape):                # linear weight (out, in), fan_in
        std = (2.0 / shape[1]) ** 0.5
        return std * jax.random.normal(k, shape, jnp.float32)

    return {
        "w_c1": xavier_normal(k_c1, (O1, C_IN, K1, K1)),
        "b_c1": jnp.zeros((O1,), jnp.float32),
        "w_c2": xavier_normal(k_c2, (O2, O1, K2, K2)),
        "b_c2": jnp.zeros((O2,), jnp.float32),
        "w_fc0": kaiming_normal(k_f0, (HID, H2 * W2 * O2)),
        "b_fc0": jnp.zeros((HID,), jnp.float32),
        "w_fc1": kaiming_normal(k_f1, (HID, HID)),
        "b_fc1": jnp.zeros((HID,), jnp.float32),
        "w_fcq": kaiming_normal(k_fq, (N_ACTIONS, HID)),
        "b_fcq": jnp.zeros((N_ACTIONS,), jnp.float32),
    }


def _reference_forward(p, x):
    """Pure-JAX/XLA reference (torch semantics, f32) for a correctness check."""
    dn = ("NCHW", "OIHW", "NCHW")
    h = lax.conv_general_dilated(x / 255.0, p["w_c1"], (2, 2), "VALID",
                                 dimension_numbers=dn)
    h = jax.nn.relu(h + p["b_c1"][None, :, None, None])
    h = lax.conv_general_dilated(h, p["w_c2"], (2, 2), "VALID",
                                 dimension_numbers=dn)
    h = jax.nn.relu(h + p["b_c2"][None, :, None, None])
    h = h.reshape(x.shape[0], -1)
    h = jax.nn.relu(h @ p["w_fc0"].T + p["b_fc0"])
    h = jax.nn.relu(h @ p["w_fc1"].T + p["b_fc1"])
    return h @ p["w_fcq"].T + p["b_fcq"]


if __name__ == "__main__":
    key = jax.random.PRNGKey(0)
    k_params, k_x, k_state = jax.random.split(key, 3)

    params = init_params(k_params)
    prepped = prepare_params(params)

    B = 2
    # x must be (B, 4, 42, 42) so the conv output is 10x8x8 = 640, as fc_0 requires.
    x = jax.random.uniform(k_x, (B, STATE_LEN, H_IN, W_IN), jnp.float32, 0.0, 255.0)
    state = jax.random.normal(k_state, (B, STATE_LEN), jnp.float32)

    q = jax.jit(convnet_forward)(prepped, x, state)
    jax.block_until_ready(q)
    assert q.shape == (B, N_ACTIONS) and q.dtype == jnp.float32

    # Correctness vs. a plain-XLA f32 reference (tolerance covers the bf16
    # operand storage; all accumulation is f32 and the Q head is f32).
    q_ref = _reference_forward(params, x)
    max_err = float(jnp.max(jnp.abs(q - q_ref)))
    assert max_err < 7.5e-2, f"mismatch vs reference: max |diff| = {max_err}"

    print("KERNEL_OK")
</pallas_src>

<mosaic_0001>
module attributes {stable_mosaic.version = 11 : i64} {
  func.func @kernel(%arg0: i32, %arg1: memref<1x128x256xbf16, #tpu.memory_space<vmem>>, %arg2: memref<32x800xbf16, #tpu.memory_space<vmem>>, %arg3: memref<32x1xf32, #tpu.memory_space<vmem>>, %arg4: memref<10x128xbf16, #tpu.memory_space<vmem>>, %arg5: memref<10x1xf32, #tpu.memory_space<vmem>>, %arg6: memref<1280x512xbf16, #tpu.memory_space<vmem>>, %arg7: memref<1x512xf32, #tpu.memory_space<vmem>>, %arg8: memref<512x512xbf16, #tpu.memory_space<vmem>>, %arg9: memref<1x512xf32, #tpu.memory_space<vmem>>, %arg10: memref<512x128xf32, #tpu.memory_space<vmem>>, %arg11: memref<1x128xf32, #tpu.memory_space<vmem>>, %arg12: memref<1x1x128xf32, #tpu.memory_space<vmem>>, %arg13: memref<800x128xf32, #tpu.memory_space<vmem>>, %arg14: memref<32x256xf32, #tpu.memory_space<vmem>>, %arg15: memref<128x128xf32, #tpu.memory_space<vmem>>, %arg16: memref<1x1280xf32, #tpu.memory_space<vmem>>) attributes {dimension_semantics = [#tpu.dimension_semantics<parallel>], iteration_bounds = array<i64: 2>, scalar_prefetch = 0 : i64, scratch_operands = 4 : i64, tpu.core_type = #tpu.core_type<tc>, window_params = [{transform_indices = @transform_0, window_bounds = array<i64: 1, 128, 256>}, {pipeline_mode = #tpu.pipeline_mode<synchronous>, transform_indices = @transform_1, window_bounds = array<i64: 32, 800>}, {pipeline_mode = #tpu.pipeline_mode<synchronous>, transform_indices = @transform_2, window_bounds = array<i64: 32, 1>}, {pipeline_mode = #tpu.pipeline_mode<synchronous>, transform_indices = @transform_3, window_bounds = array<i64: 10, 128>}, {pipeline_mode = #tpu.pipeline_mode<synchronous>, transform_indices = @transform_4, window_bounds = array<i64: 10, 1>}, {pipeline_mode = #tpu.pipeline_mode<synchronous>, transform_indices = @transform_5, window_bounds = array<i64: 1280, 512>}, {pipeline_mode = #tpu.pipeline_mode<synchronous>, transform_indices = @transform_6, window_bounds = array<i64: 1, 512>}, {pipeline_mode = #tpu.pipeline_mode<synchronous>, transform_indices = @transform_7, window_bounds = array<i64: 512, 512>}, {pipeline_mode = #tpu.pipeline_mode<synchronous>, transform_indices = @transform_8, window_bounds = array<i64: 1, 512>}, {pipeline_mode = #tpu.pipeline_mode<synchronous>, transform_indices = @transform_9, window_bounds = array<i64: 512, 128>}, {pipeline_mode = #tpu.pipeline_mode<synchronous>, transform_indices = @transform_10, window_bounds = array<i64: 1, 128>}, {transform_indices = @transform_11, window_bounds = array<i64: 1, 1, 128>}]} {
    %c0 = arith.constant 0 : index
    %c0_0 = arith.constant 0 : index
    %c0_1 = arith.constant 0 : index
    %0 = vector.load %arg1[%c0, %c0_0, %c0_1] : memref<1x128x256xbf16, #tpu.memory_space<vmem>>, vector<1x8x128xbf16>
    %1 = vector.shape_cast %0 : vector<1x8x128xbf16> to vector<8x128xbf16>
    %2 = arith.extf %1 : vector<8x128xbf16> to vector<8x128xf32>
    %c0_2 = arith.constant 0 : index
    %c0_3 = arith.constant 0 : index
    %3 = vector.load %arg13[%c0_2, %c0_3] : memref<800x128xf32, #tpu.memory_space<vmem>>, vector<8x128xf32>
    tpu.vector_store %arg13[%c0_2, %c0_3], %2 {strides = array<i32>} : memref<800x128xf32, #tpu.memory_space<vmem>>, vector<8x128xf32>,
    %c0_4 = arith.constant 0 : index
    %c8 = arith.constant 8 : index
    %c0_5 = arith.constant 0 : index
    %4 = vector.load %arg1[%c0_4, %c8, %c0_5] : memref<1x128x256xbf16, #tpu.memory_space<vmem>>, vector<1x8x128xbf16>
    %5 = vector.shape_cast %4 : vector<1x8x128xbf16> to vector<8x128xbf16>
    %6 = arith.extf %5 : vector<8x128xbf16> to vector<8x128xf32>
    %c8_6 = arith.constant 8 : index
    %c0_7 = arith.constant 0 : index
    %7 = vector.load %arg13[%c8_6, %c0_7] : memref<800x128xf32, #tpu.memory_space<vmem>>, vector<8x128xf32>
    tpu.vector_store %arg13[%c8_6, %c0_7], %6 {strides = array<i32>} : memref<800x128xf32, #tpu.memory_space<vmem>>, vector<8x128xf32>,
    %c0_8 = arith.constant 0 : index
    %c16 = arith.constant 16 : index
    %c0_9 = arith.constant 0 : index
    %8 = vector.load %arg1[%c0_8, %c16, %c0_9] : memref<1x128x256xbf16, #tpu.memory_space<vmem>>, vector<1x8x128xbf16>
    %9 = vector.shape_cast %8 : vector<1x8x128xbf16> to vector<8x128xbf16>
    %10 = arith.extf %9 : vector<8x128xbf16> to vector<8x128xf32>
    %c16_10 = arith.constant 16 : index
    %c0_11 = arith.constant 0 : index
    %11 = vector.load %arg13[%c16_10, %c0_11] : memref<800x128xf32, #tpu.memory_space<vmem>>, vector<8x128xf32>
    tpu.vector_store %arg13[%c16_10, %c0_11], %10 {strides = array<i32>} : memref<800x128xf32, #tpu.memory_space<vmem>>, vector<8x128xf32>,
    %c0_12 = arith.constant 0 : index
    %c24 = arith.constant 24 : index
    %c0_13 = arith.constant 0 : index
    %12 = vector.load %arg1[%c0_12, %c24, %c0_13] : memref<1x128x256xbf16, #tpu.memory_space<vmem>>, vector<1x8x128xbf16>
    %13 = vector.shape_cast %12 : vector<1x8x128xbf16> to vector<8x128xbf16>
    %14 = arith.extf %13 : vector<8x128xbf16> to vector<8x128xf32>
    %c24_14 = arith.constant 24 : index
    %c0_15 = arith.constant 0 : index
    %15 = vector.load %arg13[%c24_14, %c0_15] : memref<800x128xf32, #tpu.memory_space<vmem>>, vector<8x128xf32>
    tpu.vector_store %arg13[%c24_14, %c0_15], %14 {strides = array<i32>} : memref<800x128xf32, #tpu.memory_space<vmem>>, vector<8x128xf32>,
    %c0_16 = arith.constant 0 : index
    %c0_17 = arith.constant 0 : index
    %c1 = arith.constant 1 : index
    %16 = vector.load %arg1[%c0_16, %c0_17, %c1] : memref<1x128x256xbf16, #tpu.memory_space<vmem>>, vector<1x8x128xbf16>
    %17 = vector.shape_cast %16 : vector<1x8x128xbf16> to vector<8x128xbf16>
    %18 = arith.extf %17 : vector<8x128xbf16> to vector<8x128xf32>
    %c32 = arith.constant 32 : index
    %c0_18 = arith.constant 0 : index
    %19 = vector.load %arg13[%c32, %c0_18] : memref<800x128xf32, #tpu.memory_space<vmem>>, vector<8x128xf32>
    tpu.vector_store %arg13[%c32, %c0_18], %18 {strides = array<i32>} : memref<800x128xf32, #tpu.memory_space<vmem>>, vector<8x128xf32>,
    %c0_19 = arith.constant 0 : index
    %c8_20 = arith.constant 8 : index
    %c1_21 = arith.constant 1 : index
    %20 = vector.load %arg1[%c0_19, %c8_20, %c1_21] : memref<1x128x256xbf16, #tpu.memory_space<vmem>>, vector<1x8x128xbf16>
    %21 = vector.shape_cast %20 : vector<1x8x128xbf16> to vector<8x128xbf16>
    %22 = arith.extf %21 : vector<8x128xbf16> to vector<8x128xf32>
    %c40 = arith.constant 40 : index
    %c0_22 = arith.constant 0 : index
    %23 = vector.load %arg13[%c40, %c0_22] : memref<800x128xf32, #tpu.memory_space<vmem>>, vector<8x128xf32>
    tpu.vector_store %arg13[%c40, %c0_22], %22 {strides = array<i32>} : memref<800x128xf32, #tpu.memory_space<vmem>>, vector<8x128xf32>,
    %c0_23 = arith.constant 0 : index
    %c16_24 = arith.constant 16 : index
    %c1_25 = arith.constant 1 : index
    %24 = vector.load %arg1[%c0_23, %c16_24, %c1_25] : memref<1x128x256xbf16, #tpu.memory_space<vmem>>, vector<1x8x128xbf16>
    %25 = vector.shape_cast %24 : vector<1x8x128xbf16> to vector<8x128xbf16>
    %26 = arith.extf %25 : vector<8x128xbf16> to vector<8x128xf32>
    %c48 = arith.constant 48 : index
    %c0_26 = arith.constant 0 : index
    %27 = vector.load %arg13[%c48, %c0_26] : memref<800x128xf32, #tpu.memory_space<vmem>>, vector<8x128xf32>
    tpu.vector_store %arg13[%c48, %c0_26], %26 {strides = array<i32>} : memref<800x128xf32, #tpu.memory_space<vmem>>, vector<8x128xf32>,
    %c0_27 = arith.constant 0 : index
    %c24_28 = arith.constant 24 : index
    %c1_29 = arith.constant 1 : index
    %28 = vector.load %arg1[%c0_27, %c24_28, %c1_29] : memref<1x128x256xbf16, #tpu.memory_space<vmem>>, vector<1x8x128xbf16>
    %29 = vector.shape_cast %28 : vector<1x8x128xbf16> to vector<8x128xbf16>
    %30 = arith.extf %29 : vector<8x128xbf16> to vector<8x128xf32>
    %c56 = arith.constant 56 : index
    %c0_30 = arith.constant 0 : index
    %31 = vector.load %arg13[%c56, %c0_30] : memref<800x128xf32, #tpu.memory_space<vmem>>, vector<8x128xf32>
    tpu.vector_store %arg13[%c56, %c0_30], %30 {strides = array<i32>} : memref<800x128xf32, #tpu.memory_space<vmem>>, vector<8x128xf32>,
    %c0_31 = arith.constant 0 : index
    %c0_32 = arith.constant 0 : index
    %c2 = arith.constant 2 : index
    %32 = vector.load %arg1[%c0_31, %c0_32, %c2] : memref<1x128x256xbf16, #tpu.memory_space<vmem>>, vector<1x8x128xbf16>
    %33 = vector.shape_cast %32 : vector<1x8x128xbf16> to vector<8x128xbf16>
    %34 = arith.extf %33 : vector<8x128xbf16> to vector<8x128xf32>
    %c64 = arith.constant 64 : index
    %c0_33 = arith.constant 0 : index
    %35 = vector.load %arg13[%c64, %c0_33] : memref<800x128xf32, #tpu.memory_space<vmem>>, vector<8x128xf32>
    tpu.vector_store %arg13[%c64, %c0_33], %34 {strides = array<i32>} : memref<800x128xf32, #tpu.memory_space<vmem>>, vector<8x128xf32>,
    %c0_34 = arith.constant 0 : index
    %c8_35 = arith.constant 8 : index
    %c2_36 = arith.constant 2 : index
    %36 = vector.load %arg1[%c0_34, %c8_35, %c2_36] : memref<1x128x256xbf16, #tpu.memory_space<vmem>>, vector<1x8x128xbf16>
    %37 = vector.shape_cast %36 : vector<1x8x128xbf16> to vector<8x128xbf16>
    %38 = arith.extf %37 : vector<8x128xbf16> to vector<8x128xf32>
    %c72 = arith.constant 72 : index
    %c0_37 = arith.constant 0 : index
    %39 = vector.load %arg13[%c72, %c0_37] : memref<800x128xf32, #tpu.memory_space<vmem>>, vector<8x128xf32>
    tpu.vector_store %arg13[%c72, %c0_37], %38 {strides = array<i32>} : memref<800x128xf32, #tpu.memory_space<vmem>>, vector<8x128xf32>,
    %c0_38 = arith.constant 0 : index
    %c32_39 = arith.constant 32 : index
    %c0_40 = arith.constant 0 : index
    %40 = vector.load %arg1[%c0_38, %c32_39, %c0_40] : memref<1x128x256xbf16, #tpu.memory_space<vmem>>, vector<1x8x128xbf16>
    %41 = vector.shape_cast %40 : vector<1x8x128xbf16> to vector<8x128xbf16>
    %42 = arith.extf %41 : vector<8x128xbf16> to vector<8x128xf32>
    %c80 = arith.constant 80 : index
    %c0_41 = arith.constant 0 : index
    %43 = vector.load %arg13[%c80, %c0_41] : memref<800x128xf32, #tpu.memory_space<vmem>>, vector<8x128xf32>
    tpu.vector_store %arg13[%c80, %c0_41], %42 {strides = array<i32>} : memref<800x128xf32, #tpu.memory_space<vmem>>, vector<8x128xf32>,
    %c0_42 = arith.constant 0 : index
    %c40_43 = arith.constant 40 : index
    %c0_44 = arith.constant 0 : index
    %44 = vector.load %arg1[%c0_42, %c40_43, %c0_44] : memref<1x128x256xbf16, #tpu.memory_space<vmem>>, vector<1x8x128xbf16>
    %45 = vector.shape_cast %44 : vector<1x8x128xbf16> to vector<8x128xbf16>
    %46 = arith.extf %45 : vector<8x128xbf16> to vector<8x128xf32>
    %c88 = arith.constant 88 : index
    %c0_45 = arith.constant 0 : index
    %47 = vector.load %arg13[%c88, %c0_45] : memref<800x128xf32, #tpu.memory_space<vmem>>, vector<8x128xf32>
    tpu.vector_store %arg13[%c88, %c0_45], %46 {strides = array<i32>} : memref<800x128xf32, #tpu.memory_space<vmem>>, vector<8x128xf32>,
    %c0_46 = arith.constant 0 : index
    %c48_47 = arith.constant 48 : index
    %c0_48 = arith.constant 0 : index
    %48 = vector.load %arg1[%c0_46, %c48_47, %c0_48] : memref<1x128x256xbf16, #tpu.memory_space<vmem>>, vector<1x8x128xbf16>
    %49 = vector.shape_cast %48 : vector<1x8x128xbf16> to vector<8x128xbf16>
    %50 = arith.extf %49 : vector<8x128xbf16> to vector<8x128xf32>
    %c96 = arith.constant 96 : index
    %c0_49 = arith.constant 0 : index
    %51 = vector.load %arg13[%c96, %c0_49] : memref<800x128xf32, #tpu.memory_space<vmem>>, vector<8x128xf32>
    tpu.vector_store %arg13[%c96, %c0_49], %50 {strides = array<i32>} : memref<800x128xf32, #tpu.memory_space<vmem>>, vector<8x128xf32>,
    %c0_50 = arith.constant 0 : index
    %c56_51 = arith.constant 56 : index
    %c0_52 = arith.constant 0 : index
    %52 = vector.load %arg1[%c0_50, %c56_51, %c0_52] : memref<1x128x256xbf16, #tpu.memory_space<vmem>>, vector<1x8x128xbf16>
    %53 = vector.shape_cast %52 : vector<1x8x128xbf16> to vector<8x128xbf16>
    %54 = arith.extf %53 : vector<8x128xbf16> to vector<8x128xf32>
    %c104 = arith.constant 104 : index
    %c0_53 = arith.constant 0 : index
    %55 = vector.load %arg13[%c104, %c0_53] : memref<800x128xf32, #tpu.memory_space<vmem>>, vector<8x128xf32>
    tpu.vector_store %arg13[%c104, %c0_53], %54 {strides = array<i32>} : memref<800x128xf32, #tpu.memory_space<vmem>>, vector<8x128xf32>,
    %c0_54 = arith.constant 0 : index
    %c32_55 = arith.constant 32 : index
    %c1_56 = arith.constant 1 : index
    %56 = vector.load %arg1[%c0_54, %c32_55, %c1_56] : memref<1x128x256xbf16, #tpu.memory_space<vmem>>, vector<1x8x128xbf16>
    %57 = vector.shape_cast %56 : vector<1x8x128xbf16> to vector<8x128xbf16>
    %58 = arith.extf %57 : vector<8x128xbf16> to vector<8x128xf32>
    %c112 = arith.constant 112 : index
    %c0_57 = arith.constant 0 : index
    %59 = vector.load %arg13[%c112, %c0_57] : memref<800x128xf32, #tpu.memory_space<vmem>>, vector<8x128xf32>
    tpu.vector_store %arg13[%c112, %c0_57], %58 {strides = array<i32>} : memref<800x128xf32, #tpu.memory_space<vmem>>, vector<8x128xf32>,
    %c0_58 = arith.constant 0 : index
    %c40_59 = arith.constant 40 : index
    %c1_60 = arith.constant 1 : index
    %60 = vector.load %arg1[%c0_58, %c40_59, %c1_60] : memref<1x128x256xbf16, #tpu.memory_space<vmem>>, vector<1x8x128xbf16>
    %61 = vector.shape_cast %60 : vector<1x8x128xbf16> to vector<8x128xbf16>
    %62 = arith.extf %61 : vector<8x128xbf16> to vector<8x128xf32>
    %c120 = arith.constant 120 : index
    %c0_61 = arith.constant 0 : index
    %63 = vector.load %arg13[%c120, %c0_61] : memref<800x128xf32, #tpu.memory_space<vmem>>, vector<8x128xf32>
    tpu.vector_store %arg13[%c120, %c0_61], %62 {strides = array<i32>} : memref<800x128xf32, #tpu.memory_space<vmem>>, vector<8x128xf32>,
    %c0_62 = arith.constant 0 : index
    %c48_63 = arith.constant 48 : index
    %c1_64 = arith.constant 1 : index
    %64 = vector.load %arg1[%c0_62, %c48_63, %c1_64] : memref<1x128x256xbf16, #tpu.memory_space<vmem>>, vector<1x8x128xbf16>
    %65 = vector.shape_cast %64 : vector<1x8x128xbf16> to vector<8x128xbf16>
    %66 = arith.extf %65 : vector<8x128xbf16> to vector<8x128xf32>
    %c128 = arith.constant 128 : index
    %c0_65 = arith.constant 0 : index
    %67 = vector.load %arg13[%c128, %c0_65] : memref<800x128xf32, #tpu.memory_space<vmem>>, vector<8x128xf32>
    tpu.vector_store %arg13[%c128, %c0_65], %66 {strides = array<i32>} : memref<800x128xf32, #tpu.memory_space<vmem>>, vector<8x128xf32>,
    %c0_66 = arith.constant 0 : index
    %c56_67 = arith.constant 56 : index
    %c1_68 = arith.constant 1 : index
    %68 = vector.load %arg1[%c0_66, %c56_67, %c1_68] : memref<1x128x256xbf16, #tpu.memory_space<vmem>>, vector<1x8x128xbf16>
    %69 = vector.shape_cast %68 : vector<1x8x128xbf16> to vector<8x128xbf16>
    %70 = arith.extf %69 : vector<8x128xbf16> to vector<8x128xf32>
    %c136 = arith.constant 136 : index
    %c0_69 = arith.constant 0 : index
    %71 = vector.load %arg13[%c136, %c0_69] : memref<800x128xf32, #tpu.memory_space<vmem>>, vector<8x128xf32>
    tpu.vector_store %arg13[%c136, %c0_69], %70 {strides = array<i32>} : memref<800x128xf32, #tpu.memory_space<vmem>>, vector<8x128xf32>,
    %c0_70 = arith.constant 0 : index
    %c32_71 = arith.constant 32 : index
    %c2_72 = arith.constant 2 : index
    %72 = vector.load %arg1[%c0_70, %c32_71, %c2_72] : memref<1x128x256xbf16, #tpu.memory_space<vmem>>, vector<1x8x128xbf16>
    %73 = vector.shape_cast %72 : vector<1x8x128xbf16> to vector<8x128xbf16>
    %74 = arith.extf %73 : vector<8x128xbf16> to vector<8x128xf32>
    %c144 = arith.constant 144 : index
    %c0_73 = arith.constant 0 : index
    %75 = vector.load %arg13[%c144, %c0_73] : memref<800x128xf32, #tpu.memory_space<vmem>>, vector<8x128xf32>
    tpu.vector_store %arg13[%c144, %c0_73], %74 {strides = array<i32>} : memref<800x128xf32, #tpu.memory_space<vmem>>, vector<8x128xf32>,
    %c0_74 = arith.constant 0 : index
    %c40_75 = arith.constant 40 : index
    %c2_76 = arith.constant 2 : index
    %76 = vector.load %arg1[%c0_74, %c40_75, %c2_76] : memref<1x128x256xbf16, #tpu.memory_space<vmem>>, vector<1x8x128xbf16>
    %77 = vector.shape_cast %76 : vector<1x8x128xbf16> to vector<8x128xbf16>
    %78 = arith.extf %77 : vector<8x128xbf16> to vector<8x128xf32>
    %c152 = arith.constant 152 : index
    %c0_77 = arith.constant 0 : index
    %79 = vector.load %arg13[%c152, %c0_77] : memref<800x128xf32, #tpu.memory_space<vmem>>, vector<8x128xf32>
    tpu.vector_store %arg13[%c152, %c0_77], %78 {strides = array<i32>} : memref<800x128xf32, #tpu.memory_space<vmem>>, vector<8x128xf32>,
    %c0_78 = arith.constant 0 : index
    %c64_79 = arith.constant 64 : index
    %c0_80 = arith.constant 0 : index
    %80 = vector.load %arg1[%c0_78, %c64_79, %c0_80] : memref<1x128x256xbf16, #tpu.memory_space<vmem>>, vector<1x8x128xbf16>
    %81 = vector.shape_cast %80 : vector<1x8x128xbf16> to vector<8x128xbf16>
    %82 = arith.extf %81 : vector<8x128xbf16> to vector<8x128xf32>
    %c160 = arith.constant 160 : index
    %c0_81 = arith.constant 0 : index
    %83 = vector.load %arg13[%c160, %c0_81] : memref<800x128xf32, #tpu.memory_space<vmem>>, vector<8x128xf32>
    tpu.vector_store %arg13[%c160, %c0_81], %82 {strides = array<i32>} : memref<800x128xf32, #tpu.memory_space<vmem>>, vector<8x128xf32>,
    %c0_82 = arith.constant 0 : index
    %c72_83 = arith.constant 72 : index
    %c0_84 = arith.constant 0 : index
    %84 = vector.load %arg1[%c0_82, %c72_83, %c0_84] : memref<1x128x256xbf16, #tpu.memory_space<vmem>>, vector<1x8x128xbf16>
    %85 = vector.shape_cast %84 : vector<1x8x128xbf16> to vector<8x128xbf16>
    %86 = arith.extf %85 : vector<8x128xbf16> to vector<8x128xf32>
    %c168 = arith.constant 168 : index
    %c0_85 = arith.constant 0 : index
    %87 = vector.load %arg13[%c168, %c0_85] : memref<800x128xf32, #tpu.memory_space<vmem>>, vector<8x128xf32>
    tpu.vector_store %arg13[%c168, %c0_85], %86 {strides = array<i32>} : memref<800x128xf32, #tpu.memory_space<vmem>>, vector<8x128xf32>,
    %c0_86 = arith.constant 0 : index
    %c80_87 = arith.constant 80 : index
    %c0_88 = arith.constant 0 : index
    %88 = vector.load %arg1[%c0_86, %c80_87, %c0_88] : memref<1x128x256xbf16, #tpu.memory_space<vmem>>, vector<1x8x128xbf16>
    %89 = vector.shape_cast %88 : vector<1x8x128xbf16> to vector<8x128xbf16>
    %90 = arith.extf %89 : vector<8x128xbf16> to vector<8x128xf32>
    %c176 = arith.constant 176 : index
    %c0_89 = arith.constant 0 : index
    %91 = vector.load %arg13[%c176, %c0_89] : memref<800x128xf32, #tpu.memory_space<vmem>>, vector<8x128xf32>
    tpu.vector_store %arg13[%c176, %c0_89], %90 {strides = array<i32>} : memref<800x128xf32, #tpu.memory_space<vmem>>, vector<8x128xf32>,
    %c0_90 = arith.constant 0 : index
    %c88_91 = arith.constant 88 : index
    %c0_92 = arith.constant 0 : index
    %92 = vector.load %arg1[%c0_90, %c88_91, %c0_92] : memref<1x128x256xbf16, #tpu.memory_space<vmem>>, vector<1x8x128xbf16>
    %93 = vector.shape_cast %92 : vector<1x8x128xbf16> to vector<8x128xbf16>
    %94 = arith.extf %93 : vector<8x128xbf16> to vector<8x128xf32>
    %c184 = arith.constant 184 : index
    %c0_93 = arith.constant 0 : index
    %95 = vector.load %arg13[%c184, %c0_93] : memref<800x128xf32, #tpu.memory_space<vmem>>, vector<8x128xf32>
    tpu.vector_store %arg13[%c184, %c0_93], %94 {strides = array<i32>} : memref<800x128xf32, #tpu.memory_space<vmem>>, vector<8x128xf32>,
    %c0_94 = arith.constant 0 : index
    %c64_95 = arith.constant 64 : index
    %c1_96 = arith.constant 1 : index
    %96 = vector.load %arg1[%c0_94, %c64_95, %c1_96] : memref<1x128x256xbf16, #tpu.memory_space<vmem>>, vector<1x8x128xbf16>
    %97 = vector.shape_cast %96 : vector<1x8x128xbf16> to vector<8x128xbf16>
    %98 = arith.extf %97 : vector<8x128xbf16> to vector<8x128xf32>
    %c192 = arith.constant 192 : index
    %c0_97 = arith.constant 0 : index
    %99 = vector.load %arg13[%c192, %c0_97] : memref<800x128xf32, #tpu.memory_space<vmem>>, vector<8x128xf32>
    tpu.vector_store %arg13[%c192, %c0_97], %98 {strides = array<i32>} : memref<800x128xf32, #tpu.memory_space<vmem>>, vector<8x128xf32>,
    %c0_98 = arith.constant 0 : index
    %c72_99 = arith.constant 72 : index
    %c1_100 = arith.constant 1 : index
    %100 = vector.load %arg1[%c0_98, %c72_99, %c1_100] : memref<1x128x256xbf16, #tpu.memory_space<vmem>>, vector<1x8x128xbf16>
    %101 = vector.shape_cast %100 : vector<1x8x128xbf16> to vector<8x128xbf16>
    %102 = arith.extf %101 : vector<8x128xbf16> to vector<8x128xf32>
    %c200 = arith.constant 200 : index
    %c0_101 = arith.constant 0 : index
    %103 = vector.load %arg13[%c200, %c0_101] : memref<800x128xf32, #tpu.memory_space<vmem>>, vector<8x128xf32>
    tpu.vector_store %arg13[%c200, %c0_101], %102 {strides = array<i32>} : memref<800x128xf32, #tpu.memory_space<vmem>>, vector<8x128xf32>,
    %c0_102 = arith.constant 0 : index
    %c80_103 = arith.constant 80 : index
    %c1_104 = arith.constant 1 : index
    %104 = vector.load %arg1[%c0_102, %c80_103, %c1_104] : memref<1x128x256xbf16, #tpu.memory_space<vmem>>, vector<1x8x128xbf16>
    %105 = vector.shape_cast %104 : vector<1x8x128xbf16> to vector<8x128xbf16>
    %106 = arith.extf %105 : vector<8x128xbf16> to vector<8x128xf32>
    %c208 = arith.constant 208 : index
    %c0_105 = arith.constant 0 : index
    %107 = vector.load %arg13[%c208, %c0_105] : memref<800x128xf32, #tpu.memory_space<vmem>>, vector<8x128xf32>
    tpu.vector_store %arg13[%c208, %c0_105], %106 {strides = array<i32>} : memref<800x128xf32, #tpu.memory_space<vmem>>, vector<8x128xf32>,
    %c0_106 = arith.constant 0 : index
    %c88_107 = arith.constant 88 : index
    %c1_108 = arith.constant 1 : index
    %108 = vector.load %arg1[%c0_106, %c88_107, %c1_108] : memref<1x128x256xbf16, #tpu.memory_space<vmem>>, vector<1x8x128xbf16>
    %109 = vector.shape_cast %108 : vector<1x8x128xbf16> to vector<8x128xbf16>
    %110 = arith.extf %109 : vector<8x128xbf16> to vector<8x128xf32>
    %c216 = arith.constant 216 : index
    %c0_109 = arith.constant 0 : index
    %111 = vector.load %arg13[%c216, %c0_109] : memref<800x128xf32, #tpu.memory_space<vmem>>, vector<8x128xf32>
    tpu.vector_store %arg13[%c216, %c0_109], %110 {strides = array<i32>} : memref<800x128xf32, #tpu.memory_space<vmem>>, vector<8x128xf32>,
    %c0_110 = arith.constant 0 : index
    %c64_111 = arith.constant 64 : index
    %c2_112 = arith.constant 2 : index
    %112 = vector.load %arg1[%c0_110, %c64_111, %c2_112] : memref<1x128x256xbf16, #tpu.memory_space<vmem>>, vector<1x8x128xbf16>
    %113 = vector.shape_cast %112 : vector<1x8x128xbf16> to vector<8x128xbf16>
    %114 = arith.extf %113 : vector<8x128xbf16> to vector<8x128xf32>
    %c224 = arith.constant 224 : index
    %c0_113 = arith.constant 0 : index
    %115 = vector.load %arg13[%c224, %c0_113] : memref<800x128xf32, #tpu.memory_space<vmem>>, vector<8x128xf32>
    tpu.vector_store %arg13[%c224, %c0_113], %114 {strides = array<i32>} : memref<800x128xf32, #tpu.memory_space<vmem>>, vector<8x128xf32>,
    %c0_114 = arith.constant 0 : index
    %c72_115 = arith.constant 72 : index
    %c2_116 = arith.constant 2 : index
    %116 = vector.load %arg1[%c0_114, %c72_115, %c2_116] : memref<1x128x256xbf16, #tpu.memory_space<vmem>>, vector<1x8x128xbf16>
    %117 = vector.shape_cast %116 : vector<1x8x128xbf16> to vector<8x128xbf16>
    %118 = arith.extf %117 : vector<8x128xbf16> to vector<8x128xf32>
    %c232 = arith.constant 232 : index
    %c0_117 = arith.constant 0 : index
    %119 = vector.load %arg13[%c232, %c0_117] : memref<800x128xf32, #tpu.memory_space<vmem>>, vector<8x128xf32>
    tpu.vector_store %arg13[%c232, %c0_117], %118 {strides = array<i32>} : memref<800x128xf32, #tpu.memory_space<vmem>>, vector<8x128xf32>,
    %c0_118 = arith.constant 0 : index
    %c96_119 = arith.constant 96 : index
    %c0_120 = arith.constant 0 : index
    %120 = vector.load %arg1[%c0_118, %c96_119, %c0_120] : memref<1x128x256xbf16, #tpu.memory_space<vmem>>, vector<1x8x128xbf16>
    %121 = vector.shape_cast %120 : vector<1x8x128xbf16> to vector<8x128xbf16>
    %122 = arith.extf %121 : vector<8x128xbf16> to vector<8x128xf32>
    %c240 = arith.constant 240 : index
    %c0_121 = arith.constant 0 : index
    %123 = vector.load %arg13[%c240, %c0_121] : memref<800x128xf32, #tpu.memory_space<vmem>>, vector<8x128xf32>
    tpu.vector_store %arg13[%c240, %c0_121], %122 {strides = array<i32>} : memref<800x128xf32, #tpu.memory_space<vmem>>, vector<8x128xf32>,
    %c0_122 = arith.constant 0 : index
    %c104_123 = arith.constant 104 : index
    %c0_124 = arith.constant 0 : index
    %124 = vector.load %arg1[%c0_122, %c104_123, %c0_124] : memref<1x128x256xbf16, #tpu.memory_space<vmem>>, vector<1x8x128xbf16>
    %125 = vector.shape_cast %124 : vector<1x8x128xbf16> to vector<8x128xbf16>
    %126 = arith.extf %125 : vector<8x128xbf16> to vector<8x128xf32>
    %c248 = arith.constant 248 : index
    %c0_125 = arith.constant 0 : index
    %127 = vector.load %arg13[%c248, %c0_125] : memref<800x128xf32, #tpu.memory_space<vmem>>, vector<8x128xf32>
    tpu.vector_store %arg13[%c248, %c0_125], %126 {strides = array<i32>} : memref<800x128xf32, #tpu.memory_space<vmem>>, vector<8x128xf32>,
    %c0_126 = arith.constant 0 : index
    %c112_127 = arith.constant 112 : index
    %c0_128 = arith.constant 0 : index
    %128 = vector.load %arg1[%c0_126, %c112_127, %c0_128] : memref<1x128x256xbf16, #tpu.memory_space<vmem>>, vector<1x8x128xbf16>
    %129 = vector.shape_cast %128 : vector<1x8x128xbf16> to vector<8x128xbf16>
    %130 = arith.extf %129 : vector<8x128xbf16> to vector<8x128xf32>
    %c256 = arith.constant 256 : index
    %c0_129 = arith.constant 0 : index
    %131 = vector.load %arg13[%c256, %c0_129] : memref<800x128xf32, #tpu.memory_space<vmem>>, vector<8x128xf32>
    tpu.vector_store %arg13[%c256, %c0_129], %130 {strides = array<i32>} : memref<800x128xf32, #tpu.memory_space<vmem>>, vector<8x128xf32>,
    %c0_130 = arith.constant 0 : index
    %c120_131 = arith.constant 120 : index
    %c0_132 = arith.constant 0 : index
    %132 = vector.load %arg1[%c0_130, %c120_131, %c0_132] : memref<1x128x256xbf16, #tpu.memory_space<vmem>>, vector<1x8x128xbf16>
    %133 = vector.shape_cast %132 : vector<1x8x128xbf16> to vector<8x128xbf16>
    %134 = arith.extf %133 : vector<8x128xbf16> to vector<8x128xf32>
    %c264 = arith.constant 264 : index
    %c0_133 = arith.constant 0 : index
    %135 = vector.load %arg13[%c264, %c0_133] : memref<800x128xf32, #tpu.memory_space<vmem>>, vector<8x128xf32>
    tpu.vector_store %arg13[%c264, %c0_133], %134 {strides = array<i32>} : memref<800x128xf32, #tpu.memory_space<vmem>>, vector<8x128xf32>,
    %c0_134 = arith.constant 0 : index
    %c96_135 = arith.constant 96 : index
    %c1_136 = arith.constant 1 : index
    %136 = vector.load %arg1[%c0_134, %c96_135, %c1_136] : memref<1x128x256xbf16, #tpu.memory_space<vmem>>, vector<1x8x128xbf16>
    %137 = vector.shape_cast %136 : vector<1x8x128xbf16> to vector<8x128xbf16>
    %138 = arith.extf %137 : vector<8x128xbf16> to vector<8x128xf32>
    %c272 = arith.constant 272 : index
    %c0_137 = arith.constant 0 : index
    %139 = vector.load %arg13[%c272, %c0_137] : memref<800x128xf32, #tpu.memory_space<vmem>>, vector<8x128xf32>
    tpu.vector_store %arg13[%c272, %c0_137], %138 {strides = array<i32>} : memref<800x128xf32, #tpu.memory_space<vmem>>, vector<8x128xf32>,
    %c0_138 = arith.constant 0 : index
    %c104_139 = arith.constant 104 : index
    %c1_140 = arith.constant 1 : index
    %140 = vector.load %arg1[%c0_138, %c104_139, %c1_140] : memref<1x128x256xbf16, #tpu.memory_space<vmem>>, vector<1x8x128xbf16>
    %141 = vector.shape_cast %140 : vector<1x8x128xbf16> to vector<8x128xbf16>
    %142 = arith.extf %141 : vector<8x128xbf16> to vector<8x128xf32>
    %c280 = arith.constant 280 : index
    %c0_141 = arith.constant 0 : index
    %143 = vector.load %arg13[%c280, %c0_141] : memref<800x128xf32, #tpu.memory_space<vmem>>, vector<8x128xf32>
    tpu.vector_store %arg13[%c280, %c0_141], %142 {strides = array<i32>} : memref<800x128xf32, #tpu.memory_space<vmem>>, vector<8x128xf32>,
    %c0_142 = arith.constant 0 : index
    %c112_143 = arith.constant 112 : index
    %c1_144 = arith.constant 1 : index
    %144 = vector.load %arg1[%c0_142, %c112_143, %c1_144] : memref<1x128x256xbf16, #tpu.memory_space<vmem>>, vector<1x8x128xbf16>
    %145 = vector.shape_cast %144 : vector<1x8x128xbf16> to vector<8x128xbf16>
    %146 = arith.extf %145 : vector<8x128xbf16> to vector<8x128xf32>
    %c288 = arith.constant 288 : index
    %c0_145 = arith.constant 0 : index
    %147 = vector.load %arg13[%c288, %c0_145] : memref<800x128xf32, #tpu.memory_space<vmem>>, vector<8x128xf32>
    tpu.vector_store %arg13[%c288, %c0_145], %146 {strides = array<i32>} : memref<800x128xf32, #tpu.memory_space<vmem>>, vector<8x128xf32>,
    %c0_146 = arith.constant 0 : index
    %c120_147 = arith.constant 120 : index
    %c1_148 = arith.constant 1 : index
    %148 = vector.load %arg1[%c0_146, %c120_147, %c1_148] : memref<1x128x256xbf16, #tpu.memory_space<vmem>>, vector<1x8x128xbf16>
    %149 = vector.shape_cast %148 : vector<1x8x128xbf16> to vector<8x128xbf16>
    %150 = arith.extf %149 : vector<8x128xbf16> to vector<8x128xf32>
    %c296 = arith.constant 296 : index
    %c0_149 = arith.constant 0 : index
    %151 = vector.load %arg13[%c296, %c0_149] : memref<800x128xf32, #tpu.memory_space<vmem>>, vector<8x128xf32>
    tpu.vector_store %arg13[%c296, %c0_149], %150 {strides = array<i32>} : memref<800x128xf32, #tpu.memory_space<vmem>>, vector<8x128xf32>,
    %c0_150 = arith.constant 0 : index
    %c96_151 = arith.constant 96 : index
    %c2_152 = arith.constant 2 : index
    %152 = vector.load %arg1[%c0_150, %c96_151, %c2_152] : memref<1x128x256xbf16, #tpu.memory_space<vmem>>, vector<1x8x128xbf16>
    %153 = vector.shape_cast %152 : vector<1x8x128xbf16> to vector<8x128xbf16>
    %154 = arith.extf %153 : vector<8x128xbf16> to vector<8x128xf32>
    %c304 = arith.constant 304 : index
    %c0_153 = arith.constant 0 : index
    %155 = vector.load %arg13[%c304, %c0_153] : memref<800x128xf32, #tpu.memory_space<vmem>>, vector<8x128xf32>
    tpu.vector_store %arg13[%c304, %c0_153], %154 {strides = array<i32>} : memref<800x128xf32, #tpu.memory_space<vmem>>, vector<8x128xf32>,
    %c0_154 = arith.constant 0 : index
    %c104_155 = arith.constant 104 : index
    %c2_156 = arith.constant 2 : index
    %156 = vector.load %arg1[%c0_154, %c104_155, %c2_156] : memref<1x128x256xbf16, #tpu.memory_space<vmem>>, vector<1x8x128xbf16>
    %157 = vector.shape_cast %156 : vector<1x8x128xbf16> to vector<8x128xbf16>
    %158 = arith.extf %157 : vector<8x128xbf16> to vector<8x128xf32>
    %c312 = arith.constant 312 : index
    %c0_157 = arith.constant 0 : index
    %159 = vector.load %arg13[%c312, %c0_157] : memref<800x128xf32, #tpu.memory_space<vmem>>, vector<8x128xf32>
    tpu.vector_store %arg13[%c312, %c0_157], %158 {strides = array<i32>} : memref<800x128xf32, #tpu.memory_space<vmem>>, vector<8x128xf32>,
    %c0_158 = arith.constant 0 : index
    %c0_159 = arith.constant 0 : index
    %c11 = arith.constant 11 : index
    %160 = vector.load %arg1[%c0_158, %c0_159, %c11] : memref<1x128x256xbf16, #tpu.memory_space<vmem>>, vector<1x8x128xbf16>
    %161 = vector.shape_cast %160 : vector<1x8x128xbf16> to vector<8x128xbf16>
    %162 = arith.extf %161 : vector<8x128xbf16> to vector<8x128xf32>
    %c320 = arith.constant 320 : index
    %c0_160 = arith.constant 0 : index
    %163 = vector.load %arg13[%c320, %c0_160] : memref<800x128xf32, #tpu.memory_space<vmem>>, vector<8x128xf32>
    tpu.vector_store %arg13[%c320, %c0_160], %162 {strides = array<i32>} : memref<800x128xf32, #tpu.memory_space<vmem>>, vector<8x128xf32>,
    %c0_161 = arith.constant 0 : index
    %c8_162 = arith.constant 8 : index
    %c11_163 = arith.constant 11 : index
    %164 = vector.load %arg1[%c0_161, %c8_162, %c11_163] : memref<1x128x256xbf16, #tpu.memory_space<vmem>>, vector<1x8x128xbf16>
    %165 = vector.shape_cast %164 : vector<1x8x128xbf16> to vector<8x128xbf16>
    %166 = arith.extf %165 : vector<8x128xbf16> to vector<8x128xf32>
    %c328 = arith.constant 328 : index
    %c0_164 = arith.constant 0 : index
    %167 = vector.load %arg13[%c328, %c0_164] : memref<800x128xf32, #tpu.memory_space<vmem>>, vector<8x128xf32>
    tpu.vector_store %arg13[%c328, %c0_164], %166 {strides = array<i32>} : memref<800x128xf32, #tpu.memory_space<vmem>>, vector<8x128xf32>,
    %c0_165 = arith.constant 0 : index
    %c16_166 = arith.constant 16 : index
    %c11_167 = arith.constant 11 : index
    %168 = vector.load %arg1[%c0_165, %c16_166, %c11_167] : memref<1x128x256xbf16, #tpu.memory_space<vmem>>, vector<1x8x128xbf16>
    %169 = vector.shape_cast %168 : vector<1x8x128xbf16> to vector<8x128xbf16>
    %170 = arith.extf %169 : vector<8x128xbf16> to vector<8x128xf32>
    %c336 = arith.constant 336 : index
    %c0_168 = arith.constant 0 : index
    %171 = vector.load %arg13[%c336, %c0_168] : memref<800x128xf32, #tpu.memory_space<vmem>>, vector<8x128xf32>
    tpu.vector_store %arg13[%c336, %c0_168], %170 {strides = array<i32>} : memref<800x128xf32, #tpu.memory_space<vmem>>, vector<8x128xf32>,
    %c0_169 = arith.constant 0 : index
    %c24_170 = arith.constant 24 : index
    %c11_171 = arith.constant 11 : index
    %172 = vector.load %arg1[%c0_169, %c24_170, %c11_171] : memref<1x128x256xbf16, #tpu.memory_space<vmem>>, vector<1x8x128xbf16>
    %173 = vector.shape_cast %172 : vector<1x8x128xbf16> to vector<8x128xbf16>
    %174 = arith.extf %173 : vector<8x128xbf16> to vector<8x128xf32>
    %c344 = arith.constant 344 : index
    %c0_172 = arith.constant 0 : index
    %175 = vector.load %arg13[%c344, %c0_172] : memref<800x128xf32, #tpu.memory_space<vmem>>, vector<8x128xf32>
    tpu.vector_store %arg13[%c344, %c0_172], %174 {strides = array<i32>} : memref<800x128xf32, #tpu.memory_space<vmem>>, vector<8x128xf32>,
    %c0_173 = arith.constant 0 : index
    %c0_174 = arith.constant 0 : index
    %c12 = arith.constant 12 : index
    %176 = vector.load %arg1[%c0_173, %c0_174, %c12] : memref<1x128x256xbf16, #tpu.memory_space<vmem>>, vector<1x8x128xbf16>
    %177 = vector.shape_cast %176 : vector<1x8x128xbf16> to vector<8x128xbf16>
    %178 = arith.extf %177 : vector<8x128xbf16> to vector<8x128xf32>
    %c352 = arith.constant 352 : index
    %c0_175 = arith.constant 0 : index
    %179 = vector.load %arg13[%c352, %c0_175] : memref<800x128xf32, #tpu.memory_space<vmem>>, vector<8x128xf32>
    tpu.vector_store %arg13[%c352, %c0_175], %178 {strides = array<i32>} : memref<800x128xf32, #tpu.memory_space<vmem>>, vector<8x128xf32>,
    %c0_176 = arith.constant 0 : index
    %c8_177 = arith.constant 8 : index
    %c12_178 = arith.constant 12 : index
    %180 = vector.load %arg1[%c0_176, %c8_177, %c12_178] : memref<1x128x256xbf16, #tpu.memory_space<vmem>>, vector<1x8x128xbf16>
    %181 = vector.shape_cast %180 : vector<1x8x128xbf16> to vector<8x128xbf16>
    %182 = arith.extf %181 : vector<8x128xbf16> to vector<8x128xf32>
    %c360 = arith.constant 360 : index
    %c0_179 = arith.constant 0 : index
    %183 = vector.load %arg13[%c360, %c0_179] : memref<800x128xf32, #tpu.memory_space<vmem>>, vector<8x128xf32>
    tpu.vector_store %arg13[%c360, %c0_179], %182 {strides = array<i32>} : memref<800x128xf32, #tpu.memory_space<vmem>>, vector<8x128xf32>,
    %c0_180 = arith.constant 0 : index
    %c16_181 = arith.constant 16 : index
    %c12_182 = arith.constant 12 : index
    %184 = vector.load %arg1[%c0_180, %c16_181, %c12_182] : memref<1x128x256xbf16, #tpu.memory_space<vmem>>, vector<1x8x128xbf16>
    %185 = vector.shape_cast %184 : vector<1x8x128xbf16> to vector<8x128xbf16>
    %186 = arith.extf %185 : vector<8x128xbf16> to vector<8x128xf32>
    %c368 = arith.constant 368 : index
    %c0_183 = arith.constant 0 : index
    %187 = vector.load %arg13[%c368, %c0_183] : memref<800x128xf32, #tpu.memory_space<vmem>>, vector<8x128xf32>
    tpu.vector_store %arg13[%c368, %c0_183], %186 {strides = array<i32>} : memref<800x128xf32, #tpu.memory_space<vmem>>, vector<8x128xf32>,
    %c0_184 = arith.constant 0 : index
    %c24_185 = arith.constant 24 : index
    %c12_186 = arith.constant 12 : index
    %188 = vector.load %arg1[%c0_184, %c24_185, %c12_186] : memref<1x128x256xbf16, #tpu.memory_space<vmem>>, vector<1x8x128xbf16>
    %189 = vector.shape_cast %188 : vector<1x8x128xbf16> to vector<8x128xbf16>
    %190 = arith.extf %189 : vector<8x128xbf16> to vector<8x128xf32>
    %c376 = arith.constant 376 : index
    %c0_187 = arith.constant 0 : index
    %191 = vector.load %arg13[%c376, %c0_187] : memref<800x128xf32, #tpu.memory_space<vmem>>, vector<8x128xf32>
    tpu.vector_store %arg13[%c376, %c0_187], %190 {strides = array<i32>} : memref<800x128xf32, #tpu.memory_space<vmem>>, vector<8x128xf32>,
    %c0_188 = arith.constant 0 : index
    %c0_189 = arith.constant 0 : index
    %c13 = arith.constant 13 : index
    %192 = vector.load %arg1[%c0_188, %c0_189, %c13] : memref<1x128x256xbf16, #tpu.memory_space<vmem>>, vector<1x8x128xbf16>
    %193 = vector.shape_cast %192 : vector<1x8x128xbf16> to vector<8x128xbf16>
    %194 = arith.extf %193 : vector<8x128xbf16> to vector<8x128xf32>
    %c384 = arith.constant 384 : index
    %c0_190 = arith.constant 0 : index
    %195 = vector.load %arg13[%c384, %c0_190] : memref<800x128xf32, #tpu.memory_space<vmem>>, vector<8x128xf32>
    tpu.vector_store %arg13[%c384, %c0_190], %194 {strides = array<i32>} : memref<800x128xf32, #tpu.memory_space<vmem>>, vector<8x128xf32>,
    %c0_191 = arith.constant 0 : index
    %c8_192 = arith.constant 8 : index
    %c13_193 = arith.constant 13 : index
    %196 = vector.load %arg1[%c0_191, %c8_192, %c13_193] : memref<1x128x256xbf16, #tpu.memory_space<vmem>>, vector<1x8x128xbf16>
    %197 = vector.shape_cast %196 : vector<1x8x128xbf16> to vector<8x128xbf16>
    %198 = arith.extf %197 : vector<8x128xbf16> to vector<8x128xf32>
    %c392 = arith.constant 392 : index
    %c0_194 = arith.constant 0 : index
    %199 = vector.load %arg13[%c392, %c0_194] : memref<800x128xf32, #tpu.memory_space<vmem>>, vector<8x128xf32>
    tpu.vector_store %arg13[%c392, %c0_194], %198 {strides = array<i32>} : memref<800x128xf32, #tpu.memory_space<vmem>>, vector<8x128xf32>,
    %c0_195 = arith.constant 0 : index
    %c32_196 = arith.constant 32 : index
    %c11_197 = arith.constant 11 : index
    %200 = vector.load %arg1[%c0_195, %c32_196, %c11_197] : memref<1x128x256xbf16, #tpu.memory_space<vmem>>, vector<1x8x128xbf16>
    %201 = vector.shape_cast %200 : vector<1x8x128xbf16> to vector<8x128xbf16>
    %202 = arith.extf %201 : vector<8x128xbf16> to vector<8x128xf32>
    %c400 = arith.constant 400 : index
    %c0_198 = arith.constant 0 : index
    %203 = vector.load %arg13[%c400, %c0_198] : memref<800x128xf32, #tpu.memory_space<vmem>>, vector<8x128xf32>
    tpu.vector_store %arg13[%c400, %c0_198], %202 {strides = array<i32>} : memref<800x128xf32, #tpu.memory_space<vmem>>, vector<8x128xf32>,
    %c0_199 = arith.constant 0 : index
    %c40_200 = arith.constant 40 : index
    %c11_201 = arith.constant 11 : index
    %204 = vector.load %arg1[%c0_199, %c40_200, %c11_201] : memref<1x128x256xbf16, #tpu.memory_space<vmem>>, vector<1x8x128xbf16>
    %205 = vector.shape_cast %204 : vector<1x8x128xbf16> to vector<8x128xbf16>
    %206 = arith.extf %205 : vector<8x128xbf16> to vector<8x128xf32>
    %c408 = arith.constant 408 : index
    %c0_202 = arith.constant 0 : index
    %207 = vector.load %arg13[%c408, %c0_202] : memref<800x128xf32, #tpu.memory_space<vmem>>, vector<8x128xf32>
    tpu.vector_store %arg13[%c408, %c0_202], %206 {strides = array<i32>} : memref<800x128xf32, #tpu.memory_space<vmem>>, vector<8x128xf32>,
    %c0_203 = arith.constant 0 : index
    %c48_204 = arith.constant 48 : index
    %c11_205 = arith.constant 11 : index
    %208 = vector.load %arg1[%c0_203, %c48_204, %c11_205] : memref<1x128x256xbf16, #tpu.memory_space<vmem>>, vector<1x8x128xbf16>
    %209 = vector.shape_cast %208 : vector<1x8x128xbf16> to vector<8x128xbf16>
    %210 = arith.extf %209 : vector<8x128xbf16> to vector<8x128xf32>
    %c416 = arith.constant 416 : index
    %c0_206 = arith.constant 0 : index
    %211 = vector.load %arg13[%c416, %c0_206] : memref<800x128xf32, #tpu.memory_space<vmem>>, vector<8x128xf32>
    tpu.vector_store %arg13[%c416, %c0_206], %210 {strides = array<i32>} : memref<800x128xf32, #tpu.memory_space<vmem>>, vector<8x128xf32>,
    %c0_207 = arith.constant 0 : index
    %c56_208 = arith.constant 56 : index
    %c11_209 = arith.constant 11 : index
    %212 = vector.load %arg1[%c0_207, %c56_208, %c11_209] : memref<1x128x256xbf16, #tpu.memory_space<vmem>>, vector<1x8x128xbf16>
    %213 = vector.shape_cast %212 : vector<1x8x128xbf16> to vector<8x128xbf16>
    %214 = arith.extf %213 : vector<8x128xbf16> to vector<8x128xf32>
    %c424 = arith.constant 424 : index
    %c0_210 = arith.constant 0 : index
    %215 = vector.load %arg13[%c424, %c0_210] : memref<800x128xf32, #tpu.memory_space<vmem>>, vector<8x128xf32>
    tpu.vector_store %arg13[%c424, %c0_210], %214 {strides = array<i32>} : memref<800x128xf32, #tpu.memory_space<vmem>>, vector<8x128xf32>,
    %c0_211 = arith.constant 0 : index
    %c32_212 = arith.constant 32 : index
    %c12_213 = arith.constant 12 : index
    %216 = vector.load %arg1[%c0_211, %c32_212, %c12_213] : memref<1x128x256xbf16, #tpu.memory_space<vmem>>, vector<1x8x128xbf16>
    %217 = vector.shape_cast %216 : vector<1x8x128xbf16> to vector<8x128xbf16>
    %218 = arith.extf %217 : vector<8x128xbf16> to vector<8x128xf32>
    %c432 = arith.constant 432 : index
    %c0_214 = arith.constant 0 : index
    %219 = vector.load %arg13[%c432, %c0_214] : memref<800x128xf32, #tpu.memory_space<vmem>>, vector<8x128xf32>
    tpu.vector_store %arg13[%c432, %c0_214], %218 {strides = array<i32>} : memref<800x128xf32, #tpu.memory_space<vmem>>, vector<8x128xf32>,
    %c0_215 = arith.constant 0 : index
    %c40_216 = arith.constant 40 : index
    %c12_217 = arith.constant 12 : index
    %220 = vector.load %arg1[%c0_215, %c40_216, %c12_217] : memref<1x128x256xbf16, #tpu.memory_space<vmem>>, vector<1x8x128xbf16>
    %221 = vector.shape_cast %220 : vector<1x8x128xbf16> to vector<8x128xbf16>
    %222 = arith.extf %221 : vector<8x128xbf16> to vector<8x128xf32>
    %c440 = arith.constant 440 : index
    %c0_218 = arith.constant 0 : index
    %223 = vector.load %arg13[%c440, %c0_218] : memref<800x128xf32, #tpu.memory_space<vmem>>, vector<8x128xf32>
    tpu.vector_store %arg13[%c440, %c0_218], %222 {strides = array<i32>} : memref<800x128xf32, #tpu.memory_space<vmem>>, vector<8x128xf32>,
    %c0_219 = arith.constant 0 : index
    %c48_220 = arith.constant 48 : index
    %c12_221 = arith.constant 12 : index
    %224 = vector.load %arg1[%c0_219, %c48_220, %c12_221] : memref<1x128x256xbf16, #tpu.memory_space<vmem>>, vector<1x8x128xbf16>
    %225 = vector.shape_cast %224 : vector<1x8x128xbf16> to vector<8x128xbf16>
    %226 = arith.extf %225 : vector<8x128xbf16> to vector<8x128xf32>
    %c448 = arith.constant 448 : index
    %c0_222 = arith.constant 0 : index
    %227 = vector.load %arg13[%c448, %c0_222] : memref<800x128xf32, #tpu.memory_space<vmem>>, vector<8x128xf32>
    tpu.vector_store %arg13[%c448, %c0_222], %226 {strides = array<i32>} : memref<800x128xf32, #tpu.memory_space<vmem>>, vector<8x128xf32>,
    %c0_223 = arith.constant 0 : index
    %c56_224 = arith.constant 56 : index
    %c12_225 = arith.constant 12 : index
    %228 = vector.load %arg1[%c0_223, %c56_224, %c12_225] : memref<1x128x256xbf16, #tpu.memory_space<vmem>>, vector<1x8x128xbf16>
    %229 = vector.shape_cast %228 : vector<1x8x128xbf16> to vector<8x128xbf16>
    %230 = arith.extf %229 : vector<8x128xbf16> to vector<8x128xf32>
    %c456 = arith.constant 456 : index
    %c0_226 = arith.constant 0 : index
    %231 = vector.load %arg13[%c456, %c0_226] : memref<800x128xf32, #tpu.memory_space<vmem>>, vector<8x128xf32>
    tpu.vector_store %arg13[%c456, %c0_226], %230 {strides = array<i32>} : memref<800x128xf32, #tpu.memory_space<vmem>>, vector<8x128xf32>,
    %c0_227 = arith.constant 0 : index
    %c32_228 = arith.constant 32 : index
    %c13_229 = arith.constant 13 : index
    %232 = vector.load %arg1[%c0_227, %c32_228, %c13_229] : memref<1x128x256xbf16, #tpu.memory_space<vmem>>, vector<1x8x128xbf16>
    %233 = vector.shape_cast %232 : vector<1x8x128xbf16> to vector<8x128xbf16>
    %234 = arith.extf %233 : vector<8x128xbf16> to vector<8x128xf32>
    %c464 = arith.constant 464 : index
    %c0_230 = arith.constant 0 : index
    %235 = vector.load %arg13[%c464, %c0_230] : memref<800x128xf32, #tpu.memory_space<vmem>>, vector<8x128xf32>
    tpu.vector_store %arg13[%c464, %c0_230], %234 {strides = array<i32>} : memref<800x128xf32, #tpu.memory_space<vmem>>, vector<8x128xf32>,
    %c0_231 = arith.constant 0 : index
    %c40_232 = arith.constant 40 : index
    %c13_233 = arith.constant 13 : index
    %236 = vector.load %arg1[%c0_231, %c40_232, %c13_233] : memref<1x128x256xbf16, #tpu.memory_space<vmem>>, vector<1x8x128xbf16>
    %237 = vector.shape_cast %236 : vector<1x8x128xbf16> to vector<8x128xbf16>
    %238 = arith.extf %237 : vector<8x128xbf16> to vector<8x128xf32>
    %c472 = arith.constant 472 : index
    %c0_234 = arith.constant 0 : index
    %239 = vector.load %arg13[%c472, %c0_234] : memref<800x128xf32, #tpu.memory_space<vmem>>, vector<8x128xf32>
    tpu.vector_store %arg13[%c472, %c0_234], %238 {strides = array<i32>} : memref<800x128xf32, #tpu.memory_space<vmem>>, vector<8x128xf32>,
    %c0_235 = arith.constant 0 : index
    %c64_236 = arith.constant 64 : index
    %c11_237 = arith.constant 11 : index
    %240 = vector.load %arg1[%c0_235, %c64_236, %c11_237] : memref<1x128x256xbf16, #tpu.memory_space<vmem>>, vector<1x8x128xbf16>
    %241 = vector.shape_cast %240 : vector<1x8x128xbf16> to vector<8x128xbf16>
    %242 = arith.extf %241 : vector<8x128xbf16> to vector<8x128xf32>
    %c480 = arith.constant 480 : index
    %c0_238 = arith.constant 0 : index
    %243 = vector.load %arg13[%c480, %c0_238] : memref<800x128xf32, #tpu.memory_space<vmem>>, vector<8x128xf32>
    tpu.vector_store %arg13[%c480, %c0_238], %242 {strides = array<i32>} : memref<800x128xf32, #tpu.memory_space<vmem>>, vector<8x128xf32>,
    %c0_239 = arith.constant 0 : index
    %c72_240 = arith.constant 72 : index
    %c11_241 = arith.constant 11 : index
    %244 = vector.load %arg1[%c0_239, %c72_240, %c11_241] : memref<1x128x256xbf16, #tpu.memory_space<vmem>>, vector<1x8x128xbf16>
    %245 = vector.shape_cast %244 : vector<1x8x128xbf16> to vector<8x128xbf16>
    %246 = arith.extf %245 : vector<8x128xbf16> to vector<8x128xf32>
    %c488 = arith.constant 488 : index
    %c0_242 = arith.constant 0 : index
    %247 = vector.load %arg13[%c488, %c0_242] : memref<800x128xf32, #tpu.memory_space<vmem>>, vector<8x128xf32>
    tpu.vector_store %arg13[%c488, %c0_242], %246 {strides = array<i32>} : memref<800x128xf32, #tpu.memory_space<vmem>>, vector<8x128xf32>,
    %c0_243 = arith.constant 0 : index
    %c80_244 = arith.constant 80 : index
    %c11_245 = arith.constant 11 : index
    %248 = vector.load %arg1[%c0_243, %c80_244, %c11_245] : memref<1x128x256xbf16, #tpu.memory_space<vmem>>, vector<1x8x128xbf16>
    %249 = vector.shape_cast %248 : vector<1x8x128xbf16> to vector<8x128xbf16>
    %250 = arith.extf %249 : vector<8x128xbf16> to vector<8x128xf32>
    %c496 = arith.constant 496 : index
    %c0_246 = arith.constant 0 : index
    %251 = vector.load %arg13[%c496, %c0_246] : memref<800x128xf32, #tpu.memory_space<vmem>>, vector<8x128xf32>
    tpu.vector_store %arg13[%c496, %c0_246], %250 {strides = array<i32>} : memref<800x128xf32, #tpu.memory_space<vmem>>, vector<8x128xf32>,
    %c0_247 = arith.constant 0 : index
    %c88_248 = arith.constant 88 : index
    %c11_249 = arith.constant 11 : index
    %252 = vector.load %arg1[%c0_247, %c88_248, %c11_249] : memref<1x128x256xbf16, #tpu.memory_space<vmem>>, vector<1x8x128xbf16>
    %253 = vector.shape_cast %252 : vector<1x8x128xbf16> to vector<8x128xbf16>
    %254 = arith.extf %253 : vector<8x128xbf16> to vector<8x128xf32>
    %c504 = arith.constant 504 : index
    %c0_250 = arith.constant 0 : index
    %255 = vector.load %arg13[%c504, %c0_250] : memref<800x128xf32, #tpu.memory_space<vmem>>, vector<8x128xf32>
    tpu.vector_store %arg13[%c504, %c0_250], %254 {strides = array<i32>} : memref<800x128xf32, #tpu.memory_space<vmem>>, vector<8x128xf32>,
    %c0_251 = arith.constant 0 : index
    %c64_252 = arith.constant 64 : index
    %c12_253 = arith.constant 12 : index
    %256 = vector.load %arg1[%c0_251, %c64_252, %c12_253] : memref<1x128x256xbf16, #tpu.memory_space<vmem>>, vector<1x8x128xbf16>
    %257 = vector.shape_cast %256 : vector<1x8x128xbf16> to vector<8x128xbf16>
    %258 = arith.extf %257 : vector<8x128xbf16> to vector<8x128xf32>
    %c512 = arith.constant 512 : index
    %c0_254 = arith.constant 0 : index
    %259 = vector.load %arg13[%c512, %c0_254] : memref<800x128xf32, #tpu.memory_space<vmem>>, vector<8x128xf32>
    tpu.vector_store %arg13[%c512, %c0_254], %258 {strides = array<i32>} : memref<800x128xf32, #tpu.memory_space<vmem>>, vector<8x128xf32>,
    %c0_255 = arith.constant 0 : index
    %c72_256 = arith.constant 72 : index
    %c12_257 = arith.constant 12 : index
    %260 = vector.load %arg1[%c0_255, %c72_256, %c12_257] : memref<1x128x256xbf16, #tpu.memory_space<vmem>>, vector<1x8x128xbf16>
    %261 = vector.shape_cast %260 : vector<1x8x128xbf16> to vector<8x128xbf16>
    %262 = arith.extf %261 : vector<8x128xbf16> to vector<8x128xf32>
    %c520 = arith.constant 520 : index
    %c0_258 = arith.constant 0 : index
    %263 = vector.load %arg13[%c520, %c0_258] : memref<800x128xf32, #tpu.memory_space<vmem>>, vector<8x128xf32>
    tpu.vector_store %arg13[%c520, %c0_258], %262 {strides = array<i32>} : memref<800x128xf32, #tpu.memory_space<vmem>>, vector<8x128xf32>,
    %c0_259 = arith.constant 0 : index
    %c80_260 = arith.constant 80 : index
    %c12_261 = arith.constant 12 : index
    %264 = vector.load %arg1[%c0_259, %c80_260, %c12_261] : memref<1x128x256xbf16, #tpu.memory_space<vmem>>, vector<1x8x128xbf16>
    %265 = vector.shape_cast %264 : vector<1x8x128xbf16> to vector<8x128xbf16>
    %266 = arith.extf %265 : vector<8x128xbf16> to vector<8x128xf32>
    %c528 = arith.constant 528 : index
    %c0_262 = arith.constant 0 : index
    %267 = vector.load %arg13[%c528, %c0_262] : memref<800x128xf32, #tpu.memory_space<vmem>>, vector<8x128xf32>
    tpu.vector_store %arg13[%c528, %c0_262], %266 {strides = array<i32>} : memref<800x128xf32, #tpu.memory_space<vmem>>, vector<8x128xf32>,
    %c0_263 = arith.constant 0 : index
    %c88_264 = arith.constant 88 : index
    %c12_265 = arith.constant 12 : index
    %268 = vector.load %arg1[%c0_263, %c88_264, %c12_265] : memref<1x128x256xbf16, #tpu.memory_space<vmem>>, vector<1x8x128xbf16>
    %269 = vector.shape_cast %268 : vector<1x8x128xbf16> to vector<8x128xbf16>
    %270 = arith.extf %269 : vector<8x128xbf16> to vector<8x128xf32>
    %c536 = arith.constant 536 : index
    %c0_266 = arith.constant 0 : index
    %271 = vector.load %arg13[%c536, %c0_266] : memref<800x128xf32, #tpu.memory_space<vmem>>, vector<8x128xf32>
    tpu.vector_store %arg13[%c536, %c0_266], %270 {strides = array<i32>} : memref<800x128xf32, #tpu.memory_space<vmem>>, vector<8x128xf32>,
    %c0_267 = arith.constant 0 : index
    %c64_268 = arith.constant 64 : index
    %c13_269 = arith.constant 13 : index
    %272 = vector.load %arg1[%c0_267, %c64_268, %c13_269] : memref<1x128x256xbf16, #tpu.memory_space<vmem>>, vector<1x8x128xbf16>
    %273 = vector.shape_cast %272 : vector<1x8x128xbf16> to vector<8x128xbf16>
    %274 = arith.extf %273 : vector<8x128xbf16> to vector<8x128xf32>
    %c544 = arith.constant 544 : index
    %c0_270 = arith.constant 0 : index
    %275 = vector.load %arg13[%c544, %c0_270] : memref<800x128xf32, #tpu.memory_space<vmem>>, vector<8x128xf32>
    tpu.vector_store %arg13[%c544, %c0_270], %274 {strides = array<i32>} : memref<800x128xf32, #tpu.memory_space<vmem>>, vector<8x128xf32>,
    %c0_271 = arith.constant 0 : index
    %c72_272 = arith.constant 72 : index
    %c13_273 = arith.constant 13 : index
    %276 = vector.load %arg1[%c0_271, %c72_272, %c13_273] : memref<1x128x256xbf16, #tpu.memory_space<vmem>>, vector<1x8x128xbf16>
    %277 = vector.shape_cast %276 : vector<1x8x128xbf16> to vector<8x128xbf16>
    %278 = arith.extf %277 : vector<8x128xbf16> to vector<8x128xf32>
    %c552 = arith.constant 552 : index
    %c0_274 = arith.constant 0 : index
    %279 = vector.load %arg13[%c552, %c0_274] : memref<800x128xf32, #tpu.memory_space<vmem>>, vector<8x128xf32>
    tpu.vector_store %arg13[%c552, %c0_274], %278 {strides = array<i32>} : memref<800x128xf32, #tpu.memory_space<vmem>>, vector<8x128xf32>,
    %c0_275 = arith.constant 0 : index
    %c96_276 = arith.constant 96 : index
    %c11_277 = arith.constant 11 : index
    %280 = vector.load %arg1[%c0_275, %c96_276, %c11_277] : memref<1x128x256xbf16, #tpu.memory_space<vmem>>, vector<1x8x128xbf16>
    %281 = vector.shape_cast %280 : vector<1x8x128xbf16> to vector<8x128xbf16>
    %282 = arith.extf %281 : vector<8x128xbf16> to vector<8x128xf32>
    %c560 = arith.constant 560 : index
    %c0_278 = arith.constant 0 : index
    %283 = vector.load %arg13[%c560, %c0_278] : memref<800x128xf32, #tpu.memory_space<vmem>>, vector<8x128xf32>
    tpu.vector_store %arg13[%c560, %c0_278], %282 {strides = array<i32>} : memref<800x128xf32, #tpu.memory_space<vmem>>, vector<8x128xf32>,
    %c0_279 = arith.constant 0 : index
    %c104_280 = arith.constant 104 : index
    %c11_281 = arith.constant 11 : index
    %284 = vector.load %arg1[%c0_279, %c104_280, %c11_281] : memref<1x128x256xbf16, #tpu.memory_space<vmem>>, vector<1x8x128xbf16>
    %285 = vector.shape_cast %284 : vector<1x8x128xbf16> to vector<8x128xbf16>
    %286 = arith.extf %285 : vector<8x128xbf16> to vector<8x128xf32>
    %c568 = arith.constant 568 : index
    %c0_282 = arith.constant 0 : index
    %287 = vector.load %arg13[%c568, %c0_282] : memref<800x128xf32, #tpu.memory_space<vmem>>, vector<8x128xf32>
    tpu.vector_store %arg13[%c568, %c0_282], %286 {strides = array<i32>} : memref<800x128xf32, #tpu.memory_space<vmem>>, vector<8x128xf32>,
    %c0_283 = arith.constant 0 : index
    %c112_284 = arith.constant 112 : index
    %c11_285 = arith.constant 11 : index
    %288 = vector.load %arg1[%c0_283, %c112_284, %c11_285] : memref<1x128x256xbf16, #tpu.memory_space<vmem>>, vector<1x8x128xbf16>
    %289 = vector.shape_cast %288 : vector<1x8x128xbf16> to vector<8x128xbf16>
    %290 = arith.extf %289 : vector<8x128xbf16> to vector<8x128xf32>
    %c576 = arith.constant 576 : index
    %c0_286 = arith.constant 0 : index
    %291 = vector.load %arg13[%c576, %c0_286] : memref<800x128xf32, #tpu.memory_space<vmem>>, vector<8x128xf32>
    tpu.vector_store %arg13[%c576, %c0_286], %290 {strides = array<i32>} : memref<800x128xf32, #tpu.memory_space<vmem>>, vector<8x128xf32>,
    %c0_287 = arith.constant 0 : index
    %c120_288 = arith.constant 120 : index
    %c11_289 = arith.constant 11 : index
    %292 = vector.load %arg1[%c0_287, %c120_288, %c11_289] : memref<1x128x256xbf16, #tpu.memory_space<vmem>>, vector<1x8x128xbf16>
    %293 = vector.shape_cast %292 : vector<1x8x128xbf16> to vector<8x128xbf16>
    %294 = arith.extf %293 : vector<8x128xbf16> to vector<8x128xf32>
    %c584 = arith.constant 584 : index
    %c0_290 = arith.constant 0 : index
    %295 = vector.load %arg13[%c584, %c0_290] : memref<800x128xf32, #tpu.memory_space<vmem>>, vector<8x128xf32>
    tpu.vector_store %arg13[%c584, %c0_290], %294 {strides = array<i32>} : memref<800x128xf32, #tpu.memory_space<vmem>>, vector<8x128xf32>,
    %c0_291 = arith.constant 0 : index
    %c96_292 = arith.constant 96 : index
    %c12_293 = arith.constant 12 : index
    %296 = vector.load %arg1[%c0_291, %c96_292, %c12_293] : memref<1x128x256xbf16, #tpu.memory_space<vmem>>, vector<1x8x128xbf16>
    %297 = vector.shape_cast %296 : vector<1x8x128xbf16> to vector<8x128xbf16>
    %298 = arith.extf %297 : vector<8x128xbf16> to vector<8x128xf32>
    %c592 = arith.constant 592 : index
    %c0_294 = arith.constant 0 : index
    %299 = vector.load %arg13[%c592, %c0_294] : memref<800x128xf32, #tpu.memory_space<vmem>>, vector<8x128xf32>
    tpu.vector_store %arg13[%c592, %c0_294], %298 {strides = array<i32>} : memref<800x128xf32, #tpu.memory_space<vmem>>, vector<8x128xf32>,
    %c0_295 = arith.constant 0 : index
    %c104_296 = arith.constant 104 : index
    %c12_297 = arith.constant 12 : index
    %300 = vector.load %arg1[%c0_295, %c104_296, %c12_297] : memref<1x128x256xbf16, #tpu.memory_space<vmem>>, vector<1x8x128xbf16>
    %301 = vector.shape_cast %300 : vector<1x8x128xbf16> to vector<8x128xbf16>
    %302 = arith.extf %301 : vector<8x128xbf16> to vector<8x128xf32>
    %c600 = arith.constant 600 : index
    %c0_298 = arith.constant 0 : index
    %303 = vector.load %arg13[%c600, %c0_298] : memref<800x128xf32, #tpu.memory_space<vmem>>, vector<8x128xf32>
    tpu.vector_store %arg13[%c600, %c0_298], %302 {strides = array<i32>} : memref<800x128xf32, #tpu.memory_space<vmem>>, vector<8x128xf32>,
    %c0_299 = arith.constant 0 : index
    %c112_300 = arith.constant 112 : index
    %c12_301 = arith.constant 12 : index
    %304 = vector.load %arg1[%c0_299, %c112_300, %c12_301] : memref<1x128x256xbf16, #tpu.memory_space<vmem>>, vector<1x8x128xbf16>
    %305 = vector.shape_cast %304 : vector<1x8x128xbf16> to vector<8x128xbf16>
    %306 = arith.extf %305 : vector<8x128xbf16> to vector<8x128xf32>
    %c608 = arith.constant 608 : index
    %c0_302 = arith.constant 0 : index
    %307 = vector.load %arg13[%c608, %c0_302] : memref<800x128xf32, #tpu.memory_space<vmem>>, vector<8x128xf32>
    tpu.vector_store %arg13[%c608, %c0_302], %306 {strides = array<i32>} : memref<800x128xf32, #tpu.memory_space<vmem>>, vector<8x128xf32>,
    %c0_303 = arith.constant 0 : index
    %c120_304 = arith.constant 120 : index
    %c12_305 = arith.constant 12 : index
    %308 = vector.load %arg1[%c0_303, %c120_304, %c12_305] : memref<1x128x256xbf16, #tpu.memory_space<vmem>>, vector<1x8x128xbf16>
    %309 = vector.shape_cast %308 : vector<1x8x128xbf16> to vector<8x128xbf16>
    %310 = arith.extf %309 : vector<8x128xbf16> to vector<8x128xf32>
    %c616 = arith.constant 616 : index
    %c0_306 = arith.constant 0 : index
    %311 = vector.load %arg13[%c616, %c0_306] : memref<800x128xf32, #tpu.memory_space<vmem>>, vector<8x128xf32>
    tpu.vector_store %arg13[%c616, %c0_306], %310 {strides = array<i32>} : memref<800x128xf32, #tpu.memory_space<vmem>>, vector<8x128xf32>,
    %c0_307 = arith.constant 0 : index
    %c96_308 = arith.constant 96 : index
    %c13_309 = arith.constant 13 : index
    %312 = vector.load %arg1[%c0_307, %c96_308, %c13_309] : memref<1x128x256xbf16, #tpu.memory_space<vmem>>, vector<1x8x128xbf16>
    %313 = vector.shape_cast %312 : vector<1x8x128xbf16> to vector<8x128xbf16>
    %314 = arith.extf %313 : vector<8x128xbf16> to vector<8x128xf32>
    %c624 = arith.constant 624 : index
    %c0_310 = arith.constant 0 : index
    %315 = vector.load %arg13[%c624, %c0_310] : memref<800x128xf32, #tpu.memory_space<vmem>>, vector<8x128xf32>
    tpu.vector_store %arg13[%c624, %c0_310], %314 {strides = array<i32>} : memref<800x128xf32, #tpu.memory_space<vmem>>, vector<8x128xf32>,
    %c0_311 = arith.constant 0 : index
    %c104_312 = arith.constant 104 : index
    %c13_313 = arith.constant 13 : index
    %316 = vector.load %arg1[%c0_311, %c104_312, %c13_313] : memref<1x128x256xbf16, #tpu.memory_space<vmem>>, vector<1x8x128xbf16>
    %317 = vector.shape_cast %316 : vector<1x8x128xbf16> to vector<8x128xbf16>
    %318 = arith.extf %317 : vector<8x128xbf16> to vector<8x128xf32>
    %c632 = arith.constant 632 : index
    %c0_314 = arith.constant 0 : index
    %319 = vector.load %arg13[%c632, %c0_314] : memref<800x128xf32, #tpu.memory_space<vmem>>, vector<8x128xf32>
    tpu.vector_store %arg13[%c632, %c0_314], %318 {strides = array<i32>} : memref<800x128xf32, #tpu.memory_space<vmem>>, vector<8x128xf32>,
    %c0_315 = arith.constant 0 : index
    %c0_316 = arith.constant 0 : index
    %c22 = arith.constant 22 : index
    %320 = vector.load %arg1[%c0_315, %c0_316, %c22] : memref<1x128x256xbf16, #tpu.memory_space<vmem>>, vector<1x8x128xbf16>
    %321 = vector.shape_cast %320 : vector<1x8x128xbf16> to vector<8x128xbf16>
    %322 = arith.extf %321 : vector<8x128xbf16> to vector<8x128xf32>
    %c640 = arith.constant 640 : index
    %c0_317 = arith.constant 0 : index
    %323 = vector.load %arg13[%c640, %c0_317] : memref<800x128xf32, #tpu.memory_space<vmem>>, vector<8x128xf32>
    tpu.vector_store %arg13[%c640, %c0_317], %322 {strides = array<i32>} : memref<800x128xf32, #tpu.memory_space<vmem>>, vector<8x128xf32>,
    %c0_318 = arith.constant 0 : index
    %c8_319 = arith.constant 8 : index
    %c22_320 = arith.constant 22 : index
    %324 = vector.load %arg1[%c0_318, %c8_319, %c22_320] : memref<1x128x256xbf16, #tpu.memory_space<vmem>>, vector<1x8x128xbf16>
    %325 = vector.shape_cast %324 : vector<1x8x128xbf16> to vector<8x128xbf16>
    %326 = arith.extf %325 : vector<8x128xbf16> to vector<8x128xf32>
    %c648 = arith.constant 648 : index
    %c0_321 = arith.constant 0 : index
    %327 = vector.load %arg13[%c648, %c0_321] : memref<800x128xf32, #tpu.memory_space<vmem>>, vector<8x128xf32>
    tpu.vector_store %arg13[%c648, %c0_321], %326 {strides = array<i32>} : memref<800x128xf32, #tpu.memory_space<vmem>>, vector<8x128xf32>,
    %c0_322 = arith.constant 0 : index
    %c16_323 = arith.constant 16 : index
    %c22_324 = arith.constant 22 : index
    %328 = vector.load %arg1[%c0_322, %c16_323, %c22_324] : memref<1x128x256xbf16, #tpu.memory_space<vmem>>, vector<1x8x128xbf16>
    %329 = vector.shape_cast %328 : vector<1x8x128xbf16> to vector<8x128xbf16>
    %330 = arith.extf %329 : vector<8x128xbf16> to vector<8x128xf32>
    %c656 = arith.constant 656 : index
    %c0_325 = arith.constant 0 : index
    %331 = vector.load %arg13[%c656, %c0_325] : memref<800x128xf32, #tpu.memory_space<vmem>>, vector<8x128xf32>
    tpu.vector_store %arg13[%c656, %c0_325], %330 {strides = array<i32>} : memref<800x128xf32, #tpu.memory_space<vmem>>, vector<8x128xf32>,
    %c0_326 = arith.constant 0 : index
    %c24_327 = arith.constant 24 : index
    %c22_328 = arith.constant 22 : index
    %332 = vector.load %arg1[%c0_326, %c24_327, %c22_328] : memref<1x128x256xbf16, #tpu.memory_space<vmem>>, vector<1x8x128xbf16>
    %333 = vector.shape_cast %332 : vector<1x8x128xbf16> to vector<8x128xbf16>
    %334 = arith.extf %333 : vector<8x128xbf16> to vector<8x128xf32>
    %c664 = arith.constant 664 : index
    %c0_329 = arith.constant 0 : index
    %335 = vector.load %arg13[%c664, %c0_329] : memref<800x128xf32, #tpu.memory_space<vmem>>, vector<8x128xf32>
    tpu.vector_store %arg13[%c664, %c0_329], %334 {strides = array<i32>} : memref<800x128xf32, #tpu.memory_space<vmem>>, vector<8x128xf32>,
    %c0_330 = arith.constant 0 : index
    %c0_331 = arith.constant 0 : index
    %c23 = arith.constant 23 : index
    %336 = vector.load %arg1[%c0_330, %c0_331, %c23] : memref<1x128x256xbf16, #tpu.memory_space<vmem>>, vector<1x8x128xbf16>
    %337 = vector.shape_cast %336 : vector<1x8x128xbf16> to vector<8x128xbf16>
    %338 = arith.extf %337 : vector<8x128xbf16> to vector<8x128xf32>
    %c672 = arith.constant 672 : index
    %c0_332 = arith.constant 0 : index
    %339 = vector.load %arg13[%c672, %c0_332] : memref<800x128xf32, #tpu.memory_space<vmem>>, vector<8x128xf32>
    tpu.vector_store %arg13[%c672, %c0_332], %338 {strides = array<i32>} : memref<800x128xf32, #tpu.memory_space<vmem>>, vector<8x128xf32>,
    %c0_333 = arith.constant 0 : index
    %c8_334 = arith.constant 8 : index
    %c23_335 = arith.constant 23 : index
    %340 = vector.load %arg1[%c0_333, %c8_334, %c23_335] : memref<1x128x256xbf16, #tpu.memory_space<vmem>>, vector<1x8x128xbf16>
    %341 = vector.shape_cast %340 : vector<1x8x128xbf16> to vector<8x128xbf16>
    %342 = arith.extf %341 : vector<8x128xbf16> to vector<8x128xf32>
    %c680 = arith.constant 680 : index
    %c0_336 = arith.constant 0 : index
    %343 = vector.load %arg13[%c680, %c0_336] : memref<800x128xf32, #tpu.memory_space<vmem>>, vector<8x128xf32>
    tpu.vector_store %arg13[%c680, %c0_336], %342 {strides = array<i32>} : memref<800x128xf32, #tpu.memory_space<vmem>>, vector<8x128xf32>,
    %c0_337 = arith.constant 0 : index
    %c16_338 = arith.constant 16 : index
    %c23_339 = arith.constant 23 : index
    %344 = vector.load %arg1[%c0_337, %c16_338, %c23_339] : memref<1x128x256xbf16, #tpu.memory_space<vmem>>, vector<1x8x128xbf16>
    %345 = vector.shape_cast %344 : vector<1x8x128xbf16> to vector<8x128xbf16>
    %346 = arith.extf %345 : vector<8x128xbf16> to vector<8x128xf32>
    %c688 = arith.constant 688 : index
    %c0_340 = arith.constant 0 : index
    %347 = vector.load %arg13[%c688, %c0_340] : memref<800x128xf32, #tpu.memory_space<vmem>>, vector<8x128xf32>
    tpu.vector_store %arg13[%c688, %c0_340], %346 {strides = array<i32>} : memref<800x128xf32, #tpu.memory_space<vmem>>, vector<8x128xf32>,
    %c0_341 = arith.constant 0 : index
    %c24_342 = arith.constant 24 : index
    %c23_343 = arith.constant 23 : index
    %348 = vector.load %arg1[%c0_341, %c24_342, %c23_343] : memref<1x128x256xbf16, #tpu.memory_space<vmem>>, vector<1x8x128xbf16>
    %349 = vector.shape_cast %348 : vector<1x8x128xbf16> to vector<8x128xbf16>
    %350 = arith.extf %349 : vector<8x128xbf16> to vector<8x128xf32>
    %c696 = arith.constant 696 : index
    %c0_344 = arith.constant 0 : index
    %351 = vector.load %arg13[%c696, %c0_344] : memref<800x128xf32, #tpu.memory_space<vmem>>, vector<8x128xf32>
    tpu.vector_store %arg13[%c696, %c0_344], %350 {strides = array<i32>} : memref<800x128xf32, #tpu.memory_space<vmem>>, vector<8x128xf32>,
    %c0_345 = arith.constant 0 : index
    %c0_346 = arith.constant 0 : index
    %c24_347 = arith.constant 24 : index
    %352 = vector.load %arg1[%c0_345, %c0_346, %c24_347] : memref<1x128x256xbf16, #tpu.memory_space<vmem>>, vector<1x8x128xbf16>
    %353 = vector.shape_cast %352 : vector<1x8x128xbf16> to vector<8x128xbf16>
    %354 = arith.extf %353 : vector<8x128xbf16> to vector<8x128xf32>
    %c704 = arith.constant 704 : index
    %c0_348 = arith.constant 0 : index
    %355 = vector.load %arg13[%c704, %c0_348] : memref<800x128xf32, #tpu.memory_space<vmem>>, vector<8x128xf32>
    tpu.vector_store %arg13[%c704, %c0_348], %354 {strides = array<i32>} : memref<800x128xf32, #tpu.memory_space<vmem>>, vector<8x128xf32>,
    %c0_349 = arith.constant 0 : index
    %c8_350 = arith.constant 8 : index
    %c24_351 = arith.constant 24 : index
    %356 = vector.load %arg1[%c0_349, %c8_350, %c24_351] : memref<1x128x256xbf16, #tpu.memory_space<vmem>>, vector<1x8x128xbf16>
    %357 = vector.shape_cast %356 : vector<1x8x128xbf16> to vector<8x128xbf16>
    %358 = arith.extf %357 : vector<8x128xbf16> to vector<8x128xf32>
    %c712 = arith.constant 712 : index
    %c0_352 = arith.constant 0 : index
    %359 = vector.load %arg13[%c712, %c0_352] : memref<800x128xf32, #tpu.memory_space<vmem>>, vector<8x128xf32>
    tpu.vector_store %arg13[%c712, %c0_352], %358 {strides = array<i32>} : memref<800x128xf32, #tpu.memory_space<vmem>>, vector<8x128xf32>,
    %c0_353 = arith.constant 0 : index
    %c32_354 = arith.constant 32 : index
    %c22_355 = arith.constant 22 : index
    %360 = vector.load %arg1[%c0_353, %c32_354, %c22_355] : memref<1x128x256xbf16, #tpu.memory_space<vmem>>, vector<1x8x128xbf16>
    %361 = vector.shape_cast %360 : vector<1x8x128xbf16> to vector<8x128xbf16>
    %362 = arith.extf %361 : vector<8x128xbf16> to vector<8x128xf32>
    %c720 = arith.constant 720 : index
    %c0_356 = arith.constant 0 : index
    %363 = vector.load %arg13[%c720, %c0_356] : memref<800x128xf32, #tpu.memory_space<vmem>>, vector<8x128xf32>
    tpu.vector_store %arg13[%c720, %c0_356], %362 {strides = array<i32>} : memref<800x128xf32, #tpu.memory_space<vmem>>, vector<8x128xf32>,
    %c0_357 = arith.constant 0 : index
    %c40_358 = arith.constant 40 : index
    %c22_359 = arith.constant 22 : index
    %364 = vector.load %arg1[%c0_357, %c40_358, %c22_359] : memref<1x128x256xbf16, #tpu.memory_space<vmem>>, vector<1x8x128xbf16>
    %365 = vector.shape_cast %364 : vector<1x8x128xbf16> to vector<8x128xbf16>
    %366 = arith.extf %365 : vector<8x128xbf16> to vector<8x128xf32>
    %c728 = arith.constant 728 : index
    %c0_360 = arith.constant 0 : index
    %367 = vector.load %arg13[%c728, %c0_360] : memref<800x128xf32, #tpu.memory_space<vmem>>, vector<8x128xf32>
    tpu.vector_store %arg13[%c728, %c0_360], %366 {strides = array<i32>} : memref<800x128xf32, #tpu.memory_space<vmem>>, vector<8x128xf32>,
    %c0_361 = arith.constant 0 : index
    %c48_362 = arith.constant 48 : index
    %c22_363 = arith.constant 22 : index
    %368 = vector.load %arg1[%c0_361, %c48_362, %c22_363] : memref<1x128x256xbf16, #tpu.memory_space<vmem>>, vector<1x8x128xbf16>
    %369 = vector.shape_cast %368 : vector<1x8x128xbf16> to vector<8x128xbf16>
    %370 = arith.extf %369 : vector<8x128xbf16> to vector<8x128xf32>
    %c736 = arith.constant 736 : index
    %c0_364 = arith.constant 0 : index
    %371 = vector.load %arg13[%c736, %c0_364] : memref<800x128xf32, #tpu.memory_space<vmem>>, vector<8x128xf32>
    tpu.vector_store %arg13[%c736, %c0_364], %370 {strides = array<i32>} : memref<800x128xf32, #tpu.memory_space<vmem>>, vector<8x128xf32>,
    %c0_365 = arith.constant 0 : index
    %c56_366 = arith.constant 56 : index
    %c22_367 = arith.constant 22 : index
    %372 = vector.load %arg1[%c0_365, %c56_366, %c22_367] : memref<1x128x256xbf16, #tpu.memory_space<vmem>>, vector<1x8x128xbf16>
    %373 = vector.shape_cast %372 : vector<1x8x128xbf16> to vector<8x128xbf16>
    %374 = arith.extf %373 : vector<8x128xbf16> to vector<8x128xf32>
    %c744 = arith.constant 744 : index
    %c0_368 = arith.constant 0 : index
    %375 = vector.load %arg13[%c744, %c0_368] : memref<800x128xf32, #tpu.memory_space<vmem>>, vector<8x128xf32>
    tpu.vector_store %arg13[%c744, %c0_368], %374 {strides = array<i32>} : memref<800x128xf32, #tpu.memory_space<vmem>>, vector<8x128xf32>,
    %c0_369 = arith.constant 0 : index
    %c32_370 = arith.constant 32 : index
    %c23_371 = arith.constant 23 : index
    %376 = vector.load %arg1[%c0_369, %c32_370, %c23_371] : memref<1x128x256xbf16, #tpu.memory_space<vmem>>, vector<1x8x128xbf16>
    %377 = vector.shape_cast %376 : vector<1x8x128xbf16> to vector<8x128xbf16>
    %378 = arith.extf %377 : vector<8x128xbf16> to vector<8x128xf32>
    %c752 = arith.constant 752 : index
    %c0_372 = arith.constant 0 : index
    %379 = vector.load %arg13[%c752, %c0_372] : memref<800x128xf32, #tpu.memory_space<vmem>>, vector<8x128xf32>
    tpu.vector_store %arg13[%c752, %c0_372], %378 {strides = array<i32>} : memref<800x128xf32, #tpu.memory_space<vmem>>, vector<8x128xf32>,
    %c0_373 = arith.constant 0 : index
    %c40_374 = arith.constant 40 : index
    %c23_375 = arith.constant 23 : index
    %380 = vector.load %arg1[%c0_373, %c40_374, %c23_375] : memref<1x128x256xbf16, #tpu.memory_space<vmem>>, vector<1x8x128xbf16>
    %381 = vector.shape_cast %380 : vector<1x8x128xbf16> to vector<8x128xbf16>
    %382 = arith.extf %381 : vector<8x128xbf16> to vector<8x128xf32>
    %c760 = arith.constant 760 : index
    %c0_376 = arith.constant 0 : index
    %383 = vector.load %arg13[%c760, %c0_376] : memref<800x128xf32, #tpu.memory_space<vmem>>, vector<8x128xf32>
    tpu.vector_store %arg13[%c760, %c0_376], %382 {strides = array<i32>} : memref<800x128xf32, #tpu.memory_space<vmem>>, vector<8x128xf32>,
    %c0_377 = arith.constant 0 : index
    %c48_378 = arith.constant 48 : index
    %c23_379 = arith.constant 23 : index
    %384 = vector.load %arg1[%c0_377, %c48_378, %c23_379] : memref<1x128x256xbf16, #tpu.memory_space<vmem>>, vector<1x8x128xbf16>
    %385 = vector.shape_cast %384 : vector<1x8x128xbf16> to vector<8x128xbf16>
    %386 = arith.extf %385 : vector<8x128xbf16> to vector<8x128xf32>
    %c768 = arith.constant 768 : index
    %c0_380 = arith.constant 0 : index
    %387 = vector.load %arg13[%c768, %c0_380] : memref<800x128xf32, #tpu.memory_space<vmem>>, vector<8x128xf32>
    tpu.vector_store %arg13[%c768, %c0_380], %386 {strides = array<i32>} : memref<800x128xf32, #tpu.memory_space<vmem>>, vector<8x128xf32>,
    %c0_381 = arith.constant 0 : index
    %c56_382 = arith.constant 56 : index
    %c23_383 = arith.constant 23 : index
    %388 = vector.load %arg1[%c0_381, %c56_382, %c23_383] : memref<1x128x256xbf16, #tpu.memory_space<vmem>>, vector<1x8x128xbf16>
    %389 = vector.shape_cast %388 : vector<1x8x128xbf16> to vector<8x128xbf16>
    %390 = arith.extf %389 : vector<8x128xbf16> to vector<8x128xf32>
    %c776 = arith.constant 776 : index
    %c0_384 = arith.constant 0 : index
    %391 = vector.load %arg13[%c776, %c0_384] : memref<800x128xf32, #tpu.memory_space<vmem>>, vector<8x128xf32>
    tpu.vector_store %arg13[%c776, %c0_384], %390 {strides = array<i32>} : memref<800x128xf32, #tpu.memory_space<vmem>>, vector<8x128xf32>,
    %c0_385 = arith.constant 0 : index
    %c32_386 = arith.constant 32 : index
    %c24_387 = arith.constant 24 : index
    %392 = vector.load %arg1[%c0_385, %c32_386, %c24_387] : memref<1x128x256xbf16, #tpu.memory_space<vmem>>, vector<1x8x128xbf16>
    %393 = vector.shape_cast %392 : vector<1x8x128xbf16> to vector<8x128xbf16>
    %394 = arith.extf %393 : vector<8x128xbf16> to vector<8x128xf32>
    %c784 = arith.constant 784 : index
    %c0_388 = arith.constant 0 : index
    %395 = vector.load %arg13[%c784, %c0_388] : memref<800x128xf32, #tpu.memory_space<vmem>>, vector<8x128xf32>
    tpu.vector_store %arg13[%c784, %c0_388], %394 {strides = array<i32>} : memref<800x128xf32, #tpu.memory_space<vmem>>, vector<8x128xf32>,
    %c0_389 = arith.constant 0 : index
    %c40_390 = arith.constant 40 : index
    %c24_391 = arith.constant 24 : index
    %396 = vector.load %arg1[%c0_389, %c40_390, %c24_391] : memref<1x128x256xbf16, #tpu.memory_space<vmem>>, vector<1x8x128xbf16>
    %397 = vector.shape_cast %396 : vector<1x8x128xbf16> to vector<8x128xbf16>
    %398 = arith.extf %397 : vector<8x128xbf16> to vector<8x128xf32>
    %c792 = arith.constant 792 : index
    %c0_392 = arith.constant 0 : index
    %399 = vector.load %arg13[%c792, %c0_392] : memref<800x128xf32, #tpu.memory_space<vmem>>, vector<8x128xf32>
    tpu.vector_store %arg13[%c792, %c0_392], %398 {strides = array<i32>} : memref<800x128xf32, #tpu.memory_space<vmem>>, vector<8x128xf32>,
    %c0_393 = arith.constant 0 : index
    %c0_394 = arith.constant 0 : index
    %400 = vector.load %arg2[%c0_393, %c0_394] : memref<32x800xbf16, #tpu.memory_space<vmem>>, vector<32x800xbf16>
    %c0_395 = arith.constant 0 : index
    %c0_396 = arith.constant 0 : index
    %401 = vector.load %arg13[%c0_395, %c0_396] : memref<800x128xf32, #tpu.memory_space<vmem>>, vector<800x128xf32>
    %402 = arith.truncf %401 : vector<800x128xf32> to vector<800x128xbf16>
    %cst = arith.constant dense<0.000000e+00> : vector<32x128xf32>
    %403 = tpu.matmul %400, %402, %cst {dimension_numbers = #tpu.dot_dimension_numbers<[1], [0], [0], [1], [0, 0, 1, 1], [], []>} : vector<32x800xbf16>, vector<800x128xbf16>, vector<32x128xf32> -> vector<32x128xf32>
    %c0_397 = arith.constant 0 : index
    %c0_398 = arith.constant 0 : index
    %404 = vector.load %arg3[%c0_397, %c0_398] : memref<32x1xf32, #tpu.memory_space<vmem>>, vector<32x1xf32>
    %405 = vector.broadcast %404 : vector<32x1xf32> to vector<32x128xf32>
    %406 = arith.addf %403, %405 : vector<32x128xf32>
    %cst_399 = arith.constant 0.000000e+00 : f32
    %407 = vector.broadcast %cst_399 : f32 to vector<32x128xf32>
    %408 = arith.maximumf %406, %407 : vector<32x128xf32>
    %c0_400 = arith.constant 0 : index
    %c0_401 = arith.constant 0 : index
    %409 = vector.load %arg14[%c0_400, %c0_401] : memref<32x256xf32, #tpu.memory_space<vmem>>, vector<32x128xf32>
    tpu.vector_store %arg14[%c0_400, %c0_401], %408 {strides = array<i32>} : memref<32x256xf32, #tpu.memory_space<vmem>>, vector<32x128xf32>,
    %cst_402 = arith.constant 0.000000e+00 : f32
    %410 = vector.broadcast %cst_402 : f32 to vector<32x128xf32>
    %c0_403 = arith.constant 0 : index
    %c128_404 = arith.constant 128 : index
    %411 = vector.load %arg14[%c0_403, %c128_404] : memref<32x256xf32, #tpu.memory_space<vmem>>, vector<32x128xf32>
    tpu.vector_store %arg14[%c0_403, %c128_404], %410 {strides = array<i32>} : memref<32x256xf32, #tpu.memory_space<vmem>>, vector<32x128xf32>,
    %c0_405 = arith.constant 0 : index
    %c0_406 = arith.constant 0 : index
    %412 = vector.load %arg14[%c0_405, %c0_406] : memref<32x256xf32, #tpu.memory_space<vmem>>, vector<8x128xf32>
    %c0_407 = arith.constant 0 : index
    %c0_408 = arith.constant 0 : index
    %413 = vector.load %arg15[%c0_407, %c0_408] : memref<128x128xf32, #tpu.memory_space<vmem>>, vector<8x128xf32>
    tpu.vector_store %arg15[%c0_407, %c0_408], %412 {strides = array<i32>} : memref<128x128xf32, #tpu.memory_space<vmem>>, vector<8x128xf32>,
    %c8_409 = arith.constant 8 : index
    %c0_410 = arith.constant 0 : index
    %414 = vector.load %arg14[%c8_409, %c0_410] : memref<32x256xf32, #tpu.memory_space<vmem>>, vector<8x128xf32>
    %c8_411 = arith.constant 8 : index
    %c0_412 = arith.constant 0 : index
    %415 = vector.load %arg15[%c8_411, %c0_412] : memref<128x128xf32, #tpu.memory_space<vmem>>, vector<8x128xf32>
    tpu.vector_store %arg15[%c8_411, %c0_412], %414 {strides = array<i32>} : memref<128x128xf32, #tpu.memory_space<vmem>>, vector<8x128xf32>,
    %c0_413 = arith.constant 0 : index
    %c1_414 = arith.constant 1 : index
    %416 = vector.load %arg14[%c0_413, %c1_414] : memref<32x256xf32, #tpu.memory_space<vmem>>, vector<8x128xf32>
    %c16_415 = arith.constant 16 : index
    %c0_416 = arith.constant 0 : index
    %417 = vector.load %arg15[%c16_415, %c0_416] : memref<128x128xf32, #tpu.memory_space<vmem>>, vector<8x128xf32>
    tpu.vector_store %arg15[%c16_415, %c0_416], %416 {strides = array<i32>} : memref<128x128xf32, #tpu.memory_space<vmem>>, vector<8x128xf32>,
    %c8_417 = arith.constant 8 : index
    %c1_418 = arith.constant 1 : index
    %418 = vector.load %arg14[%c8_417, %c1_418] : memref<32x256xf32, #tpu.memory_space<vmem>>, vector<8x128xf32>
    %c24_419 = arith.constant 24 : index
    %c0_420 = arith.constant 0 : index
    %419 = vector.load %arg15[%c24_419, %c0_420] : memref<128x128xf32, #tpu.memory_space<vmem>>, vector<8x128xf32>
    tpu.vector_store %arg15[%c24_419, %c0_420], %418 {strides = array<i32>} : memref<128x128xf32, #tpu.memory_space<vmem>>, vector<8x128xf32>,
    %c16_421 = arith.constant 16 : index
    %c0_422 = arith.constant 0 : index
    %420 = vector.load %arg14[%c16_421, %c0_422] : memref<32x256xf32, #tpu.memory_space<vmem>>, vector<8x128xf32>
    %c32_423 = arith.constant 32 : index
    %c0_424 = arith.constant 0 : index
    %421 = vector.load %arg15[%c32_423, %c0_424] : memref<128x128xf32, #tpu.memory_space<vmem>>, vector<8x128xf32>
    tpu.vector_store %arg15[%c32_423, %c0_424], %420 {strides = array<i32>} : memref<128x128xf32, #tpu.memory_space<vmem>>, vector<8x128xf32>,
    %c24_425 = arith.constant 24 : index
    %c0_426 = arith.constant 0 : index
    %422 = vector.load %arg14[%c24_425, %c0_426] : memref<32x256xf32, #tpu.memory_space<vmem>>, vector<8x128xf32>
    %c40_427 = arith.constant 40 : index
    %c0_428 = arith.constant 0 : index
    %423 = vector.load %arg15[%c40_427, %c0_428] : memref<128x128xf32, #tpu.memory_space<vmem>>, vector<8x128xf32>
    tpu.vector_store %arg15[%c40_427, %c0_428], %422 {strides = array<i32>} : memref<128x128xf32, #tpu.memory_space<vmem>>, vector<8x128xf32>,
    %c16_429 = arith.constant 16 : index
    %c1_430 = arith.constant 1 : index
    %424 = vector.load %arg14[%c16_429, %c1_430] : memref<32x256xf32, #tpu.memory_space<vmem>>, vector<8x128xf32>
    %c48_431 = arith.constant 48 : index
    %c0_432 = arith.constant 0 : index
    %425 = vector.load %arg15[%c48_431, %c0_432] : memref<128x128xf32, #tpu.memory_space<vmem>>, vector<8x128xf32>
    tpu.vector_store %arg15[%c48_431, %c0_432], %424 {strides = array<i32>} : memref<128x128xf32, #tpu.memory_space<vmem>>, vector<8x128xf32>,
    %c24_433 = arith.constant 24 : index
    %c1_434 = arith.constant 1 : index
    %426 = vector.load %arg14[%c24_433, %c1_434] : memref<32x256xf32, #tpu.memory_space<vmem>>, vector<8x128xf32>
    %c56_435 = arith.constant 56 : index
    %c0_436 = arith.constant 0 : index
    %427 = vector.load %arg15[%c56_435, %c0_436] : memref<128x128xf32, #tpu.memory_space<vmem>>, vector<8x128xf32>
    tpu.vector_store %arg15[%c56_435, %c0_436], %426 {strides = array<i32>} : memref<128x128xf32, #tpu.memory_space<vmem>>, vector<8x128xf32>,
    %c0_437 = arith.constant 0 : index
    %c11_438 = arith.constant 11 : index
    %428 = vector.load %arg14[%c0_437, %c11_438] : memref<32x256xf32, #tpu.memory_space<vmem>>, vector<8x128xf32>
    %c64_439 = arith.constant 64 : index
    %c0_440 = arith.constant 0 : index
    %429 = vector.load %arg15[%c64_439, %c0_440] : memref<128x128xf32, #tpu.memory_space<vmem>>, vector<8x128xf32>
    tpu.vector_store %arg15[%c64_439, %c0_440], %428 {strides = array<i32>} : memref<128x128xf32, #tpu.memory_space<vmem>>, vector<8x128xf32>,
    %c8_441 = arith.constant 8 : index
    %c11_442 = arith.constant 11 : index
    %430 = vector.load %arg14[%c8_441, %c11_442] : memref<32x256xf32, #tpu.memory_space<vmem>>, vector<8x128xf32>
    %c72_443 = arith.constant 72 : index
    %c0_444 = arith.constant 0 : index
    %431 = vector.load %arg15[%c72_443, %c0_444] : memref<128x128xf32, #tpu.memory_space<vmem>>, vector<8x128xf32>
    tpu.vector_store %arg15[%c72_443, %c0_444], %430 {strides = array<i32>} : memref<128x128xf32, #tpu.memory_space<vmem>>, vector<8x128xf32>,
    %c0_445 = arith.constant 0 : index
    %c12_446 = arith.constant 12 : index
    %432 = vector.load %arg14[%c0_445, %c12_446] : memref<32x256xf32, #tpu.memory_space<vmem>>, vector<8x128xf32>
    %c80_447 = arith.constant 80 : index
    %c0_448 = arith.constant 0 : index
    %433 = vector.load %arg15[%c80_447, %c0_448] : memref<128x128xf32, #tpu.memory_space<vmem>>, vector<8x128xf32>
    tpu.vector_store %arg15[%c80_447, %c0_448], %432 {strides = array<i32>} : memref<128x128xf32, #tpu.memory_space<vmem>>, vector<8x128xf32>,
    %c8_449 = arith.constant 8 : index
    %c12_450 = arith.constant 12 : index
    %434 = vector.load %arg14[%c8_449, %c12_450] : memref<32x256xf32, #tpu.memory_space<vmem>>, vector<8x128xf32>
    %c88_451 = arith.constant 88 : index
    %c0_452 = arith.constant 0 : index
    %435 = vector.load %arg15[%c88_451, %c0_452] : memref<128x128xf32, #tpu.memory_space<vmem>>, vector<8x128xf32>
    tpu.vector_store %arg15[%c88_451, %c0_452], %434 {strides = array<i32>} : memref<128x128xf32, #tpu.memory_space<vmem>>, vector<8x128xf32>,
    %c16_453 = arith.constant 16 : index
    %c11_454 = arith.constant 11 : index
    %436 = vector.load %arg14[%c16_453, %c11_454] : memref<32x256xf32, #tpu.memory_space<vmem>>, vector<8x128xf32>
    %c96_455 = arith.constant 96 : index
    %c0_456 = arith.constant 0 : index
    %437 = vector.load %arg15[%c96_455, %c0_456] : memref<128x128xf32, #tpu.memory_space<vmem>>, vector<8x128xf32>
    tpu.vector_store %arg15[%c96_455, %c0_456], %436 {strides = array<i32>} : memref<128x128xf32, #tpu.memory_space<vmem>>, vector<8x128xf32>,
    %c24_457 = arith.constant 24 : index
    %c11_458 = arith.constant 11 : index
    %438 = vector.load %arg14[%c24_457, %c11_458] : memref<32x256xf32, #tpu.memory_space<vmem>>, vector<8x128xf32>
    %c104_459 = arith.constant 104 : index
    %c0_460 = arith.constant 0 : index
    %439 = vector.load %arg15[%c104_459, %c0_460] : memref<128x128xf32, #tpu.memory_space<vmem>>, vector<8x128xf32>
    tpu.vector_store %arg15[%c104_459, %c0_460], %438 {strides = array<i32>} : memref<128x128xf32, #tpu.memory_space<vmem>>, vector<8x128xf32>,
    %c16_461 = arith.constant 16 : index
    %c12_462 = arith.constant 12 : index
    %440 = vector.load %arg14[%c16_461, %c12_462] : memref<32x256xf32, #tpu.memory_space<vmem>>, vector<8x128xf32>
    %c112_463 = arith.constant 112 : index
    %c0_464 = arith.constant 0 : index
    %441 = vector.load %arg15[%c112_463, %c0_464] : memref<128x128xf32, #tpu.memory_space<vmem>>, vector<8x128xf32>
    tpu.vector_store %arg15[%c112_463, %c0_464], %440 {strides = array<i32>} : memref<128x128xf32, #tpu.memory_space<vmem>>, vector<8x128xf32>,
    %c24_465 = arith.constant 24 : index
    %c12_466 = arith.constant 12 : index
    %442 = vector.load %arg14[%c24_465, %c12_466] : memref<32x256xf32, #tpu.memory_space<vmem>>, vector<8x128xf32>
    %c120_467 = arith.constant 120 : index
    %c0_468 = arith.constant 0 : index
    %443 = vector.load %arg15[%c120_467, %c0_468] : memref<128x128xf32, #tpu.memory_space<vmem>>, vector<8x128xf32>
    tpu.vector_store %arg15[%c120_467, %c0_468], %442 {strides = array<i32>} : memref<128x128xf32, #tpu.memory_space<vmem>>, vector<8x128xf32>,
    %c0_469 = arith.constant 0 : index
    %c0_470 = arith.constant 0 : index
    %444 = vector.load %arg4[%c0_469, %c0_470] : memref<10x128xbf16, #tpu.memory_space<vmem>>, vector<10x128xbf16>
    %c0_471 = arith.constant 0 : index
    %c0_472 = arith.constant 0 : index
    %445 = vector.load %arg15[%c0_471, %c0_472] : memref<128x128xf32, #tpu.memory_space<vmem>>, vector<128x128xf32>
    %446 = arith.truncf %445 : vector<128x128xf32> to vector<128x128xbf16>
    %cst_473 = arith.constant dense<0.000000e+00> : vector<10x128xf32>
    %447 = tpu.matmul %444, %446, %cst_473 {dimension_numbers = #tpu.dot_dimension_numbers<[1], [0], [0], [1], [0, 0, 1, 1], [], []>} : vector<10x128xbf16>, vector<128x128xbf16>, vector<10x128xf32> -> vector<10x128xf32>
    %c0_474 = arith.constant 0 : index
    %c0_475 = arith.constant 0 : index
    %448 = vector.load %arg5[%c0_474, %c0_475] : memref<10x1xf32, #tpu.memory_space<vmem>>, vector<10x1xf32>
    %449 = vector.broadcast %448 : vector<10x1xf32> to vector<10x128xf32>
    %450 = arith.addf %447, %449 : vector<10x128xf32>
    %cst_476 = arith.constant 0.000000e+00 : f32
    %451 = vector.broadcast %cst_476 : f32 to vector<10x128xf32>
    %452 = arith.maximumf %450, %451 : vector<10x128xf32>
    %453 = vector.extract_strided_slice %452 {offsets = [0, 0], sizes = [1, 128], strides = [1, 1]} : vector<10x128xf32> to vector<1x128xf32>
    %c0_477 = arith.constant 0 : index
    %c0_478 = arith.constant 0 : index
    %454 = vector.load %arg16[%c0_477, %c0_478] : memref<1x1280xf32, #tpu.memory_space<vmem>>, vector<1x128xf32>
    tpu.vector_store %arg16[%c0_477, %c0_478], %453 {strides = array<i32>} : memref<1x1280xf32, #tpu.memory_space<vmem>>, vector<1x128xf32>,
    %455 = vector.extract_strided_slice %452 {offsets = [1, 0], sizes = [1, 128], strides = [1, 1]} : vector<10x128xf32> to vector<1x128xf32>
    %c0_479 = arith.constant 0 : index
    %c128_480 = arith.constant 128 : index
    %456 = vector.load %arg16[%c0_479, %c128_480] : memref<1x1280xf32, #tpu.memory_space<vmem>>, vector<1x128xf32>
    tpu.vector_store %arg16[%c0_479, %c128_480], %455 {strides = array<i32>} : memref<1x1280xf32, #tpu.memory_space<vmem>>, vector<1x128xf32>,
    %457 = vector.extract_strided_slice %452 {offsets = [2, 0], sizes = [1, 128], strides = [1, 1]} : vector<10x128xf32> to vector<1x128xf32>
    %c0_481 = arith.constant 0 : index
    %c256_482 = arith.constant 256 : index
    %458 = vector.load %arg16[%c0_481, %c256_482] : memref<1x1280xf32, #tpu.memory_space<vmem>>, vector<1x128xf32>
    tpu.vector_store %arg16[%c0_481, %c256_482], %457 {strides = array<i32>} : memref<1x1280xf32, #tpu.memory_space<vmem>>, vector<1x128xf32>,
    %459 = vector.extract_strided_slice %452 {offsets = [3, 0], sizes = [1, 128], strides = [1, 1]} : vector<10x128xf32> to vector<1x128xf32>
    %c0_483 = arith.constant 0 : index
    %c384_484 = arith.constant 384 : index
    %460 = vector.load %arg16[%c0_483, %c384_484] : memref<1x1280xf32, #tpu.memory_space<vmem>>, vector<1x128xf32>
    tpu.vector_store %arg16[%c0_483, %c384_484], %459 {strides = array<i32>} : memref<1x1280xf32, #tpu.memory_space<vmem>>, vector<1x128xf32>,
    %461 = vector.extract_strided_slice %452 {offsets = [4, 0], sizes = [1, 128], strides = [1, 1]} : vector<10x128xf32> to vector<1x128xf32>
    %c0_485 = arith.constant 0 : index
    %c512_486 = arith.constant 512 : index
    %462 = vector.load %arg16[%c0_485, %c512_486] : memref<1x1280xf32, #tpu.memory_space<vmem>>, vector<1x128xf32>
    tpu.vector_store %arg16[%c0_485, %c512_486], %461 {strides = array<i32>} : memref<1x1280xf32, #tpu.memory_space<vmem>>, vector<1x128xf32>,
    %463 = vector.extract_strided_slice %452 {offsets = [5, 0], sizes = [1, 128], strides = [1, 1]} : vector<10x128xf32> to vector<1x128xf32>
    %c0_487 = arith.constant 0 : index
    %c640_488 = arith.constant 640 : index
    %464 = vector.load %arg16[%c0_487, %c640_488] : memref<1x1280xf32, #tpu.memory_space<vmem>>, vector<1x128xf32>
    tpu.vector_store %arg16[%c0_487, %c640_488], %463 {strides = array<i32>} : memref<1x1280xf32, #tpu.memory_space<vmem>>, vector<1x128xf32>,
    %465 = vector.extract_strided_slice %452 {offsets = [6, 0], sizes = [1, 128], strides = [1, 1]} : vector<10x128xf32> to vector<1x128xf32>
    %c0_489 = arith.constant 0 : index
    %c768_490 = arith.constant 768 : index
    %466 = vector.load %arg16[%c0_489, %c768_490] : memref<1x1280xf32, #tpu.memory_space<vmem>>, vector<1x128xf32>
    tpu.vector_store %arg16[%c0_489, %c768_490], %465 {strides = array<i32>} : memref<1x1280xf32, #tpu.memory_space<vmem>>, vector<1x128xf32>,
    %467 = vector.extract_strided_slice %452 {offsets = [7, 0], sizes = [1, 128], strides = [1, 1]} : vector<10x128xf32> to vector<1x128xf32>
    %c0_491 = arith.constant 0 : index
    %c896 = arith.constant 896 : index
    %468 = vector.load %arg16[%c0_491, %c896] : memref<1x1280xf32, #tpu.memory_space<vmem>>, vector<1x128xf32>
    tpu.vector_store %arg16[%c0_491, %c896], %467 {strides = array<i32>} : memref<1x1280xf32, #tpu.memory_space<vmem>>, vector<1x128xf32>,
    %469 = vector.extract_strided_slice %452 {offsets = [8, 0], sizes = [1, 128], strides = [1, 1]} : vector<10x128xf32> to vector<1x128xf32>
    %c0_492 = arith.constant 0 : index
    %c1024 = arith.constant 1024 : index
    %470 = vector.load %arg16[%c0_492, %c1024] : memref<1x1280xf32, #tpu.memory_space<vmem>>, vector<1x128xf32>
    tpu.vector_store %arg16[%c0_492, %c1024], %469 {strides = array<i32>} : memref<1x1280xf32, #tpu.memory_space<vmem>>, vector<1x128xf32>,
    %471 = vector.extract_strided_slice %452 {offsets = [9, 0], sizes = [1, 128], strides = [1, 1]} : vector<10x128xf32> to vector<1x128xf32>
    %c0_493 = arith.constant 0 : index
    %c1152 = arith.constant 1152 : index
    %472 = vector.load %arg16[%c0_493, %c1152] : memref<1x1280xf32, #tpu.memory_space<vmem>>, vector<1x128xf32>
    tpu.vector_store %arg16[%c0_493, %c1152], %471 {strides = array<i32>} : memref<1x1280xf32, #tpu.memory_space<vmem>>, vector<1x128xf32>,
    %c0_494 = arith.constant 0 : index
    %c0_495 = arith.constant 0 : index
    %473 = vector.load %arg16[%c0_494, %c0_495] : memref<1x1280xf32, #tpu.memory_space<vmem>>, vector<1x1280xf32>
    %474 = arith.truncf %473 : vector<1x1280xf32> to vector<1x1280xbf16>
    %c0_496 = arith.constant 0 : index
    %c0_497 = arith.constant 0 : index
    %475 = vector.load %arg6[%c0_496, %c0_497] : memref<1280x512xbf16, #tpu.memory_space<vmem>>, vector<1280x512xbf16>
    %cst_498 = arith.constant dense<0.000000e+00> : vector<1x512xf32>
    %476 = tpu.matmul %474, %475, %cst_498 {dimension_numbers = #tpu.dot_dimension_numbers<[1], [0], [0], [1], [0, 0, 1, 1], [], []>} : vector<1x1280xbf16>, vector<1280x512xbf16>, vector<1x512xf32> -> vector<1x512xf32>
    %c0_499 = arith.constant 0 : index
    %c0_500 = arith.constant 0 : index
    %477 = vector.load %arg7[%c0_499, %c0_500] : memref<1x512xf32, #tpu.memory_space<vmem>>, vector<1x512xf32>
    %478 = arith.addf %476, %477 : vector<1x512xf32>
    %cst_501 = arith.constant 0.000000e+00 : f32
    %479 = vector.broadcast %cst_501 : f32 to vector<1x512xf32>
    %480 = arith.maximumf %478, %479 : vector<1x512xf32>
    %481 = arith.truncf %480 : vector<1x512xf32> to vector<1x512xbf16>
    %c0_502 = arith.constant 0 : index
    %c0_503 = arith.constant 0 : index
    %482 = vector.load %arg8[%c0_502, %c0_503] : memref<512x512xbf16, #tpu.memory_space<vmem>>, vector<512x512xbf16>
    %cst_504 = arith.constant dense<0.000000e+00> : vector<1x512xf32>
    %483 = tpu.matmul %481, %482, %cst_504 {dimension_numbers = #tpu.dot_dimension_numbers<[1], [0], [0], [1], [0, 0, 1, 1], [], []>} : vector<1x512xbf16>, vector<512x512xbf16>, vector<1x512xf32> -> vector<1x512xf32>
    %c0_505 = arith.constant 0 : index
    %c0_506 = arith.constant 0 : index
    %484 = vector.load %arg9[%c0_505, %c0_506] : memref<1x512xf32, #tpu.memory_space<vmem>>, vector<1x512xf32>
    %485 = arith.addf %483, %484 : vector<1x512xf32>
    %cst_507 = arith.constant 0.000000e+00 : f32
    %486 = vector.broadcast %cst_507 : f32 to vector<1x512xf32>
    %487 = arith.maximumf %485, %486 : vector<1x512xf32>
    %c0_508 = arith.constant 0 : index
    %c0_509 = arith.constant 0 : index
    %488 = vector.load %arg10[%c0_508, %c0_509] : memref<512x128xf32, #tpu.memory_space<vmem>>, vector<512x128xf32>
    %cst_510 = arith.constant dense<0.000000e+00> : vector<1x128xf32>
    %489 = tpu.matmul %487, %488, %cst_510 {dimension_numbers = #tpu.dot_dimension_numbers<[1], [0], [0], [1], [0, 0, 1, 1], [], []>} : vector<1x512xf32>, vector<512x128xf32>, vector<1x128xf32> -> vector<1x128xf32>
    %c0_511 = arith.constant 0 : index
    %c0_512 = arith.constant 0 : index
    %490 = vector.load %arg11[%c0_511, %c0_512] : memref<1x128xf32, #tpu.memory_space<vmem>>, vector<1x128xf32>
    %491 = arith.addf %489, %490 : vector<1x128xf32>
    %c0_513 = arith.constant 0 : index
    %c0_514 = arith.constant 0 : index
    %c0_515 = arith.constant 0 : index
    %492 = vector.load %arg12[%c0_513, %c0_514, %c0_515] : memref<1x1x128xf32, #tpu.memory_space<vmem>>, vector<1x1x128xf32>
    %493 = vector.shape_cast %492 : vector<1x1x128xf32> to vector<1x128xf32>
    %494 = vector.shape_cast %491 : vector<1x128xf32> to vector<1x1x128xf32>
    tpu.vector_store %arg12[%c0_513, %c0_514, %c0_515], %494 {strides = array<i32>} : memref<1x1x128xf32, #tpu.memory_space<vmem>>, vector<1x1x128xf32>,
    return
  }
  func.func @transform_0(%arg0: i32) -> (i32, i32, i32) {
    %c0_i32 = arith.constant 0 : i32
    %c0_i32_0 = arith.constant 0 : i32
    %c0_i32_1 = arith.constant 0 : i32
    return %arg0, %c0_i32, %c0_i32_0 : i32, i32, i32
  }
  func.func @transform_1(%arg0: i32) -> (i32, i32) {
    %c0_i32 = arith.constant 0 : i32
    %c0_i32_0 = arith.constant 0 : i32
    %c0_i32_1 = arith.constant 0 : i32
    return %c0_i32, %c0_i32_0 : i32, i32
  }
  func.func @transform_2(%arg0: i32) -> (i32, i32) {
    %c0_i32 = arith.constant 0 : i32
    %c0_i32_0 = arith.constant 0 : i32
    %c0_i32_1 = arith.constant 0 : i32
    return %c0_i32, %c0_i32_0 : i32, i32
  }
  func.func @transform_3(%arg0: i32) -> (i32, i32) {
    %c0_i32 = arith.constant 0 : i32
    %c0_i32_0 = arith.constant 0 : i32
    %c0_i32_1 = arith.constant 0 : i32
    return %c0_i32, %c0_i32_0 : i32, i32
  }
  func.func @transform_4(%arg0: i32) -> (i32, i32) {
    %c0_i32 = arith.constant 0 : i32
    %c0_i32_0 = arith.constant 0 : i32
    %c0_i32_1 = arith.constant 0 : i32
    return %c0_i32, %c0_i32_0 : i32, i32
  }
  func.func @transform_5(%arg0: i32) -> (i32, i32) {
    %c0_i32 = arith.constant 0 : i32
    %c0_i32_0 = arith.constant 0 : i32
    %c0_i32_1 = arith.constant 0 : i32
    return %c0_i32, %c0_i32_0 : i32, i32
  }
  func.func @transform_6(%arg0: i32) -> (i32, i32) {
    %c0_i32 = arith.constant 0 : i32
    %c0_i32_0 = arith.constant 0 : i32
    %c0_i32_1 = arith.constant 0 : i32
    return %c0_i32, %c0_i32_0 : i32, i32
  }
  func.func @transform_7(%arg0: i32) -> (i32, i32) {
    %c0_i32 = arith.constant 0 : i32
    %c0_i32_0 = arith.constant 0 : i32
    %c0_i32_1 = arith.constant 0 : i32
    return %c0_i32, %c0_i32_0 : i32, i32
  }
  func.func @transform_8(%arg0: i32) -> (i32, i32) {
    %c0_i32 = arith.constant 0 : i32
    %c0_i32_0 = arith.constant 0 : i32
    %c0_i32_1 = arith.constant 0 : i32
    return %c0_i32, %c0_i32_0 : i32, i32
  }
  func.func @transform_9(%arg0: i32) -> (i32, i32) {
    %c0_i32 = arith.constant 0 : i32
    %c0_i32_0 = arith.constant 0 : i32
    %c0_i32_1 = arith.constant 0 : i32
    return %c0_i32, %c0_i32_0 : i32, i32
  }
  func.func @transform_10(%arg0: i32) -> (i32, i32) {
    %c0_i32 = arith.constant 0 : i32
    %c0_i32_0 = arith.constant 0 : i32
    %c0_i32_1 = arith.constant 0 : i32
    return %c0_i32, %c0_i32_0 : i32, i32
  }
  func.func @transform_11(%arg0: i32) -> (i32, i32, i32) {
    %c0_i32 = arith.constant 0 : i32
    %c0_i32_0 = arith.constant 0 : i32
    %c0_i32_1 = arith.constant 0 : i32
    return %arg0, %c0_i32, %c0_i32_0 : i32, i32, i32
  }
}

</mosaic_0001>

<llo_original>
// kernel: convnet_forward.1
$region0: #{convnet_forward.1}
  #allocation0 [shape = 'u32[]', space=smem, size = 0x4, offset = 0x4, fixed_abs, tag = 'smem constant byte address 0x4 - core index']
  #allocation1 [shape = 'u32[144,128]{1,0:T(1,128)}', space=vmem, size = 0x12000, scoped, tag = 'internal scratch']
  #allocation2 [shape = 'f32[800,128]{1,0:T(8,128)}', space=vmem, size = 0x64000, scoped, tag = 'scratch operand']
  #allocation3 [shape = 'f32[32,256]{1,0:T(8,128)}', space=vmem, size = 0x8000, scoped, tag = 'scratch operand']
  #allocation4 [shape = 'f32[128,128]{1,0:T(8,128)}', space=vmem, size = 0x10000, scoped, tag = 'scratch operand']
  #allocation5 [shape = 'f32[1,1280]{1,0:T(1,128)}', space=vmem, size = 0x1400, scoped, tag = 'scratch operand']
  %s0 = inlined_call_operand.vmem [shape: bf16[2,128,256], index: 0, kind: input, shape index: {}]
  %s1 = inlined_call_operand.vmem [shape: bf16[32,800], index: 1, kind: input, shape index: {}]
  %s2 = inlined_call_operand.vmem [shape: f32[32,1], index: 2, kind: input, shape index: {}]
  %s3 = inlined_call_operand.vmem [shape: bf16[10,128], index: 3, kind: input, shape index: {}]
  %s4 = inlined_call_operand.vmem [shape: f32[10,1], index: 4, kind: input, shape index: {}]
  %s5 = inlined_call_operand.vmem [shape: bf16[1280,512], index: 5, kind: input, shape index: {}]
  %s6 = inlined_call_operand.vmem [shape: f32[1,512], index: 6, kind: input, shape index: {}]
  %s7 = inlined_call_operand.vmem [shape: bf16[512,512], index: 7, kind: input, shape index: {}]
  %s8 = inlined_call_operand.vmem [shape: f32[1,512], index: 8, kind: input, shape index: {}]
  %s9 = inlined_call_operand.vmem [shape: f32[512,128], index: 9, kind: input, shape index: {}]
  %s10 = inlined_call_operand.vmem [shape: f32[1,128], index: 10, kind: input, shape index: {}]
  %s11 = inlined_call_operand.hbm [shape: f32[2,1,128], index: 11, kind: output, shape index: {}]
  %s12 = sld [smem:[#allocation0]]
  $region77: #{convnet_forward.1} parent=0
    _
  %s14 = ssub.s32 1, %s12
  %s15 = scalar_select 0, %s14, %s12
  $region1: #{convnet_forward.1} parent=0
    #allocation6 [shape = 'u8[1024]{0}', space=vmem, size = 0x400, scoped, tag = 'output window, operand 0']
    #allocation7 [shape = 's32[2]{0}', space=sflag, size = 0x8, scoped, tag = 'scoped memory for convnet_forward.1']
    %16 = vsyncpa [#allocation7], 0
    %s17 = scalar_lea.sflag [#allocation7], 1
    %18 = vsyncpa %s17, 0
    loop: start=0, step=1, limit=4
    $region2: #{convnet_forward.1} parent=1 // loop_pre_header
      _
    $region3: #{convnet_forward.1} parent=1 // loop_header
      %s20 = sphi 0, %s24
      %p21 = scmp.ge.s32.totalorder %s20, 4
      %s30 = sphi 0, %s32
      %s33 = sphi 0, %s30
      %s34 = sphi 0, %s33
      %s50 = sphi 0, %s34
      %s54 = sphi 0, %s54
      %s56 = sphi 0, %s54
      %s57 = sphi 0, %s56
      %s71 = sphi 0, %s57
      %s75 = sphi 0, %s75
      %s77 = sphi 0, %s75
      %s78 = sphi 0, %s77
      %s92 = sphi 0, %s78
      %s96 = sphi 0, %s96
      %s98 = sphi 0, %s96
      %s99 = sphi 0, %s98
      %s113 = sphi 0, %s99
      %s117 = sphi 0, %s117
      %s119 = sphi 0, %s117
      %s120 = sphi 0, %s119
      %s134 = sphi 0, %s120
      %s138 = sphi 0, %s138
      %s140 = sphi 0, %s138
      %s141 = sphi 0, %s140
      %s155 = sphi 0, %s141
      %s159 = sphi 0, %s159
      %s161 = sphi 0, %s159
      %s162 = sphi 0, %s161
      %s176 = sphi 0, %s162
      %s180 = sphi 0, %s180
      %s182 = sphi 0, %s180
      %s183 = sphi 0, %s182
      %s197 = sphi 0, %s183
      %s201 = sphi 0, %s201
      %s203 = sphi 0, %s201
      %s204 = sphi 0, %s203
      %s218 = sphi 0, %s204
      %s222 = sphi 0, %s222
      %s224 = sphi 0, %s222
      %s225 = sphi 0, %s224
      %s239 = sphi 0, %s225
      %s243 = sphi 0, %s243
      %s245 = sphi 0, %s243
      %s246 = sphi 0, %s245
      %s260 = sphi 0, %s246
      %s266 = sphi 0, %s268
      %s269 = sphi 0, %s266
      %s270 = sphi 0, %s269
      %s286 = sphi 0, %s270
    $region4: #{convnet_forward.1} parent=1 // loop_header_branch
      %23 = sbr.rel (%p21) target = $region8
    $region5: #{convnet_forward.1} parent=1 // loop_body
      %s25 = ssub.s32 %s20, 1
      %s26 = ssub.s32 %s20, 2
      %s27 = sadd.s32 %s20, 1
      %s28 = ssub.s32 %s20, %s27
      %p29 = scmp.eq.s32.totalorder %s28, 0
      %s31 = sadd.s32 %s30, 1
      %s32 = scalar_select %p29, %s30, %s31
      %p35 = pneg %p29
      %p36 = scmp.eq.s32.totalorder %s20, 1
      %p37 = por %p35, %p36
      %p38 = scmp.ne.s32.totalorder %s30, %s33
      %p39 = scmp.eq.s32.totalorder %s20, 0
      %p40 = por %p38, %p39
      %p41 = scmp.ne.s32.totalorder %s30, %s33
      %p42 = scmp.eq.s32.totalorder %s25, 1
      %p43 = por %p41, %p42
      %p44 = scmp.ne.s32.totalorder %s33, %s34
      %p45 = scmp.eq.s32.totalorder %s25, 0
      %p46 = por %p44, %p45
      %p47 = scmp.ne.s32.totalorder %s33, %s34
      %p48 = scmp.eq.s32.totalorder %s26, 1
      %p49 = por %p47, %p48
      %p51 = scmp.ne.s32.totalorder %s34, %s50
      %p52 = scmp.eq.s32.totalorder %s26, 0
      %p53 = por %p51, %p52
      %s55 = sadd.s32 %s54, 1
      %p58 = scmp.eq.s32.totalorder %s20, 1
      %p59 = scmp.ne.s32.totalorder %s54, %s56
      %p60 = scmp.eq.s32.totalorder %s20, 0
      %p61 = por %p59, %p60
      %p62 = scmp.ne.s32.totalorder %s54, %s56
      %p63 = scmp.eq.s32.totalorder %s25, 1
      %p64 = por %p62, %p63
      %p65 = scmp.ne.s32.totalorder %s56, %s57
      %p66 = scmp.eq.s32.totalorder %s25, 0
      %p67 = por %p65, %p66
      %p68 = scmp.ne.s32.totalorder %s56, %s57
      %p69 = scmp.eq.s32.totalorder %s26, 1
      %p70 = por %p68, %p69
      %p72 = scmp.ne.s32.totalorder %s57, %s71
      %p73 = scmp.eq.s32.totalorder %s26, 0
      %p74 = por %p72, %p73
      %s76 = sadd.s32 %s75, 1
      %p79 = scmp.eq.s32.totalorder %s20, 1
      %p80 = scmp.ne.s32.totalorder %s75, %s77
      %p81 = scmp.eq.s32.totalorder %s20, 0
      %p82 = por %p80, %p81
      %p83 = scmp.ne.s32.totalorder %s75, %s77
      %p84 = scmp.eq.s32.totalorder %s25, 1
      %p85 = por %p83, %p84
      %p86 = scmp.ne.s32.totalorder %s77, %s78
      %p87 = scmp.eq.s32.totalorder %s25, 0
      %p88 = por %p86, %p87
      %p89 = scmp.ne.s32.totalorder %s77, %s78
      %p90 = scmp.eq.s32.totalorder %s26, 1
      %p91 = por %p89, %p90
      %p93 = scmp.ne.s32.totalorder %s78, %s92
      %p94 = scmp.eq.s32.totalorder %s26, 0
      %p95 = por %p93, %p94
      %s97 = sadd.s32 %s96, 1
      %p100 = scmp.eq.s32.totalorder %s20, 1
      %p101 = scmp.ne.s32.totalorder %s96, %s98
      %p102 = scmp.eq.s32.totalorder %s20, 0
      %p103 = por %p101, %p102
      %p104 = scmp.ne.s32.totalorder %s96, %s98
      %p105 = scmp.eq.s32.totalorder %s25, 1
      %p106 = por %p104, %p105
      %p107 = scmp.ne.s32.totalorder %s98, %s99
      %p108 = scmp.eq.s32.totalorder %s25, 0
      %p109 = por %p107, %p108
      %p110 = scmp.ne.s32.totalorder %s98, %s99
      %p111 = scmp.eq.s32.totalorder %s26, 1
      %p112 = por %p110, %p111
      %p114 = scmp.ne.s32.totalorder %s99, %s113
      %p115 = scmp.eq.s32.totalorder %s26, 0
      %p116 = por %p114, %p115
      %s118 = sadd.s32 %s117, 1
      %p121 = scmp.eq.s32.totalorder %s20, 1
      %p122 = scmp.ne.s32.totalorder %s117, %s119
      %p123 = scmp.eq.s32.totalorder %s20, 0
      %p124 = por %p122, %p123
      %p125 = scmp.ne.s32.totalorder %s117, %s119
      %p126 = scmp.eq.s32.totalorder %s25, 1
      %p127 = por %p125, %p126
      %p128 = scmp.ne.s32.totalorder %s119, %s120
      %p129 = scmp.eq.s32.totalorder %s25, 0
      %p130 = por %p128, %p129
      %p131 = scmp.ne.s32.totalorder %s119, %s120
      %p132 = scmp.eq.s32.totalorder %s26, 1
      %p133 = por %p131, %p132
      %p135 = scmp.ne.s32.totalorder %s120, %s134
      %p136 = scmp.eq.s32.totalorder %s26, 0
      %p137 = por %p135, %p136
      %s139 = sadd.s32 %s138, 1
      %p142 = scmp.eq.s32.totalorder %s20, 1
      %p143 = scmp.ne.s32.totalorder %s138, %s140
      %p144 = scmp.eq.s32.totalorder %s20, 0
      %p145 = por %p143, %p144
      %p146 = scmp.ne.s32.totalorder %s138, %s140
      %p147 = scmp.eq.s32.totalorder %s25, 1
      %p148 = por %p146, %p147
      %p149 = scmp.ne.s32.totalorder %s140, %s141
      %p150 = scmp.eq.s32.totalorder %s25, 0
      %p151 = por %p149, %p150
      %p152 = scmp.ne.s32.totalorder %s140, %s141
      %p153 = scmp.eq.s32.totalorder %s26, 1
      %p154 = por %p152, %p153
      %p156 = scmp.ne.s32.totalorder %s141, %s155
      %p157 = scmp.eq.s32.totalorder %s26, 0
      %p158 = por %p156, %p157
      %s160 = sadd.s32 %s159, 1
      %p163 = scmp.eq.s32.totalorder %s20, 1
      %p164 = scmp.ne.s32.totalorder %s159, %s161
      %p165 = scmp.eq.s32.totalorder %s20, 0
      %p166 = por %p164, %p165
      %p167 = scmp.ne.s32.totalorder %s159, %s161
      %p168 = scmp.eq.s32.totalorder %s25, 1
      %p169 = por %p167, %p168
      %p170 = scmp.ne.s32.totalorder %s161, %s162
      %p171 = scmp.eq.s32.totalorder %s25, 0
      %p172 = por %p170, %p171
      %p173 = scmp.ne.s32.totalorder %s161, %s162
      %p174 = scmp.eq.s32.totalorder %s26, 1
      %p175 = por %p173, %p174
      %p177 = scmp.ne.s32.totalorder %s162, %s176
      %p178 = scmp.eq.s32.totalorder %s26, 0
      %p179 = por %p177, %p178
      %s181 = sadd.s32 %s180, 1
      %p184 = scmp.eq.s32.totalorder %s20, 1
      %p185 = scmp.ne.s32.totalorder %s180, %s182
      %p186 = scmp.eq.s32.totalorder %s20, 0
      %p187 = por %p185, %p186
      %p188 = scmp.ne.s32.totalorder %s180, %s182
      %p189 = scmp.eq.s32.totalorder %s25, 1
      %p190 = por %p188, %p189
      %p191 = scmp.ne.s32.totalorder %s182, %s183
      %p192 = scmp.eq.s32.totalorder %s25, 0
      %p193 = por %p191, %p192
      %p194 = scmp.ne.s32.totalorder %s182, %s183
      %p195 = scmp.eq.s32.totalorder %s26, 1
      %p196 = por %p194, %p195
      %p198 = scmp.ne.s32.totalorder %s183, %s197
      %p199 = scmp.eq.s32.totalorder %s26, 0
      %p200 = por %p198, %p199
      %s202 = sadd.s32 %s201, 1
      %p205 = scmp.eq.s32.totalorder %s20, 1
      %p206 = scmp.ne.s32.totalorder %s201, %s203
      %p207 = scmp.eq.s32.totalorder %s20, 0
      %p208 = por %p206, %p207
      %p209 = scmp.ne.s32.totalorder %s201, %s203
      %p210 = scmp.eq.s32.totalorder %s25, 1
      %p211 = por %p209, %p210
      %p212 = scmp.ne.s32.totalorder %s203, %s204
      %p213 = scmp.eq.s32.totalorder %s25, 0
      %p214 = por %p212, %p213
      %p215 = scmp.ne.s32.totalorder %s203, %s204
      %p216 = scmp.eq.s32.totalorder %s26, 1
      %p217 = por %p215, %p216
      %p219 = scmp.ne.s32.totalorder %s204, %s218
      %p220 = scmp.eq.s32.totalorder %s26, 0
      %p221 = por %p219, %p220
      %s223 = sadd.s32 %s222, 1
      %p226 = scmp.eq.s32.totalorder %s20, 1
      %p227 = scmp.ne.s32.totalorder %s222, %s224
      %p228 = scmp.eq.s32.totalorder %s20, 0
      %p229 = por %p227, %p228
      %p230 = scmp.ne.s32.totalorder %s222, %s224
      %p231 = scmp.eq.s32.totalorder %s25, 1
      %p232 = por %p230, %p231
      %p233 = scmp.ne.s32.totalorder %s224, %s225
      %p234 = scmp.eq.s32.totalorder %s25, 0
      %p235 = por %p233, %p234
      %p236 = scmp.ne.s32.totalorder %s224, %s225
      %p237 = scmp.eq.s32.totalorder %s26, 1
      %p238 = por %p236, %p237
      %p240 = scmp.ne.s32.totalorder %s225, %s239
      %p241 = scmp.eq.s32.totalorder %s26, 0
      %p242 = por %p240, %p241
      %s244 = sadd.s32 %s243, 1
      %p247 = scmp.eq.s32.totalorder %s20, 1
      %p248 = scmp.ne.s32.totalorder %s243, %s245
      %p249 = scmp.eq.s32.totalorder %s20, 0
      %p250 = por %p248, %p249
      %p251 = scmp.ne.s32.totalorder %s243, %s245
      %p252 = scmp.eq.s32.totalorder %s25, 1
      %p253 = por %p251, %p252
      %p254 = scmp.ne.s32.totalorder %s245, %s246
      %p255 = scmp.eq.s32.totalorder %s25, 0
      %p256 = por %p254, %p255
      %p257 = scmp.ne.s32.totalorder %s245, %s246
      %p258 = scmp.eq.s32.totalorder %s26, 1
      %p259 = por %p257, %p258
      %p261 = scmp.ne.s32.totalorder %s246, %s260
      %p262 = scmp.eq.s32.totalorder %s26, 0
      %p263 = por %p261, %p262
      %s264 = ssub.s32 %s20, %s27
      %p265 = scmp.eq.s32.totalorder %s264, 0
      %s267 = sadd.s32 %s266, 1
      %s268 = scalar_select %p265, %s266, %s267
      %p271 = pneg %p265
      %p272 = scmp.eq.s32.totalorder %s20, 1
      %p273 = por %p271, %p272
      %p274 = scmp.ne.s32.totalorder %s266, %s269
      %p275 = scmp.eq.s32.totalorder %s20, 0
      %p276 = por %p274, %p275
      %p277 = scmp.ne.s32.totalorder %s266, %s269
      %p278 = scmp.eq.s32.totalorder %s25, 1
      %p279 = por %p277, %p278
      %p280 = scmp.ne.s32.totalorder %s269, %s270
      %p281 = scmp.eq.s32.totalorder %s25, 0
      %p282 = por %p280, %p281
      %p283 = scmp.ne.s32.totalorder %s269, %s270
      %p284 = scmp.eq.s32.totalorder %s26, 1
      %p285 = por %p283, %p284
      %p287 = scmp.ne.s32.totalorder %s270, %s286
      %p288 = scmp.eq.s32.totalorder %s26, 0
      %p289 = por %p287, %p288
      %p290 = scmp.le.s32.totalorder 1, %s20
      %p291 = scmp.lt.s32.totalorder %s20, 3
      %p292 = pnand %p290, %p291
      %p293 = pneg %p292
      // Predicated region
      $region9: #{convnet_forward.1} parent=5 // pred_check
        _
      $region10: #{convnet_forward.1} parent=5 // pred_check_branch
        %295 = sbr.rel (%p292) target = $region12
      $region11: #{convnet_forward.1} parent=5 // pred_region
        %s296 = ssub.s32 %s20, 1
        // Predicated region
        $region13: #{convnet_forward.1} parent=11 // pred_check
          %p297 = pneg %p67
        $region14: #{convnet_forward.1} parent=11 // pred_check_branch
          %299 = sbr.rel (%p297) target = $region16
        $region15: #{convnet_forward.1} parent=11 // pred_region
          _
        $region16: #{convnet_forward.1} parent=11 // pred_fallthru
          _
        // Predicated region
        $region17: #{convnet_forward.1} parent=11 // pred_check
          %p300 = pneg %p88
        $region18: #{convnet_forward.1} parent=11 // pred_check_branch
          %302 = sbr.rel (%p300) target = $region20
        $region19: #{convnet_forward.1} parent=11 // pred_region
          _
        $region20: #{convnet_forward.1} parent=11 // pred_fallthru
          _
        // Predicated region
        $region21: #{convnet_forward.1} parent=11 // pred_check
          %p303 = pneg %p109
        $region22: #{convnet_forward.1} parent=11 // pred_check_branch
          %305 = sbr.rel (%p303) target = $region24
        $region23: #{convnet_forward.1} parent=11 // pred_region
          _
        $region24: #{convnet_forward.1} parent=11 // pred_fallthru
          _
        // Predicated region
        $region25: #{convnet_forward.1} parent=11 // pred_check
          %p306 = pneg %p130
        $region26: #{convnet_forward.1} parent=11 // pred_check_branch
          %308 = sbr.rel (%p306) target = $region28
        $region27: #{convnet_forward.1} parent=11 // pred_region
          _
        $region28: #{convnet_forward.1} parent=11 // pred_fallthru
          _
        // Predicated region
        $region29: #{convnet_forward.1} parent=11 // pred_check
          %p309 = pneg %p151
        $region30: #{convnet_forward.1} parent=11 // pred_check_branch
          %311 = sbr.rel (%p309) target = $region32
        $region31: #{convnet_forward.1} parent=11 // pred_region
          _
        $region32: #{convnet_forward.1} parent=11 // pred_fallthru
          _
        // Predicated region
        $region33: #{convnet_forward.1} parent=11 // pred_check
          %p312 = pneg %p172
        $region34: #{convnet_forward.1} parent=11 // pred_check_branch
          %314 = sbr.rel (%p312) target = $region36
        $region35: #{convnet_forward.1} parent=11 // pred_region
          _
        $region36: #{convnet_forward.1} parent=11 // pred_fallthru
          _
        // Predicated region
        $region37: #{convnet_forward.1} parent=11 // pred_check
          %p315 = pneg %p193
        $region38: #{convnet_forward.1} parent=11 // pred_check_branch
          %317 = sbr.rel (%p315) target = $region40
        $region39: #{convnet_forward.1} parent=11 // pred_region
          _
        $region40: #{convnet_forward.1} parent=11 // pred_fallthru
          _
        // Predicated region
        $region41: #{convnet_forward.1} parent=11 // pred_check
          %p318 = pneg %p214
        $region42: #{convnet_forward.1} parent=11 // pred_check_branch
          %320 = sbr.rel (%p318) target = $region44
        $region43: #{convnet_forward.1} parent=11 // pred_region
          _
        $region44: #{convnet_forward.1} parent=11 // pred_fallthru
          _
        // Predicated region
        $region45: #{convnet_forward.1} parent=11 // pred_check
          %p321 = pneg %p235
        $region46: #{convnet_forward.1} parent=11 // pred_check_branch
          %323 = sbr.rel (%p321) target = $region48
        $region47: #{convnet_forward.1} parent=11 // pred_region
          _
        $region48: #{convnet_forward.1} parent=11 // pred_fallthru
          _
        // Predicated region
        $region49: #{convnet_forward.1} parent=11 // pred_check
          %p324 = pneg %p256
        $region50: #{convnet_forward.1} parent=11 // pred_check_branch
          %326 = sbr.rel (%p324) target = $region52
        $region51: #{convnet_forward.1} parent=11 // pred_region
          _
        $region52: #{convnet_forward.1} parent=11 // pred_fallthru
          _
      $region12: #{convnet_forward.1} parent=5 // pred_fallthru
        _
      %p327 = scmp.lt.s32.totalorder %s20, 2
      // Predicated region
      $region53: #{convnet_forward.1} parent=5 // pred_check
        %p328 = pneg %p327
      $region54: #{convnet_forward.1} parent=5 // pred_check_branch
        %330 = sbr.rel (%p328) target = $region56
      $region55: #{convnet_forward.1} parent=5 // pred_region
        // Predicated region
        $region57: #{convnet_forward.1} parent=55 // pred_check
          %p331 = pneg %p40
        $region58: #{convnet_forward.1} parent=55 // pred_check_branch
          %333 = sbr.rel (%p331) target = $region60
        $region59: #{convnet_forward.1} parent=55 // pred_region
          %p334 = scmp.lt.s32.totalorder %s20, 1
          %s335 = scalar_select %p334, %s20, 1
          %s336 = smul.addr %s335, 32
          %s337 = smul.addr %s336, 4
          %s338 = scalar_lea.vmem %s0, %s337
        $region60: #{convnet_forward.1} parent=55 // pred_fallthru
          _
      $region56: #{convnet_forward.1} parent=5 // pred_fallthru
        _
      %p339 = scmp.le.s32.totalorder 1, %s20
      %p340 = scmp.lt.s32.totalorder %s20, 3
      %p341 = pnand %p339, %p340
      %p342 = pneg %p341
      // Predicated region
      $region61: #{convnet_forward.1} parent=5 // pred_check
        _
      $region62: #{convnet_forward.1} parent=5 // pred_check_branch
        %344 = sbr.rel (%p341) target = $region64
      $region63: #{convnet_forward.1} parent=5 // pred_region
        %s345 = ssub.s32 %s20, 1
        %p346 = scmp.lt.s32.totalorder %s25, 1
        %s347 = scalar_select %p346, %s25, 1
        %s348 = smul.addr %s347, 32
        %s349 = smul.addr %s348, 4
        %s350 = scalar_lea.vmem %s0, %s349
        %p351 = pneg %p46
        %p352 = pneg %p43
        %p353 = pneg %p67
        %p354 = pneg %p64
        %p355 = pneg %p88
        %p356 = pneg %p85
        %p357 = pneg %p109
        %p358 = pneg %p106
        %p359 = pneg %p130
        %p360 = pneg %p127
        %p361 = pneg %p151
        %p362 = pneg %p148
        %p363 = pneg %p172
        %p364 = pneg %p169
        %p365 = pneg %p193
        %p366 = pneg %p190
        %p367 = pneg %p214
        %p368 = pneg %p211
        %p369 = pneg %p235
        %p370 = pneg %p232
        %p371 = pneg %p256
        %p372 = pneg %p253
        %p373 = pneg %p282
        %p374 = pneg %p279
        %s375 = sand.u32 %s269, 1
        %s376 = scalar_lea.sflag [#allocation7], %s375
        %s377 = sand.u32 %s269, 1
        %s378 = scalar_lea.vmem [#allocation6], %s377
        %p379 = scmp.lt.s32.totalorder %s25, 1
        %s380 = scalar_select %p379, %s25, 1
        %s381 = smul.addr %s380, 32
        %s382 = smul.addr %s381, 4
        %s383 = scalar_lea.vmem %s0, %s382
        %v385 = vld [vmem:[%s383] sm:$0xf]
        %v386 = vunpack.c.l.bf16 %v385
        %387 = vst [vmem:[#allocation2] sm:$0xff] %v386
        %v388 = vld [vmem:[%s383 + $0x8] sm:$0xf]
        %v389 = vunpack.c.l.bf16 %v388
        %390 = vst [vmem:[#allocation2 + $0x8] sm:$0xff] %v389
        %v391 = vld [vmem:[%s383 + $0x10] sm:$0xf]
        %v392 = vunpack.c.l.bf16 %v391
        %393 = vst [vmem:[#allocation2 + $0x10] sm:$0xff] %v392
        %v394 = vld [vmem:[%s383 + $0x18] sm:$0xf]
        %v395 = vunpack.c.l.bf16 %v394
        %396 = vst [vmem:[#allocation2 + $0x18] sm:$0xff] %v395
        %v397 = vld [vmem:[%s383] sm:$0xff]
        %v398 = vunpack.c.l.bf16 %v397
        %v399 = vunpack.c.h.bf16 %v397
        %402 = vrot.lane.b32.xlu0 %v398, 127
        %v403 = vpop.permute.xlu0 %402
        %404 = vrot.lane.b32.xlu0 %v399, 127
        %v405 = vpop.permute.xlu0 %404
        %vm406 = vcmask 1039360
        %v407 = vsel %vm406, %v403, %v405
        %409 = vst [vmem:[#allocation2 + $0x20] sm:$0xff] %v407
        %v410 = vld [vmem:[%s383 + $0x8] sm:$0xff]
        %v411 = vunpack.c.l.bf16 %v410
        %v412 = vunpack.c.h.bf16 %v410
        %415 = vrot.lane.b32.xlu0 %v411, 127
        %v416 = vpop.permute.xlu0 %415
        %417 = vrot.lane.b32.xlu0 %v412, 127
        %v418 = vpop.permute.xlu0 %417
        %v419 = vsel %vm406, %v416, %v418
        %421 = vst [vmem:[#allocation2 + $0x28] sm:$0xff] %v419
        %v422 = vld [vmem:[%s383 + $0x10] sm:$0xff]
        %v423 = vunpack.c.l.bf16 %v422
        %v424 = vunpack.c.h.bf16 %v422
        %427 = vrot.lane.b32.xlu0 %v423, 127
        %v428 = vpop.permute.xlu0 %427
        %429 = vrot.lane.b32.xlu0 %v424, 127
        %v430 = vpop.permute.xlu0 %429
        %v431 = vsel %vm406, %v428, %v430
        %433 = vst [vmem:[#allocation2 + $0x30] sm:$0xff] %v431
        %v434 = vld [vmem:[%s383 + $0x18] sm:$0xff]
        %v435 = vunpack.c.l.bf16 %v434
        %v436 = vunpack.c.h.bf16 %v434
        %439 = vrot.lane.b32.xlu0 %v435, 127
        %v440 = vpop.permute.xlu0 %439
        %441 = vrot.lane.b32.xlu0 %v436, 127
        %v442 = vpop.permute.xlu0 %441
        %v443 = vsel %vm406, %v440, %v442
        %445 = vst [vmem:[#allocation2 + $0x38] sm:$0xff] %v443
        %v446 = vld [vmem:[%s383] sm:$0xff]
        %v447 = vunpack.c.l.bf16 %v446
        %v448 = vunpack.c.h.bf16 %v446
        %451 = vrot.lane.b32.xlu0 %v447, 126
        %v452 = vpop.permute.xlu0 %451
        %453 = vrot.lane.b32.xlu0 %v448, 126
        %v454 = vpop.permute.xlu0 %453
        %vm455 = vcmask 1031168
        %v456 = vsel %vm455, %v452, %v454
        %458 = vst [vmem:[#allocation2 + $0x40] sm:$0xff] %v456
        %v459 = vld [vmem:[%s383 + $0x8] sm:$0xff]
        %v460 = vunpack.c.l.bf16 %v459
        %v461 = vunpack.c.h.bf16 %v459
        %464 = vrot.lane.b32.xlu0 %v460, 126
        %v465 = vpop.permute.xlu0 %464
        %466 = vrot.lane.b32.xlu0 %v461, 126
        %v467 = vpop.permute.xlu0 %466
        %v468 = vsel %vm455, %v465, %v467
        %470 = vst [vmem:[#allocation2 + $0x48] sm:$0xff] %v468
        %v471 = vld [vmem:[%s383 + $0x20] sm:$0xf]
        %v472 = vunpack.c.l.bf16 %v471
        %473 = vst [vmem:[#allocation2 + $0x50] sm:$0xff] %v472
        %v474 = vld [vmem:[%s383 + $0x28] sm:$0xf]
        %v475 = vunpack.c.l.bf16 %v474
        %476 = vst [vmem:[#allocation2 + $0x58] sm:$0xff] %v475
        %v477 = vld [vmem:[%s383 + $0x30] sm:$0xf]
        %v478 = vunpack.c.l.bf16 %v477
        %479 = vst [vmem:[#allocation2 + $0x60] sm:$0xff] %v478
        %v480 = vld [vmem:[%s383 + $0x38] sm:$0xf]
        %v481 = vunpack.c.l.bf16 %v480
        %482 = vst [vmem:[#allocation2 + $0x68] sm:$0xff] %v481
        %v483 = vld [vmem:[%s383 + $0x20] sm:$0xff]
        %v484 = vunpack.c.l.bf16 %v483
        %v485 = vunpack.c.h.bf16 %v483
        %488 = vrot.lane.b32.xlu0 %v484, 127
        %v489 = vpop.permute.xlu0 %488
        %490 = vrot.lane.b32.xlu0 %v485, 127
        %v491 = vpop.permute.xlu0 %490
        %v492 = vsel %vm406, %v489, %v491
        %494 = vst [vmem:[#allocation2 + $0x70] sm:$0xff] %v492
        %v495 = vld [vmem:[%s383 + $0x28] sm:$0xff]
        %v496 = vunpack.c.l.bf16 %v495
        %v497 = vunpack.c.h.bf16 %v495
        %500 = vrot.lane.b32.xlu0 %v496, 127
        %v501 = vpop.permute.xlu0 %500
        %502 = vrot.lane.b32.xlu0 %v497, 127
        %v503 = vpop.permute.xlu0 %502
        %v504 = vsel %vm406, %v501, %v503
        %506 = vst [vmem:[#allocation2 + $0x78] sm:$0xff] %v504
        %v507 = vld [vmem:[%s383 + $0x30] sm:$0xff]
        %v508 = vunpack.c.l.bf16 %v507
        %v509 = vunpack.c.h.bf16 %v507
        %512 = vrot.lane.b32.xlu0 %v508, 127
        %v513 = vpop.permute.xlu0 %512
        %514 = vrot.lane.b32.xlu0 %v509, 127
        %v515 = vpop.permute.xlu0 %514
        %v516 = vsel %vm406, %v513, %v515
        %518 = vst [vmem:[#allocation2 + $0x80] sm:$0xff] %v516
        %v519 = vld [vmem:[%s383 + $0x38] sm:$0xff]
        %v520 = vunpack.c.l.bf16 %v519
        %v521 = vunpack.c.h.bf16 %v519
        %524 = vrot.lane.b32.xlu0 %v520, 127
        %v525 = vpop.permute.xlu0 %524
        %526 = vrot.lane.b32.xlu0 %v521, 127
        %v527 = vpop.permute.xlu0 %526
        %v528 = vsel %vm406, %v525, %v527
        %530 = vst [vmem:[#allocation2 + $0x88] sm:$0xff] %v528
        %v531 = vld [vmem:[%s383 + $0x20] sm:$0xff]
        %v532 = vunpack.c.l.bf16 %v531
        %v533 = vunpack.c.h.bf16 %v531
        %536 = vrot.lane.b32.xlu0 %v532, 126
        %v537 = vpop.permute.xlu0 %536
        %538 = vrot.lane.b32.xlu0 %v533, 126
        %v539 = vpop.permute.xlu0 %538
        %v540 = vsel %vm455, %v537, %v539
        %542 = vst [vmem:[#allocation2 + $0x90] sm:$0xff] %v540
        %v543 = vld [vmem:[%s383 + $0x28] sm:$0xff]
        %v544 = vunpack.c.l.bf16 %v543
        %v545 = vunpack.c.h.bf16 %v543
        %548 = vrot.lane.b32.xlu0 %v544, 126
        %v549 = vpop.permute.xlu0 %548
        %550 = vrot.lane.b32.xlu0 %v545, 126
        %v551 = vpop.permute.xlu0 %550
        %v552 = vsel %vm455, %v549, %v551
        %554 = vst [vmem:[#allocation2 + $0x98] sm:$0xff] %v552
        %v555 = vld [vmem:[%s383 + $0x40] sm:$0xf]
        %v556 = vunpack.c.l.bf16 %v555
        %557 = vst [vmem:[#allocation2 + $0xa0] sm:$0xff] %v556
        %v558 = vld [vmem:[%s383 + $0x48] sm:$0xf]
        %v559 = vunpack.c.l.bf16 %v558
        %560 = vst [vmem:[#allocation2 + $0xa8] sm:$0xff] %v559
        %v561 = vld [vmem:[%s383 + $0x50] sm:$0xf]
        %v562 = vunpack.c.l.bf16 %v561
        %563 = vst [vmem:[#allocation2 + $0xb0] sm:$0xff] %v562
        %v564 = vld [vmem:[%s383 + $0x58] sm:$0xf]
        %v565 = vunpack.c.l.bf16 %v564
        %566 = vst [vmem:[#allocation2 + $0xb8] sm:$0xff] %v565
        %v567 = vld [vmem:[%s383 + $0x40] sm:$0xff]
        %v568 = vunpack.c.l.bf16 %v567
        %v569 = vunpack.c.h.bf16 %v567
        %572 = vrot.lane.b32.xlu0 %v568, 127
        %v573 = vpop.permute.xlu0 %572
        %574 = vrot.lane.b32.xlu0 %v569, 127
        %v575 = vpop.permute.xlu0 %574
        %v576 = vsel %vm406, %v573, %v575
        %578 = vst [vmem:[#allocation2 + $0xc0] sm:$0xff] %v576
        %v579 = vld [vmem:[%s383 + $0x48] sm:$0xff]
        %v580 = vunpack.c.l.bf16 %v579
        %v581 = vunpack.c.h.bf16 %v579
        %584 = vrot.lane.b32.xlu0 %v580, 127
        %v585 = vpop.permute.xlu0 %584
        %586 = vrot.lane.b32.xlu0 %v581, 127
        %v587 = vpop.permute.xlu0 %586
        %v588 = vsel %vm406, %v585, %v587
        %590 = vst [vmem:[#allocation2 + $0xc8] sm:$0xff] %v588
        %v591 = vld [vmem:[%s383 + $0x50] sm:$0xff]
        %v592 = vunpack.c.l.bf16 %v591
        %v593 = vunpack.c.h.bf16 %v591
        %596 = vrot.lane.b32.xlu0 %v592, 127
        %v597 = vpop.permute.xlu0 %596
        %598 = vrot.lane.b32.xlu0 %v593, 127
        %v599 = vpop.permute.xlu0 %598
        %v600 = vsel %vm406, %v597, %v599
        %602 = vst [vmem:[#allocation2 + $0xd0] sm:$0xff] %v600
        %v603 = vld [vmem:[%s383 + $0x58] sm:$0xff]
        %v604 = vunpack.c.l.bf16 %v603
        %v605 = vunpack.c.h.bf16 %v603
        %608 = vrot.lane.b32.xlu0 %v604, 127
        %v609 = vpop.permute.xlu0 %608
        %610 = vrot.lane.b32.xlu0 %v605, 127
        %v611 = vpop.permute.xlu0 %610
        %v612 = vsel %vm406, %v609, %v611
        %614 = vst [vmem:[#allocation2 + $0xd8] sm:$0xff] %v612
        %v615 = vld [vmem:[%s383 + $0x40] sm:$0xff]
        %v616 = vunpack.c.l.bf16 %v615
        %v617 = vunpack.c.h.bf16 %v615
        %620 = vrot.lane.b32.xlu0 %v616, 126
        %v621 = vpop.permute.xlu0 %620
        %622 = vrot.lane.b32.xlu0 %v617, 126
        %v623 = vpop.permute.xlu0 %622
        %v624 = vsel %vm455, %v621, %v623
        %626 = vst [vmem:[#allocation2 + $0xe0] sm:$0xff] %v624
        %v627 = vld [vmem:[%s383 + $0x48] sm:$0xff]
        %v628 = vunpack.c.l.bf16 %v627
        %v629 = vunpack.c.h.bf16 %v627
        %632 = vrot.lane.b32.xlu0 %v628, 126
        %v633 = vpop.permute.xlu0 %632
        %634 = vrot.lane.b32.xlu0 %v629, 126
        %v635 = vpop.permute.xlu0 %634
        %v636 = vsel %vm455, %v633, %v635
        %638 = vst [vmem:[#allocation2 + $0xe8] sm:$0xff] %v636
        %v639 = vld [vmem:[%s383 + $0x60] sm:$0xf]
        %v640 = vunpack.c.l.bf16 %v639
        %641 = vst [vmem:[#allocation2 + $0xf0] sm:$0xff] %v640
        %v642 = vld [vmem:[%s383 + $0x68] sm:$0xf]
        %v643 = vunpack.c.l.bf16 %v642
        %644 = vst [vmem:[#allocation2 + $0xf8] sm:$0xff] %v643
        %v645 = vld [vmem:[%s383 + $0x70] sm:$0xf]
        %v646 = vunpack.c.l.bf16 %v645
        %647 = vst [vmem:[#allocation2 + $0x100] sm:$0xff] %v646
        %v648 = vld [vmem:[%s383 + $0x78] sm:$0xf]
        %v649 = vunpack.c.l.bf16 %v648
        %650 = vst [vmem:[#allocation2 + $0x108] sm:$0xff] %v649
        %v651 = vld [vmem:[%s383 + $0x60] sm:$0xff]
        %v652 = vunpack.c.l.bf16 %v651
        %v653 = vunpack.c.h.bf16 %v651
        %656 = vrot.lane.b32.xlu0 %v652, 127
        %v657 = vpop.permute.xlu0 %656
        %658 = vrot.lane.b32.xlu0 %v653, 127
        %v659 = vpop.permute.xlu0 %658
        %v660 = vsel %vm406, %v657, %v659
        %662 = vst [vmem:[#allocation2 + $0x110] sm:$0xff] %v660
        %v663 = vld [vmem:[%s383 + $0x68] sm:$0xff]
        %v664 = vunpack.c.l.bf16 %v663
        %v665 = vunpack.c.h.bf16 %v663
        %668 = vrot.lane.b32.xlu0 %v664, 127
        %v669 = vpop.permute.xlu0 %668
        %670 = vrot.lane.b32.xlu0 %v665, 127
        %v671 = vpop.permute.xlu0 %670
        %v672 = vsel %vm406, %v669, %v671
        %674 = vst [vmem:[#allocation2 + $0x118] sm:$0xff] %v672
        %v675 = vld [vmem:[%s383 + $0x70] sm:$0xff]
        %v676 = vunpack.c.l.bf16 %v675
        %v677 = vunpack.c.h.bf16 %v675
        %680 = vrot.lane.b32.xlu0 %v676, 127
        %v681 = vpop.permute.xlu0 %680
        %682 = vrot.lane.b32.xlu0 %v677, 127
        %v683 = vpop.permute.xlu0 %682
        %v684 = vsel %vm406, %v681, %v683
        %686 = vst [vmem:[#allocation2 + $0x120] sm:$0xff] %v684
        %v687 = vld [vmem:[%s383 + $0x78] sm:$0xff]
        %v688 = vunpack.c.l.bf16 %v687
        %v689 = vunpack.c.h.bf16 %v687
        %692 = vrot.lane.b32.xlu0 %v688, 127
        %v693 = vpop.permute.xlu0 %692
        %694 = vrot.lane.b32.xlu0 %v689, 127
        %v695 = vpop.permute.xlu0 %694
        %v696 = vsel %vm406, %v693, %v695
        %698 = vst [vmem:[#allocation2 + $0x128] sm:$0xff] %v696
        %v699 = vld [vmem:[%s383 + $0x60] sm:$0xff]
        %v700 = vunpack.c.l.bf16 %v699
        %v701 = vunpack.c.h.bf16 %v699
        %704 = vrot.lane.b32.xlu0 %v700, 126
        %v705 = vpop.permute.xlu0 %704
        %706 = vrot.lane.b32.xlu0 %v701, 126
        %v707 = vpop.permute.xlu0 %706
        %v708 = vsel %vm455, %v705, %v707
        %710 = vst [vmem:[#allocation2 + $0x130] sm:$0xff] %v708
        %v711 = vld [vmem:[%s383 + $0x68] sm:$0xff]
        %v712 = vunpack.c.l.bf16 %v711
        %v713 = vunpack.c.h.bf16 %v711
        %716 = vrot.lane.b32.xlu0 %v712, 126
        %v717 = vpop.permute.xlu0 %716
        %718 = vrot.lane.b32.xlu0 %v713, 126
        %v719 = vpop.permute.xlu0 %718
        %v720 = vsel %vm455, %v717, %v719
        %722 = vst [vmem:[#allocation2 + $0x138] sm:$0xff] %v720
        %v723 = vld [vmem:[%s383] sm:$0xff]
        %v724 = vunpack.c.l.bf16 %v723
        %v725 = vunpack.c.h.bf16 %v723
        %728 = vrot.lane.b32.xlu0 %v724, 117
        %v729 = vpop.permute.xlu0 %728
        %730 = vrot.lane.b32.xlu0 %v725, 117
        %v731 = vpop.permute.xlu0 %730
        %vm732 = vcmask 957440
        %v733 = vsel %vm732, %v729, %v731
        %735 = vst [vmem:[#allocation2 + $0x140] sm:$0xff] %v733
        %v736 = vld [vmem:[%s383 + $0x8] sm:$0xff]
        %v737 = vunpack.c.l.bf16 %v736
        %v738 = vunpack.c.h.bf16 %v736
        %741 = vrot.lane.b32.xlu0 %v737, 117
        %v742 = vpop.permute.xlu0 %741
        %743 = vrot.lane.b32.xlu0 %v738, 117
        %v744 = vpop.permute.xlu0 %743
        %v745 = vsel %vm732, %v742, %v744
        %747 = vst [vmem:[#allocation2 + $0x148] sm:$0xff] %v745
        %v748 = vld [vmem:[%s383 + $0x10] sm:$0xff]
        %v749 = vunpack.c.l.bf16 %v748
        %v750 = vunpack.c.h.bf16 %v748
        %753 = vrot.lane.b32.xlu0 %v749, 117
        %v754 = vpop.permute.xlu0 %753
        %755 = vrot.lane.b32.xlu0 %v750, 117
        %v756 = vpop.permute.xlu0 %755
        %v757 = vsel %vm732, %v754, %v756
        %759 = vst [vmem:[#allocation2 + $0x150] sm:$0xff] %v757
        %v760 = vld [vmem:[%s383 + $0x18] sm:$0xff]
        %v761 = vunpack.c.l.bf16 %v760
        %v762 = vunpack.c.h.bf16 %v760
        %765 = vrot.lane.b32.xlu0 %v761, 117
        %v766 = vpop.permute.xlu0 %765
        %767 = vrot.lane.b32.xlu0 %v762, 117
        %v768 = vpop.permute.xlu0 %767
        %v769 = vsel %vm732, %v766, %v768
        %771 = vst [vmem:[#allocation2 + $0x158] sm:$0xff] %v769
        %v772 = vld [vmem:[%s383] sm:$0xff]
        %v773 = vunpack.c.l.bf16 %v772
        %v774 = vunpack.c.h.bf16 %v772
        %777 = vrot.lane.b32.xlu0 %v773, 116
        %v778 = vpop.permute.xlu0 %777
        %779 = vrot.lane.b32.xlu0 %v774, 116
        %v780 = vpop.permute.xlu0 %779
        %vm781 = vcmask 949248
        %v782 = vsel %vm781, %v778, %v780
        %784 = vst [vmem:[#allocation2 + $0x160] sm:$0xff] %v782
        %v785 = vld [vmem:[%s383 + $0x8] sm:$0xff]
        %v786 = vunpack.c.l.bf16 %v785
        %v787 = vunpack.c.h.bf16 %v785
        %790 = vrot.lane.b32.xlu0 %v786, 116
        %v791 = vpop.permute.xlu0 %790
        %792 = vrot.lane.b32.xlu0 %v787, 116
        %v793 = vpop.permute.xlu0 %792
        %v794 = vsel %vm781, %v791, %v793
        %796 = vst [vmem:[#allocation2 + $0x168] sm:$0xff] %v794
        %v797 = vld [vmem:[%s383 + $0x10] sm:$0xff]
        %v798 = vunpack.c.l.bf16 %v797
        %v799 = vunpack.c.h.bf16 %v797
        %802 = vrot.lane.b32.xlu0 %v798, 116
        %v803 = vpop.permute.xlu0 %802
        %804 = vrot.lane.b32.xlu0 %v799, 116
        %v805 = vpop.permute.xlu0 %804
        %v806 = vsel %vm781, %v803, %v805
        %808 = vst [vmem:[#allocation2 + $0x170] sm:$0xff] %v806
        %v809 = vld [vmem:[%s383 + $0x18] sm:$0xff]
        %v810 = vunpack.c.l.bf16 %v809
        %v811 = vunpack.c.h.bf16 %v809
        %814 = vrot.lane.b32.xlu0 %v810, 116
        %v815 = vpop.permute.xlu0 %814
        %816 = vrot.lane.b32.xlu0 %v811, 116
        %v817 = vpop.permute.xlu0 %816
        %v818 = vsel %vm781, %v815, %v817
        %820 = vst [vmem:[#allocation2 + $0x178] sm:$0xff] %v818
        %v821 = vld [vmem:[%s383] sm:$0xff]
        %v822 = vunpack.c.l.bf16 %v821
        %v823 = vunpack.c.h.bf16 %v821
        %826 = vrot.lane.b32.xlu0 %v822, 115
        %v827 = vpop.permute.xlu0 %826
        %828 = vrot.lane.b32.xlu0 %v823, 115
        %v829 = vpop.permute.xlu0 %828
        %vm830 = vcmask 941056
        %v831 = vsel %vm830, %v827, %v829
        %833 = vst [vmem:[#allocation2 + $0x180] sm:$0xff] %v831
        %v834 = vld [vmem:[%s383 + $0x8] sm:$0xff]
        %v835 = vunpack.c.l.bf16 %v834
        %v836 = vunpack.c.h.bf16 %v834
        %839 = vrot.lane.b32.xlu0 %v835, 115
        %v840 = vpop.permute.xlu0 %839
        %841 = vrot.lane.b32.xlu0 %v836, 115
        %v842 = vpop.permute.xlu0 %841
        %v843 = vsel %vm830, %v840, %v842
        %845 = vst [vmem:[#allocation2 + $0x188] sm:$0xff] %v843
        %v846 = vld [vmem:[%s383 + $0x20] sm:$0xff]
        %v847 = vunpack.c.l.bf16 %v846
        %v848 = vunpack.c.h.bf16 %v846
        %851 = vrot.lane.b32.xlu0 %v847, 117
        %v852 = vpop.permute.xlu0 %851
        %853 = vrot.lane.b32.xlu0 %v848, 117
        %v854 = vpop.permute.xlu0 %853
        %v855 = vsel %vm732, %v852, %v854
        %857 = vst [vmem:[#allocation2 + $0x190] sm:$0xff] %v855
        %v858 = vld [vmem:[%s383 + $0x28] sm:$0xff]
        %v859 = vunpack.c.l.bf16 %v858
        %v860 = vunpack.c.h.bf16 %v858
        %863 = vrot.lane.b32.xlu0 %v859, 117
        %v864 = vpop.permute.xlu0 %863
        %865 = vrot.lane.b32.xlu0 %v860, 117
        %v866 = vpop.permute.xlu0 %865
        %v867 = vsel %vm732, %v864, %v866
        %869 = vst [vmem:[#allocation2 + $0x198] sm:$0xff] %v867
        %v870 = vld [vmem:[%s383 + $0x30] sm:$0xff]
        %v871 = vunpack.c.l.bf16 %v870
        %v872 = vunpack.c.h.bf16 %v870
        %875 = vrot.lane.b32.xlu0 %v871, 117
        %v876 = vpop.permute.xlu0 %875
        %877 = vrot.lane.b32.xlu0 %v872, 117
        %v878 = vpop.permute.xlu0 %877
        %v879 = vsel %vm732, %v876, %v878
        %881 = vst [vmem:[#allocation2 + $0x1a0] sm:$0xff] %v879
        %v882 = vld [vmem:[%s383 + $0x38] sm:$0xff]
        %v883 = vunpack.c.l.bf16 %v882
        %v884 = vunpack.c.h.bf16 %v882
        %887 = vrot.lane.b32.xlu0 %v883, 117
        %v888 = vpop.permute.xlu0 %887
        %889 = vrot.lane.b32.xlu0 %v884, 117
        %v890 = vpop.permute.xlu0 %889
        %v891 = vsel %vm732, %v888, %v890
        %893 = vst [vmem:[#allocation2 + $0x1a8] sm:$0xff] %v891
        %v894 = vld [vmem:[%s383 + $0x20] sm:$0xff]
        %v895 = vunpack.c.l.bf16 %v894
        %v896 = vunpack.c.h.bf16 %v894
        %899 = vrot.lane.b32.xlu0 %v895, 116
        %v900 = vpop.permute.xlu0 %899
        %901 = vrot.lane.b32.xlu0 %v896, 116
        %v902 = vpop.permute.xlu0 %901
        %v903 = vsel %vm781, %v900, %v902
        %905 = vst [vmem:[#allocation2 + $0x1b0] sm:$0xff] %v903
        %v906 = vld [vmem:[%s383 + $0x28] sm:$0xff]
        %v907 = vunpack.c.l.bf16 %v906
        %v908 = vunpack.c.h.bf16 %v906
        %911 = vrot.lane.b32.xlu0 %v907, 116
        %v912 = vpop.permute.xlu0 %911
        %913 = vrot.lane.b32.xlu0 %v908, 116
        %v914 = vpop.permute.xlu0 %913
        %v915 = vsel %vm781, %v912, %v914
        %917 = vst [vmem:[#allocation2 + $0x1b8] sm:$0xff] %v915
        %v918 = vld [vmem:[%s383 + $0x30] sm:$0xff]
        %v919 = vunpack.c.l.bf16 %v918
        %v920 = vunpack.c.h.bf16 %v918
        %923 = vrot.lane.b32.xlu0 %v919, 116
        %v924 = vpop.permute.xlu0 %923
        %925 = vrot.lane.b32.xlu0 %v920, 116
        %v926 = vpop.permute.xlu0 %925
        %v927 = vsel %vm781, %v924, %v926
        %929 = vst [vmem:[#allocation2 + $0x1c0] sm:$0xff] %v927
        %v930 = vld [vmem:[%s383 + $0x38] sm:$0xff]
        %v931 = vunpack.c.l.bf16 %v930
        %v932 = vunpack.c.h.bf16 %v930
        %935 = vrot.lane.b32.xlu0 %v931, 116
        %v936 = vpop.permute.xlu0 %935
        %937 = vrot.lane.b32.xlu0 %v932, 116
        %v938 = vpop.permute.xlu0 %937
        %v939 = vsel %vm781, %v936, %v938
        %941 = vst [vmem:[#allocation2 + $0x1c8] sm:$0xff] %v939
        %v942 = vld [vmem:[%s383 + $0x20] sm:$0xff]
        %v943 = vunpack.c.l.bf16 %v942
        %v944 = vunpack.c.h.bf16 %v942
        %947 = vrot.lane.b32.xlu0 %v943, 115
        %v948 = vpop.permute.xlu0 %947
        %949 = vrot.lane.b32.xlu0 %v944, 115
        %v950 = vpop.permute.xlu0 %949
        %v951 = vsel %vm830, %v948, %v950
        %953 = vst [vmem:[#allocation2 + $0x1d0] sm:$0xff] %v951
        %v954 = vld [vmem:[%s383 + $0x28] sm:$0xff]
        %v955 = vunpack.c.l.bf16 %v954
        %v956 = vunpack.c.h.bf16 %v954
        %959 = vrot.lane.b32.xlu0 %v955, 115
        %v960 = vpop.permute.xlu0 %959
        %961 = vrot.lane.b32.xlu0 %v956, 115
        %v962 = vpop.permute.xlu0 %961
        %v963 = vsel %vm830, %v960, %v962
        %965 = vst [vmem:[#allocation2 + $0x1d8] sm:$0xff] %v963
        %v966 = vld [vmem:[%s383 + $0x40] sm:$0xff]
        %v967 = vunpack.c.l.bf16 %v966
        %v968 = vunpack.c.h.bf16 %v966
        %971 = vrot.lane.b32.xlu0 %v967, 117
        %v972 = vpop.permute.xlu0 %971
        %973 = vrot.lane.b32.xlu0 %v968, 117
        %v974 = vpop.permute.xlu0 %973
        %v975 = vsel %vm732, %v972, %v974
        %977 = vst [vmem:[#allocation2 + $0x1e0] sm:$0xff] %v975
        %v978 = vld [vmem:[%s383 + $0x48] sm:$0xff]
        %v979 = vunpack.c.l.bf16 %v978
        %v980 = vunpack.c.h.bf16 %v978
        %983 = vrot.lane.b32.xlu0 %v979, 117
        %v984 = vpop.permute.xlu0 %983
        %985 = vrot.lane.b32.xlu0 %v980, 117
        %v986 = vpop.permute.xlu0 %985
        %v987 = vsel %vm732, %v984, %v986
        %989 = vst [vmem:[#allocation2 + $0x1e8] sm:$0xff] %v987
        %v990 = vld [vmem:[%s383 + $0x50] sm:$0xff]
        %v991 = vunpack.c.l.bf16 %v990
        %v992 = vunpack.c.h.bf16 %v990
        %995 = vrot.lane.b32.xlu0 %v991, 117
        %v996 = vpop.permute.xlu0 %995
        %997 = vrot.lane.b32.xlu0 %v992, 117
        %v998 = vpop.permute.xlu0 %997
        %v999 = vsel %vm732, %v996, %v998
        %1001 = vst [vmem:[#allocation2 + $0x1f0] sm:$0xff] %v999
        %v1002 = vld [vmem:[%s383 + $0x58] sm:$0xff]
        %v1003 = vunpack.c.l.bf16 %v1002
        %v1004 = vunpack.c.h.bf16 %v1002
        %1007 = vrot.lane.b32.xlu0 %v1003, 117
        %v1008 = vpop.permute.xlu0 %1007
        %1009 = vrot.lane.b32.xlu0 %v1004, 117
        %v1010 = vpop.permute.xlu0 %1009
        %v1011 = vsel %vm732, %v1008, %v1010
        %1013 = vst [vmem:[#allocation2 + $0x1f8] sm:$0xff] %v1011
        %v1014 = vld [vmem:[%s383 + $0x40] sm:$0xff]
        %v1015 = vunpack.c.l.bf16 %v1014
        %v1016 = vunpack.c.h.bf16 %v1014
        %1019 = vrot.lane.b32.xlu0 %v1015, 116
        %v1020 = vpop.permute.xlu0 %1019
        %1021 = vrot.lane.b32.xlu0 %v1016, 116
        %v1022 = vpop.permute.xlu0 %1021
        %v1023 = vsel %vm781, %v1020, %v1022
        %1025 = vst [vmem:[#allocation2 + $0x200] sm:$0xff] %v1023
        %v1026 = vld [vmem:[%s383 + $0x48] sm:$0xff]
        %v1027 = vunpack.c.l.bf16 %v1026
        %v1028 = vunpack.c.h.bf16 %v1026
        %1031 = vrot.lane.b32.xlu0 %v1027, 116
        %v1032 = vpop.permute.xlu0 %1031
        %1033 = vrot.lane.b32.xlu0 %v1028, 116
        %v1034 = vpop.permute.xlu0 %1033
        %v1035 = vsel %vm781, %v1032, %v1034
        %1037 = vst [vmem:[#allocation2 + $0x208] sm:$0xff] %v1035
        %v1038 = vld [vmem:[%s383 + $0x50] sm:$0xff]
        %v1039 = vunpack.c.l.bf16 %v1038
        %v1040 = vunpack.c.h.bf16 %v1038
        %1043 = vrot.lane.b32.xlu0 %v1039, 116
        %v1044 = vpop.permute.xlu0 %1043
        %1045 = vrot.lane.b32.xlu0 %v1040, 116
        %v1046 = vpop.permute.xlu0 %1045
        %v1047 = vsel %vm781, %v1044, %v1046
        %1049 = vst [vmem:[#allocation2 + $0x210] sm:$0xff] %v1047
        %v1050 = vld [vmem:[%s383 + $0x58] sm:$0xff]
        %v1051 = vunpack.c.l.bf16 %v1050
        %v1052 = vunpack.c.h.bf16 %v1050
        %1055 = vrot.lane.b32.xlu0 %v1051, 116
        %v1056 = vpop.permute.xlu0 %1055
        %1057 = vrot.lane.b32.xlu0 %v1052, 116
        %v1058 = vpop.permute.xlu0 %1057
        %v1059 = vsel %vm781, %v1056, %v1058
        %1061 = vst [vmem:[#allocation2 + $0x218] sm:$0xff] %v1059
        %v1062 = vld [vmem:[%s383 + $0x40] sm:$0xff]
        %v1063 = vunpack.c.l.bf16 %v1062
        %v1064 = vunpack.c.h.bf16 %v1062
        %1067 = vrot.lane.b32.xlu0 %v1063, 115
        %v1068 = vpop.permute.xlu0 %1067
        %1069 = vrot.lane.b32.xlu0 %v1064, 115
        %v1070 = vpop.permute.xlu0 %1069
        %v1071 = vsel %vm830, %v1068, %v1070
        %1073 = vst [vmem:[#allocation2 + $0x220] sm:$0xff] %v1071
        %v1074 = vld [vmem:[%s383 + $0x48] sm:$0xff]
        %v1075 = vunpack.c.l.bf16 %v1074
        %v1076 = vunpack.c.h.bf16 %v1074
        %1079 = vrot.lane.b32.xlu0 %v1075, 115
        %v1080 = vpop.permute.xlu0 %1079
        %1081 = vrot.lane.b32.xlu0 %v1076, 115
        %v1082 = vpop.permute.xlu0 %1081
        %v1083 = vsel %vm830, %v1080, %v1082
        %1085 = vst [vmem:[#allocation2 + $0x228] sm:$0xff] %v1083
        %v1086 = vld [vmem:[%s383 + $0x60] sm:$0xff]
        %v1087 = vunpack.c.l.bf16 %v1086
        %v1088 = vunpack.c.h.bf16 %v1086
        %1091 = vrot.lane.b32.xlu0 %v1087, 117
        %v1092 = vpop.permute.xlu0 %1091
        %1093 = vrot.lane.b32.xlu0 %v1088, 117
        %v1094 = vpop.permute.xlu0 %1093
        %v1095 = vsel %vm732, %v1092, %v1094
        %1097 = vst [vmem:[#allocation2 + $0x230] sm:$0xff] %v1095
        %v1098 = vld [vmem:[%s383 + $0x68] sm:$0xff]
        %v1099 = vunpack.c.l.bf16 %v1098
        %v1100 = vunpack.c.h.bf16 %v1098
        %1103 = vrot.lane.b32.xlu0 %v1099, 117
        %v1104 = vpop.permute.xlu0 %1103
        %1105 = vrot.lane.b32.xlu0 %v1100, 117
        %v1106 = vpop.permute.xlu0 %1105
        %v1107 = vsel %vm732, %v1104, %v1106
        %1109 = vst [vmem:[#allocation2 + $0x238] sm:$0xff] %v1107
        %v1110 = vld [vmem:[%s383 + $0x70] sm:$0xff]
        %v1111 = vunpack.c.l.bf16 %v1110
        %v1112 = vunpack.c.h.bf16 %v1110
        %1115 = vrot.lane.b32.xlu0 %v1111, 117
        %v1116 = vpop.permute.xlu0 %1115
        %1117 = vrot.lane.b32.xlu0 %v1112, 117
        %v1118 = vpop.permute.xlu0 %1117
        %v1119 = vsel %vm732, %v1116, %v1118
        %1121 = vst [vmem:[#allocation2 + $0x240] sm:$0xff] %v1119
        %v1122 = vld [vmem:[%s383 + $0x78] sm:$0xff]
        %v1123 = vunpack.c.l.bf16 %v1122
        %v1124 = vunpack.c.h.bf16 %v1122
        %1127 = vrot.lane.b32.xlu0 %v1123, 117
        %v1128 = vpop.permute.xlu0 %1127
        %1129 = vrot.lane.b32.xlu0 %v1124, 117
        %v1130 = vpop.permute.xlu0 %1129
        %v1131 = vsel %vm732, %v1128, %v1130
        %1133 = vst [vmem:[#allocation2 + $0x248] sm:$0xff] %v1131
        %v1134 = vld [vmem:[%s383 + $0x60] sm:$0xff]
        %v1135 = vunpack.c.l.bf16 %v1134
        %v1136 = vunpack.c.h.bf16 %v1134
        %1139 = vrot.lane.b32.xlu0 %v1135, 116
        %v1140 = vpop.permute.xlu0 %1139
        %1141 = vrot.lane.b32.xlu0 %v1136, 116
        %v1142 = vpop.permute.xlu0 %1141
        %v1143 = vsel %vm781, %v1140, %v1142
        %1145 = vst [vmem:[#allocation2 + $0x250] sm:$0xff] %v1143
        %v1146 = vld [vmem:[%s383 + $0x68] sm:$0xff]
        %v1147 = vunpack.c.l.bf16 %v1146
        %v1148 = vunpack.c.h.bf16 %v1146
        %1151 = vrot.lane.b32.xlu0 %v1147, 116
        %v1152 = vpop.permute.xlu0 %1151
        %1153 = vrot.lane.b32.xlu0 %v1148, 116
        %v1154 = vpop.permute.xlu0 %1153
        %v1155 = vsel %vm781, %v1152, %v1154
        %1157 = vst [vmem:[#allocation2 + $0x258] sm:$0xff] %v1155
        %v1158 = vld [vmem:[%s383 + $0x70] sm:$0xff]
        %v1159 = vunpack.c.l.bf16 %v1158
        %v1160 = vunpack.c.h.bf16 %v1158
        %1163 = vrot.lane.b32.xlu0 %v1159, 116
        %v1164 = vpop.permute.xlu0 %1163
        %1165 = vrot.lane.b32.xlu0 %v1160, 116
        %v1166 = vpop.permute.xlu0 %1165
        %v1167 = vsel %vm781, %v1164, %v1166
        %1169 = vst [vmem:[#allocation2 + $0x260] sm:$0xff] %v1167
        %v1170 = vld [vmem:[%s383 + $0x78] sm:$0xff]
        %v1171 = vunpack.c.l.bf16 %v1170
        %v1172 = vunpack.c.h.bf16 %v1170
        %1175 = vrot.lane.b32.xlu0 %v1171, 116
        %v1176 = vpop.permute.xlu0 %1175
        %1177 = vrot.lane.b32.xlu0 %v1172, 116
        %v1178 = vpop.permute.xlu0 %1177
        %v1179 = vsel %vm781, %v1176, %v1178
        %1181 = vst [vmem:[#allocation2 + $0x268] sm:$0xff] %v1179
        %v1182 = vld [vmem:[%s383 + $0x60] sm:$0xff]
        %v1183 = vunpack.c.l.bf16 %v1182
        %v1184 = vunpack.c.h.bf16 %v1182
        %1187 = vrot.lane.b32.xlu0 %v1183, 115
        %v1188 = vpop.permute.xlu0 %1187
        %1189 = vrot.lane.b32.xlu0 %v1184, 115
        %v1190 = vpop.permute.xlu0 %1189
        %v1191 = vsel %vm830, %v1188, %v1190
        %1193 = vst [vmem:[#allocation2 + $0x270] sm:$0xff] %v1191
        %v1194 = vld [vmem:[%s383 + $0x68] sm:$0xff]
        %v1195 = vunpack.c.l.bf16 %v1194
        %v1196 = vunpack.c.h.bf16 %v1194
        %1199 = vrot.lane.b32.xlu0 %v1195, 115
        %v1200 = vpop.permute.xlu0 %1199
        %1201 = vrot.lane.b32.xlu0 %v1196, 115
        %v1202 = vpop.permute.xlu0 %1201
        %v1203 = vsel %vm830, %v1200, %v1202
        %1205 = vst [vmem:[#allocation2 + $0x278] sm:$0xff] %v1203
        %v1206 = vld [vmem:[%s383] sm:$0xff]
        %v1207 = vunpack.c.l.bf16 %v1206
        %v1208 = vunpack.c.h.bf16 %v1206
        %1211 = vrot.lane.b32.xlu0 %v1207, 106
        %v1212 = vpop.permute.xlu0 %1211
        %1213 = vrot.lane.b32.xlu0 %v1208, 106
        %v1214 = vpop.permute.xlu0 %1213
        %vm1215 = vcmask 867328
        %v1216 = vsel %vm1215, %v1212, %v1214
        %1218 = vst [vmem:[#allocation2 + $0x280] sm:$0xff] %v1216
        %v1219 = vld [vmem:[%s383 + $0x8] sm:$0xff]
        %v1220 = vunpack.c.l.bf16 %v1219
        %v1221 = vunpack.c.h.bf16 %v1219
        %1224 = vrot.lane.b32.xlu0 %v1220, 106
        %v1225 = vpop.permute.xlu0 %1224
        %1226 = vrot.lane.b32.xlu0 %v1221, 106
        %v1227 = vpop.permute.xlu0 %1226
        %v1228 = vsel %vm1215, %v1225, %v1227
        %1230 = vst [vmem:[#allocation2 + $0x288] sm:$0xff] %v1228
        %v1231 = vld [vmem:[%s383 + $0x10] sm:$0xff]
        %v1232 = vunpack.c.l.bf16 %v1231
        %v1233 = vunpack.c.h.bf16 %v1231
        %1236 = vrot.lane.b32.xlu0 %v1232, 106
        %v1237 = vpop.permute.xlu0 %1236
        %1238 = vrot.lane.b32.xlu0 %v1233, 106
        %v1239 = vpop.permute.xlu0 %1238
        %v1240 = vsel %vm1215, %v1237, %v1239
        %1242 = vst [vmem:[#allocation2 + $0x290] sm:$0xff] %v1240
        %v1243 = vld [vmem:[%s383 + $0x18] sm:$0xff]
        %v1244 = vunpack.c.l.bf16 %v1243
        %v1245 = vunpack.c.h.bf16 %v1243
        %1248 = vrot.lane.b32.xlu0 %v1244, 106
        %v1249 = vpop.permute.xlu0 %1248
        %1250 = vrot.lane.b32.xlu0 %v1245, 106
        %v1251 = vpop.permute.xlu0 %1250
        %v1252 = vsel %vm1215, %v1249, %v1251
        %1254 = vst [vmem:[#allocation2 + $0x298] sm:$0xff] %v1252
        %v1255 = vld [vmem:[%s383] sm:$0xff]
        %v1256 = vunpack.c.l.bf16 %v1255
        %v1257 = vunpack.c.h.bf16 %v1255
        %1260 = vrot.lane.b32.xlu0 %v1256, 105
        %v1261 = vpop.permute.xlu0 %1260
        %1262 = vrot.lane.b32.xlu0 %v1257, 105
        %v1263 = vpop.permute.xlu0 %1262
        %vm1264 = vcmask 859136
        %v1265 = vsel %vm1264, %v1261, %v1263
        %1267 = vst [vmem:[#allocation2 + $0x2a0] sm:$0xff] %v1265
        %v1268 = vld [vmem:[%s383 + $0x8] sm:$0xff]
        %v1269 = vunpack.c.l.bf16 %v1268
        %v1270 = vunpack.c.h.bf16 %v1268
        %1273 = vrot.lane.b32.xlu0 %v1269, 105
        %v1274 = vpop.permute.xlu0 %1273
        %1275 = vrot.lane.b32.xlu0 %v1270, 105
        %v1276 = vpop.permute.xlu0 %1275
        %v1277 = vsel %vm1264, %v1274, %v1276
        %1279 = vst [vmem:[#allocation2 + $0x2a8] sm:$0xff] %v1277
        %v1280 = vld [vmem:[%s383 + $0x10] sm:$0xff]
        %v1281 = vunpack.c.l.bf16 %v1280
        %v1282 = vunpack.c.h.bf16 %v1280
        %1285 = vrot.lane.b32.xlu0 %v1281, 105
        %v1286 = vpop.permute.xlu0 %1285
        %1287 = vrot.lane.b32.xlu0 %v1282, 105
        %v1288 = vpop.permute.xlu0 %1287
        %v1289 = vsel %vm1264, %v1286, %v1288
        %1291 = vst [vmem:[#allocation2 + $0x2b0] sm:$0xff] %v1289
        %v1292 = vld [vmem:[%s383 + $0x18] sm:$0xff]
        %v1293 = vunpack.c.l.bf16 %v1292
        %v1294 = vunpack.c.h.bf16 %v1292
        %1297 = vrot.lane.b32.xlu0 %v1293, 105
        %v1298 = vpop.permute.xlu0 %1297
        %1299 = vrot.lane.b32.xlu0 %v1294, 105
        %v1300 = vpop.permute.xlu0 %1299
        %v1301 = vsel %vm1264, %v1298, %v1300
        %1303 = vst [vmem:[#allocation2 + $0x2b8] sm:$0xff] %v1301
        %v1304 = vld [vmem:[%s383] sm:$0xff]
        %v1305 = vunpack.c.l.bf16 %v1304
        %v1306 = vunpack.c.h.bf16 %v1304
        %1309 = vrot.lane.b32.xlu0 %v1305, 104
        %v1310 = vpop.permute.xlu0 %1309
        %1311 = vrot.lane.b32.xlu0 %v1306, 104
        %v1312 = vpop.permute.xlu0 %1311
        %vm1313 = vcmask 850944
        %v1314 = vsel %vm1313, %v1310, %v1312
        %1316 = vst [vmem:[#allocation2 + $0x2c0] sm:$0xff] %v1314
        %v1317 = vld [vmem:[%s383 + $0x8] sm:$0xff]
        %v1318 = vunpack.c.l.bf16 %v1317
        %v1319 = vunpack.c.h.bf16 %v1317
        %1322 = vrot.lane.b32.xlu0 %v1318, 104
        %v1323 = vpop.permute.xlu0 %1322
        %1324 = vrot.lane.b32.xlu0 %v1319, 104
        %v1325 = vpop.permute.xlu0 %1324
        %v1326 = vsel %vm1313, %v1323, %v1325
        %1328 = vst [vmem:[#allocation2 + $0x2c8] sm:$0xff] %v1326
        %v1329 = vld [vmem:[%s383 + $0x20] sm:$0xff]
        %v1330 = vunpack.c.l.bf16 %v1329
        %v1331 = vunpack.c.h.bf16 %v1329
        %1334 = vrot.lane.b32.xlu0 %v1330, 106
        %v1335 = vpop.permute.xlu0 %1334
        %1336 = vrot.lane.b32.xlu0 %v1331, 106
        %v1337 = vpop.permute.xlu0 %1336
        %v1338 = vsel %vm1215, %v1335, %v1337
        %1340 = vst [vmem:[#allocation2 + $0x2d0] sm:$0xff] %v1338
        %v1341 = vld [vmem:[%s383 + $0x28] sm:$0xff]
        %v1342 = vunpack.c.l.bf16 %v1341
        %v1343 = vunpack.c.h.bf16 %v1341
        %1346 = vrot.lane.b32.xlu0 %v1342, 106
        %v1347 = vpop.permute.xlu0 %1346
        %1348 = vrot.lane.b32.xlu0 %v1343, 106
        %v1349 = vpop.permute.xlu0 %1348
        %v1350 = vsel %vm1215, %v1347, %v1349
        %1352 = vst [vmem:[#allocation2 + $0x2d8] sm:$0xff] %v1350
        %v1353 = vld [vmem:[%s383 + $0x30] sm:$0xff]
        %v1354 = vunpack.c.l.bf16 %v1353
        %v1355 = vunpack.c.h.bf16 %v1353
        %1358 = vrot.lane.b32.xlu0 %v1354, 106
        %v1359 = vpop.permute.xlu0 %1358
        %1360 = vrot.lane.b32.xlu0 %v1355, 106
        %v1361 = vpop.permute.xlu0 %1360
        %v1362 = vsel %vm1215, %v1359, %v1361
        %1364 = vst [vmem:[#allocation2 + $0x2e0] sm:$0xff] %v1362
        %v1365 = vld [vmem:[%s383 + $0x38] sm:$0xff]
        %v1366 = vunpack.c.l.bf16 %v1365
        %v1367 = vunpack.c.h.bf16 %v1365
        %1370 = vrot.lane.b32.xlu0 %v1366, 106
        %v1371 = vpop.permute.xlu0 %1370
        %1372 = vrot.lane.b32.xlu0 %v1367, 106
        %v1373 = vpop.permute.xlu0 %1372
        %v1374 = vsel %vm1215, %v1371, %v1373
        %1376 = vst [vmem:[#allocation2 + $0x2e8] sm:$0xff] %v1374
        %v1377 = vld [vmem:[%s383 + $0x20] sm:$0xff]
        %v1378 = vunpack.c.l.bf16 %v1377
        %v1379 = vunpack.c.h.bf16 %v1377
        %1382 = vrot.lane.b32.xlu0 %v1378, 105
        %v1383 = vpop.permute.xlu0 %1382
        %1384 = vrot.lane.b32.xlu0 %v1379, 105
        %v1385 = vpop.permute.xlu0 %1384
        %v1386 = vsel %vm1264, %v1383, %v1385
        %1388 = vst [vmem:[#allocation2 + $0x2f0] sm:$0xff] %v1386
        %v1389 = vld [vmem:[%s383 + $0x28] sm:$0xff]
        %v1390 = vunpack.c.l.bf16 %v1389
        %v1391 = vunpack.c.h.bf16 %v1389
        %1394 = vrot.lane.b32.xlu0 %v1390, 105
        %v1395 = vpop.permute.xlu0 %1394
        %1396 = vrot.lane.b32.xlu0 %v1391, 105
        %v1397 = vpop.permute.xlu0 %1396
        %v1398 = vsel %vm1264, %v1395, %v1397
        %1400 = vst [vmem:[#allocation2 + $0x2f8] sm:$0xff] %v1398
        %v1401 = vld [vmem:[%s383 + $0x30] sm:$0xff]
        %v1402 = vunpack.c.l.bf16 %v1401
        %v1403 = vunpack.c.h.bf16 %v1401
        %1406 = vrot.lane.b32.xlu0 %v1402, 105
        %v1407 = vpop.permute.xlu0 %1406
        %1408 = vrot.lane.b32.xlu0 %v1403, 105
        %v1409 = vpop.permute.xlu0 %1408
        %v1410 = vsel %vm1264, %v1407, %v1409
        %1412 = vst [vmem:[#allocation2 + $0x300] sm:$0xff] %v1410
        %v1413 = vld [vmem:[%s383 + $0x38] sm:$0xff]
        %v1414 = vunpack.c.l.bf16 %v1413
        %v1415 = vunpack.c.h.bf16 %v1413
        %1418 = vrot.lane.b32.xlu0 %v1414, 105
        %v1419 = vpop.permute.xlu0 %1418
        %1420 = vrot.lane.b32.xlu0 %v1415, 105
        %v1421 = vpop.permute.xlu0 %1420
        %v1422 = vsel %vm1264, %v1419, %v1421
        %1424 = vst [vmem:[#allocation2 + $0x308] sm:$0xff] %v1422
        %v1425 = vld [vmem:[%s383 + $0x20] sm:$0xff]
        %v1426 = vunpack.c.l.bf16 %v1425
        %v1427 = vunpack.c.h.bf16 %v1425
        %1430 = vrot.lane.b32.xlu0 %v1426, 104
        %v1431 = vpop.permute.xlu0 %1430
        %1432 = vrot.lane.b32.xlu0 %v1427, 104
        %v1433 = vpop.permute.xlu0 %1432
        %v1434 = vsel %vm1313, %v1431, %v1433
        %1436 = vst [vmem:[#allocation2 + $0x310] sm:$0xff] %v1434
        %v1437 = vld [vmem:[%s383 + $0x28] sm:$0xff]
        %v1438 = vunpack.c.l.bf16 %v1437
        %v1439 = vunpack.c.h.bf16 %v1437
        %1442 = vrot.lane.b32.xlu0 %v1438, 104
        %v1443 = vpop.permute.xlu0 %1442
        %1444 = vrot.lane.b32.xlu0 %v1439, 104
        %v1445 = vpop.permute.xlu0 %1444
        %v1446 = vsel %vm1313, %v1443, %v1445
        %1448 = vst [vmem:[#allocation2 + $0x318] sm:$0xff] %v1446
        %v1449 = vld [vmem:[%s1] sm:$0xff]
        %v1450 = vld [vmem:[%s1 + $0x8] sm:$0xff]
        %v1451 = vld [vmem:[%s1 + $0x10] sm:$0xff]
        %v1452 = vld [vmem:[%s1 + $0x18] sm:$0xf]
        %v1453 = vld [vmem:[%s1 + $0x1c] sm:$0xff]
        %v1454 = vld [vmem:[%s1 + $0x24] sm:$0xff]
        %v1455 = vld [vmem:[%s1 + $0x2c] sm:$0xff]
        %v1456 = vld [vmem:[%s1 + $0x34] sm:$0xf]
        %v1457 = vld [vmem:[%s1 + $0x38] sm:$0xff]
        %v1458 = vld [vmem:[%s1 + $0x40] sm:$0xff]
        %v1459 = vld [vmem:[%s1 + $0x48] sm:$0xff]
        %v1460 = vld [vmem:[%s1 + $0x50] sm:$0xf]
        %v1461 = vld [vmem:[%s1 + $0x54] sm:$0xff]
        %v1462 = vld [vmem:[%s1 + $0x5c] sm:$0xff]
        %v1463 = vld [vmem:[%s1 + $0x64] sm:$0xff]
        %v1464 = vld [vmem:[%s1 + $0x6c] sm:$0xf]
        %v1465 = vld [vmem:[#allocation2] sm:$0xff]
        %v1466 = vld [vmem:[#allocation2 + $0x8] sm:$0xff]
        %v1467 = vld [vmem:[#allocation2 + $0x10] sm:$0xff]
        %v1468 = vld [vmem:[#allocation2 + $0x18] sm:$0xff]
        %v1469 = vld [vmem:[#allocation2 + $0x20] sm:$0xff]
        %v1470 = vld [vmem:[#allocation2 + $0x28] sm:$0xff]
        %v1471 = vld [vmem:[#allocation2 + $0x30] sm:$0xff]
        %v1472 = vld [vmem:[#allocation2 + $0x38] sm:$0xff]
        %v1473 = vld [vmem:[#allocation2 + $0x40] sm:$0xff]
        %v1474 = vld [vmem:[#allocation2 + $0x48] sm:$0xff]
        %v1475 = vld [vmem:[#allocation2 + $0x50] sm:$0xff]
        %v1476 = vld [vmem:[#allocation2 + $0x58] sm:$0xff]
        %v1477 = vld [vmem:[#allocation2 + $0x60] sm:$0xff]
        %v1478 = vld [vmem:[#allocation2 + $0x68] sm:$0xff]
        %v1479 = vld [vmem:[#allocation2 + $0x70] sm:$0xff]
        %v1480 = vld [vmem:[#allocation2 + $0x78] sm:$0xff]
        %v1481 = vld [vmem:[#allocation2 + $0x80] sm:$0xff]
        %v1482 = vld [vmem:[#allocation2 + $0x88] sm:$0xff]
        %v1483 = vld [vmem:[#allocation2 + $0x90] sm:$0xff]
        %v1484 = vld [vmem:[#allocation2 + $0x98] sm:$0xff]
        %v1485 = vld [vmem:[#allocation2 + $0xa0] sm:$0xff]
        %v1486 = vld [vmem:[#allocation2 + $0xa8] sm:$0xff]
        %v1487 = vld [vmem:[#allocation2 + $0xb0] sm:$0xff]
        %v1488 = vld [vmem:[#allocation2 + $0xb8] sm:$0xff]
        %v1489 = vld [vmem:[#allocation2 + $0xc0] sm:$0xff]
        %v1490 = vld [vmem:[#allocation2 + $0xc8] sm:$0xff]
        %v1491 = vld [vmem:[#allocation2 + $0xd0] sm:$0xff]
        %v1492 = vld [vmem:[#allocation2 + $0xd8] sm:$0xff]
        %v1493 = vld [vmem:[#allocation2 + $0xe0] sm:$0xff]
        %v1494 = vld [vmem:[#allocation2 + $0xe8] sm:$0xff]
        %v1495 = vld [vmem:[#allocation2 + $0xf0] sm:$0xff]
        %v1496 = vld [vmem:[#allocation2 + $0xf8] sm:$0xff]
        %v1497 = vld [vmem:[#allocation2 + $0x100] sm:$0xff]
        %v1498 = vld [vmem:[#allocation2 + $0x108] sm:$0xff]
        %v1499 = vld [vmem:[#allocation2 + $0x110] sm:$0xff]
        %v1500 = vld [vmem:[#allocation2 + $0x118] sm:$0xff]
        %v1501 = vld [vmem:[#allocation2 + $0x120] sm:$0xff]
        %v1502 = vld [vmem:[#allocation2 + $0x128] sm:$0xff]
        %v1503 = vld [vmem:[#allocation2 + $0x130] sm:$0xff]
        %v1504 = vld [vmem:[#allocation2 + $0x138] sm:$0xff]
        %v1505 = vld [vmem:[#allocation2 + $0x140] sm:$0xff]
        %v1506 = vld [vmem:[#allocation2 + $0x148] sm:$0xff]
        %v1507 = vld [vmem:[#allocation2 + $0x150] sm:$0xff]
        %v1508 = vld [vmem:[#allocation2 + $0x158] sm:$0xff]
        %v1509 = vld [vmem:[#allocation2 + $0x160] sm:$0xff]
        %v1510 = vld [vmem:[#allocation2 + $0x168] sm:$0xff]
        %v1511 = vld [vmem:[#allocation2 + $0x170] sm:$0xff]
        %v1512 = vld [vmem:[#allocation2 + $0x178] sm:$0xff]
        %v1513 = vld [vmem:[#allocation2 + $0x180] sm:$0xff]
        %v1514 = vld [vmem:[#allocation2 + $0x188] sm:$0xff]
        %v1515 = vld [vmem:[#allocation2 + $0x190] sm:$0xff]
        %v1516 = vld [vmem:[#allocation2 + $0x198] sm:$0xff]
        %v1517 = vld [vmem:[#allocation2 + $0x1a0] sm:$0xff]
        %v1518 = vld [vmem:[#allocation2 + $0x1a8] sm:$0xff]
        %v1519 = vld [vmem:[#allocation2 + $0x1b0] sm:$0xff]
        %v1520 = vld [vmem:[#allocation2 + $0x1b8] sm:$0xff]
        %v1521 = vld [vmem:[#allocation2 + $0x1c0] sm:$0xff]
        %v1522 = vld [vmem:[#allocation2 + $0x1c8] sm:$0xff]
        %v1523 = vld [vmem:[#allocation2 + $0x1d0] sm:$0xff]
        %v1524 = vld [vmem:[#allocation2 + $0x1d8] sm:$0xff]
        %v1525 = vld [vmem:[#allocation2 + $0x1e0] sm:$0xff]
        %v1526 = vld [vmem:[#allocation2 + $0x1e8] sm:$0xff]
        %v1527 = vld [vmem:[#allocation2 + $0x1f0] sm:$0xff]
        %v1528 = vld [vmem:[#allocation2 + $0x1f8] sm:$0xff]
        %v1529 = vld [vmem:[#allocation2 + $0x200] sm:$0xff]
        %v1530 = vld [vmem:[#allocation2 + $0x208] sm:$0xff]
        %v1531 = vld [vmem:[#allocation2 + $0x210] sm:$0xff]
        %v1532 = vld [vmem:[#allocation2 + $0x218] sm:$0xff]
        %v1533 = vld [vmem:[#allocation2 + $0x220] sm:$0xff]
        %v1534 = vld [vmem:[#allocation2 + $0x228] sm:$0xff]
        %v1535 = vld [vmem:[#allocation2 + $0x230] sm:$0xff]
        %v1536 = vld [vmem:[#allocation2 + $0x238] sm:$0xff]
        %v1537 = vld [vmem:[#allocation2 + $0x240] sm:$0xff]
        %v1538 = vld [vmem:[#allocation2 + $0x248] sm:$0xff]
        %v1539 = vld [vmem:[#allocation2 + $0x250] sm:$0xff]
        %v1540 = vld [vmem:[#allocation2 + $0x258] sm:$0xff]
        %v1541 = vld [vmem:[#allocation2 + $0x260] sm:$0xff]
        %v1542 = vld [vmem:[#allocation2 + $0x268] sm:$0xff]
        %v1543 = vld [vmem:[#allocation2 + $0x270] sm:$0xff]
        %v1544 = vld [vmem:[#allocation2 + $0x278] sm:$0xff]
        %v1545 = vld [vmem:[#allocation2 + $0x280] sm:$0xff]
        %v1546 = vld [vmem:[#allocation2 + $0x288] sm:$0xff]
        %v1547 = vld [vmem:[#allocation2 + $0x290] sm:$0xff]
        %v1548 = vld [vmem:[#allocation2 + $0x298] sm:$0xff]
        %v1549 = vld [vmem:[#allocation2 + $0x2a0] sm:$0xff]
        %v1550 = vld [vmem:[#allocation2 + $0x2a8] sm:$0xff]
        %v1551 = vld [vmem:[#allocation2 + $0x2b0] sm:$0xff]
        %v1552 = vld [vmem:[#allocation2 + $0x2b8] sm:$0xff]
        %v1553 = vld [vmem:[#allocation2 + $0x2c0] sm:$0xff]
        %v1554 = vld [vmem:[#allocation2 + $0x2c8] sm:$0xff]
        %v1555 = vld [vmem:[#allocation2 + $0x2d0] sm:$0xff]
        %v1556 = vld [vmem:[#allocation2 + $0x2d8] sm:$0xff]
        %v1557 = vld [vmem:[#allocation2 + $0x2e0] sm:$0xff]
        %v1558 = vld [vmem:[#allocation2 + $0x2e8] sm:$0xff]
        %v1559 = vld [vmem:[#allocation2 + $0x2f0] sm:$0xff]
        %v1560 = vld [vmem:[#allocation2 + $0x2f8] sm:$0xff]
        %v1561 = vld [vmem:[#allocation2 + $0x300] sm:$0xff]
        %v1562 = vld [vmem:[#allocation2 + $0x308] sm:$0xff]
        %v1563 = vld [vmem:[#allocation2 + $0x310] sm:$0xff]
        %v1564 = vld [vmem:[#allocation2 + $0x318] sm:$0xff]
        %v1565 = vpack.c.bf16 %v1466, %v1465
        %v1566 = vpack.c.bf16 %v1468, %v1467
        %v1567 = vpack.c.bf16 %v1470, %v1469
        %v1568 = vpack.c.bf16 %v1472, %v1471
        %v1569 = vpack.c.bf16 %v1474, %v1473
        %v1570 = vpack.c.bf16 %v1476, %v1475
        %v1571 = vpack.c.bf16 %v1478, %v1477
        %v1572 = vpack.c.bf16 %v1480, %v1479
        %v1573 = vpack.c.bf16 %v1482, %v1481
        %v1574 = vpack.c.bf16 %v1484, %v1483
        %v1575 = vpack.c.bf16 %v1486, %v1485
        %v1576 = vpack.c.bf16 %v1488, %v1487
        %v1577 = vpack.c.bf16 %v1490, %v1489
        %v1578 = vpack.c.bf16 %v1492, %v1491
        %v1579 = vpack.c.bf16 %v1494, %v1493
        %v1580 = vpack.c.bf16 %v1496, %v1495
        %v1581 = vpack.c.bf16 %v1498, %v1497
        %v1582 = vpack.c.bf16 %v1500, %v1499
        %v1583 = vpack.c.bf16 %v1502, %v1501
        %v1584 = vpack.c.bf16 %v1504, %v1503
        %v1585 = vpack.c.bf16 %v1506, %v1505
        %v1586 = vpack.c.bf16 %v1508, %v1507
        %v1587 = vpack.c.bf16 %v1510, %v1509
        %v1588 = vpack.c.bf16 %v1512, %v1511
        %v1589 = vpack.c.bf16 %v1514, %v1513
        %v1590 = vpack.c.bf16 %v1516, %v1515
        %v1591 = vpack.c.bf16 %v1518, %v1517
        %v1592 = vpack.c.bf16 %v1520, %v1519
        %v1593 = vpack.c.bf16 %v1522, %v1521
        %v1594 = vpack.c.bf16 %v1524, %v1523
        %v1595 = vpack.c.bf16 %v1526, %v1525
        %v1596 = vpack.c.bf16 %v1528, %v1527
        %v1597 = vpack.c.bf16 %v1530, %v1529
        %v1598 = vpack.c.bf16 %v1532, %v1531
        %v1599 = vpack.c.bf16 %v1534, %v1533
        %v1600 = vpack.c.bf16 %v1536, %v1535
        %v1601 = vpack.c.bf16 %v1538, %v1537
        %v1602 = vpack.c.bf16 %v1540, %v1539
        %v1603 = vpack.c.bf16 %v1542, %v1541
        %v1604 = vpack.c.bf16 %v1544, %v1543
        %v1605 = vpack.c.bf16 %v1546, %v1545
        %v1606 = vpack.c.bf16 %v1548, %v1547
        %v1607 = vpack.c.bf16 %v1550, %v1549
        %v1608 = vpack.c.bf16 %v1552, %v1551
        %v1609 = vpack.c.bf16 %v1554, %v1553
        %v1610 = vpack.c.bf16 %v1556, %v1555
        %v1611 = vpack.c.bf16 %v1558, %v1557
        %v1612 = vpack.c.bf16 %v1560, %v1559
        %v1613 = vpack.c.bf16 %v1562, %v1561
        %v1614 = vpack.c.bf16 %v1564, %v1563
        %v1615 = vld [vmem:[%s2] sm:$0xff]
        %v1616 = vld [vmem:[%s2 + $0x8] sm:$0xff]
        %v1617 = vld [vmem:[%s2 + $0x10] sm:$0xff]
        %v1618 = vld [vmem:[%s2 + $0x18] sm:$0xff]
        %1620 = vset.pattern.permute.xlu0 0
        %1621 = vperm.xlu0 %1620, %v1615
        %v1622 = vpop.permute.xlu0 %1621
        %1625 = vset.pattern.permute.xlu0 0
        %1626 = vperm.xlu0 %1625, %v1616
        %v1627 = vpop.permute.xlu0 %1626
        %1630 = vset.pattern.permute.xlu0 0
        %1631 = vperm.xlu0 %1630, %v1617
        %v1632 = vpop.permute.xlu0 %1631
        %1635 = vset.pattern.permute.xlu0 0
        %1636 = vperm.xlu0 %1635, %v1618
        %v1637 = vpop.permute.xlu0 %1636
        %v1655 = vunpack.c.l.b16 %v1449
        %v1656 = vunpack.c.h.b16 %v1449
        %v1657 = vunpack.c.l.b16 %v1450
        %v1658 = vunpack.c.h.b16 %v1450
        %v1659 = vunpack.c.l.b16 %v1451
        %v1660 = vunpack.c.h.b16 %v1451
        %v1661 = vunpack.c.l.b16 %v1452
        %v1662 = vunpack.c.l.b16 %v1453
        %v1663 = vunpack.c.h.b16 %v1453
        %v1664 = vunpack.c.l.b16 %v1454
        %v1665 = vunpack.c.h.b16 %v1454
        %v1666 = vunpack.c.l.b16 %v1455
        %v1667 = vunpack.c.h.b16 %v1455
        %v1668 = vunpack.c.l.b16 %v1456
        %v1669 = vunpack.c.l.b16 %v1457
        %v1670 = vunpack.c.h.b16 %v1457
        %v1671 = vunpack.c.l.b16 %v1458
        %v1672 = vunpack.c.h.b16 %v1458
        %v1673 = vunpack.c.l.b16 %v1459
        %v1674 = vunpack.c.h.b16 %v1459
        %v1675 = vunpack.c.l.b16 %v1460
        %v1676 = vunpack.c.l.b16 %v1461
        %v1677 = vunpack.c.h.b16 %v1461
        %v1678 = vunpack.c.l.b16 %v1462
        %v1679 = vunpack.c.h.b16 %v1462
        %v1680 = vunpack.c.l.b16 %v1463
        %v1681 = vunpack.c.h.b16 %v1463
        %v1682 = vunpack.c.l.b16 %v1464
        %v1683 = vpack.c.b16 %v1662, %v1655
        %v1684 = vpack.c.b16 %v1663, %v1656
        %v1685 = vpack.c.b16 %v1664, %v1657
        %v1686 = vpack.c.b16 %v1665, %v1658
        %v1687 = vpack.c.b16 %v1666, %v1659
        %v1688 = vpack.c.b16 %v1667, %v1660
        %v1689 = vpack.c.b16 %v1668, %v1661
        %v1690 = vpack.c.b16 %v1676, %v1669
        %v1691 = vpack.c.b16 %v1677, %v1670
        %v1692 = vpack.c.b16 %v1678, %v1671
        %v1693 = vpack.c.b16 %v1679, %v1672
        %v1694 = vpack.c.b16 %v1680, %v1673
        %v1695 = vpack.c.b16 %v1681, %v1674
        %v1696 = vpack.c.b16 %v1682, %v1675
        %vm1709 = vcmask 261120
        %v1711 = vsel %vm1709, %v1689, 0
        %v1714 = vsel %vm1709, %v1696, 0
        %1716 = vmatprep.subr.bf16.mxu0 0
        %1717 = vmatpush1.bf16.msra.mxu0 %v1565
        %1718 = vmatprep.subr.bf16.mxu0 0
        %1719 = vmatpush1.bf16.msra.mxu0 %v1566
        %1720 = vmatprep.subr.bf16.mxu0 0
        %1721 = vmatpush1.bf16.msra.mxu0 %v1567
        %1722 = vmatprep.subr.bf16.mxu0 0
        %1723 = vmatpush1.bf16.msra.mxu0 %v1568
        %1724 = vmatprep.subr.bf16.mxu0 0
        %1725 = vmatpush1.bf16.msra.mxu0 %v1569
        %1726 = vmatprep.subr.bf16.mxu0 0
        %1727 = vmatpush1.bf16.msra.mxu0 %v1570
        %1728 = vmatprep.subr.bf16.mxu0 0
        %1729 = vmatpush1.bf16.msra.mxu0 %v1571
        %1730 = vmatprep.subr.bf16.mxu0 0
        %1731 = vmatpush1.bf16.msra.mxu0 %v1572
        %1732 = vmatprep.subr.bf16.mxu0 0
        %1733 = vmatpush1.bf16.msra.mxu0 %v1573
        %1734 = vmatprep.subr.bf16.mxu0 0
        %1735 = vmatpush1.bf16.msra.mxu0 %v1574
        %1736 = vmatprep.subr.bf16.mxu0 0
        %1737 = vmatpush1.bf16.msra.mxu0 %v1575
        %1738 = vmatprep.subr.bf16.mxu0 0
        %1739 = vmatpush1.bf16.msra.mxu0 %v1576
        %1740 = vmatprep.subr.bf16.mxu0 0
        %1741 = vmatpush1.bf16.msra.mxu0 %v1577
        %1742 = vmatprep.subr.bf16.mxu0 0
        %1743 = vmatpush1.bf16.msra.mxu0 %v1578
        %1744 = vmatprep.subr.bf16.mxu0 0
        %1745 = vmatpush1.bf16.msra.mxu0 %v1579
        %1746 = vmatprep.subr.bf16.mxu0 0
        %1747 = vmatpush1.bf16.msra.mxu0 %v1580
        %1748 = vmatprep.mubr.bf16.mxu0 %v1684
        %1749 = vmatmul.mubr.bf16.gmra.mrb[0].mxu0 %v1683
        %v1750 = vpop.f32.mrb[0].mxu0
        %v1751 = vadd.f32 %v1622, %v1750
        %v1752 = vpop.f32.mrb[0].mxu0
        %v1753 = vpop.f32.mrb[0].mxu0
        %v1754 = vadd.f32 %v1627, %v1753
        %v1755 = vpop.f32.mrb[0].mxu0
        %1756 = vmatprep.mubr.bf16.mxu0 %v1691
        %1757 = vmatmul.mubr.bf16.gmra.mrb[0].mxu0 %v1690
        %v1758 = vpop.f32.mrb[0].mxu0
        %v1759 = vadd.f32 %v1632, %v1758
        %v1760 = vpop.f32.mrb[0].mxu0
        %v1761 = vpop.f32.mrb[0].mxu0
        %v1762 = vadd.f32 %v1637, %v1761
        %v1763 = vpop.f32.mrb[0].mxu0
        %1764 = vdwg.mxu0
        %1765 = vmatprep.subr.bf16.mxu0 0
        %1766 = vmatpush1.bf16.msra.mxu0 %v1581
        %1767 = vmatprep.subr.bf16.mxu0 0
        %1768 = vmatpush1.bf16.msra.mxu0 %v1582
        %1769 = vmatprep.subr.bf16.mxu0 0
        %1770 = vmatpush1.bf16.msra.mxu0 %v1583
        %1771 = vmatprep.subr.bf16.mxu0 0
        %1772 = vmatpush1.bf16.msra.mxu0 %v1584
        %1773 = vmatprep.subr.bf16.mxu0 0
        %1774 = vmatpush1.bf16.msra.mxu0 %v1585
        %1775 = vmatprep.subr.bf16.mxu0 0
        %1776 = vmatpush1.bf16.msra.mxu0 %v1586
        %1777 = vmatprep.subr.bf16.mxu0 0
        %1778 = vmatpush1.bf16.msra.mxu0 %v1587
        %1779 = vmatprep.subr.bf16.mxu0 0
        %1780 = vmatpush1.bf16.msra.mxu0 %v1588
        %1781 = vmatprep.subr.bf16.mxu0 0
        %1782 = vmatpush1.bf16.msra.mxu0 %v1589
        %1783 = vmatprep.subr.bf16.mxu0 0
        %1784 = vmatpush1.bf16.msra.mxu0 %v1590
        %1785 = vmatprep.subr.bf16.mxu0 0
        %1786 = vmatpush1.bf16.msra.mxu0 %v1591
        %1787 = vmatprep.subr.bf16.mxu0 0
        %1788 = vmatpush1.bf16.msra.mxu0 %v1592
        %1789 = vmatprep.subr.bf16.mxu0 0
        %1790 = vmatpush1.bf16.msra.mxu0 %v1593
        %1791 = vmatprep.subr.bf16.mxu0 0
        %1792 = vmatpush1.bf16.msra.mxu0 %v1594
        %1793 = vmatprep.subr.bf16.mxu0 0
        %1794 = vmatpush1.bf16.msra.mxu0 %v1595
        %1795 = vmatprep.subr.bf16.mxu0 0
        %1796 = vmatpush1.bf16.msra.mxu0 %v1596
        %1797 = vmatprep.mubr.bf16.mxu0 %v1686
        %1798 = vmatmul.mubr.bf16.gmra.mrb[0].mxu0 %v1685
        %v1799 = vpop.f32.mrb[0].mxu0
        %v1800 = vadd.f32 %v1751, %v1799
        %v1801 = vpop.f32.mrb[0].mxu0
        %v1802 = vpop.f32.mrb[0].mxu0
        %v1803 = vadd.f32 %v1754, %v1802
        %v1804 = vpop.f32.mrb[0].mxu0
        %1805 = vmatprep.mubr.bf16.mxu0 %v1693
        %1806 = vmatmul.mubr.bf16.gmra.mrb[0].mxu0 %v1692
        %v1807 = vpop.f32.mrb[0].mxu0
        %v1808 = vadd.f32 %v1759, %v1807
        %v1809 = vpop.f32.mrb[0].mxu0
        %v1810 = vpop.f32.mrb[0].mxu0
        %v1811 = vadd.f32 %v1762, %v1810
        %v1812 = vpop.f32.mrb[0].mxu0
        %1813 = vdwg.mxu0
        %1814 = vmatprep.subr.bf16.mxu0 0
        %1815 = vmatpush1.bf16.msra.mxu0 %v1597
        %1816 = vmatprep.subr.bf16.mxu0 0
        %1817 = vmatpush1.bf16.msra.mxu0 %v1598
        %1818 = vmatprep.subr.bf16.mxu0 0
        %1819 = vmatpush1.bf16.msra.mxu0 %v1599
        %1820 = vmatprep.subr.bf16.mxu0 0
        %1821 = vmatpush1.bf16.msra.mxu0 %v1600
        %1822 = vmatprep.subr.bf16.mxu0 0
        %1823 = vmatpush1.bf16.msra.mxu0 %v1601
        %1824 = vmatprep.subr.bf16.mxu0 0
        %1825 = vmatpush1.bf16.msra.mxu0 %v1602
        %1826 = vmatprep.subr.bf16.mxu0 0
        %1827 = vmatpush1.bf16.msra.mxu0 %v1603
        %1828 = vmatprep.subr.bf16.mxu0 0
        %1829 = vmatpush1.bf16.msra.mxu0 %v1604
        %1830 = vmatprep.subr.bf16.mxu0 0
        %1831 = vmatpush1.bf16.msra.mxu0 %v1605
        %1832 = vmatprep.subr.bf16.mxu0 0
        %1833 = vmatpush1.bf16.msra.mxu0 %v1606
        %1834 = vmatprep.subr.bf16.mxu0 0
        %1835 = vmatpush1.bf16.msra.mxu0 %v1607
        %1836 = vmatprep.subr.bf16.mxu0 0
        %1837 = vmatpush1.bf16.msra.mxu0 %v1608
        %1838 = vmatprep.subr.bf16.mxu0 0
        %1839 = vmatpush1.bf16.msra.mxu0 %v1609
        %1840 = vmatprep.subr.bf16.mxu0 0
        %1841 = vmatpush1.bf16.msra.mxu0 %v1610
        %1842 = vmatprep.subr.bf16.mxu0 0
        %1843 = vmatpush1.bf16.msra.mxu0 %v1611
        %1844 = vmatprep.subr.bf16.mxu0 0
        %1845 = vmatpush1.bf16.msra.mxu0 %v1612
        %1846 = vmatprep.mubr.bf16.mxu0 %v1688
        %1847 = vmatmul.mubr.bf16.gmra.mrb[0].mxu0 %v1687
        %v1848 = vpop.f32.mrb[0].mxu0
        %v1849 = vadd.f32 %v1800, %v1848
        %v1850 = vpop.f32.mrb[0].mxu0
        %v1851 = vpop.f32.mrb[0].mxu0
        %v1852 = vadd.f32 %v1803, %v1851
        %v1853 = vpop.f32.mrb[0].mxu0
        %1854 = vmatprep.mubr.bf16.mxu0 %v1695
        %1855 = vmatmul.mubr.bf16.gmra.mrb[0].mxu0 %v1694
        %v1856 = vpop.f32.mrb[0].mxu0
        %v1857 = vadd.f32 %v1808, %v1856
        %v1858 = vpop.f32.mrb[0].mxu0
        %v1859 = vpop.f32.mrb[0].mxu0
        %v1860 = vadd.f32 %v1811, %v1859
        %v1861 = vpop.f32.mrb[0].mxu0
        %1862 = vdwg.mxu0
        %1863 = vmatprep.subr.bf16.mxu0 0
        %1864 = vmatpush1.bf16.msra.mxu0 %v1613
        %1865 = vmatprep.subr.bf16.mxu0 0
        %1866 = vmatpush1.bf16.msra.mxu0 %v1614
        %1867 = vmatprep.subr.bf16.mxu0 0
        %1868 = vmatpush1.bf16.msra.mxu0 0
        %1869 = vmatprep.subr.bf16.mxu0 0
        %1870 = vmatpush1.bf16.msra.mxu0 0
        %1871 = vmatprep.subr.bf16.mxu0 0
        %1872 = vmatpush1.bf16.msra.mxu0 0
        %1873 = vmatprep.subr.bf16.mxu0 0
        %1874 = vmatpush1.bf16.msra.mxu0 0
        %1875 = vmatprep.subr.bf16.mxu0 0
        %1876 = vmatpush1.bf16.msra.mxu0 0
        %1877 = vmatprep.subr.bf16.mxu0 0
        %1878 = vmatpush1.bf16.msra.mxu0 0
        %1879 = vmatprep.subr.bf16.mxu0 0
        %1880 = vmatpush1.bf16.msra.mxu0 0
        %1881 = vmatprep.subr.bf16.mxu0 0
        %1882 = vmatpush1.bf16.msra.mxu0 0
        %1883 = vmatprep.subr.bf16.mxu0 0
        %1884 = vmatpush1.bf16.msra.mxu0 0
        %1885 = vmatprep.subr.bf16.mxu0 0
        %1886 = vmatpush1.bf16.msra.mxu0 0
        %1887 = vmatprep.subr.bf16.mxu0 0
        %1888 = vmatpush1.bf16.msra.mxu0 0
        %1889 = vmatprep.subr.bf16.mxu0 0
        %1890 = vmatpush1.bf16.msra.mxu0 0
        %1891 = vmatprep.subr.bf16.mxu0 0
        %1892 = vmatpush1.bf16.msra.mxu0 0
        %1893 = vmatprep.subr.bf16.mxu0 0
        %1894 = vmatpush1.bf16.msra.mxu0 0
        %1895 = vmatprep.mubr.bf16.mxu0 0
        %1896 = vmatmul.mubr.bf16.gmra.mrb[0].mxu0 %v1711
        %v1897 = vpop.f32.mrb[0].mxu0
        %v1898 = vadd.f32 %v1849, %v1897
        %v1899 = vpop.f32.mrb[0].mxu0
        %v1900 = vpop.f32.mrb[0].mxu0
        %v1901 = vadd.f32 %v1852, %v1900
        %v1902 = vpop.f32.mrb[0].mxu0
        %1903 = vmatprep.mubr.bf16.mxu0 0
        %1904 = vmatmul.mubr.bf16.gmra.mrb[0].mxu0 %v1714
        %v1905 = vpop.f32.mrb[0].mxu0
        %v1906 = vadd.f32 %v1857, %v1905
        %v1907 = vpop.f32.mrb[0].mxu0
        %v1908 = vpop.f32.mrb[0].mxu0
        %v1909 = vadd.f32 %v1860, %v1908
        %v1910 = vpop.f32.mrb[0].mxu0
        %1911 = vdwg.mxu0
        %v1912 = vmax.f32 %v1898, 0.0
        %v1913 = vmax.f32 %v1901, 0.0
        %v1914 = vmax.f32 %v1906, 0.0
        %v1915 = vmax.f32 %v1909, 0.0
        %1916 = vst [vmem:[#allocation3] sm:$0xff] %v1912
        %1917 = vst [vmem:[#allocation3 + $0x10] sm:$0xff] %v1913
        %1918 = vst [vmem:[#allocation3 + $0x20] sm:$0xff] %v1914
        %1919 = vst [vmem:[#allocation3 + $0x30] sm:$0xff] %v1915
        %1920 = vst [vmem:[#allocation3 + $0x8] sm:$0xff] 0.0
        %1921 = vst [vmem:[#allocation3 + $0x18] sm:$0xff] 0.0
        %1922 = vst [vmem:[#allocation3 + $0x28] sm:$0xff] 0.0
        %1923 = vst [vmem:[#allocation3 + $0x38] sm:$0xff] 0.0
        %v1924 = vld [vmem:[#allocation3] sm:$0xff]
        %1925 = vst [vmem:[#allocation4] sm:$0xff] %v1924
        %v1926 = vld [vmem:[#allocation3 + $0x10] sm:$0xff]
        %1927 = vst [vmem:[#allocation4 + $0x8] sm:$0xff] %v1926
        %v1928 = vld [vmem:[#allocation3] sm:$0xff]
        %v1929 = vld [vmem:[#allocation3 + $0x8] sm:$0xff]
        %1932 = vrot.lane.b32.xlu0 %v1928, 127
        %v1933 = vpop.permute.xlu0 %1932
        %1934 = vrot.lane.b32.xlu0 %v1929, 127
        %v1935 = vpop.permute.xlu0 %1934
        %v1936 = vsel %vm406, %v1933, %v1935
        %1938 = vst [vmem:[#allocation4 + $0x10] sm:$0xff] %v1936
        %v1939 = vld [vmem:[#allocation3 + $0x10] sm:$0xff]
        %v1940 = vld [vmem:[#allocation3 + $0x18] sm:$0xff]
        %1943 = vrot.lane.b32.xlu0 %v1939, 127
        %v1944 = vpop.permute.xlu0 %1943
        %1945 = vrot.lane.b32.xlu0 %v1940, 127
        %v1946 = vpop.permute.xlu0 %1945
        %v1947 = vsel %vm406, %v1944, %v1946
        %1949 = vst [vmem:[#allocation4 + $0x18] sm:$0xff] %v1947
        %v1950 = vld [vmem:[#allocation3 + $0x20] sm:$0xff]
        %1951 = vst [vmem:[#allocation4 + $0x20] sm:$0xff] %v1950
        %v1952 = vld [vmem:[#allocation3 + $0x30] sm:$0xff]
        %1953 = vst [vmem:[#allocation4 + $0x28] sm:$0xff] %v1952
        %v1954 = vld [vmem:[#allocation3 + $0x20] sm:$0xff]
        %v1955 = vld [vmem:[#allocation3 + $0x28] sm:$0xff]
        %1958 = vrot.lane.b32.xlu0 %v1954, 127
        %v1959 = vpop.permute.xlu0 %1958
        %1960 = vrot.lane.b32.xlu0 %v1955, 127
        %v1961 = vpop.permute.xlu0 %1960
        %v1962 = vsel %vm406, %v1959, %v1961
        %1964 = vst [vmem:[#allocation4 + $0x30] sm:$0xff] %v1962
        %v1965 = vld [vmem:[#allocation3 + $0x30] sm:$0xff]
        %v1966 = vld [vmem:[#allocation3 + $0x38] sm:$0xff]
        %1969 = vrot.lane.b32.xlu0 %v1965, 127
        %v1970 = vpop.permute.xlu0 %1969
        %1971 = vrot.lane.b32.xlu0 %v1966, 127
        %v1972 = vpop.permute.xlu0 %1971
        %v1973 = vsel %vm406, %v1970, %v1972
        %1975 = vst [vmem:[#allocation4 + $0x38] sm:$0xff] %v1973
        %v1976 = vld [vmem:[#allocation3] sm:$0xff]
        %v1977 = vld [vmem:[#allocation3 + $0x8] sm:$0xff]
        %1980 = vrot.lane.b32.xlu0 %v1976, 117
        %v1981 = vpop.permute.xlu0 %1980
        %1982 = vrot.lane.b32.xlu0 %v1977, 117
        %v1983 = vpop.permute.xlu0 %1982
        %v1984 = vsel %vm732, %v1981, %v1983
        %1986 = vst [vmem:[#allocation4 + $0x40] sm:$0xff] %v1984
        %v1987 = vld [vmem:[#allocation3 + $0x10] sm:$0xff]
        %v1988 = vld [vmem:[#allocation3 + $0x18] sm:$0xff]
        %1991 = vrot.lane.b32.xlu0 %v1987, 117
        %v1992 = vpop.permute.xlu0 %1991
        %1993 = vrot.lane.b32.xlu0 %v1988, 117
        %v1994 = vpop.permute.xlu0 %1993
        %v1995 = vsel %vm732, %v1992, %v1994
        %1997 = vst [vmem:[#allocation4 + $0x48] sm:$0xff] %v1995
        %v1998 = vld [vmem:[#allocation3] sm:$0xff]
        %v1999 = vld [vmem:[#allocation3 + $0x8] sm:$0xff]
        %2002 = vrot.lane.b32.xlu0 %v1998, 116
        %v2003 = vpop.permute.xlu0 %2002
        %2004 = vrot.lane.b32.xlu0 %v1999, 116
        %v2005 = vpop.permute.xlu0 %2004
        %v2006 = vsel %vm781, %v2003, %v2005
        %2008 = vst [vmem:[#allocation4 + $0x50] sm:$0xff] %v2006
        %v2009 = vld [vmem:[#allocation3 + $0x10] sm:$0xff]
        %v2010 = vld [vmem:[#allocation3 + $0x18] sm:$0xff]
        %2013 = vrot.lane.b32.xlu0 %v2009, 116
        %v2014 = vpop.permute.xlu0 %2013
        %2015 = vrot.lane.b32.xlu0 %v2010, 116
        %v2016 = vpop.permute.xlu0 %2015
        %v2017 = vsel %vm781, %v2014, %v2016
        %2019 = vst [vmem:[#allocation4 + $0x58] sm:$0xff] %v2017
        %v2020 = vld [vmem:[#allocation3 + $0x20] sm:$0xff]
        %v2021 = vld [vmem:[#allocation3 + $0x28] sm:$0xff]
        %2024 = vrot.lane.b32.xlu0 %v2020, 117
        %v2025 = vpop.permute.xlu0 %2024
        %2026 = vrot.lane.b32.xlu0 %v2021, 117
        %v2027 = vpop.permute.xlu0 %2026
        %v2028 = vsel %vm732, %v2025, %v2027
        %2030 = vst [vmem:[#allocation4 + $0x60] sm:$0xff] %v2028
        %v2031 = vld [vmem:[#allocation3 + $0x30] sm:$0xff]
        %v2032 = vld [vmem:[#allocation3 + $0x38] sm:$0xff]
        %2035 = vrot.lane.b32.xlu0 %v2031, 117
        %v2036 = vpop.permute.xlu0 %2035
        %2037 = vrot.lane.b32.xlu0 %v2032, 117
        %v2038 = vpop.permute.xlu0 %2037
        %v2039 = vsel %vm732, %v2036, %v2038
        %2041 = vst [vmem:[#allocation4 + $0x68] sm:$0xff] %v2039
        %v2042 = vld [vmem:[#allocation3 + $0x20] sm:$0xff]
        %v2043 = vld [vmem:[#allocation3 + $0x28] sm:$0xff]
        %2046 = vrot.lane.b32.xlu0 %v2042, 116
        %v2047 = vpop.permute.xlu0 %2046
        %2048 = vrot.lane.b32.xlu0 %v2043, 116
        %v2049 = vpop.permute.xlu0 %2048
        %v2050 = vsel %vm781, %v2047, %v2049
        %2052 = vst [vmem:[#allocation4 + $0x70] sm:$0xff] %v2050
        %v2053 = vld [vmem:[#allocation3 + $0x30] sm:$0xff]
        %v2054 = vld [vmem:[#allocation3 + $0x38] sm:$0xff]
        %2057 = vrot.lane.b32.xlu0 %v2053, 116
        %v2058 = vpop.permute.xlu0 %2057
        %2059 = vrot.lane.b32.xlu0 %v2054, 116
        %v2060 = vpop.permute.xlu0 %2059
        %v2061 = vsel %vm781, %v2058, %v2060
        %2063 = vst [vmem:[#allocation4 + $0x78] sm:$0xff] %v2061
        %v2064 = vld [vmem:[%s3] sm:$0xf]
        %v2065 = vld [vmem:[%s3 + $0x4] sm:$0x1]
        %v2066 = vld [vmem:[#allocation4] sm:$0xff]
        %v2067 = vld [vmem:[#allocation4 + $0x8] sm:$0xff]
        %v2068 = vld [vmem:[#allocation4 + $0x10] sm:$0xff]
        %v2069 = vld [vmem:[#allocation4 + $0x18] sm:$0xff]
        %v2070 = vld [vmem:[#allocation4 + $0x20] sm:$0xff]
        %v2071 = vld [vmem:[#allocation4 + $0x28] sm:$0xff]
        %v2072 = vld [vmem:[#allocation4 + $0x30] sm:$0xff]
        %v2073 = vld [vmem:[#allocation4 + $0x38] sm:$0xff]
        %v2074 = vld [vmem:[#allocation4 + $0x40] sm:$0xff]
        %v2075 = vld [vmem:[#allocation4 + $0x48] sm:$0xff]
        %v2076 = vld [vmem:[#allocation4 + $0x50] sm:$0xff]
        %v2077 = vld [vmem:[#allocation4 + $0x58] sm:$0xff]
        %v2078 = vld [vmem:[#allocation4 + $0x60] sm:$0xff]
        %v2079 = vld [vmem:[#allocation4 + $0x68] sm:$0xff]
        %v2080 = vld [vmem:[#allocation4 + $0x70] sm:$0xff]
        %v2081 = vld [vmem:[#allocation4 + $0x78] sm:$0xff]
        %v2082 = vpack.c.bf16 %v2067, %v2066
        %v2083 = vpack.c.bf16 %v2069, %v2068
        %v2084 = vpack.c.bf16 %v2071, %v2070
        %v2085 = vpack.c.bf16 %v2073, %v2072
        %v2086 = vpack.c.bf16 %v2075, %v2074
        %v2087 = vpack.c.bf16 %v2077, %v2076
        %v2088 = vpack.c.bf16 %v2079, %v2078
        %v2089 = vpack.c.bf16 %v2081, %v2080
        %v2090 = vld [vmem:[%s4] sm:$0xff]
        %v2091 = vld [vmem:[%s4 + $0x8] sm:$0x3]
        %2093 = vset.pattern.permute.xlu0 0
        %2094 = vperm.xlu0 %2093, %v2090
        %v2095 = vpop.permute.xlu0 %2094
        %2098 = vset.pattern.permute.xlu0 0
        %2099 = vperm.xlu0 %2098, %v2091
        %v2100 = vpop.permute.xlu0 %2099
        %v2104 = vunpack.c.l.b16 %v2064
        %v2105 = vunpack.c.l.b16 %v2065
        %v2106 = vpack.c.b16 %v2105, %v2104
        %2108 = vmatprep.subr.bf16.mxu0 0
        %2109 = vmatpush1.bf16.msra.mxu0 %v2082
        %2110 = vmatprep.subr.bf16.mxu0 0
        %2111 = vmatpush1.bf16.msra.mxu0 %v2083
        %2112 = vmatprep.subr.bf16.mxu0 0
        %2113 = vmatpush1.bf16.msra.mxu0 %v2084
        %2114 = vmatprep.subr.bf16.mxu0 0
        %2115 = vmatpush1.bf16.msra.mxu0 %v2085
        %2116 = vmatprep.subr.bf16.mxu0 0
        %2117 = vmatpush1.bf16.msra.mxu0 %v2086
        %2118 = vmatprep.subr.bf16.mxu0 0
        %2119 = vmatpush1.bf16.msra.mxu0 %v2087
        %2120 = vmatprep.subr.bf16.mxu0 0
        %2121 = vmatpush1.bf16.msra.mxu0 %v2088
        %2122 = vmatprep.subr.bf16.mxu0 0
        %2123 = vmatpush1.bf16.msra.mxu0 %v2089
        %2124 = vmatprep.subr.bf16.mxu0 0
        %2125 = vmatpush1.bf16.msra.mxu0 0
        %2126 = vmatprep.subr.bf16.mxu0 0
        %2127 = vmatpush1.bf16.msra.mxu0 0
        %2128 = vmatprep.subr.bf16.mxu0 0
        %2129 = vmatpush1.bf16.msra.mxu0 0
        %2130 = vmatprep.subr.bf16.mxu0 0
        %2131 = vmatpush1.bf16.msra.mxu0 0
        %2132 = vmatprep.subr.bf16.mxu0 0
        %2133 = vmatpush1.bf16.msra.mxu0 0
        %2134 = vmatprep.subr.bf16.mxu0 0
        %2135 = vmatpush1.bf16.msra.mxu0 0
        %2136 = vmatprep.subr.bf16.mxu0 0
        %2137 = vmatpush1.bf16.msra.mxu0 0
        %2138 = vmatprep.subr.bf16.mxu0 0
        %2139 = vmatpush1.bf16.msra.mxu0 0
        %2140 = vmatprep.mubr.bf16.mxu0 0
        %2141 = vmatmul.mubr.bf16.gmra.mrb[0].mxu0 %v2106
        %v2142 = vpop.f32.mrb[0].mxu0
        %v2143 = vadd.f32 %v2095, %v2142
        %v2144 = vpop.f32.mrb[0].mxu0
        %v2145 = vpop.f32.mrb[0].mxu0
        %v2146 = vadd.f32 %v2100, %v2145
        %v2147 = vpop.f32.mrb[0].mxu0
        %2148 = vdwg.mxu0
        %v2149 = vmax.f32 %v2143, 0.0
        %v2150 = vmax.f32 %v2146, 0.0
        %v2151 = vlaneseq
        %vm2152 = vcmp.ge.s32.totalorder %v2151, 0
        %vm2153 = vcmp.lt.s32.totalorder %v2151, 128
        %vm2154 = vmand %vm2152, %vm2153
        %2155 = vst.msk [vmem:[#allocation5] sm:$0x1] %vm2154, %v2149
        %v2158 = vunpack.c.l.s4 1966171168
        %v2159 = vunpack.c.0.s8 %v2158
        %v2160 = vlaneseq
        %v2161 = vshrl.u32 %v2160, 7
        %v2162 = vsub.s32 %v2159, %v2161
        %v2163 = vrot.slane %v2149, %v2162
        %v2164 = vcombine.high %v2163, %v2163
        %v2166 = vunpack.c.l.s4 1966171168
        %v2167 = vunpack.c.0.s8 %v2166
        %v2168 = vlaneseq
        %v2169 = vshrl.u32 %v2168, 7
        %v2170 = vsub.s32 %v2167, %v2169
        %v2171 = vrot.slane %v2163, %v2170
        %v2173 = vunpack.c.l.s4 1966171168
        %v2174 = vunpack.c.0.s8 %v2173
        %v2175 = vlaneseq
        %v2176 = vshrl.u32 %v2175, 7
        %v2177 = vsub.s32 %v2174, %v2176
        %v2178 = vrot.slane %v2164, %v2177
        %2180 = vst.msk [vmem:[#allocation5 + $0x1] sm:$0x1] %vm2154, %v2178
        %v2181 = vcombine.high %v2171, %v2171
        %2183 = vst.msk [vmem:[#allocation5 + $0x2] sm:$0x1] %vm2154, %v2181
        %v2184 = vcombine.high %v2178, %v2178
        %2186 = vst.msk [vmem:[#allocation5 + $0x3] sm:$0x1] %vm2154, %v2184
        %v2187 = vcombine.high %v2149, %v2149
        %v2189 = vunpack.c.l.s4 1966171168
        %v2190 = vunpack.c.0.s8 %v2189
        %v2191 = vlaneseq
        %v2192 = vshrl.u32 %v2191, 7
        %v2193 = vsub.s32 %v2190, %v2192
        %v2194 = vrot.slane %v2187, %v2193
        %v2196 = vunpack.c.l.s4 1966171168
        %v2197 = vunpack.c.0.s8 %v2196
        %v2198 = vlaneseq
        %v2199 = vshrl.u32 %v2198, 7
        %v2200 = vsub.s32 %v2197, %v2199
        %v2201 = vrot.slane %v2194, %v2200
        %2203 = vst.msk [vmem:[#allocation5 + $0x4] sm:$0x1] %vm2154, %v2201
        %v2204 = vcombine.high %v2194, %v2194
        %v2206 = vunpack.c.l.s4 1966171168
        %v2207 = vunpack.c.0.s8 %v2206
        %v2208 = vlaneseq
        %v2209 = vshrl.u32 %v2208, 7
        %v2210 = vsub.s32 %v2207, %v2209
        %v2211 = vrot.slane %v2204, %v2210
        %2213 = vst.msk [vmem:[#allocation5 + $0x5] sm:$0x1] %vm2154, %v2211
        %v2214 = vcombine.high %v2201, %v2201
        %2216 = vst.msk [vmem:[#allocation5 + $0x6] sm:$0x1] %vm2154, %v2214
        %v2217 = vcombine.high %v2211, %v2211
        %2219 = vst.msk [vmem:[#allocation5 + $0x7] sm:$0x1] %vm2154, %v2217
        %2220 = vst.msk [vmem:[#allocation5 + $0x8] sm:$0x1] %vm2154, %v2150
        %v2223 = vunpack.c.l.s4 1966171168
        %v2224 = vunpack.c.0.s8 %v2223
        %v2225 = vlaneseq
        %v2226 = vshrl.u32 %v2225, 7
        %v2227 = vsub.s32 %v2224, %v2226
        %v2228 = vrot.slane %v2150, %v2227
        %v2229 = vcombine.high %v2228, %v2228
        %v2231 = vunpack.c.l.s4 1966171168
        %v2232 = vunpack.c.0.s8 %v2231
        %v2233 = vlaneseq
        %v2234 = vshrl.u32 %v2233, 7
        %v2235 = vsub.s32 %v2232, %v2234
        %v2236 = vrot.slane %v2229, %v2235
        %2238 = vst.msk [vmem:[#allocation5 + $0x9] sm:$0x1] %vm2154, %v2236
        %v2239 = vld [vmem:[#allocation5] sm:$0xff]
        %v2240 = vld [vmem:[#allocation5 + $0x8] sm:$0x3]
        %v2243 = vlaneseq
        %v2244 = vshrl.u32 %v2243, 7
        %v2245 = vsub.s32 0, %v2244
        %v2246 = vrot.slane %v2239, %v2245
        %v2247 = vlaneseq
        %v2248 = vshrl.u32 %v2247, 7
        %v2249 = vsub.s32 1, %v2248
        %v2250 = vrot.slane %v2239, %v2249
        %v2251 = vlaneseq
        %v2252 = vshrl.u32 %v2251, 7
        %v2253 = vsub.s32 2, %v2252
        %v2254 = vrot.slane %v2239, %v2253
        %v2255 = vlaneseq
        %v2256 = vshrl.u32 %v2255, 7
        %v2257 = vsub.s32 3, %v2256
        %v2258 = vrot.slane %v2239, %v2257
        %v2259 = vlaneseq
        %v2260 = vshrl.u32 %v2259, 7
        %v2261 = vsub.s32 4, %v2260
        %v2262 = vrot.slane %v2239, %v2261
        %v2263 = vlaneseq
        %v2264 = vshrl.u32 %v2263, 7
        %v2265 = vsub.s32 5, %v2264
        %v2266 = vrot.slane %v2239, %v2265
        %v2267 = vlaneseq
        %v2268 = vshrl.u32 %v2267, 7
        %v2269 = vsub.s32 6, %v2268
        %v2270 = vrot.slane %v2239, %v2269
        %v2271 = vlaneseq
        %v2272 = vshrl.u32 %v2271, 7
        %v2273 = vsub.s32 7, %v2272
        %v2274 = vrot.slane %v2239, %v2273
        %v2275 = vlaneseq
        %v2276 = vshrl.u32 %v2275, 7
        %v2277 = vsub.s32 0, %v2276
        %v2278 = vrot.slane %v2240, %v2277
        %v2279 = vlaneseq
        %v2280 = vshrl.u32 %v2279, 7
        %v2281 = vsub.s32 1, %v2280
        %v2282 = vrot.slane %v2240, %v2281
        %v2293 = vpack.c.bf16 %v2246, %v2246
        %v2294 = vpack.c.bf16 %v2250, %v2250
        %v2295 = vpack.c.bf16 %v2254, %v2254
        %v2296 = vpack.c.bf16 %v2258, %v2258
        %v2297 = vpack.c.bf16 %v2262, %v2262
        %v2298 = vpack.c.bf16 %v2266, %v2266
        %v2299 = vpack.c.bf16 %v2270, %v2270
        %v2300 = vpack.c.bf16 %v2274, %v2274
        %v2301 = vpack.c.bf16 %v2278, %v2278
        %v2302 = vpack.c.bf16 %v2282, %v2282
        %v2303 = vld [vmem:[%s5] sm:$0xff]
        %v2304 = vld [vmem:[%s5 + $0x8] sm:$0xff]
        %v2305 = vld [vmem:[%s5 + $0x10] sm:$0xff]
        %v2306 = vld [vmem:[%s5 + $0x18] sm:$0xff]
        %v2307 = vld [vmem:[%s5 + $0x20] sm:$0xff]
        %v2308 = vld [vmem:[%s5 + $0x28] sm:$0xff]
        %v2309 = vld [vmem:[%s5 + $0x30] sm:$0xff]
        %v2310 = vld [vmem:[%s5 + $0x38] sm:$0xff]
        %v2311 = vld [vmem:[%s5 + $0x40] sm:$0xff]
        %v2312 = vld [vmem:[%s5 + $0x48] sm:$0xff]
        %v2313 = vld [vmem:[%s5 + $0x50] sm:$0xff]
        %v2314 = vld [vmem:[%s5 + $0x58] sm:$0xff]
        %v2315 = vld [vmem:[%s5 + $0x60] sm:$0xff]
        %v2316 = vld [vmem:[%s5 + $0x68] sm:$0xff]
        %v2317 = vld [vmem:[%s5 + $0x70] sm:$0xff]
        %v2318 = vld [vmem:[%s5 + $0x78] sm:$0xff]
        %v2319 = vld [vmem:[%s5 + $0x80] sm:$0xff]
        %v2320 = vld [vmem:[%s5 + $0x88] sm:$0xff]
        %v2321 = vld [vmem:[%s5 + $0x90] sm:$0xff]
        %v2322 = vld [vmem:[%s5 + $0x98] sm:$0xff]
        %v2323 = vld [vmem:[%s5 + $0xa0] sm:$0xff]
        %v2324 = vld [vmem:[%s5 + $0xa8] sm:$0xff]
        %v2325 = vld [vmem:[%s5 + $0xb0] sm:$0xff]
        %v2326 = vld [vmem:[%s5 + $0xb8] sm:$0xff]
        %v2327 = vld [vmem:[%s5 + $0xc0] sm:$0xff]
        %v2328 = vld [vmem:[%s5 + $0xc8] sm:$0xff]
        %v2329 = vld [vmem:[%s5 + $0xd0] sm:$0xff]
        %v2330 = vld [vmem:[%s5 + $0xd8] sm:$0xff]
        %v2331 = vld [vmem:[%s5 + $0xe0] sm:$0xff]
        %v2332 = vld [vmem:[%s5 + $0xe8] sm:$0xff]
        %v2333 = vld [vmem:[%s5 + $0xf0] sm:$0xff]
        %v2334 = vld [vmem:[%s5 + $0xf8] sm:$0xff]
        %v2335 = vld [vmem:[%s5 + $0x100] sm:$0xff]
        %v2336 = vld [vmem:[%s5 + $0x108] sm:$0xff]
        %v2337 = vld [vmem:[%s5 + $0x110] sm:$0xff]
        %v2338 = vld [vmem:[%s5 + $0x118] sm:$0xff]
        %v2339 = vld [vmem:[%s5 + $0x120] sm:$0xff]
        %v2340 = vld [vmem:[%s5 + $0x128] sm:$0xff]
        %v2341 = vld [vmem:[%s5 + $0x130] sm:$0xff]
        %v2342 = vld [vmem:[%s5 + $0x138] sm:$0xff]
        %v2343 = vld [vmem:[%s5 + $0x140] sm:$0xff]
        %v2344 = vld [vmem:[%s5 + $0x148] sm:$0xff]
        %v2345 = vld [vmem:[%s5 + $0x150] sm:$0xff]
        %v2346 = vld [vmem:[%s5 + $0x158] sm:$0xff]
        %v2347 = vld [vmem:[%s5 + $0x160] sm:$0xff]
        %v2348 = vld [vmem:[%s5 + $0x168] sm:$0xff]
        %v2349 = vld [vmem:[%s5 + $0x170] sm:$0xff]
        %v2350 = vld [vmem:[%s5 + $0x178] sm:$0xff]
        %v2351 = vld [vmem:[%s5 + $0x180] sm:$0xff]
        %v2352 = vld [vmem:[%s5 + $0x188] sm:$0xff]
        %v2353 = vld [vmem:[%s5 + $0x190] sm:$0xff]
        %v2354 = vld [vmem:[%s5 + $0x198] sm:$0xff]
        %v2355 = vld [vmem:[%s5 + $0x1a0] sm:$0xff]
        %v2356 = vld [vmem:[%s5 + $0x1a8] sm:$0xff]
        %v2357 = vld [vmem:[%s5 + $0x1b0] sm:$0xff]
        %v2358 = vld [vmem:[%s5 + $0x1b8] sm:$0xff]
        %v2359 = vld [vmem:[%s5 + $0x1c0] sm:$0xff]
        %v2360 = vld [vmem:[%s5 + $0x1c8] sm:$0xff]
        %v2361 = vld [vmem:[%s5 + $0x1d0] sm:$0xff]
        %v2362 = vld [vmem:[%s5 + $0x1d8] sm:$0xff]
        %v2363 = vld [vmem:[%s5 + $0x1e0] sm:$0xff]
        %v2364 = vld [vmem:[%s5 + $0x1e8] sm:$0xff]
        %v2365 = vld [vmem:[%s5 + $0x1f0] sm:$0xff]
        %v2366 = vld [vmem:[%s5 + $0x1f8] sm:$0xff]
        %v2367 = vld [vmem:[%s5 + $0x200] sm:$0xff]
        %v2368 = vld [vmem:[%s5 + $0x208] sm:$0xff]
        %v2369 = vld [vmem:[%s5 + $0x210] sm:$0xff]
        %v2370 = vld [vmem:[%s5 + $0x218] sm:$0xff]
        %v2371 = vld [vmem:[%s5 + $0x220] sm:$0xff]
        %v2372 = vld [vmem:[%s5 + $0x228] sm:$0xff]
        %v2373 = vld [vmem:[%s5 + $0x230] sm:$0xff]
        %v2374 = vld [vmem:[%s5 + $0x238] sm:$0xff]
        %v2375 = vld [vmem:[%s5 + $0x240] sm:$0xff]
        %v2376 = vld [vmem:[%s5 + $0x248] sm:$0xff]
        %v2377 = vld [vmem:[%s5 + $0x250] sm:$0xff]
        %v2378 = vld [vmem:[%s5 + $0x258] sm:$0xff]
        %v2379 = vld [vmem:[%s5 + $0x260] sm:$0xff]
        %v2380 = vld [vmem:[%s5 + $0x268] sm:$0xff]
        %v2381 = vld [vmem:[%s5 + $0x270] sm:$0xff]
        %v2382 = vld [vmem:[%s5 + $0x278] sm:$0xff]
        %v2383 = vld [vmem:[%s5 + $0x280] sm:$0xff]
        %v2384 = vld [vmem:[%s5 + $0x288] sm:$0xff]
        %v2385 = vld [vmem:[%s5 + $0x290] sm:$0xff]
        %v2386 = vld [vmem:[%s5 + $0x298] sm:$0xff]
        %v2387 = vld [vmem:[%s5 + $0x2a0] sm:$0xff]
        %v2388 = vld [vmem:[%s5 + $0x2a8] sm:$0xff]
        %v2389 = vld [vmem:[%s5 + $0x2b0] sm:$0xff]
        %v2390 = vld [vmem:[%s5 + $0x2b8] sm:$0xff]
        %v2391 = vld [vmem:[%s5 + $0x2c0] sm:$0xff]
        %v2392 = vld [vmem:[%s5 + $0x2c8] sm:$0xff]
        %v2393 = vld [vmem:[%s5 + $0x2d0] sm:$0xff]
        %v2394 = vld [vmem:[%s5 + $0x2d8] sm:$0xff]
        %v2395 = vld [vmem:[%s5 + $0x2e0] sm:$0xff]
        %v2396 = vld [vmem:[%s5 + $0x2e8] sm:$0xff]
        %v2397 = vld [vmem:[%s5 + $0x2f0] sm:$0xff]
        %v2398 = vld [vmem:[%s5 + $0x2f8] sm:$0xff]
        %v2399 = vld [vmem:[%s5 + $0x300] sm:$0xff]
        %v2400 = vld [vmem:[%s5 + $0x308] sm:$0xff]
        %v2401 = vld [vmem:[%s5 + $0x310] sm:$0xff]
        %v2402 = vld [vmem:[%s5 + $0x318] sm:$0xff]
        %v2403 = vld [vmem:[%s5 + $0x320] sm:$0xff]
        %v2404 = vld [vmem:[%s5 + $0x328] sm:$0xff]
        %v2405 = vld [vmem:[%s5 + $0x330] sm:$0xff]
        %v2406 = vld [vmem:[%s5 + $0x338] sm:$0xff]
        %v2407 = vld [vmem:[%s5 + $0x340] sm:$0xff]
        %v2408 = vld [vmem:[%s5 + $0x348] sm:$0xff]
        %v2409 = vld [vmem:[%s5 + $0x350] sm:$0xff]
        %v2410 = vld [vmem:[%s5 + $0x358] sm:$0xff]
        %v2411 = vld [vmem:[%s5 + $0x360] sm:$0xff]
        %v2412 = vld [vmem:[%s5 + $0x368] sm:$0xff]
        %v2413 = vld [vmem:[%s5 + $0x370] sm:$0xff]
        %v2414 = vld [vmem:[%s5 + $0x378] sm:$0xff]
        %v2415 = vld [vmem:[%s5 + $0x380] sm:$0xff]
        %v2416 = vld [vmem:[%s5 + $0x388] sm:$0xff]
        %v2417 = vld [vmem:[%s5 + $0x390] sm:$0xff]
        %v2418 = vld [vmem:[%s5 + $0x398] sm:$0xff]
        %v2419 = vld [vmem:[%s5 + $0x3a0] sm:$0xff]
        %v2420 = vld [vmem:[%s5 + $0x3a8] sm:$0xff]
        %v2421 = vld [vmem:[%s5 + $0x3b0] sm:$0xff]
        %v2422 = vld [vmem:[%s5 + $0x3b8] sm:$0xff]
        %v2423 = vld [vmem:[%s5 + $0x3c0] sm:$0xff]
        %v2424 = vld [vmem:[%s5 + $0x3c8] sm:$0xff]
        %v2425 = vld [vmem:[%s5 + $0x3d0] sm:$0xff]
        %v2426 = vld [vmem:[%s5 + $0x3d8] sm:$0xff]
        %v2427 = vld [vmem:[%s5 + $0x3e0] sm:$0xff]
        %v2428 = vld [vmem:[%s5 + $0x3e8] sm:$0xff]
        %v2429 = vld [vmem:[%s5 + $0x3f0] sm:$0xff]
        %v2430 = vld [vmem:[%s5 + $0x3f8] sm:$0xff]
        %v2431 = vld [vmem:[%s5 + $0x400] sm:$0xff]
        %v2432 = vld [vmem:[%s5 + $0x408] sm:$0xff]
        %v2433 = vld [vmem:[%s5 + $0x410] sm:$0xff]
        %v2434 = vld [vmem:[%s5 + $0x418] sm:$0xff]
        %v2435 = vld [vmem:[%s5 + $0x420] sm:$0xff]
        %v2436 = vld [vmem:[%s5 + $0x428] sm:$0xff]
        %v2437 = vld [vmem:[%s5 + $0x430] sm:$0xff]
        %v2438 = vld [vmem:[%s5 + $0x438] sm:$0xff]
        %v2439 = vld [vmem:[%s5 + $0x440] sm:$0xff]
        %v2440 = vld [vmem:[%s5 + $0x448] sm:$0xff]
        %v2441 = vld [vmem:[%s5 + $0x450] sm:$0xff]
        %v2442 = vld [vmem:[%s5 + $0x458] sm:$0xff]
        %v2443 = vld [vmem:[%s5 + $0x460] sm:$0xff]
        %v2444 = vld [vmem:[%s5 + $0x468] sm:$0xff]
        %v2445 = vld [vmem:[%s5 + $0x470] sm:$0xff]
        %v2446 = vld [vmem:[%s5 + $0x478] sm:$0xff]
        %v2447 = vld [vmem:[%s5 + $0x480] sm:$0xff]
        %v2448 = vld [vmem:[%s5 + $0x488] sm:$0xff]
        %v2449 = vld [vmem:[%s5 + $0x490] sm:$0xff]
        %v2450 = vld [vmem:[%s5 + $0x498] sm:$0xff]
        %v2451 = vld [vmem:[%s5 + $0x4a0] sm:$0xff]
        %v2452 = vld [vmem:[%s5 + $0x4a8] sm:$0xff]
        %v2453 = vld [vmem:[%s5 + $0x4b0] sm:$0xff]
        %v2454 = vld [vmem:[%s5 + $0x4b8] sm:$0xff]
        %v2455 = vld [vmem:[%s5 + $0x4c0] sm:$0xff]
        %v2456 = vld [vmem:[%s5 + $0x4c8] sm:$0xff]
        %v2457 = vld [vmem:[%s5 + $0x4d0] sm:$0xff]
        %v2458 = vld [vmem:[%s5 + $0x4d8] sm:$0xff]
        %v2459 = vld [vmem:[%s5 + $0x4e0] sm:$0xff]
        %v2460 = vld [vmem:[%s5 + $0x4e8] sm:$0xff]
        %v2461 = vld [vmem:[%s5 + $0x4f0] sm:$0xff]
        %v2462 = vld [vmem:[%s5 + $0x4f8] sm:$0xff]
        %v2463 = vld [vmem:[%s5 + $0x500] sm:$0xff]
        %v2464 = vld [vmem:[%s5 + $0x508] sm:$0xff]
        %v2465 = vld [vmem:[%s5 + $0x510] sm:$0xff]
        %v2466 = vld [vmem:[%s5 + $0x518] sm:$0xff]
        %v2467 = vld [vmem:[%s5 + $0x520] sm:$0xff]
        %v2468 = vld [vmem:[%s5 + $0x528] sm:$0xff]
        %v2469 = vld [vmem:[%s5 + $0x530] sm:$0xff]
        %v2470 = vld [vmem:[%s5 + $0x538] sm:$0xff]
        %v2471 = vld [vmem:[%s5 + $0x540] sm:$0xff]
        %v2472 = vld [vmem:[%s5 + $0x548] sm:$0xff]
        %v2473 = vld [vmem:[%s5 + $0x550] sm:$0xff]
        %v2474 = vld [vmem:[%s5 + $0x558] sm:$0xff]
        %v2475 = vld [vmem:[%s5 + $0x560] sm:$0xff]
        %v2476 = vld [vmem:[%s5 + $0x568] sm:$0xff]
        %v2477 = vld [vmem:[%s5 + $0x570] sm:$0xff]
        %v2478 = vld [vmem:[%s5 + $0x578] sm:$0xff]
        %v2479 = vld [vmem:[%s5 + $0x580] sm:$0xff]
        %v2480 = vld [vmem:[%s5 + $0x588] sm:$0xff]
        %v2481 = vld [vmem:[%s5 + $0x590] sm:$0xff]
        %v2482 = vld [vmem:[%s5 + $0x598] sm:$0xff]
        %v2483 = vld [vmem:[%s5 + $0x5a0] sm:$0xff]
        %v2484 = vld [vmem:[%s5 + $0x5a8] sm:$0xff]
        %v2485 = vld [vmem:[%s5 + $0x5b0] sm:$0xff]
        %v2486 = vld [vmem:[%s5 + $0x5b8] sm:$0xff]
        %v2487 = vld [vmem:[%s5 + $0x5c0] sm:$0xff]
        %v2488 = vld [vmem:[%s5 + $0x5c8] sm:$0xff]
        %v2489 = vld [vmem:[%s5 + $0x5d0] sm:$0xff]
        %v2490 = vld [vmem:[%s5 + $0x5d8] sm:$0xff]
        %v2491 = vld [vmem:[%s5 + $0x5e0] sm:$0xff]
        %v2492 = vld [vmem:[%s5 + $0x5e8] sm:$0xff]
        %v2493 = vld [vmem:[%s5 + $0x5f0] sm:$0xff]
        %v2494 = vld [vmem:[%s5 + $0x5f8] sm:$0xff]
        %v2495 = vld [vmem:[%s5 + $0x600] sm:$0xff]
        %v2496 = vld [vmem:[%s5 + $0x608] sm:$0xff]
        %v2497 = vld [vmem:[%s5 + $0x610] sm:$0xff]
        %v2498 = vld [vmem:[%s5 + $0x618] sm:$0xff]
        %v2499 = vld [vmem:[%s5 + $0x620] sm:$0xff]
        %v2500 = vld [vmem:[%s5 + $0x628] sm:$0xff]
        %v2501 = vld [vmem:[%s5 + $0x630] sm:$0xff]
        %v2502 = vld [vmem:[%s5 + $0x638] sm:$0xff]
        %v2503 = vld [vmem:[%s5 + $0x640] sm:$0xff]
        %v2504 = vld [vmem:[%s5 + $0x648] sm:$0xff]
        %v2505 = vld [vmem:[%s5 + $0x650] sm:$0xff]
        %v2506 = vld [vmem:[%s5 + $0x658] sm:$0xff]
        %v2507 = vld [vmem:[%s5 + $0x660] sm:$0xff]
        %v2508 = vld [vmem:[%s5 + $0x668] sm:$0xff]
        %v2509 = vld [vmem:[%s5 + $0x670] sm:$0xff]
        %v2510 = vld [vmem:[%s5 + $0x678] sm:$0xff]
        %v2511 = vld [vmem:[%s5 + $0x680] sm:$0xff]
        %v2512 = vld [vmem:[%s5 + $0x688] sm:$0xff]
        %v2513 = vld [vmem:[%s5 + $0x690] sm:$0xff]
        %v2514 = vld [vmem:[%s5 + $0x698] sm:$0xff]
        %v2515 = vld [vmem:[%s5 + $0x6a0] sm:$0xff]
        %v2516 = vld [vmem:[%s5 + $0x6a8] sm:$0xff]
        %v2517 = vld [vmem:[%s5 + $0x6b0] sm:$0xff]
        %v2518 = vld [vmem:[%s5 + $0x6b8] sm:$0xff]
        %v2519 = vld [vmem:[%s5 + $0x6c0] sm:$0xff]
        %v2520 = vld [vmem:[%s5 + $0x6c8] sm:$0xff]
        %v2521 = vld [vmem:[%s5 + $0x6d0] sm:$0xff]
        %v2522 = vld [vmem:[%s5 + $0x6d8] sm:$0xff]
        %v2523 = vld [vmem:[%s5 + $0x6e0] sm:$0xff]
        %v2524 = vld [vmem:[%s5 + $0x6e8] sm:$0xff]
        %v2525 = vld [vmem:[%s5 + $0x6f0] sm:$0xff]
        %v2526 = vld [vmem:[%s5 + $0x6f8] sm:$0xff]
        %v2527 = vld [vmem:[%s5 + $0x700] sm:$0xff]
        %v2528 = vld [vmem:[%s5 + $0x708] sm:$0xff]
        %v2529 = vld [vmem:[%s5 + $0x710] sm:$0xff]
        %v2530 = vld [vmem:[%s5 + $0x718] sm:$0xff]
        %v2531 = vld [vmem:[%s5 + $0x720] sm:$0xff]
        %v2532 = vld [vmem:[%s5 + $0x728] sm:$0xff]
        %v2533 = vld [vmem:[%s5 + $0x730] sm:$0xff]
        %v2534 = vld [vmem:[%s5 + $0x738] sm:$0xff]
        %v2535 = vld [vmem:[%s5 + $0x740] sm:$0xff]
        %v2536 = vld [vmem:[%s5 + $0x748] sm:$0xff]
        %v2537 = vld [vmem:[%s5 + $0x750] sm:$0xff]
        %v2538 = vld [vmem:[%s5 + $0x758] sm:$0xff]
        %v2539 = vld [vmem:[%s5 + $0x760] sm:$0xff]
        %v2540 = vld [vmem:[%s5 + $0x768] sm:$0xff]
        %v2541 = vld [vmem:[%s5 + $0x770] sm:$0xff]
        %v2542 = vld [vmem:[%s5 + $0x778] sm:$0xff]
        %v2543 = vld [vmem:[%s5 + $0x780] sm:$0xff]
        %v2544 = vld [vmem:[%s5 + $0x788] sm:$0xff]
        %v2545 = vld [vmem:[%s5 + $0x790] sm:$0xff]
        %v2546 = vld [vmem:[%s5 + $0x798] sm:$0xff]
        %v2547 = vld [vmem:[%s5 + $0x7a0] sm:$0xff]
        %v2548 = vld [vmem:[%s5 + $0x7a8] sm:$0xff]
        %v2549 = vld [vmem:[%s5 + $0x7b0] sm:$0xff]
        %v2550 = vld [vmem:[%s5 + $0x7b8] sm:$0xff]
        %v2551 = vld [vmem:[%s5 + $0x7c0] sm:$0xff]
        %v2552 = vld [vmem:[%s5 + $0x7c8] sm:$0xff]
        %v2553 = vld [vmem:[%s5 + $0x7d0] sm:$0xff]
        %v2554 = vld [vmem:[%s5 + $0x7d8] sm:$0xff]
        %v2555 = vld [vmem:[%s5 + $0x7e0] sm:$0xff]
        %v2556 = vld [vmem:[%s5 + $0x7e8] sm:$0xff]
        %v2557 = vld [vmem:[%s5 + $0x7f0] sm:$0xff]
        %v2558 = vld [vmem:[%s5 + $0x7f8] sm:$0xff]
        %v2559 = vld [vmem:[%s5 + $0x800] sm:$0xff]
        %v2560 = vld [vmem:[%s5 + $0x808] sm:$0xff]
        %v2561 = vld [vmem:[%s5 + $0x810] sm:$0xff]
        %v2562 = vld [vmem:[%s5 + $0x818] sm:$0xff]
        %v2563 = vld [vmem:[%s5 + $0x820] sm:$0xff]
        %v2564 = vld [vmem:[%s5 + $0x828] sm:$0xff]
        %v2565 = vld [vmem:[%s5 + $0x830] sm:$0xff]
        %v2566 = vld [vmem:[%s5 + $0x838] sm:$0xff]
        %v2567 = vld [vmem:[%s5 + $0x840] sm:$0xff]
        %v2568 = vld [vmem:[%s5 + $0x848] sm:$0xff]
        %v2569 = vld [vmem:[%s5 + $0x850] sm:$0xff]
        %v2570 = vld [vmem:[%s5 + $0x858] sm:$0xff]
        %v2571 = vld [vmem:[%s5 + $0x860] sm:$0xff]
        %v2572 = vld [vmem:[%s5 + $0x868] sm:$0xff]
        %v2573 = vld [vmem:[%s5 + $0x870] sm:$0xff]
        %v2574 = vld [vmem:[%s5 + $0x878] sm:$0xff]
        %v2575 = vld [vmem:[%s5 + $0x880] sm:$0xff]
        %v2576 = vld [vmem:[%s5 + $0x888] sm:$0xff]
        %v2577 = vld [vmem:[%s5 + $0x890] sm:$0xff]
        %v2578 = vld [vmem:[%s5 + $0x898] sm:$0xff]
        %v2579 = vld [vmem:[%s5 + $0x8a0] sm:$0xff]
        %v2580 = vld [vmem:[%s5 + $0x8a8] sm:$0xff]
        %v2581 = vld [vmem:[%s5 + $0x8b0] sm:$0xff]
        %v2582 = vld [vmem:[%s5 + $0x8b8] sm:$0xff]
        %v2583 = vld [vmem:[%s5 + $0x8c0] sm:$0xff]
        %v2584 = vld [vmem:[%s5 + $0x8c8] sm:$0xff]
        %v2585 = vld [vmem:[%s5 + $0x8d0] sm:$0xff]
        %v2586 = vld [vmem:[%s5 + $0x8d8] sm:$0xff]
        %v2587 = vld [vmem:[%s5 + $0x8e0] sm:$0xff]
        %v2588 = vld [vmem:[%s5 + $0x8e8] sm:$0xff]
        %v2589 = vld [vmem:[%s5 + $0x8f0] sm:$0xff]
        %v2590 = vld [vmem:[%s5 + $0x8f8] sm:$0xff]
        %v2591 = vld [vmem:[%s5 + $0x900] sm:$0xff]
        %v2592 = vld [vmem:[%s5 + $0x908] sm:$0xff]
        %v2593 = vld [vmem:[%s5 + $0x910] sm:$0xff]
        %v2594 = vld [vmem:[%s5 + $0x918] sm:$0xff]
        %v2595 = vld [vmem:[%s5 + $0x920] sm:$0xff]
        %v2596 = vld [vmem:[%s5 + $0x928] sm:$0xff]
        %v2597 = vld [vmem:[%s5 + $0x930] sm:$0xff]
        %v2598 = vld [vmem:[%s5 + $0x938] sm:$0xff]
        %v2599 = vld [vmem:[%s5 + $0x940] sm:$0xff]
        %v2600 = vld [vmem:[%s5 + $0x948] sm:$0xff]
        %v2601 = vld [vmem:[%s5 + $0x950] sm:$0xff]
        %v2602 = vld [vmem:[%s5 + $0x958] sm:$0xff]
        %v2603 = vld [vmem:[%s5 + $0x960] sm:$0xff]
        %v2604 = vld [vmem:[%s5 + $0x968] sm:$0xff]
        %v2605 = vld [vmem:[%s5 + $0x970] sm:$0xff]
        %v2606 = vld [vmem:[%s5 + $0x978] sm:$0xff]
        %v2607 = vld [vmem:[%s5 + $0x980] sm:$0xff]
        %v2608 = vld [vmem:[%s5 + $0x988] sm:$0xff]
        %v2609 = vld [vmem:[%s5 + $0x990] sm:$0xff]
        %v2610 = vld [vmem:[%s5 + $0x998] sm:$0xff]
        %v2611 = vld [vmem:[%s5 + $0x9a0] sm:$0xff]
        %v2612 = vld [vmem:[%s5 + $0x9a8] sm:$0xff]
        %v2613 = vld [vmem:[%s5 + $0x9b0] sm:$0xff]
        %v2614 = vld [vmem:[%s5 + $0x9b8] sm:$0xff]
        %v2615 = vld [vmem:[%s5 + $0x9c0] sm:$0xff]
        %v2616 = vld [vmem:[%s5 + $0x9c8] sm:$0xff]
        %v2617 = vld [vmem:[%s5 + $0x9d0] sm:$0xff]
        %v2618 = vld [vmem:[%s5 + $0x9d8] sm:$0xff]
        %v2619 = vld [vmem:[%s5 + $0x9e0] sm:$0xff]
        %v2620 = vld [vmem:[%s5 + $0x9e8] sm:$0xff]
        %v2621 = vld [vmem:[%s5 + $0x9f0] sm:$0xff]
        %v2622 = vld [vmem:[%s5 + $0x9f8] sm:$0xff]
        %v2623 = vld [vmem:[%s6] sm:$0xf]
        %v2944 = vunpack.c.l.b16 %v2303
        %v2945 = vunpack.c.h.b16 %v2303
        %v2946 = vunpack.c.l.b16 %v2304
        %v2947 = vunpack.c.h.b16 %v2304
        %v2948 = vunpack.c.l.b16 %v2305
        %v2949 = vunpack.c.h.b16 %v2305
        %v2950 = vunpack.c.l.b16 %v2306
        %v2951 = vunpack.c.h.b16 %v2306
        %v2952 = vunpack.c.l.b16 %v2307
        %v2953 = vunpack.c.h.b16 %v2307
        %v2954 = vunpack.c.l.b16 %v2308
        %v2955 = vunpack.c.h.b16 %v2308
        %v2956 = vunpack.c.l.b16 %v2309
        %v2957 = vunpack.c.h.b16 %v2309
        %v2958 = vunpack.c.l.b16 %v2310
        %v2959 = vunpack.c.h.b16 %v2310
        %v2960 = vunpack.c.l.b16 %v2311
        %v2961 = vunpack.c.h.b16 %v2311
        %v2962 = vunpack.c.l.b16 %v2312
        %v2963 = vunpack.c.h.b16 %v2312
        %v2964 = vunpack.c.l.b16 %v2313
        %v2965 = vunpack.c.h.b16 %v2313
        %v2966 = vunpack.c.l.b16 %v2314
        %v2967 = vunpack.c.h.b16 %v2314
        %v2968 = vunpack.c.l.b16 %v2315
        %v2969 = vunpack.c.h.b16 %v2315
        %v2970 = vunpack.c.l.b16 %v2316
        %v2971 = vunpack.c.h.b16 %v2316
        %v2972 = vunpack.c.l.b16 %v2317
        %v2973 = vunpack.c.h.b16 %v2317
        %v2974 = vunpack.c.l.b16 %v2318
        %v2975 = vunpack.c.h.b16 %v2318
        %v2976 = vunpack.c.l.b16 %v2319
        %v2977 = vunpack.c.h.b16 %v2319
        %v2978 = vunpack.c.l.b16 %v2320
        %v2979 = vunpack.c.h.b16 %v2320
        %v2980 = vunpack.c.l.b16 %v2321
        %v2981 = vunpack.c.h.b16 %v2321
        %v2982 = vunpack.c.l.b16 %v2322
        %v2983 = vunpack.c.h.b16 %v2322
        %v2984 = vunpack.c.l.b16 %v2323
        %v2985 = vunpack.c.h.b16 %v2323
        %v2986 = vunpack.c.l.b16 %v2324
        %v2987 = vunpack.c.h.b16 %v2324
        %v2988 = vunpack.c.l.b16 %v2325
        %v2989 = vunpack.c.h.b16 %v2325
        %v2990 = vunpack.c.l.b16 %v2326
        %v2991 = vunpack.c.h.b16 %v2326
        %v2992 = vunpack.c.l.b16 %v2327
        %v2993 = vunpack.c.h.b16 %v2327
        %v2994 = vunpack.c.l.b16 %v2328
        %v2995 = vunpack.c.h.b16 %v2328
        %v2996 = vunpack.c.l.b16 %v2329
        %v2997 = vunpack.c.h.b16 %v2329
        %v2998 = vunpack.c.l.b16 %v2330
        %v2999 = vunpack.c.h.b16 %v2330
        %v3000 = vunpack.c.l.b16 %v2331
        %v3001 = vunpack.c.h.b16 %v2331
        %v3002 = vunpack.c.l.b16 %v2332
        %v3003 = vunpack.c.h.b16 %v2332
        %v3004 = vunpack.c.l.b16 %v2333
        %v3005 = vunpack.c.h.b16 %v2333
        %v3006 = vunpack.c.l.b16 %v2334
        %v3007 = vunpack.c.h.b16 %v2334
        %v3008 = vunpack.c.l.b16 %v2335
        %v3009 = vunpack.c.h.b16 %v2335
        %v3010 = vunpack.c.l.b16 %v2336
        %v3011 = vunpack.c.h.b16 %v2336
        %v3012 = vunpack.c.l.b16 %v2337
        %v3013 = vunpack.c.h.b16 %v2337
        %v3014 = vunpack.c.l.b16 %v2338
        %v3015 = vunpack.c.h.b16 %v2338
        %v3016 = vunpack.c.l.b16 %v2339
        %v3017 = vunpack.c.h.b16 %v2339
        %v3018 = vunpack.c.l.b16 %v2340
        %v3019 = vunpack.c.h.b16 %v2340
        %v3020 = vunpack.c.l.b16 %v2341
        %v3021 = vunpack.c.h.b16 %v2341
        %v3022 = vunpack.c.l.b16 %v2342
        %v3023 = vunpack.c.h.b16 %v2342
        %v3024 = vunpack.c.l.b16 %v2343
        %v3025 = vunpack.c.h.b16 %v2343
        %v3026 = vunpack.c.l.b16 %v2344
        %v3027 = vunpack.c.h.b16 %v2344
        %v3028 = vunpack.c.l.b16 %v2345
        %v3029 = vunpack.c.h.b16 %v2345
        %v3030 = vunpack.c.l.b16 %v2346
        %v3031 = vunpack.c.h.b16 %v2346
        %v3032 = vunpack.c.l.b16 %v2347
        %v3033 = vunpack.c.h.b16 %v2347
        %v3034 = vunpack.c.l.b16 %v2348
        %v3035 = vunpack.c.h.b16 %v2348
        %v3036 = vunpack.c.l.b16 %v2349
        %v3037 = vunpack.c.h.b16 %v2349
        %v3038 = vunpack.c.l.b16 %v2350
        %v3039 = vunpack.c.h.b16 %v2350
        %v3040 = vunpack.c.l.b16 %v2351
        %v3041 = vunpack.c.h.b16 %v2351
        %v3042 = vunpack.c.l.b16 %v2352
        %v3043 = vunpack.c.h.b16 %v2352
        %v3044 = vunpack.c.l.b16 %v2353
        %v3045 = vunpack.c.h.b16 %v2353
        %v3046 = vunpack.c.l.b16 %v2354
        %v3047 = vunpack.c.h.b16 %v2354
        %v3048 = vunpack.c.l.b16 %v2355
        %v3049 = vunpack.c.h.b16 %v2355
        %v3050 = vunpack.c.l.b16 %v2356
        %v3051 = vunpack.c.h.b16 %v2356
        %v3052 = vunpack.c.l.b16 %v2357
        %v3053 = vunpack.c.h.b16 %v2357
        %v3054 = vunpack.c.l.b16 %v2358
        %v3055 = vunpack.c.h.b16 %v2358
        %v3056 = vunpack.c.l.b16 %v2359
        %v3057 = vunpack.c.h.b16 %v2359
        %v3058 = vunpack.c.l.b16 %v2360
        %v3059 = vunpack.c.h.b16 %v2360
        %v3060 = vunpack.c.l.b16 %v2361
        %v3061 = vunpack.c.h.b16 %v2361
        %v3062 = vunpack.c.l.b16 %v2362
        %v3063 = vunpack.c.h.b16 %v2362
        %v3064 = vunpack.c.l.b16 %v2363
        %v3065 = vunpack.c.h.b16 %v2363
        %v3066 = vunpack.c.l.b16 %v2364
        %v3067 = vunpack.c.h.b16 %v2364
        %v3068 = vunpack.c.l.b16 %v2365
        %v3069 = vunpack.c.h.b16 %v2365
        %v3070 = vunpack.c.l.b16 %v2366
        %v3071 = vunpack.c.h.b16 %v2366
        %v3072 = vunpack.c.l.b16 %v2367
        %v3073 = vunpack.c.h.b16 %v2367
        %v3074 = vunpack.c.l.b16 %v2368
        %v3075 = vunpack.c.h.b16 %v2368
        %v3076 = vunpack.c.l.b16 %v2369
        %v3077 = vunpack.c.h.b16 %v2369
        %v3078 = vunpack.c.l.b16 %v2370
        %v3079 = vunpack.c.h.b16 %v2370
        %v3080 = vunpack.c.l.b16 %v2371
        %v3081 = vunpack.c.h.b16 %v2371
        %v3082 = vunpack.c.l.b16 %v2372
        %v3083 = vunpack.c.h.b16 %v2372
        %v3084 = vunpack.c.l.b16 %v2373
        %v3085 = vunpack.c.h.b16 %v2373
        %v3086 = vunpack.c.l.b16 %v2374
        %v3087 = vunpack.c.h.b16 %v2374
        %v3088 = vunpack.c.l.b16 %v2375
        %v3089 = vunpack.c.h.b16 %v2375
        %v3090 = vunpack.c.l.b16 %v2376
        %v3091 = vunpack.c.h.b16 %v2376
        %v3092 = vunpack.c.l.b16 %v2377
        %v3093 = vunpack.c.h.b16 %v2377
        %v3094 = vunpack.c.l.b16 %v2378
        %v3095 = vunpack.c.h.b16 %v2378
        %v3096 = vunpack.c.l.b16 %v2379
        %v3097 = vunpack.c.h.b16 %v2379
        %v3098 = vunpack.c.l.b16 %v2380
        %v3099 = vunpack.c.h.b16 %v2380
        %v3100 = vunpack.c.l.b16 %v2381
        %v3101 = vunpack.c.h.b16 %v2381
        %v3102 = vunpack.c.l.b16 %v2382
        %v3103 = vunpack.c.h.b16 %v2382
        %v3104 = vunpack.c.l.b16 %v2383
        %v3105 = vunpack.c.h.b16 %v2383
        %v3106 = vunpack.c.l.b16 %v2384
        %v3107 = vunpack.c.h.b16 %v2384
        %v3108 = vunpack.c.l.b16 %v2385
        %v3109 = vunpack.c.h.b16 %v2385
        %v3110 = vunpack.c.l.b16 %v2386
        %v3111 = vunpack.c.h.b16 %v2386
        %v3112 = vunpack.c.l.b16 %v2387
        %v3113 = vunpack.c.h.b16 %v2387
        %v3114 = vunpack.c.l.b16 %v2388
        %v3115 = vunpack.c.h.b16 %v2388
        %v3116 = vunpack.c.l.b16 %v2389
        %v3117 = vunpack.c.h.b16 %v2389
        %v3118 = vunpack.c.l.b16 %v2390
        %v3119 = vunpack.c.h.b16 %v2390
        %v3120 = vunpack.c.l.b16 %v2391
        %v3121 = vunpack.c.h.b16 %v2391
        %v3122 = vunpack.c.l.b16 %v2392
        %v3123 = vunpack.c.h.b16 %v2392
        %v3124 = vunpack.c.l.b16 %v2393
        %v3125 = vunpack.c.h.b16 %v2393
        %v3126 = vunpack.c.l.b16 %v2394
        %v3127 = vunpack.c.h.b16 %v2394
        %v3128 = vunpack.c.l.b16 %v2395
        %v3129 = vunpack.c.h.b16 %v2395
        %v3130 = vunpack.c.l.b16 %v2396
        %v3131 = vunpack.c.h.b16 %v2396
        %v3132 = vunpack.c.l.b16 %v2397
        %v3133 = vunpack.c.h.b16 %v2397
        %v3134 = vunpack.c.l.b16 %v2398
        %v3135 = vunpack.c.h.b16 %v2398
        %v3136 = vunpack.c.l.b16 %v2399
        %v3137 = vunpack.c.h.b16 %v2399
        %v3138 = vunpack.c.l.b16 %v2400
        %v3139 = vunpack.c.h.b16 %v2400
        %v3140 = vunpack.c.l.b16 %v2401
        %v3141 = vunpack.c.h.b16 %v2401
        %v3142 = vunpack.c.l.b16 %v2402
        %v3143 = vunpack.c.h.b16 %v2402
        %v3144 = vunpack.c.l.b16 %v2403
        %v3145 = vunpack.c.h.b16 %v2403
        %v3146 = vunpack.c.l.b16 %v2404
        %v3147 = vunpack.c.h.b16 %v2404
        %v3148 = vunpack.c.l.b16 %v2405
        %v3149 = vunpack.c.h.b16 %v2405
        %v3150 = vunpack.c.l.b16 %v2406
        %v3151 = vunpack.c.h.b16 %v2406
        %v3152 = vunpack.c.l.b16 %v2407
        %v3153 = vunpack.c.h.b16 %v2407
        %v3154 = vunpack.c.l.b16 %v2408
        %v3155 = vunpack.c.h.b16 %v2408
        %v3156 = vunpack.c.l.b16 %v2409
        %v3157 = vunpack.c.h.b16 %v2409
        %v3158 = vunpack.c.l.b16 %v2410
        %v3159 = vunpack.c.h.b16 %v2410
        %v3160 = vunpack.c.l.b16 %v2411
        %v3161 = vunpack.c.h.b16 %v2411
        %v3162 = vunpack.c.l.b16 %v2412
        %v3163 = vunpack.c.h.b16 %v2412
        %v3164 = vunpack.c.l.b16 %v2413
        %v3165 = vunpack.c.h.b16 %v2413
        %v3166 = vunpack.c.l.b16 %v2414
        %v3167 = vunpack.c.h.b16 %v2414
        %v3168 = vunpack.c.l.b16 %v2415
        %v3169 = vunpack.c.h.b16 %v2415
        %v3170 = vunpack.c.l.b16 %v2416
        %v3171 = vunpack.c.h.b16 %v2416
        %v3172 = vunpack.c.l.b16 %v2417
        %v3173 = vunpack.c.h.b16 %v2417
        %v3174 = vunpack.c.l.b16 %v2418
        %v3175 = vunpack.c.h.b16 %v2418
        %v3176 = vunpack.c.l.b16 %v2419
        %v3177 = vunpack.c.h.b16 %v2419
        %v3178 = vunpack.c.l.b16 %v2420
        %v3179 = vunpack.c.h.b16 %v2420
        %v3180 = vunpack.c.l.b16 %v2421
        %v3181 = vunpack.c.h.b16 %v2421
        %v3182 = vunpack.c.l.b16 %v2422
        %v3183 = vunpack.c.h.b16 %v2422
        %v3184 = vunpack.c.l.b16 %v2423
        %v3185 = vunpack.c.h.b16 %v2423
        %v3186 = vunpack.c.l.b16 %v2424
        %v3187 = vunpack.c.h.b16 %v2424
        %v3188 = vunpack.c.l.b16 %v2425
        %v3189 = vunpack.c.h.b16 %v2425
        %v3190 = vunpack.c.l.b16 %v2426
        %v3191 = vunpack.c.h.b16 %v2426
        %v3192 = vunpack.c.l.b16 %v2427
        %v3193 = vunpack.c.h.b16 %v2427
        %v3194 = vunpack.c.l.b16 %v2428
        %v3195 = vunpack.c.h.b16 %v2428
        %v3196 = vunpack.c.l.b16 %v2429
        %v3197 = vunpack.c.h.b16 %v2429
        %v3198 = vunpack.c.l.b16 %v2430
        %v3199 = vunpack.c.h.b16 %v2430
        %v3200 = vunpack.c.l.b16 %v2431
        %v3201 = vunpack.c.h.b16 %v2431
        %v3202 = vunpack.c.l.b16 %v2432
        %v3203 = vunpack.c.h.b16 %v2432
        %v3204 = vunpack.c.l.b16 %v2433
        %v3205 = vunpack.c.h.b16 %v2433
        %v3206 = vunpack.c.l.b16 %v2434
        %v3207 = vunpack.c.h.b16 %v2434
        %v3208 = vunpack.c.l.b16 %v2435
        %v3209 = vunpack.c.h.b16 %v2435
        %v3210 = vunpack.c.l.b16 %v2436
        %v3211 = vunpack.c.h.b16 %v2436
        %v3212 = vunpack.c.l.b16 %v2437
        %v3213 = vunpack.c.h.b16 %v2437
        %v3214 = vunpack.c.l.b16 %v2438
        %v3215 = vunpack.c.h.b16 %v2438
        %v3216 = vunpack.c.l.b16 %v2439
        %v3217 = vunpack.c.h.b16 %v2439
        %v3218 = vunpack.c.l.b16 %v2440
        %v3219 = vunpack.c.h.b16 %v2440
        %v3220 = vunpack.c.l.b16 %v2441
        %v3221 = vunpack.c.h.b16 %v2441
        %v3222 = vunpack.c.l.b16 %v2442
        %v3223 = vunpack.c.h.b16 %v2442
        %v3224 = vunpack.c.l.b16 %v2443
        %v3225 = vunpack.c.h.b16 %v2443
        %v3226 = vunpack.c.l.b16 %v2444
        %v3227 = vunpack.c.h.b16 %v2444
        %v3228 = vunpack.c.l.b16 %v2445
        %v3229 = vunpack.c.h.b16 %v2445
        %v3230 = vunpack.c.l.b16 %v2446
        %v3231 = vunpack.c.h.b16 %v2446
        %v3232 = vunpack.c.l.b16 %v2447
        %v3233 = vunpack.c.h.b16 %v2447
        %v3234 = vunpack.c.l.b16 %v2448
        %v3235 = vunpack.c.h.b16 %v2448
        %v3236 = vunpack.c.l.b16 %v2449
        %v3237 = vunpack.c.h.b16 %v2449
        %v3238 = vunpack.c.l.b16 %v2450
        %v3239 = vunpack.c.h.b16 %v2450
        %v3240 = vunpack.c.l.b16 %v2451
        %v3241 = vunpack.c.h.b16 %v2451
        %v3242 = vunpack.c.l.b16 %v2452
        %v3243 = vunpack.c.h.b16 %v2452
        %v3244 = vunpack.c.l.b16 %v2453
        %v3245 = vunpack.c.h.b16 %v2453
        %v3246 = vunpack.c.l.b16 %v2454
        %v3247 = vunpack.c.h.b16 %v2454
        %v3248 = vunpack.c.l.b16 %v2455
        %v3249 = vunpack.c.h.b16 %v2455
        %v3250 = vunpack.c.l.b16 %v2456
        %v3251 = vunpack.c.h.b16 %v2456
        %v3252 = vunpack.c.l.b16 %v2457
        %v3253 = vunpack.c.h.b16 %v2457
        %v3254 = vunpack.c.l.b16 %v2458
        %v3255 = vunpack.c.h.b16 %v2458
        %v3256 = vunpack.c.l.b16 %v2459
        %v3257 = vunpack.c.h.b16 %v2459
        %v3258 = vunpack.c.l.b16 %v2460
        %v3259 = vunpack.c.h.b16 %v2460
        %v3260 = vunpack.c.l.b16 %v2461
        %v3261 = vunpack.c.h.b16 %v2461
        %v3262 = vunpack.c.l.b16 %v2462
        %v3263 = vunpack.c.h.b16 %v2462
        %v3264 = vunpack.c.l.b16 %v2463
        %v3265 = vunpack.c.h.b16 %v2463
        %v3266 = vunpack.c.l.b16 %v2464
        %v3267 = vunpack.c.h.b16 %v2464
        %v3268 = vunpack.c.l.b16 %v2465
        %v3269 = vunpack.c.h.b16 %v2465
        %v3270 = vunpack.c.l.b16 %v2466
        %v3271 = vunpack.c.h.b16 %v2466
        %v3272 = vunpack.c.l.b16 %v2467
        %v3273 = vunpack.c.h.b16 %v2467
        %v3274 = vunpack.c.l.b16 %v2468
        %v3275 = vunpack.c.h.b16 %v2468
        %v3276 = vunpack.c.l.b16 %v2469
        %v3277 = vunpack.c.h.b16 %v2469
        %v3278 = vunpack.c.l.b16 %v2470
        %v3279 = vunpack.c.h.b16 %v2470
        %v3280 = vunpack.c.l.b16 %v2471
        %v3281 = vunpack.c.h.b16 %v2471
        %v3282 = vunpack.c.l.b16 %v2472
        %v3283 = vunpack.c.h.b16 %v2472
        %v3284 = vunpack.c.l.b16 %v2473
        %v3285 = vunpack.c.h.b16 %v2473
        %v3286 = vunpack.c.l.b16 %v2474
        %v3287 = vunpack.c.h.b16 %v2474
        %v3288 = vunpack.c.l.b16 %v2475
        %v3289 = vunpack.c.h.b16 %v2475
        %v3290 = vunpack.c.l.b16 %v2476
        %v3291 = vunpack.c.h.b16 %v2476
        %v3292 = vunpack.c.l.b16 %v2477
        %v3293 = vunpack.c.h.b16 %v2477
        %v3294 = vunpack.c.l.b16 %v2478
        %v3295 = vunpack.c.h.b16 %v2478
        %v3296 = vunpack.c.l.b16 %v2479
        %v3297 = vunpack.c.h.b16 %v2479
        %v3298 = vunpack.c.l.b16 %v2480
        %v3299 = vunpack.c.h.b16 %v2480
        %v3300 = vunpack.c.l.b16 %v2481
        %v3301 = vunpack.c.h.b16 %v2481
        %v3302 = vunpack.c.l.b16 %v2482
        %v3303 = vunpack.c.h.b16 %v2482
        %v3304 = vunpack.c.l.b16 %v2483
        %v3305 = vunpack.c.h.b16 %v2483
        %v3306 = vunpack.c.l.b16 %v2484
        %v3307 = vunpack.c.h.b16 %v2484
        %v3308 = vunpack.c.l.b16 %v2485
        %v3309 = vunpack.c.h.b16 %v2485
        %v3310 = vunpack.c.l.b16 %v2486
        %v3311 = vunpack.c.h.b16 %v2486
        %v3312 = vunpack.c.l.b16 %v2487
        %v3313 = vunpack.c.h.b16 %v2487
        %v3314 = vunpack.c.l.b16 %v2488
        %v3315 = vunpack.c.h.b16 %v2488
        %v3316 = vunpack.c.l.b16 %v2489
        %v3317 = vunpack.c.h.b16 %v2489
        %v3318 = vunpack.c.l.b16 %v2490
        %v3319 = vunpack.c.h.b16 %v2490
        %v3320 = vunpack.c.l.b16 %v2491
        %v3321 = vunpack.c.h.b16 %v2491
        %v3322 = vunpack.c.l.b16 %v2492
        %v3323 = vunpack.c.h.b16 %v2492
        %v3324 = vunpack.c.l.b16 %v2493
        %v3325 = vunpack.c.h.b16 %v2493
        %v3326 = vunpack.c.l.b16 %v2494
        %v3327 = vunpack.c.h.b16 %v2494
        %v3328 = vunpack.c.l.b16 %v2495
        %v3329 = vunpack.c.h.b16 %v2495
        %v3330 = vunpack.c.l.b16 %v2496
        %v3331 = vunpack.c.h.b16 %v2496
        %v3332 = vunpack.c.l.b16 %v2497
        %v3333 = vunpack.c.h.b16 %v2497
        %v3334 = vunpack.c.l.b16 %v2498
        %v3335 = vunpack.c.h.b16 %v2498
        %v3336 = vunpack.c.l.b16 %v2499
        %v3337 = vunpack.c.h.b16 %v2499
        %v3338 = vunpack.c.l.b16 %v2500
        %v3339 = vunpack.c.h.b16 %v2500
        %v3340 = vunpack.c.l.b16 %v2501
        %v3341 = vunpack.c.h.b16 %v2501
        %v3342 = vunpack.c.l.b16 %v2502
        %v3343 = vunpack.c.h.b16 %v2502
        %v3344 = vunpack.c.l.b16 %v2503
        %v3345 = vunpack.c.h.b16 %v2503
        %v3346 = vunpack.c.l.b16 %v2504
        %v3347 = vunpack.c.h.b16 %v2504
        %v3348 = vunpack.c.l.b16 %v2505
        %v3349 = vunpack.c.h.b16 %v2505
        %v3350 = vunpack.c.l.b16 %v2506
        %v3351 = vunpack.c.h.b16 %v2506
        %v3352 = vunpack.c.l.b16 %v2507
        %v3353 = vunpack.c.h.b16 %v2507
        %v3354 = vunpack.c.l.b16 %v2508
        %v3355 = vunpack.c.h.b16 %v2508
        %v3356 = vunpack.c.l.b16 %v2509
        %v3357 = vunpack.c.h.b16 %v2509
        %v3358 = vunpack.c.l.b16 %v2510
        %v3359 = vunpack.c.h.b16 %v2510
        %v3360 = vunpack.c.l.b16 %v2511
        %v3361 = vunpack.c.h.b16 %v2511
        %v3362 = vunpack.c.l.b16 %v2512
        %v3363 = vunpack.c.h.b16 %v2512
        %v3364 = vunpack.c.l.b16 %v2513
        %v3365 = vunpack.c.h.b16 %v2513
        %v3366 = vunpack.c.l.b16 %v2514
        %v3367 = vunpack.c.h.b16 %v2514
        %v3368 = vunpack.c.l.b16 %v2515
        %v3369 = vunpack.c.h.b16 %v2515
        %v3370 = vunpack.c.l.b16 %v2516
        %v3371 = vunpack.c.h.b16 %v2516
        %v3372 = vunpack.c.l.b16 %v2517
        %v3373 = vunpack.c.h.b16 %v2517
        %v3374 = vunpack.c.l.b16 %v2518
        %v3375 = vunpack.c.h.b16 %v2518
        %v3376 = vunpack.c.l.b16 %v2519
        %v3377 = vunpack.c.h.b16 %v2519
        %v3378 = vunpack.c.l.b16 %v2520
        %v3379 = vunpack.c.h.b16 %v2520
        %v3380 = vunpack.c.l.b16 %v2521
        %v3381 = vunpack.c.h.b16 %v2521
        %v3382 = vunpack.c.l.b16 %v2522
        %v3383 = vunpack.c.h.b16 %v2522
        %v3384 = vunpack.c.l.b16 %v2523
        %v3385 = vunpack.c.h.b16 %v2523
        %v3386 = vunpack.c.l.b16 %v2524
        %v3387 = vunpack.c.h.b16 %v2524
        %v3388 = vunpack.c.l.b16 %v2525
        %v3389 = vunpack.c.h.b16 %v2525
        %v3390 = vunpack.c.l.b16 %v2526
        %v3391 = vunpack.c.h.b16 %v2526
        %v3392 = vunpack.c.l.b16 %v2527
        %v3393 = vunpack.c.h.b16 %v2527
        %v3394 = vunpack.c.l.b16 %v2528
        %v3395 = vunpack.c.h.b16 %v2528
        %v3396 = vunpack.c.l.b16 %v2529
        %v3397 = vunpack.c.h.b16 %v2529
        %v3398 = vunpack.c.l.b16 %v2530
        %v3399 = vunpack.c.h.b16 %v2530
        %v3400 = vunpack.c.l.b16 %v2531
        %v3401 = vunpack.c.h.b16 %v2531
        %v3402 = vunpack.c.l.b16 %v2532
        %v3403 = vunpack.c.h.b16 %v2532
        %v3404 = vunpack.c.l.b16 %v2533
        %v3405 = vunpack.c.h.b16 %v2533
        %v3406 = vunpack.c.l.b16 %v2534
        %v3407 = vunpack.c.h.b16 %v2534
        %v3408 = vunpack.c.l.b16 %v2535
        %v3409 = vunpack.c.h.b16 %v2535
        %v3410 = vunpack.c.l.b16 %v2536
        %v3411 = vunpack.c.h.b16 %v2536
        %v3412 = vunpack.c.l.b16 %v2537
        %v3413 = vunpack.c.h.b16 %v2537
        %v3414 = vunpack.c.l.b16 %v2538
        %v3415 = vunpack.c.h.b16 %v2538
        %v3416 = vunpack.c.l.b16 %v2539
        %v3417 = vunpack.c.h.b16 %v2539
        %v3418 = vunpack.c.l.b16 %v2540
        %v3419 = vunpack.c.h.b16 %v2540
        %v3420 = vunpack.c.l.b16 %v2541
        %v3421 = vunpack.c.h.b16 %v2541
        %v3422 = vunpack.c.l.b16 %v2542
        %v3423 = vunpack.c.h.b16 %v2542
        %v3424 = vunpack.c.l.b16 %v2543
        %v3425 = vunpack.c.h.b16 %v2543
        %v3426 = vunpack.c.l.b16 %v2544
        %v3427 = vunpack.c.h.b16 %v2544
        %v3428 = vunpack.c.l.b16 %v2545
        %v3429 = vunpack.c.h.b16 %v2545
        %v3430 = vunpack.c.l.b16 %v2546
        %v3431 = vunpack.c.h.b16 %v2546
        %v3432 = vunpack.c.l.b16 %v2547
        %v3433 = vunpack.c.h.b16 %v2547
        %v3434 = vunpack.c.l.b16 %v2548
        %v3435 = vunpack.c.h.b16 %v2548
        %v3436 = vunpack.c.l.b16 %v2549
        %v3437 = vunpack.c.h.b16 %v2549
        %v3438 = vunpack.c.l.b16 %v2550
        %v3439 = vunpack.c.h.b16 %v2550
        %v3440 = vunpack.c.l.b16 %v2551
        %v3441 = vunpack.c.h.b16 %v2551
        %v3442 = vunpack.c.l.b16 %v2552
        %v3443 = vunpack.c.h.b16 %v2552
        %v3444 = vunpack.c.l.b16 %v2553
        %v3445 = vunpack.c.h.b16 %v2553
        %v3446 = vunpack.c.l.b16 %v2554
        %v3447 = vunpack.c.h.b16 %v2554
        %v3448 = vunpack.c.l.b16 %v2555
        %v3449 = vunpack.c.h.b16 %v2555
        %v3450 = vunpack.c.l.b16 %v2556
        %v3451 = vunpack.c.h.b16 %v2556
        %v3452 = vunpack.c.l.b16 %v2557
        %v3453 = vunpack.c.h.b16 %v2557
        %v3454 = vunpack.c.l.b16 %v2558
        %v3455 = vunpack.c.h.b16 %v2558
        %v3456 = vunpack.c.l.b16 %v2559
        %v3457 = vunpack.c.h.b16 %v2559
        %v3458 = vunpack.c.l.b16 %v2560
        %v3459 = vunpack.c.h.b16 %v2560
        %v3460 = vunpack.c.l.b16 %v2561
        %v3461 = vunpack.c.h.b16 %v2561
        %v3462 = vunpack.c.l.b16 %v2562
        %v3463 = vunpack.c.h.b16 %v2562
        %v3464 = vunpack.c.l.b16 %v2563
        %v3465 = vunpack.c.h.b16 %v2563
        %v3466 = vunpack.c.l.b16 %v2564
        %v3467 = vunpack.c.h.b16 %v2564
        %v3468 = vunpack.c.l.b16 %v2565
        %v3469 = vunpack.c.h.b16 %v2565
        %v3470 = vunpack.c.l.b16 %v2566
        %v3471 = vunpack.c.h.b16 %v2566
        %v3472 = vunpack.c.l.b16 %v2567
        %v3473 = vunpack.c.h.b16 %v2567
        %v3474 = vunpack.c.l.b16 %v2568
        %v3475 = vunpack.c.h.b16 %v2568
        %v3476 = vunpack.c.l.b16 %v2569
        %v3477 = vunpack.c.h.b16 %v2569
        %v3478 = vunpack.c.l.b16 %v2570
        %v3479 = vunpack.c.h.b16 %v2570
        %v3480 = vunpack.c.l.b16 %v2571
        %v3481 = vunpack.c.h.b16 %v2571
        %v3482 = vunpack.c.l.b16 %v2572
        %v3483 = vunpack.c.h.b16 %v2572
        %v3484 = vunpack.c.l.b16 %v2573
        %v3485 = vunpack.c.h.b16 %v2573
        %v3486 = vunpack.c.l.b16 %v2574
        %v3487 = vunpack.c.h.b16 %v2574
        %v3488 = vunpack.c.l.b16 %v2575
        %v3489 = vunpack.c.h.b16 %v2575
        %v3490 = vunpack.c.l.b16 %v2576
        %v3491 = vunpack.c.h.b16 %v2576
        %v3492 = vunpack.c.l.b16 %v2577
        %v3493 = vunpack.c.h.b16 %v2577
        %v3494 = vunpack.c.l.b16 %v2578
        %v3495 = vunpack.c.h.b16 %v2578
        %v3496 = vunpack.c.l.b16 %v2579
        %v3497 = vunpack.c.h.b16 %v2579
        %v3498 = vunpack.c.l.b16 %v2580
        %v3499 = vunpack.c.h.b16 %v2580
        %v3500 = vunpack.c.l.b16 %v2581
        %v3501 = vunpack.c.h.b16 %v2581
        %v3502 = vunpack.c.l.b16 %v2582
        %v3503 = vunpack.c.h.b16 %v2582
        %v3504 = vunpack.c.l.b16 %v2583
        %v3505 = vunpack.c.h.b16 %v2583
        %v3506 = vunpack.c.l.b16 %v2584
        %v3507 = vunpack.c.h.b16 %v2584
        %v3508 = vunpack.c.l.b16 %v2585
        %v3509 = vunpack.c.h.b16 %v2585
        %v3510 = vunpack.c.l.b16 %v2586
        %v3511 = vunpack.c.h.b16 %v2586
        %v3512 = vunpack.c.l.b16 %v2587
        %v3513 = vunpack.c.h.b16 %v2587
        %v3514 = vunpack.c.l.b16 %v2588
        %v3515 = vunpack.c.h.b16 %v2588
        %v3516 = vunpack.c.l.b16 %v2589
        %v3517 = vunpack.c.h.b16 %v2589
        %v3518 = vunpack.c.l.b16 %v2590
        %v3519 = vunpack.c.h.b16 %v2590
        %v3520 = vunpack.c.l.b16 %v2591
        %v3521 = vunpack.c.h.b16 %v2591
        %v3522 = vunpack.c.l.b16 %v2592
        %v3523 = vunpack.c.h.b16 %v2592
        %v3524 = vunpack.c.l.b16 %v2593
        %v3525 = vunpack.c.h.b16 %v2593
        %v3526 = vunpack.c.l.b16 %v2594
        %v3527 = vunpack.c.h.b16 %v2594
        %v3528 = vunpack.c.l.b16 %v2595
        %v3529 = vunpack.c.h.b16 %v2595
        %v3530 = vunpack.c.l.b16 %v2596
        %v3531 = vunpack.c.h.b16 %v2596
        %v3532 = vunpack.c.l.b16 %v2597
        %v3533 = vunpack.c.h.b16 %v2597
        %v3534 = vunpack.c.l.b16 %v2598
        %v3535 = vunpack.c.h.b16 %v2598
        %v3536 = vunpack.c.l.b16 %v2599
        %v3537 = vunpack.c.h.b16 %v2599
        %v3538 = vunpack.c.l.b16 %v2600
        %v3539 = vunpack.c.h.b16 %v2600
        %v3540 = vunpack.c.l.b16 %v2601
        %v3541 = vunpack.c.h.b16 %v2601
        %v3542 = vunpack.c.l.b16 %v2602
        %v3543 = vunpack.c.h.b16 %v2602
        %v3544 = vunpack.c.l.b16 %v2603
        %v3545 = vunpack.c.h.b16 %v2603
        %v3546 = vunpack.c.l.b16 %v2604
        %v3547 = vunpack.c.h.b16 %v2604
        %v3548 = vunpack.c.l.b16 %v2605
        %v3549 = vunpack.c.h.b16 %v2605
        %v3550 = vunpack.c.l.b16 %v2606
        %v3551 = vunpack.c.h.b16 %v2606
        %v3552 = vunpack.c.l.b16 %v2607
        %v3553 = vunpack.c.h.b16 %v2607
        %v3554 = vunpack.c.l.b16 %v2608
        %v3555 = vunpack.c.h.b16 %v2608
        %v3556 = vunpack.c.l.b16 %v2609
        %v3557 = vunpack.c.h.b16 %v2609
        %v3558 = vunpack.c.l.b16 %v2610
        %v3559 = vunpack.c.h.b16 %v2610
        %v3560 = vunpack.c.l.b16 %v2611
        %v3561 = vunpack.c.h.b16 %v2611
        %v3562 = vunpack.c.l.b16 %v2612
        %v3563 = vunpack.c.h.b16 %v2612
        %v3564 = vunpack.c.l.b16 %v2613
        %v3565 = vunpack.c.h.b16 %v2613
        %v3566 = vunpack.c.l.b16 %v2614
        %v3567 = vunpack.c.h.b16 %v2614
        %v3568 = vunpack.c.l.b16 %v2615
        %v3569 = vunpack.c.h.b16 %v2615
        %v3570 = vunpack.c.l.b16 %v2616
        %v3571 = vunpack.c.h.b16 %v2616
        %v3572 = vunpack.c.l.b16 %v2617
        %v3573 = vunpack.c.h.b16 %v2617
        %v3574 = vunpack.c.l.b16 %v2618
        %v3575 = vunpack.c.h.b16 %v2618
        %v3576 = vunpack.c.l.b16 %v2619
        %v3577 = vunpack.c.h.b16 %v2619
        %v3578 = vunpack.c.l.b16 %v2620
        %v3579 = vunpack.c.h.b16 %v2620
        %v3580 = vunpack.c.l.b16 %v2621
        %v3581 = vunpack.c.h.b16 %v2621
        %v3582 = vunpack.c.l.b16 %v2622
        %v3583 = vunpack.c.h.b16 %v2622
        %v3584 = vpack.c.b16 %v2948, %v2944
        %v3585 = vpack.c.b16 %v2949, %v2945
        %v3586 = vpack.c.b16 %v2950, %v2946
        %v3587 = vpack.c.b16 %v2951, %v2947
        %v3588 = vpack.c.b16 %v2956, %v2952
        %v3589 = vpack.c.b16 %v2957, %v2953
        %v3590 = vpack.c.b16 %v2958, %v2954
        %v3591 = vpack.c.b16 %v2959, %v2955
        %v3592 = vpack.c.b16 %v2964, %v2960
        %v3593 = vpack.c.b16 %v2965, %v2961
        %v3594 = vpack.c.b16 %v2966, %v2962
        %v3595 = vpack.c.b16 %v2967, %v2963
        %v3596 = vpack.c.b16 %v2972, %v2968
        %v3597 = vpack.c.b16 %v2973, %v2969
        %v3598 = vpack.c.b16 %v2974, %v2970
        %v3599 = vpack.c.b16 %v2975, %v2971
        %v3600 = vpack.c.b16 %v2980, %v2976
        %v3601 = vpack.c.b16 %v2981, %v2977
        %v3602 = vpack.c.b16 %v2982, %v2978
        %v3603 = vpack.c.b16 %v2983, %v2979
        %v3604 = vpack.c.b16 %v2988, %v2984
        %v3605 = vpack.c.b16 %v2989, %v2985
        %v3606 = vpack.c.b16 %v2990, %v2986
        %v3607 = vpack.c.b16 %v2991, %v2987
        %v3608 = vpack.c.b16 %v2996, %v2992
        %v3609 = vpack.c.b16 %v2997, %v2993
        %v3610 = vpack.c.b16 %v2998, %v2994
        %v3611 = vpack.c.b16 %v2999, %v2995
        %v3612 = vpack.c.b16 %v3004, %v3000
        %v3613 = vpack.c.b16 %v3005, %v3001
        %v3614 = vpack.c.b16 %v3006, %v3002
        %v3615 = vpack.c.b16 %v3007, %v3003
        %v3616 = vpack.c.b16 %v3012, %v3008
        %v3617 = vpack.c.b16 %v3013, %v3009
        %v3618 = vpack.c.b16 %v3014, %v3010
        %v3619 = vpack.c.b16 %v3015, %v3011
        %v3620 = vpack.c.b16 %v3020, %v3016
        %v3621 = vpack.c.b16 %v3021, %v3017
        %v3622 = vpack.c.b16 %v3022, %v3018
        %v3623 = vpack.c.b16 %v3023, %v3019
        %v3624 = vpack.c.b16 %v3028, %v3024
        %v3625 = vpack.c.b16 %v3029, %v3025
        %v3626 = vpack.c.b16 %v3030, %v3026
        %v3627 = vpack.c.b16 %v3031, %v3027
        %v3628 = vpack.c.b16 %v3036, %v3032
        %v3629 = vpack.c.b16 %v3037, %v3033
        %v3630 = vpack.c.b16 %v3038, %v3034
        %v3631 = vpack.c.b16 %v3039, %v3035
        %v3632 = vpack.c.b16 %v3044, %v3040
        %v3633 = vpack.c.b16 %v3045, %v3041
        %v3634 = vpack.c.b16 %v3046, %v3042
        %v3635 = vpack.c.b16 %v3047, %v3043
        %v3636 = vpack.c.b16 %v3052, %v3048
        %v3637 = vpack.c.b16 %v3053, %v3049
        %v3638 = vpack.c.b16 %v3054, %v3050
        %v3639 = vpack.c.b16 %v3055, %v3051
        %v3640 = vpack.c.b16 %v3060, %v3056
        %v3641 = vpack.c.b16 %v3061, %v3057
        %v3642 = vpack.c.b16 %v3062, %v3058
        %v3643 = vpack.c.b16 %v3063, %v3059
        %v3644 = vpack.c.b16 %v3068, %v3064
        %v3645 = vpack.c.b16 %v3069, %v3065
        %v3646 = vpack.c.b16 %v3070, %v3066
        %v3647 = vpack.c.b16 %v3071, %v3067
        %v3648 = vpack.c.b16 %v3076, %v3072
        %v3649 = vpack.c.b16 %v3077, %v3073
        %v3650 = vpack.c.b16 %v3078, %v3074
        %v3651 = vpack.c.b16 %v3079, %v3075
        %v3652 = vpack.c.b16 %v3084, %v3080
        %v3653 = vpack.c.b16 %v3085, %v3081
        %v3654 = vpack.c.b16 %v3086, %v3082
        %v3655 = vpack.c.b16 %v3087, %v3083
        %v3656 = vpack.c.b16 %v3092, %v3088
        %v3657 = vpack.c.b16 %v3093, %v3089
        %v3658 = vpack.c.b16 %v3094, %v3090
        %v3659 = vpack.c.b16 %v3095, %v3091
        %v3660 = vpack.c.b16 %v3100, %v3096
        %v3661 = vpack.c.b16 %v3101, %v3097
        %v3662 = vpack.c.b16 %v3102, %v3098
        %v3663 = vpack.c.b16 %v3103, %v3099
        %v3664 = vpack.c.b16 %v3108, %v3104
        %v3665 = vpack.c.b16 %v3109, %v3105
        %v3666 = vpack.c.b16 %v3110, %v3106
        %v3667 = vpack.c.b16 %v3111, %v3107
        %v3668 = vpack.c.b16 %v3116, %v3112
        %v3669 = vpack.c.b16 %v3117, %v3113
        %v3670 = vpack.c.b16 %v3118, %v3114
        %v3671 = vpack.c.b16 %v3119, %v3115
        %v3672 = vpack.c.b16 %v3124, %v3120
        %v3673 = vpack.c.b16 %v3125, %v3121
        %v3674 = vpack.c.b16 %v3126, %v3122
        %v3675 = vpack.c.b16 %v3127, %v3123
        %v3676 = vpack.c.b16 %v3132, %v3128
        %v3677 = vpack.c.b16 %v3133, %v3129
        %v3678 = vpack.c.b16 %v3134, %v3130
        %v3679 = vpack.c.b16 %v3135, %v3131
        %v3680 = vpack.c.b16 %v3140, %v3136
        %v3681 = vpack.c.b16 %v3141, %v3137
        %v3682 = vpack.c.b16 %v3142, %v3138
        %v3683 = vpack.c.b16 %v3143, %v3139
        %v3684 = vpack.c.b16 %v3148, %v3144
        %v3685 = vpack.c.b16 %v3149, %v3145
        %v3686 = vpack.c.b16 %v3150, %v3146
        %v3687 = vpack.c.b16 %v3151, %v3147
        %v3688 = vpack.c.b16 %v3156, %v3152
        %v3689 = vpack.c.b16 %v3157, %v3153
        %v3690 = vpack.c.b16 %v3158, %v3154
        %v3691 = vpack.c.b16 %v3159, %v3155
        %v3692 = vpack.c.b16 %v3164, %v3160
        %v3693 = vpack.c.b16 %v3165, %v3161
        %v3694 = vpack.c.b16 %v3166, %v3162
        %v3695 = vpack.c.b16 %v3167, %v3163
        %v3696 = vpack.c.b16 %v3172, %v3168
        %v3697 = vpack.c.b16 %v3173, %v3169
        %v3698 = vpack.c.b16 %v3174, %v3170
        %v3699 = vpack.c.b16 %v3175, %v3171
        %v3700 = vpack.c.b16 %v3180, %v3176
        %v3701 = vpack.c.b16 %v3181, %v3177
        %v3702 = vpack.c.b16 %v3182, %v3178
        %v3703 = vpack.c.b16 %v3183, %v3179
        %v3704 = vpack.c.b16 %v3188, %v3184
        %v3705 = vpack.c.b16 %v3189, %v3185
        %v3706 = vpack.c.b16 %v3190, %v3186
        %v3707 = vpack.c.b16 %v3191, %v3187
        %v3708 = vpack.c.b16 %v3196, %v3192
        %v3709 = vpack.c.b16 %v3197, %v3193
        %v3710 = vpack.c.b16 %v3198, %v3194
        %v3711 = vpack.c.b16 %v3199, %v3195
        %v3712 = vpack.c.b16 %v3204, %v3200
        %v3713 = vpack.c.b16 %v3205, %v3201
        %v3714 = vpack.c.b16 %v3206, %v3202
        %v3715 = vpack.c.b16 %v3207, %v3203
        %v3716 = vpack.c.b16 %v3212, %v3208
        %v3717 = vpack.c.b16 %v3213, %v3209
        %v3718 = vpack.c.b16 %v3214, %v3210
        %v3719 = vpack.c.b16 %v3215, %v3211
        %v3720 = vpack.c.b16 %v3220, %v3216
        %v3721 = vpack.c.b16 %v3221, %v3217
        %v3722 = vpack.c.b16 %v3222, %v3218
        %v3723 = vpack.c.b16 %v3223, %v3219
        %v3724 = vpack.c.b16 %v3228, %v3224
        %v3725 = vpack.c.b16 %v3229, %v3225
        %v3726 = vpack.c.b16 %v3230, %v3226
        %v3727 = vpack.c.b16 %v3231, %v3227
        %v3728 = vpack.c.b16 %v3236, %v3232
        %v3729 = vpack.c.b16 %v3237, %v3233
        %v3730 = vpack.c.b16 %v3238, %v3234
        %v3731 = vpack.c.b16 %v3239, %v3235
        %v3732 = vpack.c.b16 %v3244, %v3240
        %v3733 = vpack.c.b16 %v3245, %v3241
        %v3734 = vpack.c.b16 %v3246, %v3242
        %v3735 = vpack.c.b16 %v3247, %v3243
        %v3736 = vpack.c.b16 %v3252, %v3248
        %v3737 = vpack.c.b16 %v3253, %v3249
        %v3738 = vpack.c.b16 %v3254, %v3250
        %v3739 = vpack.c.b16 %v3255, %v3251
        %v3740 = vpack.c.b16 %v3260, %v3256
        %v3741 = vpack.c.b16 %v3261, %v3257
        %v3742 = vpack.c.b16 %v3262, %v3258
        %v3743 = vpack.c.b16 %v3263, %v3259
        %v3744 = vpack.c.b16 %v3268, %v3264
        %v3745 = vpack.c.b16 %v3269, %v3265
        %v3746 = vpack.c.b16 %v3270, %v3266
        %v3747 = vpack.c.b16 %v3271, %v3267
        %v3748 = vpack.c.b16 %v3276, %v3272
        %v3749 = vpack.c.b16 %v3277, %v3273
        %v3750 = vpack.c.b16 %v3278, %v3274
        %v3751 = vpack.c.b16 %v3279, %v3275
        %v3752 = vpack.c.b16 %v3284, %v3280
        %v3753 = vpack.c.b16 %v3285, %v3281
        %v3754 = vpack.c.b16 %v3286, %v3282
        %v3755 = vpack.c.b16 %v3287, %v3283
        %v3756 = vpack.c.b16 %v3292, %v3288
        %v3757 = vpack.c.b16 %v3293, %v3289
        %v3758 = vpack.c.b16 %v3294, %v3290
        %v3759 = vpack.c.b16 %v3295, %v3291
        %v3760 = vpack.c.b16 %v3300, %v3296
        %v3761 = vpack.c.b16 %v3301, %v3297
        %v3762 = vpack.c.b16 %v3302, %v3298
        %v3763 = vpack.c.b16 %v3303, %v3299
        %v3764 = vpack.c.b16 %v3308, %v3304
        %v3765 = vpack.c.b16 %v3309, %v3305
        %v3766 = vpack.c.b16 %v3310, %v3306
        %v3767 = vpack.c.b16 %v3311, %v3307
        %v3768 = vpack.c.b16 %v3316, %v3312
        %v3769 = vpack.c.b16 %v3317, %v3313
        %v3770 = vpack.c.b16 %v3318, %v3314
        %v3771 = vpack.c.b16 %v3319, %v3315
        %v3772 = vpack.c.b16 %v3324, %v3320
        %v3773 = vpack.c.b16 %v3325, %v3321
        %v3774 = vpack.c.b16 %v3326, %v3322
        %v3775 = vpack.c.b16 %v3327, %v3323
        %v3776 = vpack.c.b16 %v3332, %v3328
        %v3777 = vpack.c.b16 %v3333, %v3329
        %v3778 = vpack.c.b16 %v3334, %v3330
        %v3779 = vpack.c.b16 %v3335, %v3331
        %v3780 = vpack.c.b16 %v3340, %v3336
        %v3781 = vpack.c.b16 %v3341, %v3337
        %v3782 = vpack.c.b16 %v3342, %v3338
        %v3783 = vpack.c.b16 %v3343, %v3339
        %v3784 = vpack.c.b16 %v3348, %v3344
        %v3785 = vpack.c.b16 %v3349, %v3345
        %v3786 = vpack.c.b16 %v3350, %v3346
        %v3787 = vpack.c.b16 %v3351, %v3347
        %v3788 = vpack.c.b16 %v3356, %v3352
        %v3789 = vpack.c.b16 %v3357, %v3353
        %v3790 = vpack.c.b16 %v3358, %v3354
        %v3791 = vpack.c.b16 %v3359, %v3355
        %v3792 = vpack.c.b16 %v3364, %v3360
        %v3793 = vpack.c.b16 %v3365, %v3361
        %v3794 = vpack.c.b16 %v3366, %v3362
        %v3795 = vpack.c.b16 %v3367, %v3363
        %v3796 = vpack.c.b16 %v3372, %v3368
        %v3797 = vpack.c.b16 %v3373, %v3369
        %v3798 = vpack.c.b16 %v3374, %v3370
        %v3799 = vpack.c.b16 %v3375, %v3371
        %v3800 = vpack.c.b16 %v3380, %v3376
        %v3801 = vpack.c.b16 %v3381, %v3377
        %v3802 = vpack.c.b16 %v3382, %v3378
        %v3803 = vpack.c.b16 %v3383, %v3379
        %v3804 = vpack.c.b16 %v3388, %v3384
        %v3805 = vpack.c.b16 %v3389, %v3385
        %v3806 = vpack.c.b16 %v3390, %v3386
        %v3807 = vpack.c.b16 %v3391, %v3387
        %v3808 = vpack.c.b16 %v3396, %v3392
        %v3809 = vpack.c.b16 %v3397, %v3393
        %v3810 = vpack.c.b16 %v3398, %v3394
        %v3811 = vpack.c.b16 %v3399, %v3395
        %v3812 = vpack.c.b16 %v3404, %v3400
        %v3813 = vpack.c.b16 %v3405, %v3401
        %v3814 = vpack.c.b16 %v3406, %v3402
        %v3815 = vpack.c.b16 %v3407, %v3403
        %v3816 = vpack.c.b16 %v3412, %v3408
        %v3817 = vpack.c.b16 %v3413, %v3409
        %v3818 = vpack.c.b16 %v3414, %v3410
        %v3819 = vpack.c.b16 %v3415, %v3411
        %v3820 = vpack.c.b16 %v3420, %v3416
        %v3821 = vpack.c.b16 %v3421, %v3417
        %v3822 = vpack.c.b16 %v3422, %v3418
        %v3823 = vpack.c.b16 %v3423, %v3419
        %v3824 = vpack.c.b16 %v3428, %v3424
        %v3825 = vpack.c.b16 %v3429, %v3425
        %v3826 = vpack.c.b16 %v3430, %v3426
        %v3827 = vpack.c.b16 %v3431, %v3427
        %v3828 = vpack.c.b16 %v3436, %v3432
        %v3829 = vpack.c.b16 %v3437, %v3433
        %v3830 = vpack.c.b16 %v3438, %v3434
        %v3831 = vpack.c.b16 %v3439, %v3435
        %v3832 = vpack.c.b16 %v3444, %v3440
        %v3833 = vpack.c.b16 %v3445, %v3441
        %v3834 = vpack.c.b16 %v3446, %v3442
        %v3835 = vpack.c.b16 %v3447, %v3443
        %v3836 = vpack.c.b16 %v3452, %v3448
        %v3837 = vpack.c.b16 %v3453, %v3449
        %v3838 = vpack.c.b16 %v3454, %v3450
        %v3839 = vpack.c.b16 %v3455, %v3451
        %v3840 = vpack.c.b16 %v3460, %v3456
        %v3841 = vpack.c.b16 %v3461, %v3457
        %v3842 = vpack.c.b16 %v3462, %v3458
        %v3843 = vpack.c.b16 %v3463, %v3459
        %v3844 = vpack.c.b16 %v3468, %v3464
        %v3845 = vpack.c.b16 %v3469, %v3465
        %v3846 = vpack.c.b16 %v3470, %v3466
        %v3847 = vpack.c.b16 %v3471, %v3467
        %v3848 = vpack.c.b16 %v3476, %v3472
        %v3849 = vpack.c.b16 %v3477, %v3473
        %v3850 = vpack.c.b16 %v3478, %v3474
        %v3851 = vpack.c.b16 %v3479, %v3475
        %v3852 = vpack.c.b16 %v3484, %v3480
        %v3853 = vpack.c.b16 %v3485, %v3481
        %v3854 = vpack.c.b16 %v3486, %v3482
        %v3855 = vpack.c.b16 %v3487, %v3483
        %v3856 = vpack.c.b16 %v3492, %v3488
        %v3857 = vpack.c.b16 %v3493, %v3489
        %v3858 = vpack.c.b16 %v3494, %v3490
        %v3859 = vpack.c.b16 %v3495, %v3491
        %v3860 = vpack.c.b16 %v3500, %v3496
        %v3861 = vpack.c.b16 %v3501, %v3497
        %v3862 = vpack.c.b16 %v3502, %v3498
        %v3863 = vpack.c.b16 %v3503, %v3499
        %v3864 = vpack.c.b16 %v3508, %v3504
        %v3865 = vpack.c.b16 %v3509, %v3505
        %v3866 = vpack.c.b16 %v3510, %v3506
        %v3867 = vpack.c.b16 %v3511, %v3507
        %v3868 = vpack.c.b16 %v3516, %v3512
        %v3869 = vpack.c.b16 %v3517, %v3513
        %v3870 = vpack.c.b16 %v3518, %v3514
        %v3871 = vpack.c.b16 %v3519, %v3515
        %v3872 = vpack.c.b16 %v3524, %v3520
        %v3873 = vpack.c.b16 %v3525, %v3521
        %v3874 = vpack.c.b16 %v3526, %v3522
        %v3875 = vpack.c.b16 %v3527, %v3523
        %v3876 = vpack.c.b16 %v3532, %v3528
        %v3877 = vpack.c.b16 %v3533, %v3529
        %v3878 = vpack.c.b16 %v3534, %v3530
        %v3879 = vpack.c.b16 %v3535, %v3531
        %v3880 = vpack.c.b16 %v3540, %v3536
        %v3881 = vpack.c.b16 %v3541, %v3537
        %v3882 = vpack.c.b16 %v3542, %v3538
        %v3883 = vpack.c.b16 %v3543, %v3539
        %v3884 = vpack.c.b16 %v3548, %v3544
        %v3885 = vpack.c.b16 %v3549, %v3545
        %v3886 = vpack.c.b16 %v3550, %v3546
        %v3887 = vpack.c.b16 %v3551, %v3547
        %v3888 = vpack.c.b16 %v3556, %v3552
        %v3889 = vpack.c.b16 %v3557, %v3553
        %v3890 = vpack.c.b16 %v3558, %v3554
        %v3891 = vpack.c.b16 %v3559, %v3555
        %v3892 = vpack.c.b16 %v3564, %v3560
        %v3893 = vpack.c.b16 %v3565, %v3561
        %v3894 = vpack.c.b16 %v3566, %v3562
        %v3895 = vpack.c.b16 %v3567, %v3563
        %v3896 = vpack.c.b16 %v3572, %v3568
        %v3897 = vpack.c.b16 %v3573, %v3569
        %v3898 = vpack.c.b16 %v3574, %v3570
        %v3899 = vpack.c.b16 %v3575, %v3571
        %v3900 = vpack.c.b16 %v3580, %v3576
        %v3901 = vpack.c.b16 %v3581, %v3577
        %v3902 = vpack.c.b16 %v3582, %v3578
        %v3903 = vpack.c.b16 %v3583, %v3579
        %v4225 = vlaneseq
        %v4226 = vshrl.u32 %v4225, 7
        %v4227 = vsub.s32 0, %v4226
        %v4228 = vrot.slane %v2623, %v4227
        %v4229 = vlaneseq
        %v4230 = vshrl.u32 %v4229, 7
        %v4231 = vsub.s32 1, %v4230
        %v4232 = vrot.slane %v2623, %v4231
        %v4233 = vlaneseq
        %v4234 = vshrl.u32 %v4233, 7
        %v4235 = vsub.s32 2, %v4234
        %v4236 = vrot.slane %v2623, %v4235
        %v4237 = vlaneseq
        %v4238 = vshrl.u32 %v4237, 7
        %v4239 = vsub.s32 3, %v4238
        %v4240 = vrot.slane %v2623, %v4239
        %4245 = vmatprep.subr.bf16.mxu0 %v3585
        %4246 = vmatpush1.bf16.msra.mxu0 %v3584
        %4247 = vmatprep.subr.bf16.mxu0 %v3589
        %4248 = vmatpush1.bf16.msra.mxu0 %v3588
        %4249 = vmatprep.subr.bf16.mxu0 %v3593
        %4250 = vmatpush1.bf16.msra.mxu0 %v3592
        %4251 = vmatprep.subr.bf16.mxu0 %v3597
        %4252 = vmatpush1.bf16.msra.mxu0 %v3596
        %4253 = vmatprep.subr.bf16.mxu0 %v3601
        %4254 = vmatpush1.bf16.msra.mxu0 %v3600
        %4255 = vmatprep.subr.bf16.mxu0 %v3605
        %4256 = vmatpush1.bf16.msra.mxu0 %v3604
        %4257 = vmatprep.subr.bf16.mxu0 %v3609
        %4258 = vmatpush1.bf16.msra.mxu0 %v3608
        %4259 = vmatprep.subr.bf16.mxu0 %v3613
        %4260 = vmatpush1.bf16.msra.mxu0 %v3612
        %4261 = vmatprep.subr.bf16.mxu0 %v3617
        %4262 = vmatpush1.bf16.msra.mxu0 %v3616
        %4263 = vmatprep.subr.bf16.mxu0 %v3621
        %4264 = vmatpush1.bf16.msra.mxu0 %v3620
        %4265 = vmatprep.subr.bf16.mxu0 %v3625
        %4266 = vmatpush1.bf16.msra.mxu0 %v3624
        %4267 = vmatprep.subr.bf16.mxu0 %v3629
        %4268 = vmatpush1.bf16.msra.mxu0 %v3628
        %4269 = vmatprep.subr.bf16.mxu0 %v3633
        %4270 = vmatpush1.bf16.msra.mxu0 %v3632
        %4271 = vmatprep.subr.bf16.mxu0 %v3637
        %4272 = vmatpush1.bf16.msra.mxu0 %v3636
        %4273 = vmatprep.subr.bf16.mxu0 %v3641
        %4274 = vmatpush1.bf16.msra.mxu0 %v3640
        %4275 = vmatprep.subr.bf16.mxu0 %v3645
        %4276 = vmatpush1.bf16.msra.mxu0 %v3644
        %4277 = vmatprep.mubr.bf16.mxu0 %v2294
        %4278 = vmatmul.mubr.bf16.gmra.mrb[0].mxu0 %v2293
        %v4279 = vpop.f32.mrb[0].mxu0
        %v4280 = vadd.f32 %v4228, %v4279
        %v4281 = vpop.f32.mrb[0].mxu0
        %v4282 = vadd.f32 %v4232, %v4281
        %v4283 = vpop.f32.mrb[0].mxu0
        %v4284 = vpop.f32.mrb[0].mxu0
        %4285 = vdwg.mxu0
        %4286 = vmatprep.subr.bf16.mxu0 %v3649
        %4287 = vmatpush1.bf16.msra.mxu0 %v3648
        %4288 = vmatprep.subr.bf16.mxu0 %v3653
        %4289 = vmatpush1.bf16.msra.mxu0 %v3652
        %4290 = vmatprep.subr.bf16.mxu0 %v3657
        %4291 = vmatpush1.bf16.msra.mxu0 %v3656
        %4292 = vmatprep.subr.bf16.mxu0 %v3661
        %4293 = vmatpush1.bf16.msra.mxu0 %v3660
        %4294 = vmatprep.subr.bf16.mxu0 %v3665
        %4295 = vmatpush1.bf16.msra.mxu0 %v3664
        %4296 = vmatprep.subr.bf16.mxu0 %v3669
        %4297 = vmatpush1.bf16.msra.mxu0 %v3668
        %4298 = vmatprep.subr.bf16.mxu0 %v3673
        %4299 = vmatpush1.bf16.msra.mxu0 %v3672
        %4300 = vmatprep.subr.bf16.mxu0 %v3677
        %4301 = vmatpush1.bf16.msra.mxu0 %v3676
        %4302 = vmatprep.subr.bf16.mxu0 %v3681
        %4303 = vmatpush1.bf16.msra.mxu0 %v3680
        %4304 = vmatprep.subr.bf16.mxu0 %v3685
        %4305 = vmatpush1.bf16.msra.mxu0 %v3684
        %4306 = vmatprep.subr.bf16.mxu0 %v3689
        %4307 = vmatpush1.bf16.msra.mxu0 %v3688
        %4308 = vmatprep.subr.bf16.mxu0 %v3693
        %4309 = vmatpush1.bf16.msra.mxu0 %v3692
        %4310 = vmatprep.subr.bf16.mxu0 %v3697
        %4311 = vmatpush1.bf16.msra.mxu0 %v3696
        %4312 = vmatprep.subr.bf16.mxu0 %v3701
        %4313 = vmatpush1.bf16.msra.mxu0 %v3700
        %4314 = vmatprep.subr.bf16.mxu0 %v3705
        %4315 = vmatpush1.bf16.msra.mxu0 %v3704
        %4316 = vmatprep.subr.bf16.mxu0 %v3709
        %4317 = vmatpush1.bf16.msra.mxu0 %v3708
        %4318 = vmatprep.mubr.bf16.mxu0 %v2296
        %4319 = vmatmul.mubr.bf16.gmra.mrb[0].mxu0 %v2295
        %v4320 = vpop.f32.mrb[0].mxu0
        %v4321 = vadd.f32 %v4280, %v4320
        %v4322 = vpop.f32.mrb[0].mxu0
        %v4323 = vadd.f32 %v4282, %v4322
        %v4324 = vpop.f32.mrb[0].mxu0
        %v4325 = vpop.f32.mrb[0].mxu0
        %4326 = vdwg.mxu0
        %4327 = vmatprep.subr.bf16.mxu0 %v3713
        %4328 = vmatpush1.bf16.msra.mxu0 %v3712
        %4329 = vmatprep.subr.bf16.mxu0 %v3717
        %4330 = vmatpush1.bf16.msra.mxu0 %v3716
        %4331 = vmatprep.subr.bf16.mxu0 %v3721
        %4332 = vmatpush1.bf16.msra.mxu0 %v3720
        %4333 = vmatprep.subr.bf16.mxu0 %v3725
        %4334 = vmatpush1.bf16.msra.mxu0 %v3724
        %4335 = vmatprep.subr.bf16.mxu0 %v3729
        %4336 = vmatpush1.bf16.msra.mxu0 %v3728
        %4337 = vmatprep.subr.bf16.mxu0 %v3733
        %4338 = vmatpush1.bf16.msra.mxu0 %v3732
        %4339 = vmatprep.subr.bf16.mxu0 %v3737
        %4340 = vmatpush1.bf16.msra.mxu0 %v3736
        %4341 = vmatprep.subr.bf16.mxu0 %v3741
        %4342 = vmatpush1.bf16.msra.mxu0 %v3740
        %4343 = vmatprep.subr.bf16.mxu0 %v3745
        %4344 = vmatpush1.bf16.msra.mxu0 %v3744
        %4345 = vmatprep.subr.bf16.mxu0 %v3749
        %4346 = vmatpush1.bf16.msra.mxu0 %v3748
        %4347 = vmatprep.subr.bf16.mxu0 %v3753
        %4348 = vmatpush1.bf16.msra.mxu0 %v3752
        %4349 = vmatprep.subr.bf16.mxu0 %v3757
        %4350 = vmatpush1.bf16.msra.mxu0 %v3756
        %4351 = vmatprep.subr.bf16.mxu0 %v3761
        %4352 = vmatpush1.bf16.msra.mxu0 %v3760
        %4353 = vmatprep.subr.bf16.mxu0 %v3765
        %4354 = vmatpush1.bf16.msra.mxu0 %v3764
        %4355 = vmatprep.subr.bf16.mxu0 %v3769
        %4356 = vmatpush1.bf16.msra.mxu0 %v3768
        %4357 = vmatprep.subr.bf16.mxu0 %v3773
        %4358 = vmatpush1.bf16.msra.mxu0 %v3772
        %4359 = vmatprep.mubr.bf16.mxu0 %v2298
        %4360 = vmatmul.mubr.bf16.gmra.mrb[0].mxu0 %v2297
        %v4361 = vpop.f32.mrb[0].mxu0
        %v4362 = vadd.f32 %v4321, %v4361
        %v4363 = vpop.f32.mrb[0].mxu0
        %v4364 = vadd.f32 %v4323, %v4363
        %v4365 = vpop.f32.mrb[0].mxu0
        %v4366 = vpop.f32.mrb[0].mxu0
        %4367 = vdwg.mxu0
        %4368 = vmatprep.subr.bf16.mxu0 %v3777
        %4369 = vmatpush1.bf16.msra.mxu0 %v3776
        %4370 = vmatprep.subr.bf16.mxu0 %v3781
        %4371 = vmatpush1.bf16.msra.mxu0 %v3780
        %4372 = vmatprep.subr.bf16.mxu0 %v3785
        %4373 = vmatpush1.bf16.msra.mxu0 %v3784
        %4374 = vmatprep.subr.bf16.mxu0 %v3789
        %4375 = vmatpush1.bf16.msra.mxu0 %v3788
        %4376 = vmatprep.subr.bf16.mxu0 %v3793
        %4377 = vmatpush1.bf16.msra.mxu0 %v3792
        %4378 = vmatprep.subr.bf16.mxu0 %v3797
        %4379 = vmatpush1.bf16.msra.mxu0 %v3796
        %4380 = vmatprep.subr.bf16.mxu0 %v3801
        %4381 = vmatpush1.bf16.msra.mxu0 %v3800
        %4382 = vmatprep.subr.bf16.mxu0 %v3805
        %4383 = vmatpush1.bf16.msra.mxu0 %v3804
        %4384 = vmatprep.subr.bf16.mxu0 %v3809
        %4385 = vmatpush1.bf16.msra.mxu0 %v3808
        %4386 = vmatprep.subr.bf16.mxu0 %v3813
        %4387 = vmatpush1.bf16.msra.mxu0 %v3812
        %4388 = vmatprep.subr.bf16.mxu0 %v3817
        %4389 = vmatpush1.bf16.msra.mxu0 %v3816
        %4390 = vmatprep.subr.bf16.mxu0 %v3821
        %4391 = vmatpush1.bf16.msra.mxu0 %v3820
        %4392 = vmatprep.subr.bf16.mxu0 %v3825
        %4393 = vmatpush1.bf16.msra.mxu0 %v3824
        %4394 = vmatprep.subr.bf16.mxu0 %v3829
        %4395 = vmatpush1.bf16.msra.mxu0 %v3828
        %4396 = vmatprep.subr.bf16.mxu0 %v3833
        %4397 = vmatpush1.bf16.msra.mxu0 %v3832
        %4398 = vmatprep.subr.bf16.mxu0 %v3837
        %4399 = vmatpush1.bf16.msra.mxu0 %v3836
        %4400 = vmatprep.mubr.bf16.mxu0 %v2300
        %4401 = vmatmul.mubr.bf16.gmra.mrb[0].mxu0 %v2299
        %v4402 = vpop.f32.mrb[0].mxu0
        %v4403 = vadd.f32 %v4362, %v4402
        %v4404 = vpop.f32.mrb[0].mxu0
        %v4405 = vadd.f32 %v4364, %v4404
        %v4406 = vpop.f32.mrb[0].mxu0
        %v4407 = vpop.f32.mrb[0].mxu0
        %4408 = vdwg.mxu0
        %4409 = vmatprep.subr.bf16.mxu0 %v3841
        %4410 = vmatpush1.bf16.msra.mxu0 %v3840
        %4411 = vmatprep.subr.bf16.mxu0 %v3845
        %4412 = vmatpush1.bf16.msra.mxu0 %v3844
        %4413 = vmatprep.subr.bf16.mxu0 %v3849
        %4414 = vmatpush1.bf16.msra.mxu0 %v3848
        %4415 = vmatprep.subr.bf16.mxu0 %v3853
        %4416 = vmatpush1.bf16.msra.mxu0 %v3852
        %4417 = vmatprep.subr.bf16.mxu0 %v3857
        %4418 = vmatpush1.bf16.msra.mxu0 %v3856
        %4419 = vmatprep.subr.bf16.mxu0 %v3861
        %4420 = vmatpush1.bf16.msra.mxu0 %v3860
        %4421 = vmatprep.subr.bf16.mxu0 %v3865
        %4422 = vmatpush1.bf16.msra.mxu0 %v3864
        %4423 = vmatprep.subr.bf16.mxu0 %v3869
        %4424 = vmatpush1.bf16.msra.mxu0 %v3868
        %4425 = vmatprep.subr.bf16.mxu0 %v3873
        %4426 = vmatpush1.bf16.msra.mxu0 %v3872
        %4427 = vmatprep.subr.bf16.mxu0 %v3877
        %4428 = vmatpush1.bf16.msra.mxu0 %v3876
        %4429 = vmatprep.subr.bf16.mxu0 %v3881
        %4430 = vmatpush1.bf16.msra.mxu0 %v3880
        %4431 = vmatprep.subr.bf16.mxu0 %v3885
        %4432 = vmatpush1.bf16.msra.mxu0 %v3884
        %4433 = vmatprep.subr.bf16.mxu0 %v3889
        %4434 = vmatpush1.bf16.msra.mxu0 %v3888
        %4435 = vmatprep.subr.bf16.mxu0 %v3893
        %4436 = vmatpush1.bf16.msra.mxu0 %v3892
        %4437 = vmatprep.subr.bf16.mxu0 %v3897
        %4438 = vmatpush1.bf16.msra.mxu0 %v3896
        %4439 = vmatprep.subr.bf16.mxu0 %v3901
        %4440 = vmatpush1.bf16.msra.mxu0 %v3900
        %4441 = vmatprep.mubr.bf16.mxu0 %v2302
        %4442 = vmatmul.mubr.bf16.gmra.mrb[0].mxu0 %v2301
        %v4443 = vpop.f32.mrb[0].mxu0
        %v4444 = vadd.f32 %v4403, %v4443
        %v4445 = vpop.f32.mrb[0].mxu0
        %v4446 = vadd.f32 %v4405, %v4445
        %v4447 = vpop.f32.mrb[0].mxu0
        %v4448 = vpop.f32.mrb[0].mxu0
        %4449 = vdwg.mxu0
        %4450 = vmatprep.subr.bf16.mxu0 %v3587
        %4451 = vmatpush1.bf16.msra.mxu0 %v3586
        %4452 = vmatprep.subr.bf16.mxu0 %v3591
        %4453 = vmatpush1.bf16.msra.mxu0 %v3590
        %4454 = vmatprep.subr.bf16.mxu0 %v3595
        %4455 = vmatpush1.bf16.msra.mxu0 %v3594
        %4456 = vmatprep.subr.bf16.mxu0 %v3599
        %4457 = vmatpush1.bf16.msra.mxu0 %v3598
        %4458 = vmatprep.subr.bf16.mxu0 %v3603
        %4459 = vmatpush1.bf16.msra.mxu0 %v3602
        %4460 = vmatprep.subr.bf16.mxu0 %v3607
        %4461 = vmatpush1.bf16.msra.mxu0 %v3606
        %4462 = vmatprep.subr.bf16.mxu0 %v3611
        %4463 = vmatpush1.bf16.msra.mxu0 %v3610
        %4464 = vmatprep.subr.bf16.mxu0 %v3615
        %4465 = vmatpush1.bf16.msra.mxu0 %v3614
        %4466 = vmatprep.subr.bf16.mxu0 %v3619
        %4467 = vmatpush1.bf16.msra.mxu0 %v3618
        %4468 = vmatprep.subr.bf16.mxu0 %v3623
        %4469 = vmatpush1.bf16.msra.mxu0 %v3622
        %4470 = vmatprep.subr.bf16.mxu0 %v3627
        %4471 = vmatpush1.bf16.msra.mxu0 %v3626
        %4472 = vmatprep.subr.bf16.mxu0 %v3631
        %4473 = vmatpush1.bf16.msra.mxu0 %v3630
        %4474 = vmatprep.subr.bf16.mxu0 %v3635
        %4475 = vmatpush1.bf16.msra.mxu0 %v3634
        %4476 = vmatprep.subr.bf16.mxu0 %v3639
        %4477 = vmatpush1.bf16.msra.mxu0 %v3638
        %4478 = vmatprep.subr.bf16.mxu0 %v3643
        %4479 = vmatpush1.bf16.msra.mxu0 %v3642
        %4480 = vmatprep.subr.bf16.mxu0 %v3647
        %4481 = vmatpush1.bf16.msra.mxu0 %v3646
        %4482 = vmatprep.mubr.bf16.mxu0 %v2294
        %4483 = vmatmul.mubr.bf16.gmra.mrb[0].mxu0 %v2293
        %v4484 = vpop.f32.mrb[0].mxu0
        %v4485 = vadd.f32 %v4236, %v4484
        %v4486 = vpop.f32.mrb[0].mxu0
        %v4487 = vadd.f32 %v4240, %v4486
        %v4488 = vpop.f32.mrb[0].mxu0
        %v4489 = vpop.f32.mrb[0].mxu0
        %4490 = vdwg.mxu0
        %4491 = vmatprep.subr.bf16.mxu0 %v3651
        %4492 = vmatpush1.bf16.msra.mxu0 %v3650
        %4493 = vmatprep.subr.bf16.mxu0 %v3655
        %4494 = vmatpush1.bf16.msra.mxu0 %v3654
        %4495 = vmatprep.subr.bf16.mxu0 %v3659
        %4496 = vmatpush1.bf16.msra.mxu0 %v3658
        %4497 = vmatprep.subr.bf16.mxu0 %v3663
        %4498 = vmatpush1.bf16.msra.mxu0 %v3662
        %4499 = vmatprep.subr.bf16.mxu0 %v3667
        %4500 = vmatpush1.bf16.msra.mxu0 %v3666
        %4501 = vmatprep.subr.bf16.mxu0 %v3671
        %4502 = vmatpush1.bf16.msra.mxu0 %v3670
        %4503 = vmatprep.subr.bf16.mxu0 %v3675
        %4504 = vmatpush1.bf16.msra.mxu0 %v3674
        %4505 = vmatprep.subr.bf16.mxu0 %v3679
        %4506 = vmatpush1.bf16.msra.mxu0 %v3678
        %4507 = vmatprep.subr.bf16.mxu0 %v3683
        %4508 = vmatpush1.bf16.msra.mxu0 %v3682
        %4509 = vmatprep.subr.bf16.mxu0 %v3687
        %4510 = vmatpush1.bf16.msra.mxu0 %v3686
        %4511 = vmatprep.subr.bf16.mxu0 %v3691
        %4512 = vmatpush1.bf16.msra.mxu0 %v3690
        %4513 = vmatprep.subr.bf16.mxu0 %v3695
        %4514 = vmatpush1.bf16.msra.mxu0 %v3694
        %4515 = vmatprep.subr.bf16.mxu0 %v3699
        %4516 = vmatpush1.bf16.msra.mxu0 %v3698
        %4517 = vmatprep.subr.bf16.mxu0 %v3703
        %4518 = vmatpush1.bf16.msra.mxu0 %v3702
        %4519 = vmatprep.subr.bf16.mxu0 %v3707
        %4520 = vmatpush1.bf16.msra.mxu0 %v3706
        %4521 = vmatprep.subr.bf16.mxu0 %v3711
        %4522 = vmatpush1.bf16.msra.mxu0 %v3710
        %4523 = vmatprep.mubr.bf16.mxu0 %v2296
        %4524 = vmatmul.mubr.bf16.gmra.mrb[0].mxu0 %v2295
        %v4525 = vpop.f32.mrb[0].mxu0
        %v4526 = vadd.f32 %v4485, %v4525
        %v4527 = vpop.f32.mrb[0].mxu0
        %v4528 = vadd.f32 %v4487, %v4527
        %v4529 = vpop.f32.mrb[0].mxu0
        %v4530 = vpop.f32.mrb[0].mxu0
        %4531 = vdwg.mxu0
        %4532 = vmatprep.subr.bf16.mxu0 %v3715
        %4533 = vmatpush1.bf16.msra.mxu0 %v3714
        %4534 = vmatprep.subr.bf16.mxu0 %v3719
        %4535 = vmatpush1.bf16.msra.mxu0 %v3718
        %4536 = vmatprep.subr.bf16.mxu0 %v3723
        %4537 = vmatpush1.bf16.msra.mxu0 %v3722
        %4538 = vmatprep.subr.bf16.mxu0 %v3727
        %4539 = vmatpush1.bf16.msra.mxu0 %v3726
        %4540 = vmatprep.subr.bf16.mxu0 %v3731
        %4541 = vmatpush1.bf16.msra.mxu0 %v3730
        %4542 = vmatprep.subr.bf16.mxu0 %v3735
        %4543 = vmatpush1.bf16.msra.mxu0 %v3734
        %4544 = vmatprep.subr.bf16.mxu0 %v3739
        %4545 = vmatpush1.bf16.msra.mxu0 %v3738
        %4546 = vmatprep.subr.bf16.mxu0 %v3743
        %4547 = vmatpush1.bf16.msra.mxu0 %v3742
        %4548 = vmatprep.subr.bf16.mxu0 %v3747
        %4549 = vmatpush1.bf16.msra.mxu0 %v3746
        %4550 = vmatprep.subr.bf16.mxu0 %v3751
        %4551 = vmatpush1.bf16.msra.mxu0 %v3750
        %4552 = vmatprep.subr.bf16.mxu0 %v3755
        %4553 = vmatpush1.bf16.msra.mxu0 %v3754
        %4554 = vmatprep.subr.bf16.mxu0 %v3759
        %4555 = vmatpush1.bf16.msra.mxu0 %v3758
        %4556 = vmatprep.subr.bf16.mxu0 %v3763
        %4557 = vmatpush1.bf16.msra.mxu0 %v3762
        %4558 = vmatprep.subr.bf16.mxu0 %v3767
        %4559 = vmatpush1.bf16.msra.mxu0 %v3766
        %4560 = vmatprep.subr.bf16.mxu0 %v3771
        %4561 = vmatpush1.bf16.msra.mxu0 %v3770
        %4562 = vmatprep.subr.bf16.mxu0 %v3775
        %4563 = vmatpush1.bf16.msra.mxu0 %v3774
        %4564 = vmatprep.mubr.bf16.mxu0 %v2298
        %4565 = vmatmul.mubr.bf16.gmra.mrb[0].mxu0 %v2297
        %v4566 = vpop.f32.mrb[0].mxu0
        %v4567 = vadd.f32 %v4526, %v4566
        %v4568 = vpop.f32.mrb[0].mxu0
        %v4569 = vadd.f32 %v4528, %v4568
        %v4570 = vpop.f32.mrb[0].mxu0
        %v4571 = vpop.f32.mrb[0].mxu0
        %4572 = vdwg.mxu0
        %4573 = vmatprep.subr.bf16.mxu0 %v3779
        %4574 = vmatpush1.bf16.msra.mxu0 %v3778
        %4575 = vmatprep.subr.bf16.mxu0 %v3783
        %4576 = vmatpush1.bf16.msra.mxu0 %v3782
        %4577 = vmatprep.subr.bf16.mxu0 %v3787
        %4578 = vmatpush1.bf16.msra.mxu0 %v3786
        %4579 = vmatprep.subr.bf16.mxu0 %v3791
        %4580 = vmatpush1.bf16.msra.mxu0 %v3790
        %4581 = vmatprep.subr.bf16.mxu0 %v3795
        %4582 = vmatpush1.bf16.msra.mxu0 %v3794
        %4583 = vmatprep.subr.bf16.mxu0 %v3799
        %4584 = vmatpush1.bf16.msra.mxu0 %v3798
        %4585 = vmatprep.subr.bf16.mxu0 %v3803
        %4586 = vmatpush1.bf16.msra.mxu0 %v3802
        %4587 = vmatprep.subr.bf16.mxu0 %v3807
        %4588 = vmatpush1.bf16.msra.mxu0 %v3806
        %4589 = vmatprep.subr.bf16.mxu0 %v3811
        %4590 = vmatpush1.bf16.msra.mxu0 %v3810
        %4591 = vmatprep.subr.bf16.mxu0 %v3815
        %4592 = vmatpush1.bf16.msra.mxu0 %v3814
        %4593 = vmatprep.subr.bf16.mxu0 %v3819
        %4594 = vmatpush1.bf16.msra.mxu0 %v3818
        %4595 = vmatprep.subr.bf16.mxu0 %v3823
        %4596 = vmatpush1.bf16.msra.mxu0 %v3822
        %4597 = vmatprep.subr.bf16.mxu0 %v3827
        %4598 = vmatpush1.bf16.msra.mxu0 %v3826
        %4599 = vmatprep.subr.bf16.mxu0 %v3831
        %4600 = vmatpush1.bf16.msra.mxu0 %v3830
        %4601 = vmatprep.subr.bf16.mxu0 %v3835
        %4602 = vmatpush1.bf16.msra.mxu0 %v3834
        %4603 = vmatprep.subr.bf16.mxu0 %v3839
        %4604 = vmatpush1.bf16.msra.mxu0 %v3838
        %4605 = vmatprep.mubr.bf16.mxu0 %v2300
        %4606 = vmatmul.mubr.bf16.gmra.mrb[0].mxu0 %v2299
        %v4607 = vpop.f32.mrb[0].mxu0
        %v4608 = vadd.f32 %v4567, %v4607
        %v4609 = vpop.f32.mrb[0].mxu0
        %v4610 = vadd.f32 %v4569, %v4609
        %v4611 = vpop.f32.mrb[0].mxu0
        %v4612 = vpop.f32.mrb[0].mxu0
        %4613 = vdwg.mxu0
        %4614 = vmatprep.subr.bf16.mxu0 %v3843
        %4615 = vmatpush1.bf16.msra.mxu0 %v3842
        %4616 = vmatprep.subr.bf16.mxu0 %v3847
        %4617 = vmatpush1.bf16.msra.mxu0 %v3846
        %4618 = vmatprep.subr.bf16.mxu0 %v3851
        %4619 = vmatpush1.bf16.msra.mxu0 %v3850
        %4620 = vmatprep.subr.bf16.mxu0 %v3855
        %4621 = vmatpush1.bf16.msra.mxu0 %v3854
        %4622 = vmatprep.subr.bf16.mxu0 %v3859
        %4623 = vmatpush1.bf16.msra.mxu0 %v3858
        %4624 = vmatprep.subr.bf16.mxu0 %v3863
        %4625 = vmatpush1.bf16.msra.mxu0 %v3862
        %4626 = vmatprep.subr.bf16.mxu0 %v3867
        %4627 = vmatpush1.bf16.msra.mxu0 %v3866
        %4628 = vmatprep.subr.bf16.mxu0 %v3871
        %4629 = vmatpush1.bf16.msra.mxu0 %v3870
        %4630 = vmatprep.subr.bf16.mxu0 %v3875
        %4631 = vmatpush1.bf16.msra.mxu0 %v3874
        %4632 = vmatprep.subr.bf16.mxu0 %v3879
        %4633 = vmatpush1.bf16.msra.mxu0 %v3878
        %4634 = vmatprep.subr.bf16.mxu0 %v3883
        %4635 = vmatpush1.bf16.msra.mxu0 %v3882
        %4636 = vmatprep.subr.bf16.mxu0 %v3887
        %4637 = vmatpush1.bf16.msra.mxu0 %v3886
        %4638 = vmatprep.subr.bf16.mxu0 %v3891
        %4639 = vmatpush1.bf16.msra.mxu0 %v3890
        %4640 = vmatprep.subr.bf16.mxu0 %v3895
        %4641 = vmatpush1.bf16.msra.mxu0 %v3894
        %4642 = vmatprep.subr.bf16.mxu0 %v3899
        %4643 = vmatpush1.bf16.msra.mxu0 %v3898
        %4644 = vmatprep.subr.bf16.mxu0 %v3903
        %4645 = vmatpush1.bf16.msra.mxu0 %v3902
        %4646 = vmatprep.mubr.bf16.mxu0 %v2302
        %4647 = vmatmul.mubr.bf16.gmra.mrb[0].mxu0 %v2301
        %v4648 = vpop.f32.mrb[0].mxu0
        %v4649 = vadd.f32 %v4608, %v4648
        %v4650 = vpop.f32.mrb[0].mxu0
        %v4651 = vadd.f32 %v4610, %v4650
        %v4652 = vpop.f32.mrb[0].mxu0
        %v4653 = vpop.f32.mrb[0].mxu0
        %4654 = vdwg.mxu0
        %v4655 = vmax.f32 %v4444, 0.0
        %v4656 = vmax.f32 %v4446, 0.0
        %v4657 = vmax.f32 %v4649, 0.0
        %v4658 = vmax.f32 %v4651, 0.0
        %v4659 = vpack.c.bf16 %v4655, %v4655
        %v4660 = vpack.c.bf16 %v4656, %v4656
        %v4661 = vpack.c.bf16 %v4657, %v4657
        %v4662 = vpack.c.bf16 %v4658, %v4658
        %v4663 = vld [vmem:[%s7] sm:$0xff]
        %v4664 = vld [vmem:[%s7 + $0x8] sm:$0xff]
        %v4665 = vld [vmem:[%s7 + $0x10] sm:$0xff]
        %v4666 = vld [vmem:[%s7 + $0x18] sm:$0xff]
        %v4667 = vld [vmem:[%s7 + $0x20] sm:$0xff]
        %v4668 = vld [vmem:[%s7 + $0x28] sm:$0xff]
        %v4669 = vld [vmem:[%s7 + $0x30] sm:$0xff]
        %v4670 = vld [vmem:[%s7 + $0x38] sm:$0xff]
        %v4671 = vld [vmem:[%s7 + $0x40] sm:$0xff]
        %v4672 = vld [vmem:[%s7 + $0x48] sm:$0xff]
        %v4673 = vld [vmem:[%s7 + $0x50] sm:$0xff]
        %v4674 = vld [vmem:[%s7 + $0x58] sm:$0xff]
        %v4675 = vld [vmem:[%s7 + $0x60] sm:$0xff]
        %v4676 = vld [vmem:[%s7 + $0x68] sm:$0xff]
        %v4677 = vld [vmem:[%s7 + $0x70] sm:$0xff]
        %v4678 = vld [vmem:[%s7 + $0x78] sm:$0xff]
        %v4679 = vld [vmem:[%s7 + $0x80] sm:$0xff]
        %v4680 = vld [vmem:[%s7 + $0x88] sm:$0xff]
        %v4681 = vld [vmem:[%s7 + $0x90] sm:$0xff]
        %v4682 = vld [vmem:[%s7 + $0x98] sm:$0xff]
        %v4683 = vld [vmem:[%s7 + $0xa0] sm:$0xff]
        %v4684 = vld [vmem:[%s7 + $0xa8] sm:$0xff]
        %v4685 = vld [vmem:[%s7 + $0xb0] sm:$0xff]
        %v4686 = vld [vmem:[%s7 + $0xb8] sm:$0xff]
        %v4687 = vld [vmem:[%s7 + $0xc0] sm:$0xff]
        %v4688 = vld [vmem:[%s7 + $0xc8] sm:$0xff]
        %v4689 = vld [vmem:[%s7 + $0xd0] sm:$0xff]
        %v4690 = vld [vmem:[%s7 + $0xd8] sm:$0xff]
        %v4691 = vld [vmem:[%s7 + $0xe0] sm:$0xff]
        %v4692 = vld [vmem:[%s7 + $0xe8] sm:$0xff]
        %v4693 = vld [vmem:[%s7 + $0xf0] sm:$0xff]
        %v4694 = vld [vmem:[%s7 + $0xf8] sm:$0xff]
        %v4695 = vld [vmem:[%s7 + $0x100] sm:$0xff]
        %v4696 = vld [vmem:[%s7 + $0x108] sm:$0xff]
        %v4697 = vld [vmem:[%s7 + $0x110] sm:$0xff]
        %v4698 = vld [vmem:[%s7 + $0x118] sm:$0xff]
        %v4699 = vld [vmem:[%s7 + $0x120] sm:$0xff]
        %v4700 = vld [vmem:[%s7 + $0x128] sm:$0xff]
        %v4701 = vld [vmem:[%s7 + $0x130] sm:$0xff]
        %v4702 = vld [vmem:[%s7 + $0x138] sm:$0xff]
        %v4703 = vld [vmem:[%s7 + $0x140] sm:$0xff]
        %v4704 = vld [vmem:[%s7 + $0x148] sm:$0xff]
        %v4705 = vld [vmem:[%s7 + $0x150] sm:$0xff]
        %v4706 = vld [vmem:[%s7 + $0x158] sm:$0xff]
        %v4707 = vld [vmem:[%s7 + $0x160] sm:$0xff]
        %v4708 = vld [vmem:[%s7 + $0x168] sm:$0xff]
        %v4709 = vld [vmem:[%s7 + $0x170] sm:$0xff]
        %v4710 = vld [vmem:[%s7 + $0x178] sm:$0xff]
        %v4711 = vld [vmem:[%s7 + $0x180] sm:$0xff]
        %v4712 = vld [vmem:[%s7 + $0x188] sm:$0xff]
        %v4713 = vld [vmem:[%s7 + $0x190] sm:$0xff]
        %v4714 = vld [vmem:[%s7 + $0x198] sm:$0xff]
        %v4715 = vld [vmem:[%s7 + $0x1a0] sm:$0xff]
        %v4716 = vld [vmem:[%s7 + $0x1a8] sm:$0xff]
        %v4717 = vld [vmem:[%s7 + $0x1b0] sm:$0xff]
        %v4718 = vld [vmem:[%s7 + $0x1b8] sm:$0xff]
        %v4719 = vld [vmem:[%s7 + $0x1c0] sm:$0xff]
        %v4720 = vld [vmem:[%s7 + $0x1c8] sm:$0xff]
        %v4721 = vld [vmem:[%s7 + $0x1d0] sm:$0xff]
        %v4722 = vld [vmem:[%s7 + $0x1d8] sm:$0xff]
        %v4723 = vld [vmem:[%s7 + $0x1e0] sm:$0xff]
        %v4724 = vld [vmem:[%s7 + $0x1e8] sm:$0xff]
        %v4725 = vld [vmem:[%s7 + $0x1f0] sm:$0xff]
        %v4726 = vld [vmem:[%s7 + $0x1f8] sm:$0xff]
        %v4727 = vld [vmem:[%s7 + $0x200] sm:$0xff]
        %v4728 = vld [vmem:[%s7 + $0x208] sm:$0xff]
        %v4729 = vld [vmem:[%s7 + $0x210] sm:$0xff]
        %v4730 = vld [vmem:[%s7 + $0x218] sm:$0xff]
        %v4731 = vld [vmem:[%s7 + $0x220] sm:$0xff]
        %v4732 = vld [vmem:[%s7 + $0x228] sm:$0xff]
        %v4733 = vld [vmem:[%s7 + $0x230] sm:$0xff]
        %v4734 = vld [vmem:[%s7 + $0x238] sm:$0xff]
        %v4735 = vld [vmem:[%s7 + $0x240] sm:$0xff]
        %v4736 = vld [vmem:[%s7 + $0x248] sm:$0xff]
        %v4737 = vld [vmem:[%s7 + $0x250] sm:$0xff]
        %v4738 = vld [vmem:[%s7 + $0x258] sm:$0xff]
        %v4739 = vld [vmem:[%s7 + $0x260] sm:$0xff]
        %v4740 = vld [vmem:[%s7 + $0x268] sm:$0xff]
        %v4741 = vld [vmem:[%s7 + $0x270] sm:$0xff]
        %v4742 = vld [vmem:[%s7 + $0x278] sm:$0xff]
        %v4743 = vld [vmem:[%s7 + $0x280] sm:$0xff]
        %v4744 = vld [vmem:[%s7 + $0x288] sm:$0xff]
        %v4745 = vld [vmem:[%s7 + $0x290] sm:$0xff]
        %v4746 = vld [vmem:[%s7 + $0x298] sm:$0xff]
        %v4747 = vld [vmem:[%s7 + $0x2a0] sm:$0xff]
        %v4748 = vld [vmem:[%s7 + $0x2a8] sm:$0xff]
        %v4749 = vld [vmem:[%s7 + $0x2b0] sm:$0xff]
        %v4750 = vld [vmem:[%s7 + $0x2b8] sm:$0xff]
        %v4751 = vld [vmem:[%s7 + $0x2c0] sm:$0xff]
        %v4752 = vld [vmem:[%s7 + $0x2c8] sm:$0xff]
        %v4753 = vld [vmem:[%s7 + $0x2d0] sm:$0xff]
        %v4754 = vld [vmem:[%s7 + $0x2d8] sm:$0xff]
        %v4755 = vld [vmem:[%s7 + $0x2e0] sm:$0xff]
        %v4756 = vld [vmem:[%s7 + $0x2e8] sm:$0xff]
        %v4757 = vld [vmem:[%s7 + $0x2f0] sm:$0xff]
        %v4758 = vld [vmem:[%s7 + $0x2f8] sm:$0xff]
        %v4759 = vld [vmem:[%s7 + $0x300] sm:$0xff]
        %v4760 = vld [vmem:[%s7 + $0x308] sm:$0xff]
        %v4761 = vld [vmem:[%s7 + $0x310] sm:$0xff]
        %v4762 = vld [vmem:[%s7 + $0x318] sm:$0xff]
        %v4763 = vld [vmem:[%s7 + $0x320] sm:$0xff]
        %v4764 = vld [vmem:[%s7 + $0x328] sm:$0xff]
        %v4765 = vld [vmem:[%s7 + $0x330] sm:$0xff]
        %v4766 = vld [vmem:[%s7 + $0x338] sm:$0xff]
        %v4767 = vld [vmem:[%s7 + $0x340] sm:$0xff]
        %v4768 = vld [vmem:[%s7 + $0x348] sm:$0xff]
        %v4769 = vld [vmem:[%s7 + $0x350] sm:$0xff]
        %v4770 = vld [vmem:[%s7 + $0x358] sm:$0xff]
        %v4771 = vld [vmem:[%s7 + $0x360] sm:$0xff]
        %v4772 = vld [vmem:[%s7 + $0x368] sm:$0xff]
        %v4773 = vld [vmem:[%s7 + $0x370] sm:$0xff]
        %v4774 = vld [vmem:[%s7 + $0x378] sm:$0xff]
        %v4775 = vld [vmem:[%s7 + $0x380] sm:$0xff]
        %v4776 = vld [vmem:[%s7 + $0x388] sm:$0xff]
        %v4777 = vld [vmem:[%s7 + $0x390] sm:$0xff]
        %v4778 = vld [vmem:[%s7 + $0x398] sm:$0xff]
        %v4779 = vld [vmem:[%s7 + $0x3a0] sm:$0xff]
        %v4780 = vld [vmem:[%s7 + $0x3a8] sm:$0xff]
        %v4781 = vld [vmem:[%s7 + $0x3b0] sm:$0xff]
        %v4782 = vld [vmem:[%s7 + $0x3b8] sm:$0xff]
        %v4783 = vld [vmem:[%s7 + $0x3c0] sm:$0xff]
        %v4784 = vld [vmem:[%s7 + $0x3c8] sm:$0xff]
        %v4785 = vld [vmem:[%s7 + $0x3d0] sm:$0xff]
        %v4786 = vld [vmem:[%s7 + $0x3d8] sm:$0xff]
        %v4787 = vld [vmem:[%s7 + $0x3e0] sm:$0xff]
        %v4788 = vld [vmem:[%s7 + $0x3e8] sm:$0xff]
        %v4789 = vld [vmem:[%s7 + $0x3f0] sm:$0xff]
        %v4790 = vld [vmem:[%s7 + $0x3f8] sm:$0xff]
        %v4791 = vld [vmem:[%s8] sm:$0xf]
        %v4920 = vunpack.c.l.b16 %v4663
        %v4921 = vunpack.c.h.b16 %v4663
        %v4922 = vunpack.c.l.b16 %v4664
        %v4923 = vunpack.c.h.b16 %v4664
        %v4924 = vunpack.c.l.b16 %v4665
        %v4925 = vunpack.c.h.b16 %v4665
        %v4926 = vunpack.c.l.b16 %v4666
        %v4927 = vunpack.c.h.b16 %v4666
        %v4928 = vunpack.c.l.b16 %v4667
        %v4929 = vunpack.c.h.b16 %v4667
        %v4930 = vunpack.c.l.b16 %v4668
        %v4931 = vunpack.c.h.b16 %v4668
        %v4932 = vunpack.c.l.b16 %v4669
        %v4933 = vunpack.c.h.b16 %v4669
        %v4934 = vunpack.c.l.b16 %v4670
        %v4935 = vunpack.c.h.b16 %v4670
        %v4936 = vunpack.c.l.b16 %v4671
        %v4937 = vunpack.c.h.b16 %v4671
        %v4938 = vunpack.c.l.b16 %v4672
        %v4939 = vunpack.c.h.b16 %v4672
        %v4940 = vunpack.c.l.b16 %v4673
        %v4941 = vunpack.c.h.b16 %v4673
        %v4942 = vunpack.c.l.b16 %v4674
        %v4943 = vunpack.c.h.b16 %v4674
        %v4944 = vunpack.c.l.b16 %v4675
        %v4945 = vunpack.c.h.b16 %v4675
        %v4946 = vunpack.c.l.b16 %v4676
        %v4947 = vunpack.c.h.b16 %v4676
        %v4948 = vunpack.c.l.b16 %v4677
        %v4949 = vunpack.c.h.b16 %v4677
        %v4950 = vunpack.c.l.b16 %v4678
        %v4951 = vunpack.c.h.b16 %v4678
        %v4952 = vunpack.c.l.b16 %v4679
        %v4953 = vunpack.c.h.b16 %v4679
        %v4954 = vunpack.c.l.b16 %v4680
        %v4955 = vunpack.c.h.b16 %v4680
        %v4956 = vunpack.c.l.b16 %v4681
        %v4957 = vunpack.c.h.b16 %v4681
        %v4958 = vunpack.c.l.b16 %v4682
        %v4959 = vunpack.c.h.b16 %v4682
        %v4960 = vunpack.c.l.b16 %v4683
        %v4961 = vunpack.c.h.b16 %v4683
        %v4962 = vunpack.c.l.b16 %v4684
        %v4963 = vunpack.c.h.b16 %v4684
        %v4964 = vunpack.c.l.b16 %v4685
        %v4965 = vunpack.c.h.b16 %v4685
        %v4966 = vunpack.c.l.b16 %v4686
        %v4967 = vunpack.c.h.b16 %v4686
        %v4968 = vunpack.c.l.b16 %v4687
        %v4969 = vunpack.c.h.b16 %v4687
        %v4970 = vunpack.c.l.b16 %v4688
        %v4971 = vunpack.c.h.b16 %v4688
        %v4972 = vunpack.c.l.b16 %v4689
        %v4973 = vunpack.c.h.b16 %v4689
        %v4974 = vunpack.c.l.b16 %v4690
        %v4975 = vunpack.c.h.b16 %v4690
        %v4976 = vunpack.c.l.b16 %v4691
        %v4977 = vunpack.c.h.b16 %v4691
        %v4978 = vunpack.c.l.b16 %v4692
        %v4979 = vunpack.c.h.b16 %v4692
        %v4980 = vunpack.c.l.b16 %v4693
        %v4981 = vunpack.c.h.b16 %v4693
        %v4982 = vunpack.c.l.b16 %v4694
        %v4983 = vunpack.c.h.b16 %v4694
        %v4984 = vunpack.c.l.b16 %v4695
        %v4985 = vunpack.c.h.b16 %v4695
        %v4986 = vunpack.c.l.b16 %v4696
        %v4987 = vunpack.c.h.b16 %v4696
        %v4988 = vunpack.c.l.b16 %v4697
        %v4989 = vunpack.c.h.b16 %v4697
        %v4990 = vunpack.c.l.b16 %v4698
        %v4991 = vunpack.c.h.b16 %v4698
        %v4992 = vunpack.c.l.b16 %v4699
        %v4993 = vunpack.c.h.b16 %v4699
        %v4994 = vunpack.c.l.b16 %v4700
        %v4995 = vunpack.c.h.b16 %v4700
        %v4996 = vunpack.c.l.b16 %v4701
        %v4997 = vunpack.c.h.b16 %v4701
        %v4998 = vunpack.c.l.b16 %v4702
        %v4999 = vunpack.c.h.b16 %v4702
        %v5000 = vunpack.c.l.b16 %v4703
        %v5001 = vunpack.c.h.b16 %v4703
        %v5002 = vunpack.c.l.b16 %v4704
        %v5003 = vunpack.c.h.b16 %v4704
        %v5004 = vunpack.c.l.b16 %v4705
        %v5005 = vunpack.c.h.b16 %v4705
        %v5006 = vunpack.c.l.b16 %v4706
        %v5007 = vunpack.c.h.b16 %v4706
        %v5008 = vunpack.c.l.b16 %v4707
        %v5009 = vunpack.c.h.b16 %v4707
        %v5010 = vunpack.c.l.b16 %v4708
        %v5011 = vunpack.c.h.b16 %v4708
        %v5012 = vunpack.c.l.b16 %v4709
        %v5013 = vunpack.c.h.b16 %v4709
        %v5014 = vunpack.c.l.b16 %v4710
        %v5015 = vunpack.c.h.b16 %v4710
        %v5016 = vunpack.c.l.b16 %v4711
        %v5017 = vunpack.c.h.b16 %v4711
        %v5018 = vunpack.c.l.b16 %v4712
        %v5019 = vunpack.c.h.b16 %v4712
        %v5020 = vunpack.c.l.b16 %v4713
        %v5021 = vunpack.c.h.b16 %v4713
        %v5022 = vunpack.c.l.b16 %v4714
        %v5023 = vunpack.c.h.b16 %v4714
        %v5024 = vunpack.c.l.b16 %v4715
        %v5025 = vunpack.c.h.b16 %v4715
        %v5026 = vunpack.c.l.b16 %v4716
        %v5027 = vunpack.c.h.b16 %v4716
        %v5028 = vunpack.c.l.b16 %v4717
        %v5029 = vunpack.c.h.b16 %v4717
        %v5030 = vunpack.c.l.b16 %v4718
        %v5031 = vunpack.c.h.b16 %v4718
        %v5032 = vunpack.c.l.b16 %v4719
        %v5033 = vunpack.c.h.b16 %v4719
        %v5034 = vunpack.c.l.b16 %v4720
        %v5035 = vunpack.c.h.b16 %v4720
        %v5036 = vunpack.c.l.b16 %v4721
        %v5037 = vunpack.c.h.b16 %v4721
        %v5038 = vunpack.c.l.b16 %v4722
        %v5039 = vunpack.c.h.b16 %v4722
        %v5040 = vunpack.c.l.b16 %v4723
        %v5041 = vunpack.c.h.b16 %v4723
        %v5042 = vunpack.c.l.b16 %v4724
        %v5043 = vunpack.c.h.b16 %v4724
        %v5044 = vunpack.c.l.b16 %v4725
        %v5045 = vunpack.c.h.b16 %v4725
        %v5046 = vunpack.c.l.b16 %v4726
        %v5047 = vunpack.c.h.b16 %v4726
        %v5048 = vunpack.c.l.b16 %v4727
        %v5049 = vunpack.c.h.b16 %v4727
        %v5050 = vunpack.c.l.b16 %v4728
        %v5051 = vunpack.c.h.b16 %v4728
        %v5052 = vunpack.c.l.b16 %v4729
        %v5053 = vunpack.c.h.b16 %v4729
        %v5054 = vunpack.c.l.b16 %v4730
        %v5055 = vunpack.c.h.b16 %v4730
        %v5056 = vunpack.c.l.b16 %v4731
        %v5057 = vunpack.c.h.b16 %v4731
        %v5058 = vunpack.c.l.b16 %v4732
        %v5059 = vunpack.c.h.b16 %v4732
        %v5060 = vunpack.c.l.b16 %v4733
        %v5061 = vunpack.c.h.b16 %v4733
        %v5062 = vunpack.c.l.b16 %v4734
        %v5063 = vunpack.c.h.b16 %v4734
        %v5064 = vunpack.c.l.b16 %v4735
        %v5065 = vunpack.c.h.b16 %v4735
        %v5066 = vunpack.c.l.b16 %v4736
        %v5067 = vunpack.c.h.b16 %v4736
        %v5068 = vunpack.c.l.b16 %v4737
        %v5069 = vunpack.c.h.b16 %v4737
        %v5070 = vunpack.c.l.b16 %v4738
        %v5071 = vunpack.c.h.b16 %v4738
        %v5072 = vunpack.c.l.b16 %v4739
        %v5073 = vunpack.c.h.b16 %v4739
        %v5074 = vunpack.c.l.b16 %v4740
        %v5075 = vunpack.c.h.b16 %v4740
        %v5076 = vunpack.c.l.b16 %v4741
        %v5077 = vunpack.c.h.b16 %v4741
        %v5078 = vunpack.c.l.b16 %v4742
        %v5079 = vunpack.c.h.b16 %v4742
        %v5080 = vunpack.c.l.b16 %v4743
        %v5081 = vunpack.c.h.b16 %v4743
        %v5082 = vunpack.c.l.b16 %v4744
        %v5083 = vunpack.c.h.b16 %v4744
        %v5084 = vunpack.c.l.b16 %v4745
        %v5085 = vunpack.c.h.b16 %v4745
        %v5086 = vunpack.c.l.b16 %v4746
        %v5087 = vunpack.c.h.b16 %v4746
        %v5088 = vunpack.c.l.b16 %v4747
        %v5089 = vunpack.c.h.b16 %v4747
        %v5090 = vunpack.c.l.b16 %v4748
        %v5091 = vunpack.c.h.b16 %v4748
        %v5092 = vunpack.c.l.b16 %v4749
        %v5093 = vunpack.c.h.b16 %v4749
        %v5094 = vunpack.c.l.b16 %v4750
        %v5095 = vunpack.c.h.b16 %v4750
        %v5096 = vunpack.c.l.b16 %v4751
        %v5097 = vunpack.c.h.b16 %v4751
        %v5098 = vunpack.c.l.b16 %v4752
        %v5099 = vunpack.c.h.b16 %v4752
        %v5100 = vunpack.c.l.b16 %v4753
        %v5101 = vunpack.c.h.b16 %v4753
        %v5102 = vunpack.c.l.b16 %v4754
        %v5103 = vunpack.c.h.b16 %v4754
        %v5104 = vunpack.c.l.b16 %v4755
        %v5105 = vunpack.c.h.b16 %v4755
        %v5106 = vunpack.c.l.b16 %v4756
        %v5107 = vunpack.c.h.b16 %v4756
        %v5108 = vunpack.c.l.b16 %v4757
        %v5109 = vunpack.c.h.b16 %v4757
        %v5110 = vunpack.c.l.b16 %v4758
        %v5111 = vunpack.c.h.b16 %v4758
        %v5112 = vunpack.c.l.b16 %v4759
        %v5113 = vunpack.c.h.b16 %v4759
        %v5114 = vunpack.c.l.b16 %v4760
        %v5115 = vunpack.c.h.b16 %v4760
        %v5116 = vunpack.c.l.b16 %v4761
        %v5117 = vunpack.c.h.b16 %v4761
        %v5118 = vunpack.c.l.b16 %v4762
        %v5119 = vunpack.c.h.b16 %v4762
        %v5120 = vunpack.c.l.b16 %v4763
        %v5121 = vunpack.c.h.b16 %v4763
        %v5122 = vunpack.c.l.b16 %v4764
        %v5123 = vunpack.c.h.b16 %v4764
        %v5124 = vunpack.c.l.b16 %v4765
        %v5125 = vunpack.c.h.b16 %v4765
        %v5126 = vunpack.c.l.b16 %v4766
        %v5127 = vunpack.c.h.b16 %v4766
        %v5128 = vunpack.c.l.b16 %v4767
        %v5129 = vunpack.c.h.b16 %v4767
        %v5130 = vunpack.c.l.b16 %v4768
        %v5131 = vunpack.c.h.b16 %v4768
        %v5132 = vunpack.c.l.b16 %v4769
        %v5133 = vunpack.c.h.b16 %v4769
        %v5134 = vunpack.c.l.b16 %v4770
        %v5135 = vunpack.c.h.b16 %v4770
        %v5136 = vunpack.c.l.b16 %v4771
        %v5137 = vunpack.c.h.b16 %v4771
        %v5138 = vunpack.c.l.b16 %v4772
        %v5139 = vunpack.c.h.b16 %v4772
        %v5140 = vunpack.c.l.b16 %v4773
        %v5141 = vunpack.c.h.b16 %v4773
        %v5142 = vunpack.c.l.b16 %v4774
        %v5143 = vunpack.c.h.b16 %v4774
        %v5144 = vunpack.c.l.b16 %v4775
        %v5145 = vunpack.c.h.b16 %v4775
        %v5146 = vunpack.c.l.b16 %v4776
        %v5147 = vunpack.c.h.b16 %v4776
        %v5148 = vunpack.c.l.b16 %v4777
        %v5149 = vunpack.c.h.b16 %v4777
        %v5150 = vunpack.c.l.b16 %v4778
        %v5151 = vunpack.c.h.b16 %v4778
        %v5152 = vunpack.c.l.b16 %v4779
        %v5153 = vunpack.c.h.b16 %v4779
        %v5154 = vunpack.c.l.b16 %v4780
        %v5155 = vunpack.c.h.b16 %v4780
        %v5156 = vunpack.c.l.b16 %v4781
        %v5157 = vunpack.c.h.b16 %v4781
        %v5158 = vunpack.c.l.b16 %v4782
        %v5159 = vunpack.c.h.b16 %v4782
        %v5160 = vunpack.c.l.b16 %v4783
        %v5161 = vunpack.c.h.b16 %v4783
        %v5162 = vunpack.c.l.b16 %v4784
        %v5163 = vunpack.c.h.b16 %v4784
        %v5164 = vunpack.c.l.b16 %v4785
        %v5165 = vunpack.c.h.b16 %v4785
        %v5166 = vunpack.c.l.b16 %v4786
        %v5167 = vunpack.c.h.b16 %v4786
        %v5168 = vunpack.c.l.b16 %v4787
        %v5169 = vunpack.c.h.b16 %v4787
        %v5170 = vunpack.c.l.b16 %v4788
        %v5171 = vunpack.c.h.b16 %v4788
        %v5172 = vunpack.c.l.b16 %v4789
        %v5173 = vunpack.c.h.b16 %v4789
        %v5174 = vunpack.c.l.b16 %v4790
        %v5175 = vunpack.c.h.b16 %v4790
        %v5176 = vpack.c.b16 %v4924, %v4920
        %v5177 = vpack.c.b16 %v4925, %v4921
        %v5178 = vpack.c.b16 %v4926, %v4922
        %v5179 = vpack.c.b16 %v4927, %v4923
        %v5180 = vpack.c.b16 %v4932, %v4928
        %v5181 = vpack.c.b16 %v4933, %v4929
        %v5182 = vpack.c.b16 %v4934, %v4930
        %v5183 = vpack.c.b16 %v4935, %v4931
        %v5184 = vpack.c.b16 %v4940, %v4936
        %v5185 = vpack.c.b16 %v4941, %v4937
        %v5186 = vpack.c.b16 %v4942, %v4938
        %v5187 = vpack.c.b16 %v4943, %v4939
        %v5188 = vpack.c.b16 %v4948, %v4944
        %v5189 = vpack.c.b16 %v4949, %v4945
        %v5190 = vpack.c.b16 %v4950, %v4946
        %v5191 = vpack.c.b16 %v4951, %v4947
        %v5192 = vpack.c.b16 %v4956, %v4952
        %v5193 = vpack.c.b16 %v4957, %v4953
        %v5194 = vpack.c.b16 %v4958, %v4954
        %v5195 = vpack.c.b16 %v4959, %v4955
        %v5196 = vpack.c.b16 %v4964, %v4960
        %v5197 = vpack.c.b16 %v4965, %v4961
        %v5198 = vpack.c.b16 %v4966, %v4962
        %v5199 = vpack.c.b16 %v4967, %v4963
        %v5200 = vpack.c.b16 %v4972, %v4968
        %v5201 = vpack.c.b16 %v4973, %v4969
        %v5202 = vpack.c.b16 %v4974, %v4970
        %v5203 = vpack.c.b16 %v4975, %v4971
        %v5204 = vpack.c.b16 %v4980, %v4976
        %v5205 = vpack.c.b16 %v4981, %v4977
        %v5206 = vpack.c.b16 %v4982, %v4978
        %v5207 = vpack.c.b16 %v4983, %v4979
        %v5208 = vpack.c.b16 %v4988, %v4984
        %v5209 = vpack.c.b16 %v4989, %v4985
        %v5210 = vpack.c.b16 %v4990, %v4986
        %v5211 = vpack.c.b16 %v4991, %v4987
        %v5212 = vpack.c.b16 %v4996, %v4992
        %v5213 = vpack.c.b16 %v4997, %v4993
        %v5214 = vpack.c.b16 %v4998, %v4994
        %v5215 = vpack.c.b16 %v4999, %v4995
        %v5216 = vpack.c.b16 %v5004, %v5000
        %v5217 = vpack.c.b16 %v5005, %v5001
        %v5218 = vpack.c.b16 %v5006, %v5002
        %v5219 = vpack.c.b16 %v5007, %v5003
        %v5220 = vpack.c.b16 %v5012, %v5008
        %v5221 = vpack.c.b16 %v5013, %v5009
        %v5222 = vpack.c.b16 %v5014, %v5010
        %v5223 = vpack.c.b16 %v5015, %v5011
        %v5224 = vpack.c.b16 %v5020, %v5016
        %v5225 = vpack.c.b16 %v5021, %v5017
        %v5226 = vpack.c.b16 %v5022, %v5018
        %v5227 = vpack.c.b16 %v5023, %v5019
        %v5228 = vpack.c.b16 %v5028, %v5024
        %v5229 = vpack.c.b16 %v5029, %v5025
        %v5230 = vpack.c.b16 %v5030, %v5026
        %v5231 = vpack.c.b16 %v5031, %v5027
        %v5232 = vpack.c.b16 %v5036, %v5032
        %v5233 = vpack.c.b16 %v5037, %v5033
        %v5234 = vpack.c.b16 %v5038, %v5034
        %v5235 = vpack.c.b16 %v5039, %v5035
        %v5236 = vpack.c.b16 %v5044, %v5040
        %v5237 = vpack.c.b16 %v5045, %v5041
        %v5238 = vpack.c.b16 %v5046, %v5042
        %v5239 = vpack.c.b16 %v5047, %v5043
        %v5240 = vpack.c.b16 %v5052, %v5048
        %v5241 = vpack.c.b16 %v5053, %v5049
        %v5242 = vpack.c.b16 %v5054, %v5050
        %v5243 = vpack.c.b16 %v5055, %v5051
        %v5244 = vpack.c.b16 %v5060, %v5056
        %v5245 = vpack.c.b16 %v5061, %v5057
        %v5246 = vpack.c.b16 %v5062, %v5058
        %v5247 = vpack.c.b16 %v5063, %v5059
        %v5248 = vpack.c.b16 %v5068, %v5064
        %v5249 = vpack.c.b16 %v5069, %v5065
        %v5250 = vpack.c.b16 %v5070, %v5066
        %v5251 = vpack.c.b16 %v5071, %v5067
        %v5252 = vpack.c.b16 %v5076, %v5072
        %v5253 = vpack.c.b16 %v5077, %v5073
        %v5254 = vpack.c.b16 %v5078, %v5074
        %v5255 = vpack.c.b16 %v5079, %v5075
        %v5256 = vpack.c.b16 %v5084, %v5080
        %v5257 = vpack.c.b16 %v5085, %v5081
        %v5258 = vpack.c.b16 %v5086, %v5082
        %v5259 = vpack.c.b16 %v5087, %v5083
        %v5260 = vpack.c.b16 %v5092, %v5088
        %v5261 = vpack.c.b16 %v5093, %v5089
        %v5262 = vpack.c.b16 %v5094, %v5090
        %v5263 = vpack.c.b16 %v5095, %v5091
        %v5264 = vpack.c.b16 %v5100, %v5096
        %v5265 = vpack.c.b16 %v5101, %v5097
        %v5266 = vpack.c.b16 %v5102, %v5098
        %v5267 = vpack.c.b16 %v5103, %v5099
        %v5268 = vpack.c.b16 %v5108, %v5104
        %v5269 = vpack.c.b16 %v5109, %v5105
        %v5270 = vpack.c.b16 %v5110, %v5106
        %v5271 = vpack.c.b16 %v5111, %v5107
        %v5272 = vpack.c.b16 %v5116, %v5112
        %v5273 = vpack.c.b16 %v5117, %v5113
        %v5274 = vpack.c.b16 %v5118, %v5114
        %v5275 = vpack.c.b16 %v5119, %v5115
        %v5276 = vpack.c.b16 %v5124, %v5120
        %v5277 = vpack.c.b16 %v5125, %v5121
        %v5278 = vpack.c.b16 %v5126, %v5122
        %v5279 = vpack.c.b16 %v5127, %v5123
        %v5280 = vpack.c.b16 %v5132, %v5128
        %v5281 = vpack.c.b16 %v5133, %v5129
        %v5282 = vpack.c.b16 %v5134, %v5130
        %v5283 = vpack.c.b16 %v5135, %v5131
        %v5284 = vpack.c.b16 %v5140, %v5136
        %v5285 = vpack.c.b16 %v5141, %v5137
        %v5286 = vpack.c.b16 %v5142, %v5138
        %v5287 = vpack.c.b16 %v5143, %v5139
        %v5288 = vpack.c.b16 %v5148, %v5144
        %v5289 = vpack.c.b16 %v5149, %v5145
        %v5290 = vpack.c.b16 %v5150, %v5146
        %v5291 = vpack.c.b16 %v5151, %v5147
        %v5292 = vpack.c.b16 %v5156, %v5152
        %v5293 = vpack.c.b16 %v5157, %v5153
        %v5294 = vpack.c.b16 %v5158, %v5154
        %v5295 = vpack.c.b16 %v5159, %v5155
        %v5296 = vpack.c.b16 %v5164, %v5160
        %v5297 = vpack.c.b16 %v5165, %v5161
        %v5298 = vpack.c.b16 %v5166, %v5162
        %v5299 = vpack.c.b16 %v5167, %v5163
        %v5300 = vpack.c.b16 %v5172, %v5168
        %v5301 = vpack.c.b16 %v5173, %v5169
        %v5302 = vpack.c.b16 %v5174, %v5170
        %v5303 = vpack.c.b16 %v5175, %v5171
        %v5433 = vlaneseq
        %v5434 = vshrl.u32 %v5433, 7
        %v5435 = vsub.s32 0, %v5434
        %v5436 = vrot.slane %v4791, %v5435
        %v5437 = vlaneseq
        %v5438 = vshrl.u32 %v5437, 7
        %v5439 = vsub.s32 1, %v5438
        %v5440 = vrot.slane %v4791, %v5439
        %v5441 = vlaneseq
        %v5442 = vshrl.u32 %v5441, 7
        %v5443 = vsub.s32 2, %v5442
        %v5444 = vrot.slane %v4791, %v5443
        %v5445 = vlaneseq
        %v5446 = vshrl.u32 %v5445, 7
        %v5447 = vsub.s32 3, %v5446
        %v5448 = vrot.slane %v4791, %v5447
        %5453 = vmatprep.subr.bf16.mxu0 %v5177
        %5454 = vmatpush1.bf16.msra.mxu0 %v5176
        %5455 = vmatprep.subr.bf16.mxu0 %v5181
        %5456 = vmatpush1.bf16.msra.mxu0 %v5180
        %5457 = vmatprep.subr.bf16.mxu0 %v5185
        %5458 = vmatpush1.bf16.msra.mxu0 %v5184
        %5459 = vmatprep.subr.bf16.mxu0 %v5189
        %5460 = vmatpush1.bf16.msra.mxu0 %v5188
        %5461 = vmatprep.subr.bf16.mxu0 %v5193
        %5462 = vmatpush1.bf16.msra.mxu0 %v5192
        %5463 = vmatprep.subr.bf16.mxu0 %v5197
        %5464 = vmatpush1.bf16.msra.mxu0 %v5196
        %5465 = vmatprep.subr.bf16.mxu0 %v5201
        %5466 = vmatpush1.bf16.msra.mxu0 %v5200
        %5467 = vmatprep.subr.bf16.mxu0 %v5205
        %5468 = vmatpush1.bf16.msra.mxu0 %v5204
        %5469 = vmatprep.subr.bf16.mxu0 %v5209
        %5470 = vmatpush1.bf16.msra.mxu0 %v5208
        %5471 = vmatprep.subr.bf16.mxu0 %v5213
        %5472 = vmatpush1.bf16.msra.mxu0 %v5212
        %5473 = vmatprep.subr.bf16.mxu0 %v5217
        %5474 = vmatpush1.bf16.msra.mxu0 %v5216
        %5475 = vmatprep.subr.bf16.mxu0 %v5221
        %5476 = vmatpush1.bf16.msra.mxu0 %v5220
        %5477 = vmatprep.subr.bf16.mxu0 %v5225
        %5478 = vmatpush1.bf16.msra.mxu0 %v5224
        %5479 = vmatprep.subr.bf16.mxu0 %v5229
        %5480 = vmatpush1.bf16.msra.mxu0 %v5228
        %5481 = vmatprep.subr.bf16.mxu0 %v5233
        %5482 = vmatpush1.bf16.msra.mxu0 %v5232
        %5483 = vmatprep.subr.bf16.mxu0 %v5237
        %5484 = vmatpush1.bf16.msra.mxu0 %v5236
        %5485 = vmatprep.mubr.bf16.mxu0 %v4660
        %5486 = vmatmul.mubr.bf16.gmra.mrb[0].mxu0 %v4659
        %v5487 = vpop.f32.mrb[0].mxu0
        %v5488 = vadd.f32 %v5436, %v5487
        %v5489 = vpop.f32.mrb[0].mxu0
        %v5490 = vadd.f32 %v5440, %v5489
        %v5491 = vpop.f32.mrb[0].mxu0
        %v5492 = vpop.f32.mrb[0].mxu0
        %5493 = vdwg.mxu0
        %5494 = vmatprep.subr.bf16.mxu0 %v5241
        %5495 = vmatpush1.bf16.msra.mxu0 %v5240
        %5496 = vmatprep.subr.bf16.mxu0 %v5245
        %5497 = vmatpush1.bf16.msra.mxu0 %v5244
        %5498 = vmatprep.subr.bf16.mxu0 %v5249
        %5499 = vmatpush1.bf16.msra.mxu0 %v5248
        %5500 = vmatprep.subr.bf16.mxu0 %v5253
        %5501 = vmatpush1.bf16.msra.mxu0 %v5252
        %5502 = vmatprep.subr.bf16.mxu0 %v5257
        %5503 = vmatpush1.bf16.msra.mxu0 %v5256
        %5504 = vmatprep.subr.bf16.mxu0 %v5261
        %5505 = vmatpush1.bf16.msra.mxu0 %v5260
        %5506 = vmatprep.subr.bf16.mxu0 %v5265
        %5507 = vmatpush1.bf16.msra.mxu0 %v5264
        %5508 = vmatprep.subr.bf16.mxu0 %v5269
        %5509 = vmatpush1.bf16.msra.mxu0 %v5268
        %5510 = vmatprep.subr.bf16.mxu0 %v5273
        %5511 = vmatpush1.bf16.msra.mxu0 %v5272
        %5512 = vmatprep.subr.bf16.mxu0 %v5277
        %5513 = vmatpush1.bf16.msra.mxu0 %v5276
        %5514 = vmatprep.subr.bf16.mxu0 %v5281
        %5515 = vmatpush1.bf16.msra.mxu0 %v5280
        %5516 = vmatprep.subr.bf16.mxu0 %v5285
        %5517 = vmatpush1.bf16.msra.mxu0 %v5284
        %5518 = vmatprep.subr.bf16.mxu0 %v5289
        %5519 = vmatpush1.bf16.msra.mxu0 %v5288
        %5520 = vmatprep.subr.bf16.mxu0 %v5293
        %5521 = vmatpush1.bf16.msra.mxu0 %v5292
        %5522 = vmatprep.subr.bf16.mxu0 %v5297
        %5523 = vmatpush1.bf16.msra.mxu0 %v5296
        %5524 = vmatprep.subr.bf16.mxu0 %v5301
        %5525 = vmatpush1.bf16.msra.mxu0 %v5300
        %5526 = vmatprep.mubr.bf16.mxu0 %v4662
        %5527 = vmatmul.mubr.bf16.gmra.mrb[0].mxu0 %v4661
        %v5528 = vpop.f32.mrb[0].mxu0
        %v5529 = vadd.f32 %v5488, %v5528
        %v5530 = vpop.f32.mrb[0].mxu0
        %v5531 = vadd.f32 %v5490, %v5530
        %v5532 = vpop.f32.mrb[0].mxu0
        %v5533 = vpop.f32.mrb[0].mxu0
        %5534 = vdwg.mxu0
        %5535 = vmatprep.subr.bf16.mxu0 %v5179
        %5536 = vmatpush1.bf16.msra.mxu0 %v5178
        %5537 = vmatprep.subr.bf16.mxu0 %v5183
        %5538 = vmatpush1.bf16.msra.mxu0 %v5182
        %5539 = vmatprep.subr.bf16.mxu0 %v5187
        %5540 = vmatpush1.bf16.msra.mxu0 %v5186
        %5541 = vmatprep.subr.bf16.mxu0 %v5191
        %5542 = vmatpush1.bf16.msra.mxu0 %v5190
        %5543 = vmatprep.subr.bf16.mxu0 %v5195
        %5544 = vmatpush1.bf16.msra.mxu0 %v5194
        %5545 = vmatprep.subr.bf16.mxu0 %v5199
        %5546 = vmatpush1.bf16.msra.mxu0 %v5198
        %5547 = vmatprep.subr.bf16.mxu0 %v5203
        %5548 = vmatpush1.bf16.msra.mxu0 %v5202
        %5549 = vmatprep.subr.bf16.mxu0 %v5207
        %5550 = vmatpush1.bf16.msra.mxu0 %v5206
        %5551 = vmatprep.subr.bf16.mxu0 %v5211
        %5552 = vmatpush1.bf16.msra.mxu0 %v5210
        %5553 = vmatprep.subr.bf16.mxu0 %v5215
        %5554 = vmatpush1.bf16.msra.mxu0 %v5214
        %5555 = vmatprep.subr.bf16.mxu0 %v5219
        %5556 = vmatpush1.bf16.msra.mxu0 %v5218
        %5557 = vmatprep.subr.bf16.mxu0 %v5223
        %5558 = vmatpush1.bf16.msra.mxu0 %v5222
        %5559 = vmatprep.subr.bf16.mxu0 %v5227
        %5560 = vmatpush1.bf16.msra.mxu0 %v5226
        %5561 = vmatprep.subr.bf16.mxu0 %v5231
        %5562 = vmatpush1.bf16.msra.mxu0 %v5230
        %5563 = vmatprep.subr.bf16.mxu0 %v5235
        %5564 = vmatpush1.bf16.msra.mxu0 %v5234
        %5565 = vmatprep.subr.bf16.mxu0 %v5239
        %5566 = vmatpush1.bf16.msra.mxu0 %v5238
        %5567 = vmatprep.mubr.bf16.mxu0 %v4660
        %5568 = vmatmul.mubr.bf16.gmra.mrb[0].mxu0 %v4659
        %v5569 = vpop.f32.mrb[0].mxu0
        %v5570 = vadd.f32 %v5444, %v5569
        %v5571 = vpop.f32.mrb[0].mxu0
        %v5572 = vadd.f32 %v5448, %v5571
        %v5573 = vpop.f32.mrb[0].mxu0
        %v5574 = vpop.f32.mrb[0].mxu0
        %5575 = vdwg.mxu0
        %5576 = vmatprep.subr.bf16.mxu0 %v5243
        %5577 = vmatpush1.bf16.msra.mxu0 %v5242
        %5578 = vmatprep.subr.bf16.mxu0 %v5247
        %5579 = vmatpush1.bf16.msra.mxu0 %v5246
        %5580 = vmatprep.subr.bf16.mxu0 %v5251
        %5581 = vmatpush1.bf16.msra.mxu0 %v5250
        %5582 = vmatprep.subr.bf16.mxu0 %v5255
        %5583 = vmatpush1.bf16.msra.mxu0 %v5254
        %5584 = vmatprep.subr.bf16.mxu0 %v5259
        %5585 = vmatpush1.bf16.msra.mxu0 %v5258
        %5586 = vmatprep.subr.bf16.mxu0 %v5263
        %5587 = vmatpush1.bf16.msra.mxu0 %v5262
        %5588 = vmatprep.subr.bf16.mxu0 %v5267
        %5589 = vmatpush1.bf16.msra.mxu0 %v5266
        %5590 = vmatprep.subr.bf16.mxu0 %v5271
        %5591 = vmatpush1.bf16.msra.mxu0 %v5270
        %5592 = vmatprep.subr.bf16.mxu0 %v5275
        %5593 = vmatpush1.bf16.msra.mxu0 %v5274
        %5594 = vmatprep.subr.bf16.mxu0 %v5279
        %5595 = vmatpush1.bf16.msra.mxu0 %v5278
        %5596 = vmatprep.subr.bf16.mxu0 %v5283
        %5597 = vmatpush1.bf16.msra.mxu0 %v5282
        %5598 = vmatprep.subr.bf16.mxu0 %v5287
        %5599 = vmatpush1.bf16.msra.mxu0 %v5286
        %5600 = vmatprep.subr.bf16.mxu0 %v5291
        %5601 = vmatpush1.bf16.msra.mxu0 %v5290
        %5602 = vmatprep.subr.bf16.mxu0 %v5295
        %5603 = vmatpush1.bf16.msra.mxu0 %v5294
        %5604 = vmatprep.subr.bf16.mxu0 %v5299
        %5605 = vmatpush1.bf16.msra.mxu0 %v5298
        %5606 = vmatprep.subr.bf16.mxu0 %v5303
        %5607 = vmatpush1.bf16.msra.mxu0 %v5302
        %5608 = vmatprep.mubr.bf16.mxu0 %v4662
        %5609 = vmatmul.mubr.bf16.gmra.mrb[0].mxu0 %v4661
        %v5610 = vpop.f32.mrb[0].mxu0
        %v5611 = vadd.f32 %v5570, %v5610
        %v5612 = vpop.f32.mrb[0].mxu0
        %v5613 = vadd.f32 %v5572, %v5612
        %v5614 = vpop.f32.mrb[0].mxu0
        %v5615 = vpop.f32.mrb[0].mxu0
        %5616 = vdwg.mxu0
        %v5617 = vmax.f32 %v5529, 0.0
        %v5618 = vmax.f32 %v5531, 0.0
        %v5619 = vmax.f32 %v5611, 0.0
        %v5620 = vmax.f32 %v5613, 0.0
        %v5621 = vld [vmem:[%s9] sm:$0xff]
        %v5622 = vld [vmem:[%s9 + $0x8] sm:$0xff]
        %v5623 = vld [vmem:[%s9 + $0x10] sm:$0xff]
        %v5624 = vld [vmem:[%s9 + $0x18] sm:$0xff]
        %v5625 = vld [vmem:[%s9 + $0x20] sm:$0xff]
        %v5626 = vld [vmem:[%s9 + $0x28] sm:$0xff]
        %v5627 = vld [vmem:[%s9 + $0x30] sm:$0xff]
        %v5628 = vld [vmem:[%s9 + $0x38] sm:$0xff]
        %v5629 = vld [vmem:[%s9 + $0x40] sm:$0xff]
        %v5630 = vld [vmem:[%s9 + $0x48] sm:$0xff]
        %v5631 = vld [vmem:[%s9 + $0x50] sm:$0xff]
        %v5632 = vld [vmem:[%s9 + $0x58] sm:$0xff]
        %v5633 = vld [vmem:[%s9 + $0x60] sm:$0xff]
        %v5634 = vld [vmem:[%s9 + $0x68] sm:$0xff]
        %v5635 = vld [vmem:[%s9 + $0x70] sm:$0xff]
        %v5636 = vld [vmem:[%s9 + $0x78] sm:$0xff]
        %v5637 = vld [vmem:[%s9 + $0x80] sm:$0xff]
        %v5638 = vld [vmem:[%s9 + $0x88] sm:$0xff]
        %v5639 = vld [vmem:[%s9 + $0x90] sm:$0xff]
        %v5640 = vld [vmem:[%s9 + $0x98] sm:$0xff]
        %v5641 = vld [vmem:[%s9 + $0xa0] sm:$0xff]
        %v5642 = vld [vmem:[%s9 + $0xa8] sm:$0xff]
        %v5643 = vld [vmem:[%s9 + $0xb0] sm:$0xff]
        %v5644 = vld [vmem:[%s9 + $0xb8] sm:$0xff]
        %v5645 = vld [vmem:[%s9 + $0xc0] sm:$0xff]
        %v5646 = vld [vmem:[%s9 + $0xc8] sm:$0xff]
        %v5647 = vld [vmem:[%s9 + $0xd0] sm:$0xff]
        %v5648 = vld [vmem:[%s9 + $0xd8] sm:$0xff]
        %v5649 = vld [vmem:[%s9 + $0xe0] sm:$0xff]
        %v5650 = vld [vmem:[%s9 + $0xe8] sm:$0xff]
        %v5651 = vld [vmem:[%s9 + $0xf0] sm:$0xff]
        %v5652 = vld [vmem:[%s9 + $0xf8] sm:$0xff]
        %v5653 = vld [vmem:[%s9 + $0x100] sm:$0xff]
        %v5654 = vld [vmem:[%s9 + $0x108] sm:$0xff]
        %v5655 = vld [vmem:[%s9 + $0x110] sm:$0xff]
        %v5656 = vld [vmem:[%s9 + $0x118] sm:$0xff]
        %v5657 = vld [vmem:[%s9 + $0x120] sm:$0xff]
        %v5658 = vld [vmem:[%s9 + $0x128] sm:$0xff]
        %v5659 = vld [vmem:[%s9 + $0x130] sm:$0xff]
        %v5660 = vld [vmem:[%s9 + $0x138] sm:$0xff]
        %v5661 = vld [vmem:[%s9 + $0x140] sm:$0xff]
        %v5662 = vld [vmem:[%s9 + $0x148] sm:$0xff]
        %v5663 = vld [vmem:[%s9 + $0x150] sm:$0xff]
        %v5664 = vld [vmem:[%s9 + $0x158] sm:$0xff]
        %v5665 = vld [vmem:[%s9 + $0x160] sm:$0xff]
        %v5666 = vld [vmem:[%s9 + $0x168] sm:$0xff]
        %v5667 = vld [vmem:[%s9 + $0x170] sm:$0xff]
        %v5668 = vld [vmem:[%s9 + $0x178] sm:$0xff]
        %v5669 = vld [vmem:[%s9 + $0x180] sm:$0xff]
        %v5670 = vld [vmem:[%s9 + $0x188] sm:$0xff]
        %v5671 = vld [vmem:[%s9 + $0x190] sm:$0xff]
        %v5672 = vld [vmem:[%s9 + $0x198] sm:$0xff]
        %v5673 = vld [vmem:[%s9 + $0x1a0] sm:$0xff]
        %v5674 = vld [vmem:[%s9 + $0x1a8] sm:$0xff]
        %v5675 = vld [vmem:[%s9 + $0x1b0] sm:$0xff]
        %v5676 = vld [vmem:[%s9 + $0x1b8] sm:$0xff]
        %v5677 = vld [vmem:[%s9 + $0x1c0] sm:$0xff]
        %v5678 = vld [vmem:[%s9 + $0x1c8] sm:$0xff]
        %v5679 = vld [vmem:[%s9 + $0x1d0] sm:$0xff]
        %v5680 = vld [vmem:[%s9 + $0x1d8] sm:$0xff]
        %v5681 = vld [vmem:[%s9 + $0x1e0] sm:$0xff]
        %v5682 = vld [vmem:[%s9 + $0x1e8] sm:$0xff]
        %v5683 = vld [vmem:[%s9 + $0x1f0] sm:$0xff]
        %v5684 = vld [vmem:[%s9 + $0x1f8] sm:$0xff]
        %v5685 = vld [vmem:[%s10] sm:$0x1]
        %5686 = vmatprep.subr.mxu0 0.0
        %5687 = vmatpush1.msra.mxu0 %v5621
        %5688 = vmatprep.subr.mxu0 0.0
        %5689 = vmatpush1.msra.mxu0 %v5622
        %5690 = vmatprep.subr.mxu0 0.0
        %5691 = vmatpush1.msra.mxu0 %v5623
        %5692 = vmatprep.subr.mxu0 0.0
        %5693 = vmatpush1.msra.mxu0 %v5624
        %5694 = vmatprep.subr.mxu0 0.0
        %5695 = vmatpush1.msra.mxu0 %v5625
        %5696 = vmatprep.subr.mxu0 0.0
        %5697 = vmatpush1.msra.mxu0 %v5626
        %5698 = vmatprep.subr.mxu0 0.0
        %5699 = vmatpush1.msra.mxu0 %v5627
        %5700 = vmatprep.subr.mxu0 0.0
        %5701 = vmatpush1.msra.mxu0 %v5628
        %5702 = vmatprep.subr.mxu0 0.0
        %5703 = vmatpush1.msra.mxu0 %v5629
        %5704 = vmatprep.subr.mxu0 0.0
        %5705 = vmatpush1.msra.mxu0 %v5630
        %5706 = vmatprep.subr.mxu0 0.0
        %5707 = vmatpush1.msra.mxu0 %v5631
        %5708 = vmatprep.subr.mxu0 0.0
        %5709 = vmatpush1.msra.mxu0 %v5632
        %5710 = vmatprep.subr.mxu0 0.0
        %5711 = vmatpush1.msra.mxu0 %v5633
        %5712 = vmatprep.subr.mxu0 0.0
        %5713 = vmatpush1.msra.mxu0 %v5634
        %5714 = vmatprep.subr.mxu0 0.0
        %5715 = vmatpush1.msra.mxu0 %v5635
        %5716 = vmatprep.subr.mxu0 0.0
        %5717 = vmatpush1.msra.mxu0 %v5636
        %5718 = vmatprep.subr.mxu0 0.0
        %5719 = vmatpush1.msra.mxu0 %v5637
        %5720 = vmatprep.subr.mxu0 0.0
        %5721 = vmatpush1.msra.mxu0 %v5638
        %5722 = vmatprep.subr.mxu0 0.0
        %5723 = vmatpush1.msra.mxu0 %v5639
        %5724 = vmatprep.subr.mxu0 0.0
        %5725 = vmatpush1.msra.mxu0 %v5640
        %5726 = vmatprep.subr.mxu0 0.0
        %5727 = vmatpush1.msra.mxu0 %v5641
        %5728 = vmatprep.subr.mxu0 0.0
        %5729 = vmatpush1.msra.mxu0 %v5642
        %5730 = vmatprep.subr.mxu0 0.0
        %5731 = vmatpush1.msra.mxu0 %v5643
        %5732 = vmatprep.subr.mxu0 0.0
        %5733 = vmatpush1.msra.mxu0 %v5644
        %5734 = vmatprep.subr.mxu0 0.0
        %5735 = vmatpush1.msra.mxu0 %v5645
        %5736 = vmatprep.subr.mxu0 0.0
        %5737 = vmatpush1.msra.mxu0 %v5646
        %5738 = vmatprep.subr.mxu0 0.0
        %5739 = vmatpush1.msra.mxu0 %v5647
        %5740 = vmatprep.subr.mxu0 0.0
        %5741 = vmatpush1.msra.mxu0 %v5648
        %5742 = vmatprep.subr.mxu0 0.0
        %5743 = vmatpush1.msra.mxu0 %v5649
        %5744 = vmatprep.subr.mxu0 0.0
        %5745 = vmatpush1.msra.mxu0 %v5650
        %5746 = vmatprep.subr.mxu0 0.0
        %5747 = vmatpush1.msra.mxu0 %v5651
        %5748 = vmatprep.subr.mxu0 0.0
        %5749 = vmatpush1.msra.mxu0 %v5652
        %5750 = vmatprep.mubr.f32.mxu0 %v5618
        %5751 = vmatmul.mubr.f32.gmra.mrb[0].mxu0 %v5617
        %v5752 = vpop.f32.mrb[0].mxu0
        %v5753 = vadd.f32 %v5685, %v5752
        %v5754 = vpop.f32.mrb[0].mxu0
        %5755 = vdwg.mxu0
        %5756 = vmatprep.subr.mxu0 0.0
        %5757 = vmatpush1.msra.mxu0 %v5653
        %5758 = vmatprep.subr.mxu0 0.0
        %5759 = vmatpush1.msra.mxu0 %v5654
        %5760 = vmatprep.subr.mxu0 0.0
        %5761 = vmatpush1.msra.mxu0 %v5655
        %5762 = vmatprep.subr.mxu0 0.0
        %5763 = vmatpush1.msra.mxu0 %v5656
        %5764 = vmatprep.subr.mxu0 0.0
        %5765 = vmatpush1.msra.mxu0 %v5657
        %5766 = vmatprep.subr.mxu0 0.0
        %5767 = vmatpush1.msra.mxu0 %v5658
        %5768 = vmatprep.subr.mxu0 0.0
        %5769 = vmatpush1.msra.mxu0 %v5659
        %5770 = vmatprep.subr.mxu0 0.0
        %5771 = vmatpush1.msra.mxu0 %v5660
        %5772 = vmatprep.subr.mxu0 0.0
        %5773 = vmatpush1.msra.mxu0 %v5661
        %5774 = vmatprep.subr.mxu0 0.0
        %5775 = vmatpush1.msra.mxu0 %v5662
        %5776 = vmatprep.subr.mxu0 0.0
        %5777 = vmatpush1.msra.mxu0 %v5663
        %5778 = vmatprep.subr.mxu0 0.0
        %5779 = vmatpush1.msra.mxu0 %v5664
        %5780 = vmatprep.subr.mxu0 0.0
        %5781 = vmatpush1.msra.mxu0 %v5665
        %5782 = vmatprep.subr.mxu0 0.0
        %5783 = vmatpush1.msra.mxu0 %v5666
        %5784 = vmatprep.subr.mxu0 0.0
        %5785 = vmatpush1.msra.mxu0 %v5667
        %5786 = vmatprep.subr.mxu0 0.0
        %5787 = vmatpush1.msra.mxu0 %v5668
        %5788 = vmatprep.subr.mxu0 0.0
        %5789 = vmatpush1.msra.mxu0 %v5669
        %5790 = vmatprep.subr.mxu0 0.0
        %5791 = vmatpush1.msra.mxu0 %v5670
        %5792 = vmatprep.subr.mxu0 0.0
        %5793 = vmatpush1.msra.mxu0 %v5671
        %5794 = vmatprep.subr.mxu0 0.0
        %5795 = vmatpush1.msra.mxu0 %v5672
        %5796 = vmatprep.subr.mxu0 0.0
        %5797 = vmatpush1.msra.mxu0 %v5673
        %5798 = vmatprep.subr.mxu0 0.0
        %5799 = vmatpush1.msra.mxu0 %v5674
        %5800 = vmatprep.subr.mxu0 0.0
        %5801 = vmatpush1.msra.mxu0 %v5675
        %5802 = vmatprep.subr.mxu0 0.0
        %5803 = vmatpush1.msra.mxu0 %v5676
        %5804 = vmatprep.subr.mxu0 0.0
        %5805 = vmatpush1.msra.mxu0 %v5677
        %5806 = vmatprep.subr.mxu0 0.0
        %5807 = vmatpush1.msra.mxu0 %v5678
        %5808 = vmatprep.subr.mxu0 0.0
        %5809 = vmatpush1.msra.mxu0 %v5679
        %5810 = vmatprep.subr.mxu0 0.0
        %5811 = vmatpush1.msra.mxu0 %v5680
        %5812 = vmatprep.subr.mxu0 0.0
        %5813 = vmatpush1.msra.mxu0 %v5681
        %5814 = vmatprep.subr.mxu0 0.0
        %5815 = vmatpush1.msra.mxu0 %v5682
        %5816 = vmatprep.subr.mxu0 0.0
        %5817 = vmatpush1.msra.mxu0 %v5683
        %5818 = vmatprep.subr.mxu0 0.0
        %5819 = vmatpush1.msra.mxu0 %v5684
        %5820 = vmatprep.mubr.f32.mxu0 %v5620
        %5821 = vmatmul.mubr.f32.gmra.mrb[0].mxu0 %v5619
        %v5822 = vpop.f32.mrb[0].mxu0
        %v5823 = vadd.f32 %v5753, %v5822
        %v5824 = vpop.f32.mrb[0].mxu0
        %5825 = vdwg.mxu0
        %5826 = vst [vmem:[%s378] sm:$0x1] %v5823
        %s5827 = sand.u32 %s269, 1
        %s5828 = scalar_lea.sflag [#allocation7], %s5827
        %s5829 = sand.u32 %s269, 1
        %s5830 = scalar_lea.vmem [#allocation6], %s5829
        // Predicated region
        $region65: #{convnet_forward.1} parent=63 // pred_check
          %p5831 = pneg %p279
        $region66: #{convnet_forward.1} parent=63 // pred_check_branch
          %5833 = sbr.rel (%p5831) target = $region68
        $region67: #{convnet_forward.1} parent=63 // pred_region
          %s5835 = ssub.s32 16, 16
          %5836 = vsyncadd %s5828, %s5835
          %s5837 = smul.addr %s25, 16
          %s5838 = scalar_lea.hbm %s11, %s5837
          %s5840 = sshll.u32 %s5830, 4
          %s5841 = int_to_ptr.vmem [resolvable:$true] %s5840
          %5843 = dma.vmem_to_hbm [thread:$0]  %s5841, 16, %s5838, %s5828
        $region68: #{convnet_forward.1} parent=63 // pred_fallthru
          _
      $region64: #{convnet_forward.1} parent=5 // pred_fallthru
        _
      %p5844 = scmp.le.s32.totalorder 2, %s20
      // Predicated region
      $region69: #{convnet_forward.1} parent=5 // pred_check
        %p5845 = pneg %p5844
      $region70: #{convnet_forward.1} parent=5 // pred_check_branch
        %5847 = sbr.rel (%p5845) target = $region72
      $region71: #{convnet_forward.1} parent=5 // pred_region
        %s5848 = ssub.s32 %s20, 2
        // Predicated region
        $region73: #{convnet_forward.1} parent=71 // pred_check
          %p5849 = pneg %p285
        $region74: #{convnet_forward.1} parent=71 // pred_check_branch
          %5851 = sbr.rel (%p5849) target = $region76
        $region75: #{convnet_forward.1} parent=71 // pred_region
          %s5852 = sand.u32 %s270, 1
          %s5853 = scalar_lea.sflag [#allocation7], %s5852
          %s5854 = sand.u32 %s270, 1
          %s5855 = scalar_lea.vmem [#allocation6], %s5854
          %5856 = dma.done %s5853, 16
        $region76: #{convnet_forward.1} parent=71 // pred_fallthru
          _
      $region72: #{convnet_forward.1} parent=5 // pred_fallthru
        _
    $region6: #{convnet_forward.1} parent=1 // loop_footer
      %s24 = sadd.s32 1, %s20
    $region7: #{convnet_forward.1} parent=1 // loop_footer_branch
      %19 = sbr.rel target = $region3
    $region8: #{convnet_forward.1} parent=1 // loop_exit
      _
    %5857 = vsyncpa [#allocation7], 1
    %s5858 = scalar_lea.sflag [#allocation7], 1
    %5859 = vsyncpa %s5858, 1

</llo_original>
